<compile_context>
chip_gen: v6e
topology: v6e:2x2x1
jax: 0.10.0
libtpu: 0.0.40
codegen_flags: <defaults>
</compile_context>

<pallas_src>
import jax
import jax.numpy as jnp
import numpy as np
from jax.experimental import pallas as pl
from jax.experimental.pallas import tpu as pltpu

EPS = 1e-5  # PyTorch BatchNorm default eps

# Spatial geometry implied by fc1 = Linear(64*1*7, 128):
# (8, 54) --pool11--> (4, 28) --pool--> (2, 14) --pool--> (1, 7)
H1, W1 = 8, 54
H2, W2 = 4, 28
H3, W3 = 2, 14
W4 = 7


# --------------------------------------------------------------------------
# Fused Pallas kernel
# --------------------------------------------------------------------------

def fused_net_kernel(
        cols1_ref,                    # (N*H1*W1, 9)   conv1 im2col columns
        w1_ref, s1_ref, t1_ref,       # (9,16), (1,16), (1,16)
        w2_ref, s2_ref, t2_ref,       # (3,48,32), (1,32), (1,32)
        w3_ref, s3_ref, t3_ref,       # (3,96,64), (1,64), (1,64)
        w1p_ref, sf_ref, tf_ref,      # (7,64,128), (1,128), (1,128)
        w2f_ref, b2f_ref,             # (128,2), (1,2)
        o_ref,                        # (N, 2) output logits
        r1_ref,                       # (N*H1*W1, 16)       conv1 post-act, flat rows
        e2_ref,                       # (N, H2+2, W2+2, 48) conv2 input, kx folded into lanes
        e3_ref,                       # (N, H3+2, W3+2, 96) conv3 input, kx folded into lanes
        q3_ref,                       # (N, 7, 64)          pooled conv3 output
        rb_ref):                      # (W1+2, 64)          pooling row buffer
    f32 = jnp.float32
    nb = q3_ref.shape[0]

    # Zero-init scratch whose never-written entries supply the conv zero padding and
    # the pool11 width padding (valid because pooled inputs are post-ReLU, >= 0).
    e2_ref[...] = jnp.zeros_like(e2_ref)
    e3_ref[...] = jnp.zeros_like(e3_ref)
    rb_ref[...] = jnp.zeros_like(rb_ref)

    # ----------------- conv1 + bn1 + relu: one im2col matmul -----------------
    a1 = jnp.dot(cols1_ref[...], w1_ref[...], preferred_element_type=f32)
    r1_ref[...] = jnp.maximum(a1 * s1_ref[...] + t1_ref[...], 0.0)

    # --------- pool11 (2x2 / 2, width padded by 1) + scatter into e2 ---------
    # Layout invariant: e2[n, hp, u, kx*16 + c] == xpad2[n, hp, u - 1 + kx, c],
    # where xpad2 is the zero-padded conv2 input; conv2 reads u in [1, 1+W2).
    for n in range(nb):
        for hp in range(H2):
            row_a = r1_ref[pl.ds((n * H1 + 2 * hp) * W1, W1), :]
            row_b = r1_ref[pl.ds((n * H1 + 2 * hp + 1) * W1, W1), :]
            v = jnp.maximum(row_a, row_b)                  # (54, 16) vertical max
            rb_ref[1:1 + W1, 0:16] = v                     # rows 0 / 55 stay 0 (W pad)
            p = jnp.maximum(rb_ref[pl.ds(0, W2, stride=2), 0:16],
                            rb_ref[pl.ds(1, W2, stride=2), 0:16])   # (28, 16)
            e2_ref[n, 1 + hp, 2:2 + W2, 0:16] = p          # kx = 0 tap
            e2_ref[n, 1 + hp, 1:1 + W2, 16:32] = p         # kx = 1 tap
            e2_ref[n, 1 + hp, 0:W2, 32:48] = p             # kx = 2 tap

    # Hoisted weight taps / folded-BN broadcasts (JAX does not CSE broadcasts).
    w2k = [w2_ref[k] for k in range(3)]
    s2b = jnp.broadcast_to(s2_ref[...], (W2, 32))
    t2b = jnp.broadcast_to(t2_ref[...], (W2, 32))
    w3k = [w3_ref[k] for k in range(3)]
    s3b = jnp.broadcast_to(s3_ref[...], (W3, 64))
    t3b = jnp.broadcast_to(t3_ref[...], (W3, 64))

    # -------- conv2 + bn2 + relu (3 tap matmuls per row) + 2x2 pool -> e3 -----
    for n in range(nb):
        for hp in range(H3):
            rows = []
            for hh in (2 * hp, 2 * hp + 1):
                acc = jnp.dot(e2_ref[n, hh, 1:1 + W2, :], w2k[0],
                              preferred_element_type=f32)
                acc += jnp.dot(e2_ref[n, hh + 1, 1:1 + W2, :], w2k[1],
                               preferred_element_type=f32)
                acc += jnp.dot(e2_ref[n, hh + 2, 1:1 + W2, :], w2k[2],
                               preferred_element_type=f32)
                rows.append(jnp.maximum(acc * s2b + t2b, 0.0))
            v = jnp.maximum(rows[0], rows[1])              # (28, 32)
            rb_ref[0:W2, 0:32] = v
            p = jnp.maximum(rb_ref[pl.ds(0, W3, stride=2), 0:32],
                            rb_ref[pl.ds(1, W3, stride=2), 0:32])   # (14, 32)
            e3_ref[n, 1 + hp, 2:2 + W3, 0:32] = p
            e3_ref[n, 1 + hp, 1:1 + W3, 32:64] = p
            e3_ref[n, 1 + hp, 0:W3, 64:96] = p

    # -------- conv3 + bn3 + relu + 2x2 pool -> q3 (N, 7, 64) ------------------
    for n in range(nb):
        rows = []
        for hh in (0, 1):
            acc = jnp.dot(e3_ref[n, hh, 1:1 + W3, :], w3k[0],
                          preferred_element_type=f32)
            acc += jnp.dot(e3_ref[n, hh + 1, 1:1 + W3, :], w3k[1],
                           preferred_element_type=f32)
            acc += jnp.dot(e3_ref[n, hh + 2, 1:1 + W3, :], w3k[2],
                           preferred_element_type=f32)
            rows.append(jnp.maximum(acc * s3b + t3b, 0.0))
        v = jnp.maximum(rows[0], rows[1])                  # (14, 64)
        rb_ref[0:W3, 0:64] = v
        q3_ref[n, :, :] = jnp.maximum(rb_ref[pl.ds(0, W4, stride=2), 0:64],
                                      rb_ref[pl.ds(1, W4, stride=2), 0:64])

    # -------- head: fc1 (7 accumulated (N,64)@(64,128)) + bn + relu + fc2 -----
    h = jnp.dot(q3_ref[:, 0, :], w1p_ref[0], preferred_element_type=f32)
    for w in range(1, W4):
        h += jnp.dot(q3_ref[:, w, :], w1p_ref[w], preferred_element_type=f32)
    h = jnp.maximum(h * sf_ref[...] + tf_ref[...], 0.0)
    # TODO(synk): Dropout(p=0.5) is eval-mode identity here (no train-mode RNG mask).
    o_ref[...] = jnp.dot(h, w2f_ref[...], preferred_element_type=f32) + b2f_ref[...]


# --------------------------------------------------------------------------
# Wrapper (parameter folding / layout glue; single pallas_call)
# --------------------------------------------------------------------------

def fold_bn(bn, pre_bias):
    scale = bn["gamma"] / jnp.sqrt(bn["var"] + EPS)
    shift = bn["beta"] + scale * (pre_bias - bn["mean"])
    return scale[None, :], shift[None, :]


@jax.jit
def net_forward(x_nchw, p):
    n = x_nchw.shape[0]
    assert x_nchw.shape[1:] == (1, H1, W1), x_nchw.shape

    # conv1 im2col (tiny, 1-channel input) built wrapper-side so the kernel's first
    # layer is a single (N*H1*W1, 9) @ (9, 16) matmul.  Row order = (n*H1 + h)*W1 + w.
    xs = x_nchw[:, 0, :, :]                                    # (N, 8, 54)
    xp = jnp.pad(xs, ((0, 0), (1, 1), (1, 1)))                 # (N, 10, 56)
    taps = [xp[:, ky:ky + H1, kx:kx + W1]
            for ky in range(3) for kx in range(3)]             # 9 x (N, 8, 54)
    cols1 = jnp.stack(taps, axis=-1).reshape(n * H1 * W1, 9)

    s1, t1 = fold_bn(p["bn1"], p["conv1_b"])
    s2, t2 = fold_bn(p["bn2"], p["conv2_b"])
    s3, t3 = fold_bn(p["bn3"], p["conv3_b"])
    sf, tf = fold_bn(p["bn_fc"], p["fc1_b"])

    w1 = p["conv1_w"].reshape(9, 16)            # [ky*3+kx, cout]
    w2 = p["conv2_w"].reshape(3, 3 * 16, 32)    # [ky, kx*16+cin, cout]
    w3 = p["conv3_w"].reshape(3, 3 * 32, 64)    # [ky, kx*32+cin, cout]
    # fc1 weight reordered to [w, c, j] to match the (N, 7, 64) pooled layout
    # (torch flattens the (C=64, H=1, W=7) block as index c*7 + w).
    w1p = p["fc1_w"].reshape(64, 7, 128).transpose(1, 0, 2)
    b2 = p["fc2_b"][None, :]

    vm = pl.BlockSpec(memory_space=pltpu.MemorySpace.VMEM)
    return pl.pallas_call(
        fused_net_kernel,
        out_shape=jax.ShapeDtypeStruct((n, 2), jnp.float32),
        in_specs=[vm] * 15,
        out_specs=vm,
        scratch_shapes=[
            pltpu.VMEM((n * H1 * W1, 16), jnp.float32),            # r1
            pltpu.VMEM((n, H2 + 2, W2 + 2, 3 * 16), jnp.float32),  # e2
            pltpu.VMEM((n, H3 + 2, W3 + 2, 3 * 32), jnp.float32),  # e3
            pltpu.VMEM((n, W4, 64), jnp.float32),                  # q3
            pltpu.VMEM((W1 + 2, 64), jnp.float32),                 # row buffer
        ],
    )(cols1, w1, s1, t1, w2, s2, t2, w3, s3, t3, w1p, sf, tf, p["fc2_w"], b2)


# --------------------------------------------------------------------------
# Deterministic parameters + pure-JAX reference
# --------------------------------------------------------------------------

def init_params(key):
    ks = jax.random.split(key, 16)

    def bn(k, c):
        k1, k2, k3, k4 = jax.random.split(k, 4)
        return dict(gamma=1.0 + 0.1 * jax.random.normal(k1, (c,), jnp.float32),
                    beta=0.1 * jax.random.normal(k2, (c,), jnp.float32),
                    mean=0.1 * jax.random.normal(k3, (c,), jnp.float32),
                    var=1.0 + 0.5 * jax.random.uniform(k4, (c,), jnp.float32))

    p = {}
    p["conv1_w"] = 0.3 * jax.random.normal(ks[0], (3, 3, 1, 16), jnp.float32)   # HWIO
    p["conv1_b"] = 0.1 * jax.random.normal(ks[1], (16,), jnp.float32)
    p["conv2_w"] = 0.1 * jax.random.normal(ks[2], (3, 3, 16, 32), jnp.float32)
    p["conv2_b"] = 0.1 * jax.random.normal(ks[3], (32,), jnp.float32)
    p["conv3_w"] = 0.1 * jax.random.normal(ks[4], (3, 3, 32, 64), jnp.float32)
    p["conv3_b"] = 0.1 * jax.random.normal(ks[5], (64,), jnp.float32)
    p["bn1"] = bn(ks[6], 16)
    p["bn2"] = bn(ks[7], 32)
    p["bn3"] = bn(ks[8], 64)
    p["fc1_w"] = 0.05 * jax.random.normal(ks[9], (448, 128), jnp.float32)
    p["fc1_b"] = 0.1 * jax.random.normal(ks[10], (128,), jnp.float32)
    p["bn_fc"] = bn(ks[11], 128)
    p["fc2_w"] = 0.1 * jax.random.normal(ks[12], (128, 2), jnp.float32)
    p["fc2_b"] = 0.1 * jax.random.normal(ks[13], (2,), jnp.float32)
    return p


def reference_forward(x_nchw, p):
    prec = jax.lax.Precision.HIGHEST

    def conv(x, w, b):
        y = jax.lax.conv_general_dilated(
            x, w, window_strides=(1, 1), padding=((1, 1), (1, 1)),
            dimension_numbers=("NHWC", "HWIO", "NHWC"), precision=prec)
        return y + b

    def bn(x, d):
        return (x - d["mean"]) / jnp.sqrt(d["var"] + EPS) * d["gamma"] + d["beta"]

    def pool(x, pad_w=0):
        return jax.lax.reduce_window(
            x, -jnp.inf, jax.lax.max, (1, 2, 2, 1), (1, 2, 2, 1),
            ((0, 0), (0, 0), (pad_w, pad_w), (0, 0)))

    x = jnp.transpose(x_nchw, (0, 2, 3, 1))
    x = pool(jax.nn.relu(bn(conv(x, p["conv1_w"], p["conv1_b"]), p["bn1"])), 1)
    x = pool(jax.nn.relu(bn(conv(x, p["conv2_w"], p["conv2_b"]), p["bn2"])))
    x = pool(jax.nn.relu(bn(conv(x, p["conv3_w"], p["conv3_b"]), p["bn3"])))
    flat = jnp.transpose(x, (0, 3, 1, 2)).reshape(x.shape[0], -1)
    h = jnp.dot(flat, p["fc1_w"], precision=prec) + p["fc1_b"]
    h = jax.nn.relu((h - p["bn_fc"]["mean"]) / jnp.sqrt(p["bn_fc"]["var"] + EPS)
                    * p["bn_fc"]["gamma"] + p["bn_fc"]["beta"])
    return jnp.dot(h, p["fc2_w"], precision=prec) + p["fc2_b"]


if __name__ == "__main__":
    # Input consistent with fc1 = Linear(64*1*7, 128):
    # NCHW (2, 1, 8, 54): 8x54 -> pool11 -> 4x28 -> pool -> 2x14 -> pool -> 1x7.
    x = jax.random.normal(jax.random.PRNGKey(0), (2, 1, H1, W1), jnp.float32)
    params = init_params(jax.random.PRNGKey(1))

    out = jax.block_until_ready(net_forward(x, params))
    ref = jax.block_until_ready(reference_forward(x, params))

    assert out.shape == (2, 2), out.shape
    np.testing.assert_allclose(np.asarray(out), np.asarray(ref), rtol=2e-2, atol=2e-2)
    print("KERNEL_OK")
</pallas_src>

<mosaic_0001>
module attributes {stable_mosaic.version = 11 : i64} {
  func.func @fused_net_kernel(%arg0: memref<864x9xf32, #tpu.memory_space<vmem>>, %arg1: memref<9x16xf32, #tpu.memory_space<vmem>>, %arg2: memref<1x16xf32, #tpu.memory_space<vmem>>, %arg3: memref<1x16xf32, #tpu.memory_space<vmem>>, %arg4: memref<3x48x32xf32, #tpu.memory_space<vmem>>, %arg5: memref<1x32xf32, #tpu.memory_space<vmem>>, %arg6: memref<1x32xf32, #tpu.memory_space<vmem>>, %arg7: memref<3x96x64xf32, #tpu.memory_space<vmem>>, %arg8: memref<1x64xf32, #tpu.memory_space<vmem>>, %arg9: memref<1x64xf32, #tpu.memory_space<vmem>>, %arg10: memref<7x64x128xf32, #tpu.memory_space<vmem>>, %arg11: memref<1x128xf32, #tpu.memory_space<vmem>>, %arg12: memref<1x128xf32, #tpu.memory_space<vmem>>, %arg13: memref<128x2xf32, #tpu.memory_space<vmem>>, %arg14: memref<1x2xf32, #tpu.memory_space<vmem>>, %arg15: memref<2x2xf32, #tpu.memory_space<vmem>>, %arg16: memref<864x16xf32, #tpu.memory_space<vmem>>, %arg17: memref<2x6x30x48xf32, #tpu.memory_space<vmem>>, %arg18: memref<2x4x16x96xf32, #tpu.memory_space<vmem>>, %arg19: memref<2x7x64xf32, #tpu.memory_space<vmem>>, %arg20: memref<56x64xf32, #tpu.memory_space<vmem>>) attributes {dimension_semantics = [], scalar_prefetch = 0 : i64, scratch_operands = 5 : i64, tpu.core_type = #tpu.core_type<tc>} {
    %cst = arith.constant 0.000000e+00 : f32
    %0 = vector.broadcast %cst : f32 to vector<2x6x30x48xf32>
    %c0 = arith.constant 0 : index
    %c0_0 = arith.constant 0 : index
    %c0_1 = arith.constant 0 : index
    %c0_2 = arith.constant 0 : index
    %1 = vector.load %arg17[%c0, %c0_0, %c0_1, %c0_2] : memref<2x6x30x48xf32, #tpu.memory_space<vmem>>, vector<2x6x30x48xf32>
    tpu.vector_store %arg17[%c0, %c0_0, %c0_1, %c0_2], %0 {strides = array<i32>} : memref<2x6x30x48xf32, #tpu.memory_space<vmem>>, vector<2x6x30x48xf32>,
    %cst_3 = arith.constant 0.000000e+00 : f32
    %2 = vector.broadcast %cst_3 : f32 to vector<2x4x16x96xf32>
    %c0_4 = arith.constant 0 : index
    %c0_5 = arith.constant 0 : index
    %c0_6 = arith.constant 0 : index
    %c0_7 = arith.constant 0 : index
    %3 = vector.load %arg18[%c0_4, %c0_5, %c0_6, %c0_7] : memref<2x4x16x96xf32, #tpu.memory_space<vmem>>, vector<2x4x16x96xf32>
    tpu.vector_store %arg18[%c0_4, %c0_5, %c0_6, %c0_7], %2 {strides = array<i32>} : memref<2x4x16x96xf32, #tpu.memory_space<vmem>>, vector<2x4x16x96xf32>,
    %cst_8 = arith.constant 0.000000e+00 : f32
    %4 = vector.broadcast %cst_8 : f32 to vector<56x64xf32>
    %c0_9 = arith.constant 0 : index
    %c0_10 = arith.constant 0 : index
    %5 = vector.load %arg20[%c0_9, %c0_10] : memref<56x64xf32, #tpu.memory_space<vmem>>, vector<56x64xf32>
    tpu.vector_store %arg20[%c0_9, %c0_10], %4 {strides = array<i32>} : memref<56x64xf32, #tpu.memory_space<vmem>>, vector<56x64xf32>,
    %c0_11 = arith.constant 0 : index
    %c0_12 = arith.constant 0 : index
    %6 = vector.load %arg0[%c0_11, %c0_12] : memref<864x9xf32, #tpu.memory_space<vmem>>, vector<864x9xf32>
    %c0_13 = arith.constant 0 : index
    %c0_14 = arith.constant 0 : index
    %7 = vector.load %arg1[%c0_13, %c0_14] : memref<9x16xf32, #tpu.memory_space<vmem>>, vector<9x16xf32>
    %cst_15 = arith.constant dense<0.000000e+00> : vector<864x16xf32>
    %8 = tpu.matmul %6, %7, %cst_15 {dimension_numbers = #tpu.dot_dimension_numbers<[1], [0], [0], [1], [0, 0, 1, 1], [], []>} : vector<864x9xf32>, vector<9x16xf32>, vector<864x16xf32> -> vector<864x16xf32>
    %c0_16 = arith.constant 0 : index
    %c0_17 = arith.constant 0 : index
    %9 = vector.load %arg2[%c0_16, %c0_17] : memref<1x16xf32, #tpu.memory_space<vmem>>, vector<1x16xf32>
    %10 = vector.broadcast %9 : vector<1x16xf32> to vector<864x16xf32>
    %11 = arith.mulf %8, %10 : vector<864x16xf32>
    %c0_18 = arith.constant 0 : index
    %c0_19 = arith.constant 0 : index
    %12 = vector.load %arg3[%c0_18, %c0_19] : memref<1x16xf32, #tpu.memory_space<vmem>>, vector<1x16xf32>
    %13 = vector.broadcast %12 : vector<1x16xf32> to vector<864x16xf32>
    %14 = arith.addf %11, %13 : vector<864x16xf32>
    %cst_20 = arith.constant 0.000000e+00 : f32
    %15 = vector.broadcast %cst_20 : f32 to vector<864x16xf32>
    %16 = arith.maximumf %14, %15 : vector<864x16xf32>
    %c0_21 = arith.constant 0 : index
    %c0_22 = arith.constant 0 : index
    %17 = vector.load %arg16[%c0_21, %c0_22] : memref<864x16xf32, #tpu.memory_space<vmem>>, vector<864x16xf32>
    tpu.vector_store %arg16[%c0_21, %c0_22], %16 {strides = array<i32>} : memref<864x16xf32, #tpu.memory_space<vmem>>, vector<864x16xf32>,
    %c0_23 = arith.constant 0 : index
    %c0_24 = arith.constant 0 : index
    %18 = vector.load %arg16[%c0_23, %c0_24] : memref<864x16xf32, #tpu.memory_space<vmem>>, vector<54x16xf32>
    %c54 = arith.constant 54 : index
    %c0_25 = arith.constant 0 : index
    %19 = vector.load %arg16[%c54, %c0_25] : memref<864x16xf32, #tpu.memory_space<vmem>>, vector<54x16xf32>
    %20 = arith.maximumf %18, %19 : vector<54x16xf32>
    %c1 = arith.constant 1 : index
    %c0_26 = arith.constant 0 : index
    %21 = vector.load %arg20[%c1, %c0_26] : memref<56x64xf32, #tpu.memory_space<vmem>>, vector<54x16xf32>
    tpu.vector_store %arg20[%c1, %c0_26], %20 {strides = array<i32>} : memref<56x64xf32, #tpu.memory_space<vmem>>, vector<54x16xf32>,
    %c0_27 = arith.constant 0 : index
    %c0_28 = arith.constant 0 : index
    %22 = tpu.strided_load %arg20[%c0_27, %c0_28] {strides = array<i32: 2, 1>} : memref<56x64xf32, #tpu.memory_space<vmem>>, vector<28x16xf32>
    %c1_29 = arith.constant 1 : index
    %c0_30 = arith.constant 0 : index
    %23 = tpu.strided_load %arg20[%c1_29, %c0_30] {strides = array<i32: 2, 1>} : memref<56x64xf32, #tpu.memory_space<vmem>>, vector<28x16xf32>
    %24 = arith.maximumf %22, %23 : vector<28x16xf32>
    %c0_31 = arith.constant 0 : index
    %c1_32 = arith.constant 1 : index
    %c2 = arith.constant 2 : index
    %c0_33 = arith.constant 0 : index
    %25 = vector.load %arg17[%c0_31, %c1_32, %c2, %c0_33] : memref<2x6x30x48xf32, #tpu.memory_space<vmem>>, vector<1x1x28x16xf32>
    %26 = vector.shape_cast %25 : vector<1x1x28x16xf32> to vector<28x16xf32>
    %27 = vector.shape_cast %24 : vector<28x16xf32> to vector<1x1x28x16xf32>
    tpu.vector_store %arg17[%c0_31, %c1_32, %c2, %c0_33], %27 {strides = array<i32>} : memref<2x6x30x48xf32, #tpu.memory_space<vmem>>, vector<1x1x28x16xf32>,
    %c0_34 = arith.constant 0 : index
    %c1_35 = arith.constant 1 : index
    %c1_36 = arith.constant 1 : index
    %c16 = arith.constant 16 : index
    %28 = vector.load %arg17[%c0_34, %c1_35, %c1_36, %c16] : memref<2x6x30x48xf32, #tpu.memory_space<vmem>>, vector<1x1x28x16xf32>
    %29 = vector.shape_cast %28 : vector<1x1x28x16xf32> to vector<28x16xf32>
    %30 = vector.shape_cast %24 : vector<28x16xf32> to vector<1x1x28x16xf32>
    tpu.vector_store %arg17[%c0_34, %c1_35, %c1_36, %c16], %30 {strides = array<i32>} : memref<2x6x30x48xf32, #tpu.memory_space<vmem>>, vector<1x1x28x16xf32>,
    %c0_37 = arith.constant 0 : index
    %c1_38 = arith.constant 1 : index
    %c0_39 = arith.constant 0 : index
    %c32 = arith.constant 32 : index
    %31 = vector.load %arg17[%c0_37, %c1_38, %c0_39, %c32] : memref<2x6x30x48xf32, #tpu.memory_space<vmem>>, vector<1x1x28x16xf32>
    %32 = vector.shape_cast %31 : vector<1x1x28x16xf32> to vector<28x16xf32>
    %33 = vector.shape_cast %24 : vector<28x16xf32> to vector<1x1x28x16xf32>
    tpu.vector_store %arg17[%c0_37, %c1_38, %c0_39, %c32], %33 {strides = array<i32>} : memref<2x6x30x48xf32, #tpu.memory_space<vmem>>, vector<1x1x28x16xf32>,
    %c108 = arith.constant 108 : index
    %c0_40 = arith.constant 0 : index
    %34 = vector.load %arg16[%c108, %c0_40] : memref<864x16xf32, #tpu.memory_space<vmem>>, vector<54x16xf32>
    %c162 = arith.constant 162 : index
    %c0_41 = arith.constant 0 : index
    %35 = vector.load %arg16[%c162, %c0_41] : memref<864x16xf32, #tpu.memory_space<vmem>>, vector<54x16xf32>
    %36 = arith.maximumf %34, %35 : vector<54x16xf32>
    %c1_42 = arith.constant 1 : index
    %c0_43 = arith.constant 0 : index
    %37 = vector.load %arg20[%c1_42, %c0_43] : memref<56x64xf32, #tpu.memory_space<vmem>>, vector<54x16xf32>
    tpu.vector_store %arg20[%c1_42, %c0_43], %36 {strides = array<i32>} : memref<56x64xf32, #tpu.memory_space<vmem>>, vector<54x16xf32>,
    %c0_44 = arith.constant 0 : index
    %c0_45 = arith.constant 0 : index
    %38 = tpu.strided_load %arg20[%c0_44, %c0_45] {strides = array<i32: 2, 1>} : memref<56x64xf32, #tpu.memory_space<vmem>>, vector<28x16xf32>
    %c1_46 = arith.constant 1 : index
    %c0_47 = arith.constant 0 : index
    %39 = tpu.strided_load %arg20[%c1_46, %c0_47] {strides = array<i32: 2, 1>} : memref<56x64xf32, #tpu.memory_space<vmem>>, vector<28x16xf32>
    %40 = arith.maximumf %38, %39 : vector<28x16xf32>
    %c0_48 = arith.constant 0 : index
    %c2_49 = arith.constant 2 : index
    %c2_50 = arith.constant 2 : index
    %c0_51 = arith.constant 0 : index
    %41 = vector.load %arg17[%c0_48, %c2_49, %c2_50, %c0_51] : memref<2x6x30x48xf32, #tpu.memory_space<vmem>>, vector<1x1x28x16xf32>
    %42 = vector.shape_cast %41 : vector<1x1x28x16xf32> to vector<28x16xf32>
    %43 = vector.shape_cast %40 : vector<28x16xf32> to vector<1x1x28x16xf32>
    tpu.vector_store %arg17[%c0_48, %c2_49, %c2_50, %c0_51], %43 {strides = array<i32>} : memref<2x6x30x48xf32, #tpu.memory_space<vmem>>, vector<1x1x28x16xf32>,
    %c0_52 = arith.constant 0 : index
    %c2_53 = arith.constant 2 : index
    %c1_54 = arith.constant 1 : index
    %c16_55 = arith.constant 16 : index
    %44 = vector.load %arg17[%c0_52, %c2_53, %c1_54, %c16_55] : memref<2x6x30x48xf32, #tpu.memory_space<vmem>>, vector<1x1x28x16xf32>
    %45 = vector.shape_cast %44 : vector<1x1x28x16xf32> to vector<28x16xf32>
    %46 = vector.shape_cast %40 : vector<28x16xf32> to vector<1x1x28x16xf32>
    tpu.vector_store %arg17[%c0_52, %c2_53, %c1_54, %c16_55], %46 {strides = array<i32>} : memref<2x6x30x48xf32, #tpu.memory_space<vmem>>, vector<1x1x28x16xf32>,
    %c0_56 = arith.constant 0 : index
    %c2_57 = arith.constant 2 : index
    %c0_58 = arith.constant 0 : index
    %c32_59 = arith.constant 32 : index
    %47 = vector.load %arg17[%c0_56, %c2_57, %c0_58, %c32_59] : memref<2x6x30x48xf32, #tpu.memory_space<vmem>>, vector<1x1x28x16xf32>
    %48 = vector.shape_cast %47 : vector<1x1x28x16xf32> to vector<28x16xf32>
    %49 = vector.shape_cast %40 : vector<28x16xf32> to vector<1x1x28x16xf32>
    tpu.vector_store %arg17[%c0_56, %c2_57, %c0_58, %c32_59], %49 {strides = array<i32>} : memref<2x6x30x48xf32, #tpu.memory_space<vmem>>, vector<1x1x28x16xf32>,
    %c216 = arith.constant 216 : index
    %c0_60 = arith.constant 0 : index
    %50 = vector.load %arg16[%c216, %c0_60] : memref<864x16xf32, #tpu.memory_space<vmem>>, vector<54x16xf32>
    %c270 = arith.constant 270 : index
    %c0_61 = arith.constant 0 : index
    %51 = vector.load %arg16[%c270, %c0_61] : memref<864x16xf32, #tpu.memory_space<vmem>>, vector<54x16xf32>
    %52 = arith.maximumf %50, %51 : vector<54x16xf32>
    %c1_62 = arith.constant 1 : index
    %c0_63 = arith.constant 0 : index
    %53 = vector.load %arg20[%c1_62, %c0_63] : memref<56x64xf32, #tpu.memory_space<vmem>>, vector<54x16xf32>
    tpu.vector_store %arg20[%c1_62, %c0_63], %52 {strides = array<i32>} : memref<56x64xf32, #tpu.memory_space<vmem>>, vector<54x16xf32>,
    %c0_64 = arith.constant 0 : index
    %c0_65 = arith.constant 0 : index
    %54 = tpu.strided_load %arg20[%c0_64, %c0_65] {strides = array<i32: 2, 1>} : memref<56x64xf32, #tpu.memory_space<vmem>>, vector<28x16xf32>
    %c1_66 = arith.constant 1 : index
    %c0_67 = arith.constant 0 : index
    %55 = tpu.strided_load %arg20[%c1_66, %c0_67] {strides = array<i32: 2, 1>} : memref<56x64xf32, #tpu.memory_space<vmem>>, vector<28x16xf32>
    %56 = arith.maximumf %54, %55 : vector<28x16xf32>
    %c0_68 = arith.constant 0 : index
    %c3 = arith.constant 3 : index
    %c2_69 = arith.constant 2 : index
    %c0_70 = arith.constant 0 : index
    %57 = vector.load %arg17[%c0_68, %c3, %c2_69, %c0_70] : memref<2x6x30x48xf32, #tpu.memory_space<vmem>>, vector<1x1x28x16xf32>
    %58 = vector.shape_cast %57 : vector<1x1x28x16xf32> to vector<28x16xf32>
    %59 = vector.shape_cast %56 : vector<28x16xf32> to vector<1x1x28x16xf32>
    tpu.vector_store %arg17[%c0_68, %c3, %c2_69, %c0_70], %59 {strides = array<i32>} : memref<2x6x30x48xf32, #tpu.memory_space<vmem>>, vector<1x1x28x16xf32>,
    %c0_71 = arith.constant 0 : index
    %c3_72 = arith.constant 3 : index
    %c1_73 = arith.constant 1 : index
    %c16_74 = arith.constant 16 : index
    %60 = vector.load %arg17[%c0_71, %c3_72, %c1_73, %c16_74] : memref<2x6x30x48xf32, #tpu.memory_space<vmem>>, vector<1x1x28x16xf32>
    %61 = vector.shape_cast %60 : vector<1x1x28x16xf32> to vector<28x16xf32>
    %62 = vector.shape_cast %56 : vector<28x16xf32> to vector<1x1x28x16xf32>
    tpu.vector_store %arg17[%c0_71, %c3_72, %c1_73, %c16_74], %62 {strides = array<i32>} : memref<2x6x30x48xf32, #tpu.memory_space<vmem>>, vector<1x1x28x16xf32>,
    %c0_75 = arith.constant 0 : index
    %c3_76 = arith.constant 3 : index
    %c0_77 = arith.constant 0 : index
    %c32_78 = arith.constant 32 : index
    %63 = vector.load %arg17[%c0_75, %c3_76, %c0_77, %c32_78] : memref<2x6x30x48xf32, #tpu.memory_space<vmem>>, vector<1x1x28x16xf32>
    %64 = vector.shape_cast %63 : vector<1x1x28x16xf32> to vector<28x16xf32>
    %65 = vector.shape_cast %56 : vector<28x16xf32> to vector<1x1x28x16xf32>
    tpu.vector_store %arg17[%c0_75, %c3_76, %c0_77, %c32_78], %65 {strides = array<i32>} : memref<2x6x30x48xf32, #tpu.memory_space<vmem>>, vector<1x1x28x16xf32>,
    %c324 = arith.constant 324 : index
    %c0_79 = arith.constant 0 : index
    %66 = vector.load %arg16[%c324, %c0_79] : memref<864x16xf32, #tpu.memory_space<vmem>>, vector<54x16xf32>
    %c378 = arith.constant 378 : index
    %c0_80 = arith.constant 0 : index
    %67 = vector.load %arg16[%c378, %c0_80] : memref<864x16xf32, #tpu.memory_space<vmem>>, vector<54x16xf32>
    %68 = arith.maximumf %66, %67 : vector<54x16xf32>
    %c1_81 = arith.constant 1 : index
    %c0_82 = arith.constant 0 : index
    %69 = vector.load %arg20[%c1_81, %c0_82] : memref<56x64xf32, #tpu.memory_space<vmem>>, vector<54x16xf32>
    tpu.vector_store %arg20[%c1_81, %c0_82], %68 {strides = array<i32>} : memref<56x64xf32, #tpu.memory_space<vmem>>, vector<54x16xf32>,
    %c0_83 = arith.constant 0 : index
    %c0_84 = arith.constant 0 : index
    %70 = tpu.strided_load %arg20[%c0_83, %c0_84] {strides = array<i32: 2, 1>} : memref<56x64xf32, #tpu.memory_space<vmem>>, vector<28x16xf32>
    %c1_85 = arith.constant 1 : index
    %c0_86 = arith.constant 0 : index
    %71 = tpu.strided_load %arg20[%c1_85, %c0_86] {strides = array<i32: 2, 1>} : memref<56x64xf32, #tpu.memory_space<vmem>>, vector<28x16xf32>
    %72 = arith.maximumf %70, %71 : vector<28x16xf32>
    %c0_87 = arith.constant 0 : index
    %c4 = arith.constant 4 : index
    %c2_88 = arith.constant 2 : index
    %c0_89 = arith.constant 0 : index
    %73 = vector.load %arg17[%c0_87, %c4, %c2_88, %c0_89] : memref<2x6x30x48xf32, #tpu.memory_space<vmem>>, vector<1x1x28x16xf32>
    %74 = vector.shape_cast %73 : vector<1x1x28x16xf32> to vector<28x16xf32>
    %75 = vector.shape_cast %72 : vector<28x16xf32> to vector<1x1x28x16xf32>
    tpu.vector_store %arg17[%c0_87, %c4, %c2_88, %c0_89], %75 {strides = array<i32>} : memref<2x6x30x48xf32, #tpu.memory_space<vmem>>, vector<1x1x28x16xf32>,
    %c0_90 = arith.constant 0 : index
    %c4_91 = arith.constant 4 : index
    %c1_92 = arith.constant 1 : index
    %c16_93 = arith.constant 16 : index
    %76 = vector.load %arg17[%c0_90, %c4_91, %c1_92, %c16_93] : memref<2x6x30x48xf32, #tpu.memory_space<vmem>>, vector<1x1x28x16xf32>
    %77 = vector.shape_cast %76 : vector<1x1x28x16xf32> to vector<28x16xf32>
    %78 = vector.shape_cast %72 : vector<28x16xf32> to vector<1x1x28x16xf32>
    tpu.vector_store %arg17[%c0_90, %c4_91, %c1_92, %c16_93], %78 {strides = array<i32>} : memref<2x6x30x48xf32, #tpu.memory_space<vmem>>, vector<1x1x28x16xf32>,
    %c0_94 = arith.constant 0 : index
    %c4_95 = arith.constant 4 : index
    %c0_96 = arith.constant 0 : index
    %c32_97 = arith.constant 32 : index
    %79 = vector.load %arg17[%c0_94, %c4_95, %c0_96, %c32_97] : memref<2x6x30x48xf32, #tpu.memory_space<vmem>>, vector<1x1x28x16xf32>
    %80 = vector.shape_cast %79 : vector<1x1x28x16xf32> to vector<28x16xf32>
    %81 = vector.shape_cast %72 : vector<28x16xf32> to vector<1x1x28x16xf32>
    tpu.vector_store %arg17[%c0_94, %c4_95, %c0_96, %c32_97], %81 {strides = array<i32>} : memref<2x6x30x48xf32, #tpu.memory_space<vmem>>, vector<1x1x28x16xf32>,
    %c432 = arith.constant 432 : index
    %c0_98 = arith.constant 0 : index
    %82 = vector.load %arg16[%c432, %c0_98] : memref<864x16xf32, #tpu.memory_space<vmem>>, vector<54x16xf32>
    %c486 = arith.constant 486 : index
    %c0_99 = arith.constant 0 : index
    %83 = vector.load %arg16[%c486, %c0_99] : memref<864x16xf32, #tpu.memory_space<vmem>>, vector<54x16xf32>
    %84 = arith.maximumf %82, %83 : vector<54x16xf32>
    %c1_100 = arith.constant 1 : index
    %c0_101 = arith.constant 0 : index
    %85 = vector.load %arg20[%c1_100, %c0_101] : memref<56x64xf32, #tpu.memory_space<vmem>>, vector<54x16xf32>
    tpu.vector_store %arg20[%c1_100, %c0_101], %84 {strides = array<i32>} : memref<56x64xf32, #tpu.memory_space<vmem>>, vector<54x16xf32>,
    %c0_102 = arith.constant 0 : index
    %c0_103 = arith.constant 0 : index
    %86 = tpu.strided_load %arg20[%c0_102, %c0_103] {strides = array<i32: 2, 1>} : memref<56x64xf32, #tpu.memory_space<vmem>>, vector<28x16xf32>
    %c1_104 = arith.constant 1 : index
    %c0_105 = arith.constant 0 : index
    %87 = tpu.strided_load %arg20[%c1_104, %c0_105] {strides = array<i32: 2, 1>} : memref<56x64xf32, #tpu.memory_space<vmem>>, vector<28x16xf32>
    %88 = arith.maximumf %86, %87 : vector<28x16xf32>
    %c1_106 = arith.constant 1 : index
    %c1_107 = arith.constant 1 : index
    %c2_108 = arith.constant 2 : index
    %c0_109 = arith.constant 0 : index
    %89 = vector.load %arg17[%c1_106, %c1_107, %c2_108, %c0_109] : memref<2x6x30x48xf32, #tpu.memory_space<vmem>>, vector<1x1x28x16xf32>
    %90 = vector.shape_cast %89 : vector<1x1x28x16xf32> to vector<28x16xf32>
    %91 = vector.shape_cast %88 : vector<28x16xf32> to vector<1x1x28x16xf32>
    tpu.vector_store %arg17[%c1_106, %c1_107, %c2_108, %c0_109], %91 {strides = array<i32>} : memref<2x6x30x48xf32, #tpu.memory_space<vmem>>, vector<1x1x28x16xf32>,
    %c1_110 = arith.constant 1 : index
    %c1_111 = arith.constant 1 : index
    %c1_112 = arith.constant 1 : index
    %c16_113 = arith.constant 16 : index
    %92 = vector.load %arg17[%c1_110, %c1_111, %c1_112, %c16_113] : memref<2x6x30x48xf32, #tpu.memory_space<vmem>>, vector<1x1x28x16xf32>
    %93 = vector.shape_cast %92 : vector<1x1x28x16xf32> to vector<28x16xf32>
    %94 = vector.shape_cast %88 : vector<28x16xf32> to vector<1x1x28x16xf32>
    tpu.vector_store %arg17[%c1_110, %c1_111, %c1_112, %c16_113], %94 {strides = array<i32>} : memref<2x6x30x48xf32, #tpu.memory_space<vmem>>, vector<1x1x28x16xf32>,
    %c1_114 = arith.constant 1 : index
    %c1_115 = arith.constant 1 : index
    %c0_116 = arith.constant 0 : index
    %c32_117 = arith.constant 32 : index
    %95 = vector.load %arg17[%c1_114, %c1_115, %c0_116, %c32_117] : memref<2x6x30x48xf32, #tpu.memory_space<vmem>>, vector<1x1x28x16xf32>
    %96 = vector.shape_cast %95 : vector<1x1x28x16xf32> to vector<28x16xf32>
    %97 = vector.shape_cast %88 : vector<28x16xf32> to vector<1x1x28x16xf32>
    tpu.vector_store %arg17[%c1_114, %c1_115, %c0_116, %c32_117], %97 {strides = array<i32>} : memref<2x6x30x48xf32, #tpu.memory_space<vmem>>, vector<1x1x28x16xf32>,
    %c540 = arith.constant 540 : index
    %c0_118 = arith.constant 0 : index
    %98 = vector.load %arg16[%c540, %c0_118] : memref<864x16xf32, #tpu.memory_space<vmem>>, vector<54x16xf32>
    %c594 = arith.constant 594 : index
    %c0_119 = arith.constant 0 : index
    %99 = vector.load %arg16[%c594, %c0_119] : memref<864x16xf32, #tpu.memory_space<vmem>>, vector<54x16xf32>
    %100 = arith.maximumf %98, %99 : vector<54x16xf32>
    %c1_120 = arith.constant 1 : index
    %c0_121 = arith.constant 0 : index
    %101 = vector.load %arg20[%c1_120, %c0_121] : memref<56x64xf32, #tpu.memory_space<vmem>>, vector<54x16xf32>
    tpu.vector_store %arg20[%c1_120, %c0_121], %100 {strides = array<i32>} : memref<56x64xf32, #tpu.memory_space<vmem>>, vector<54x16xf32>,
    %c0_122 = arith.constant 0 : index
    %c0_123 = arith.constant 0 : index
    %102 = tpu.strided_load %arg20[%c0_122, %c0_123] {strides = array<i32: 2, 1>} : memref<56x64xf32, #tpu.memory_space<vmem>>, vector<28x16xf32>
    %c1_124 = arith.constant 1 : index
    %c0_125 = arith.constant 0 : index
    %103 = tpu.strided_load %arg20[%c1_124, %c0_125] {strides = array<i32: 2, 1>} : memref<56x64xf32, #tpu.memory_space<vmem>>, vector<28x16xf32>
    %104 = arith.maximumf %102, %103 : vector<28x16xf32>
    %c1_126 = arith.constant 1 : index
    %c2_127 = arith.constant 2 : index
    %c2_128 = arith.constant 2 : index
    %c0_129 = arith.constant 0 : index
    %105 = vector.load %arg17[%c1_126, %c2_127, %c2_128, %c0_129] : memref<2x6x30x48xf32, #tpu.memory_space<vmem>>, vector<1x1x28x16xf32>
    %106 = vector.shape_cast %105 : vector<1x1x28x16xf32> to vector<28x16xf32>
    %107 = vector.shape_cast %104 : vector<28x16xf32> to vector<1x1x28x16xf32>
    tpu.vector_store %arg17[%c1_126, %c2_127, %c2_128, %c0_129], %107 {strides = array<i32>} : memref<2x6x30x48xf32, #tpu.memory_space<vmem>>, vector<1x1x28x16xf32>,
    %c1_130 = arith.constant 1 : index
    %c2_131 = arith.constant 2 : index
    %c1_132 = arith.constant 1 : index
    %c16_133 = arith.constant 16 : index
    %108 = vector.load %arg17[%c1_130, %c2_131, %c1_132, %c16_133] : memref<2x6x30x48xf32, #tpu.memory_space<vmem>>, vector<1x1x28x16xf32>
    %109 = vector.shape_cast %108 : vector<1x1x28x16xf32> to vector<28x16xf32>
    %110 = vector.shape_cast %104 : vector<28x16xf32> to vector<1x1x28x16xf32>
    tpu.vector_store %arg17[%c1_130, %c2_131, %c1_132, %c16_133], %110 {strides = array<i32>} : memref<2x6x30x48xf32, #tpu.memory_space<vmem>>, vector<1x1x28x16xf32>,
    %c1_134 = arith.constant 1 : index
    %c2_135 = arith.constant 2 : index
    %c0_136 = arith.constant 0 : index
    %c32_137 = arith.constant 32 : index
    %111 = vector.load %arg17[%c1_134, %c2_135, %c0_136, %c32_137] : memref<2x6x30x48xf32, #tpu.memory_space<vmem>>, vector<1x1x28x16xf32>
    %112 = vector.shape_cast %111 : vector<1x1x28x16xf32> to vector<28x16xf32>
    %113 = vector.shape_cast %104 : vector<28x16xf32> to vector<1x1x28x16xf32>
    tpu.vector_store %arg17[%c1_134, %c2_135, %c0_136, %c32_137], %113 {strides = array<i32>} : memref<2x6x30x48xf32, #tpu.memory_space<vmem>>, vector<1x1x28x16xf32>,
    %c648 = arith.constant 648 : index
    %c0_138 = arith.constant 0 : index
    %114 = vector.load %arg16[%c648, %c0_138] : memref<864x16xf32, #tpu.memory_space<vmem>>, vector<54x16xf32>
    %c702 = arith.constant 702 : index
    %c0_139 = arith.constant 0 : index
    %115 = vector.load %arg16[%c702, %c0_139] : memref<864x16xf32, #tpu.memory_space<vmem>>, vector<54x16xf32>
    %116 = arith.maximumf %114, %115 : vector<54x16xf32>
    %c1_140 = arith.constant 1 : index
    %c0_141 = arith.constant 0 : index
    %117 = vector.load %arg20[%c1_140, %c0_141] : memref<56x64xf32, #tpu.memory_space<vmem>>, vector<54x16xf32>
    tpu.vector_store %arg20[%c1_140, %c0_141], %116 {strides = array<i32>} : memref<56x64xf32, #tpu.memory_space<vmem>>, vector<54x16xf32>,
    %c0_142 = arith.constant 0 : index
    %c0_143 = arith.constant 0 : index
    %118 = tpu.strided_load %arg20[%c0_142, %c0_143] {strides = array<i32: 2, 1>} : memref<56x64xf32, #tpu.memory_space<vmem>>, vector<28x16xf32>
    %c1_144 = arith.constant 1 : index
    %c0_145 = arith.constant 0 : index
    %119 = tpu.strided_load %arg20[%c1_144, %c0_145] {strides = array<i32: 2, 1>} : memref<56x64xf32, #tpu.memory_space<vmem>>, vector<28x16xf32>
    %120 = arith.maximumf %118, %119 : vector<28x16xf32>
    %c1_146 = arith.constant 1 : index
    %c3_147 = arith.constant 3 : index
    %c2_148 = arith.constant 2 : index
    %c0_149 = arith.constant 0 : index
    %121 = vector.load %arg17[%c1_146, %c3_147, %c2_148, %c0_149] : memref<2x6x30x48xf32, #tpu.memory_space<vmem>>, vector<1x1x28x16xf32>
    %122 = vector.shape_cast %121 : vector<1x1x28x16xf32> to vector<28x16xf32>
    %123 = vector.shape_cast %120 : vector<28x16xf32> to vector<1x1x28x16xf32>
    tpu.vector_store %arg17[%c1_146, %c3_147, %c2_148, %c0_149], %123 {strides = array<i32>} : memref<2x6x30x48xf32, #tpu.memory_space<vmem>>, vector<1x1x28x16xf32>,
    %c1_150 = arith.constant 1 : index
    %c3_151 = arith.constant 3 : index
    %c1_152 = arith.constant 1 : index
    %c16_153 = arith.constant 16 : index
    %124 = vector.load %arg17[%c1_150, %c3_151, %c1_152, %c16_153] : memref<2x6x30x48xf32, #tpu.memory_space<vmem>>, vector<1x1x28x16xf32>
    %125 = vector.shape_cast %124 : vector<1x1x28x16xf32> to vector<28x16xf32>
    %126 = vector.shape_cast %120 : vector<28x16xf32> to vector<1x1x28x16xf32>
    tpu.vector_store %arg17[%c1_150, %c3_151, %c1_152, %c16_153], %126 {strides = array<i32>} : memref<2x6x30x48xf32, #tpu.memory_space<vmem>>, vector<1x1x28x16xf32>,
    %c1_154 = arith.constant 1 : index
    %c3_155 = arith.constant 3 : index
    %c0_156 = arith.constant 0 : index
    %c32_157 = arith.constant 32 : index
    %127 = vector.load %arg17[%c1_154, %c3_155, %c0_156, %c32_157] : memref<2x6x30x48xf32, #tpu.memory_space<vmem>>, vector<1x1x28x16xf32>
    %128 = vector.shape_cast %127 : vector<1x1x28x16xf32> to vector<28x16xf32>
    %129 = vector.shape_cast %120 : vector<28x16xf32> to vector<1x1x28x16xf32>
    tpu.vector_store %arg17[%c1_154, %c3_155, %c0_156, %c32_157], %129 {strides = array<i32>} : memref<2x6x30x48xf32, #tpu.memory_space<vmem>>, vector<1x1x28x16xf32>,
    %c756 = arith.constant 756 : index
    %c0_158 = arith.constant 0 : index
    %130 = vector.load %arg16[%c756, %c0_158] : memref<864x16xf32, #tpu.memory_space<vmem>>, vector<54x16xf32>
    %c810 = arith.constant 810 : index
    %c0_159 = arith.constant 0 : index
    %131 = vector.load %arg16[%c810, %c0_159] : memref<864x16xf32, #tpu.memory_space<vmem>>, vector<54x16xf32>
    %132 = arith.maximumf %130, %131 : vector<54x16xf32>
    %c1_160 = arith.constant 1 : index
    %c0_161 = arith.constant 0 : index
    %133 = vector.load %arg20[%c1_160, %c0_161] : memref<56x64xf32, #tpu.memory_space<vmem>>, vector<54x16xf32>
    tpu.vector_store %arg20[%c1_160, %c0_161], %132 {strides = array<i32>} : memref<56x64xf32, #tpu.memory_space<vmem>>, vector<54x16xf32>,
    %c0_162 = arith.constant 0 : index
    %c0_163 = arith.constant 0 : index
    %134 = tpu.strided_load %arg20[%c0_162, %c0_163] {strides = array<i32: 2, 1>} : memref<56x64xf32, #tpu.memory_space<vmem>>, vector<28x16xf32>
    %c1_164 = arith.constant 1 : index
    %c0_165 = arith.constant 0 : index
    %135 = tpu.strided_load %arg20[%c1_164, %c0_165] {strides = array<i32: 2, 1>} : memref<56x64xf32, #tpu.memory_space<vmem>>, vector<28x16xf32>
    %136 = arith.maximumf %134, %135 : vector<28x16xf32>
    %c1_166 = arith.constant 1 : index
    %c4_167 = arith.constant 4 : index
    %c2_168 = arith.constant 2 : index
    %c0_169 = arith.constant 0 : index
    %137 = vector.load %arg17[%c1_166, %c4_167, %c2_168, %c0_169] : memref<2x6x30x48xf32, #tpu.memory_space<vmem>>, vector<1x1x28x16xf32>
    %138 = vector.shape_cast %137 : vector<1x1x28x16xf32> to vector<28x16xf32>
    %139 = vector.shape_cast %136 : vector<28x16xf32> to vector<1x1x28x16xf32>
    tpu.vector_store %arg17[%c1_166, %c4_167, %c2_168, %c0_169], %139 {strides = array<i32>} : memref<2x6x30x48xf32, #tpu.memory_space<vmem>>, vector<1x1x28x16xf32>,
    %c1_170 = arith.constant 1 : index
    %c4_171 = arith.constant 4 : index
    %c1_172 = arith.constant 1 : index
    %c16_173 = arith.constant 16 : index
    %140 = vector.load %arg17[%c1_170, %c4_171, %c1_172, %c16_173] : memref<2x6x30x48xf32, #tpu.memory_space<vmem>>, vector<1x1x28x16xf32>
    %141 = vector.shape_cast %140 : vector<1x1x28x16xf32> to vector<28x16xf32>
    %142 = vector.shape_cast %136 : vector<28x16xf32> to vector<1x1x28x16xf32>
    tpu.vector_store %arg17[%c1_170, %c4_171, %c1_172, %c16_173], %142 {strides = array<i32>} : memref<2x6x30x48xf32, #tpu.memory_space<vmem>>, vector<1x1x28x16xf32>,
    %c1_174 = arith.constant 1 : index
    %c4_175 = arith.constant 4 : index
    %c0_176 = arith.constant 0 : index
    %c32_177 = arith.constant 32 : index
    %143 = vector.load %arg17[%c1_174, %c4_175, %c0_176, %c32_177] : memref<2x6x30x48xf32, #tpu.memory_space<vmem>>, vector<1x1x28x16xf32>
    %144 = vector.shape_cast %143 : vector<1x1x28x16xf32> to vector<28x16xf32>
    %145 = vector.shape_cast %136 : vector<28x16xf32> to vector<1x1x28x16xf32>
    tpu.vector_store %arg17[%c1_174, %c4_175, %c0_176, %c32_177], %145 {strides = array<i32>} : memref<2x6x30x48xf32, #tpu.memory_space<vmem>>, vector<1x1x28x16xf32>,
    %c0_178 = arith.constant 0 : index
    %c0_179 = arith.constant 0 : index
    %c0_180 = arith.constant 0 : index
    %146 = vector.load %arg4[%c0_178, %c0_179, %c0_180] : memref<3x48x32xf32, #tpu.memory_space<vmem>>, vector<1x48x32xf32>
    %147 = vector.shape_cast %146 : vector<1x48x32xf32> to vector<48x32xf32>
    %c1_181 = arith.constant 1 : index
    %c0_182 = arith.constant 0 : index
    %c0_183 = arith.constant 0 : index
    %148 = vector.load %arg4[%c1_181, %c0_182, %c0_183] : memref<3x48x32xf32, #tpu.memory_space<vmem>>, vector<1x48x32xf32>
    %149 = vector.shape_cast %148 : vector<1x48x32xf32> to vector<48x32xf32>
    %c2_184 = arith.constant 2 : index
    %c0_185 = arith.constant 0 : index
    %c0_186 = arith.constant 0 : index
    %150 = vector.load %arg4[%c2_184, %c0_185, %c0_186] : memref<3x48x32xf32, #tpu.memory_space<vmem>>, vector<1x48x32xf32>
    %151 = vector.shape_cast %150 : vector<1x48x32xf32> to vector<48x32xf32>
    %c0_187 = arith.constant 0 : index
    %c0_188 = arith.constant 0 : index
    %152 = vector.load %arg5[%c0_187, %c0_188] : memref<1x32xf32, #tpu.memory_space<vmem>>, vector<1x32xf32>
    %153 = vector.shape_cast %152 : vector<1x32xf32> to vector<1x32xf32>
    %154 = vector.broadcast %153 : vector<1x32xf32> to vector<28x32xf32>
    %c0_189 = arith.constant 0 : index
    %c0_190 = arith.constant 0 : index
    %155 = vector.load %arg6[%c0_189, %c0_190] : memref<1x32xf32, #tpu.memory_space<vmem>>, vector<1x32xf32>
    %156 = vector.shape_cast %155 : vector<1x32xf32> to vector<1x32xf32>
    %157 = vector.broadcast %156 : vector<1x32xf32> to vector<28x32xf32>
    %c0_191 = arith.constant 0 : index
    %c0_192 = arith.constant 0 : index
    %c0_193 = arith.constant 0 : index
    %158 = vector.load %arg7[%c0_191, %c0_192, %c0_193] : memref<3x96x64xf32, #tpu.memory_space<vmem>>, vector<1x96x64xf32>
    %159 = vector.shape_cast %158 : vector<1x96x64xf32> to vector<96x64xf32>
    %c1_194 = arith.constant 1 : index
    %c0_195 = arith.constant 0 : index
    %c0_196 = arith.constant 0 : index
    %160 = vector.load %arg7[%c1_194, %c0_195, %c0_196] : memref<3x96x64xf32, #tpu.memory_space<vmem>>, vector<1x96x64xf32>
    %161 = vector.shape_cast %160 : vector<1x96x64xf32> to vector<96x64xf32>
    %c2_197 = arith.constant 2 : index
    %c0_198 = arith.constant 0 : index
    %c0_199 = arith.constant 0 : index
    %162 = vector.load %arg7[%c2_197, %c0_198, %c0_199] : memref<3x96x64xf32, #tpu.memory_space<vmem>>, vector<1x96x64xf32>
    %163 = vector.shape_cast %162 : vector<1x96x64xf32> to vector<96x64xf32>
    %c0_200 = arith.constant 0 : index
    %c0_201 = arith.constant 0 : index
    %164 = vector.load %arg8[%c0_200, %c0_201] : memref<1x64xf32, #tpu.memory_space<vmem>>, vector<1x64xf32>
    %165 = vector.shape_cast %164 : vector<1x64xf32> to vector<1x64xf32>
    %166 = vector.broadcast %165 : vector<1x64xf32> to vector<14x64xf32>
    %c0_202 = arith.constant 0 : index
    %c0_203 = arith.constant 0 : index
    %167 = vector.load %arg9[%c0_202, %c0_203] : memref<1x64xf32, #tpu.memory_space<vmem>>, vector<1x64xf32>
    %168 = vector.shape_cast %167 : vector<1x64xf32> to vector<1x64xf32>
    %169 = vector.broadcast %168 : vector<1x64xf32> to vector<14x64xf32>
    %c0_204 = arith.constant 0 : index
    %c0_205 = arith.constant 0 : index
    %c1_206 = arith.constant 1 : index
    %c0_207 = arith.constant 0 : index
    %170 = vector.load %arg17[%c0_204, %c0_205, %c1_206, %c0_207] : memref<2x6x30x48xf32, #tpu.memory_space<vmem>>, vector<1x1x28x48xf32>
    %171 = vector.shape_cast %170 : vector<1x1x28x48xf32> to vector<28x48xf32>
    %cst_208 = arith.constant dense<0.000000e+00> : vector<28x32xf32>
    %172 = tpu.matmul %171, %147, %cst_208 {dimension_numbers = #tpu.dot_dimension_numbers<[1], [0], [0], [1], [0, 0, 1, 1], [], []>} : vector<28x48xf32>, vector<48x32xf32>, vector<28x32xf32> -> vector<28x32xf32>
    %c0_209 = arith.constant 0 : index
    %c1_210 = arith.constant 1 : index
    %c1_211 = arith.constant 1 : index
    %c0_212 = arith.constant 0 : index
    %173 = vector.load %arg17[%c0_209, %c1_210, %c1_211, %c0_212] : memref<2x6x30x48xf32, #tpu.memory_space<vmem>>, vector<1x1x28x48xf32>
    %174 = vector.shape_cast %173 : vector<1x1x28x48xf32> to vector<28x48xf32>
    %cst_213 = arith.constant dense<0.000000e+00> : vector<28x32xf32>
    %175 = tpu.matmul %174, %149, %cst_213 {dimension_numbers = #tpu.dot_dimension_numbers<[1], [0], [0], [1], [0, 0, 1, 1], [], []>} : vector<28x48xf32>, vector<48x32xf32>, vector<28x32xf32> -> vector<28x32xf32>
    %176 = arith.addf %172, %175 : vector<28x32xf32>
    %c0_214 = arith.constant 0 : index
    %c2_215 = arith.constant 2 : index
    %c1_216 = arith.constant 1 : index
    %c0_217 = arith.constant 0 : index
    %177 = vector.load %arg17[%c0_214, %c2_215, %c1_216, %c0_217] : memref<2x6x30x48xf32, #tpu.memory_space<vmem>>, vector<1x1x28x48xf32>
    %178 = vector.shape_cast %177 : vector<1x1x28x48xf32> to vector<28x48xf32>
    %cst_218 = arith.constant dense<0.000000e+00> : vector<28x32xf32>
    %179 = tpu.matmul %178, %151, %cst_218 {dimension_numbers = #tpu.dot_dimension_numbers<[1], [0], [0], [1], [0, 0, 1, 1], [], []>} : vector<28x48xf32>, vector<48x32xf32>, vector<28x32xf32> -> vector<28x32xf32>
    %180 = arith.addf %176, %179 : vector<28x32xf32>
    %181 = arith.mulf %180, %154 : vector<28x32xf32>
    %182 = arith.addf %181, %157 : vector<28x32xf32>
    %cst_219 = arith.constant 0.000000e+00 : f32
    %183 = vector.broadcast %cst_219 : f32 to vector<28x32xf32>
    %184 = arith.maximumf %182, %183 : vector<28x32xf32>
    %c0_220 = arith.constant 0 : index
    %c1_221 = arith.constant 1 : index
    %c1_222 = arith.constant 1 : index
    %c0_223 = arith.constant 0 : index
    %185 = vector.load %arg17[%c0_220, %c1_221, %c1_222, %c0_223] : memref<2x6x30x48xf32, #tpu.memory_space<vmem>>, vector<1x1x28x48xf32>
    %186 = vector.shape_cast %185 : vector<1x1x28x48xf32> to vector<28x48xf32>
    %cst_224 = arith.constant dense<0.000000e+00> : vector<28x32xf32>
    %187 = tpu.matmul %186, %147, %cst_224 {dimension_numbers = #tpu.dot_dimension_numbers<[1], [0], [0], [1], [0, 0, 1, 1], [], []>} : vector<28x48xf32>, vector<48x32xf32>, vector<28x32xf32> -> vector<28x32xf32>
    %c0_225 = arith.constant 0 : index
    %c2_226 = arith.constant 2 : index
    %c1_227 = arith.constant 1 : index
    %c0_228 = arith.constant 0 : index
    %188 = vector.load %arg17[%c0_225, %c2_226, %c1_227, %c0_228] : memref<2x6x30x48xf32, #tpu.memory_space<vmem>>, vector<1x1x28x48xf32>
    %189 = vector.shape_cast %188 : vector<1x1x28x48xf32> to vector<28x48xf32>
    %cst_229 = arith.constant dense<0.000000e+00> : vector<28x32xf32>
    %190 = tpu.matmul %189, %149, %cst_229 {dimension_numbers = #tpu.dot_dimension_numbers<[1], [0], [0], [1], [0, 0, 1, 1], [], []>} : vector<28x48xf32>, vector<48x32xf32>, vector<28x32xf32> -> vector<28x32xf32>
    %191 = arith.addf %187, %190 : vector<28x32xf32>
    %c0_230 = arith.constant 0 : index
    %c3_231 = arith.constant 3 : index
    %c1_232 = arith.constant 1 : index
    %c0_233 = arith.constant 0 : index
    %192 = vector.load %arg17[%c0_230, %c3_231, %c1_232, %c0_233] : memref<2x6x30x48xf32, #tpu.memory_space<vmem>>, vector<1x1x28x48xf32>
    %193 = vector.shape_cast %192 : vector<1x1x28x48xf32> to vector<28x48xf32>
    %cst_234 = arith.constant dense<0.000000e+00> : vector<28x32xf32>
    %194 = tpu.matmul %193, %151, %cst_234 {dimension_numbers = #tpu.dot_dimension_numbers<[1], [0], [0], [1], [0, 0, 1, 1], [], []>} : vector<28x48xf32>, vector<48x32xf32>, vector<28x32xf32> -> vector<28x32xf32>
    %195 = arith.addf %191, %194 : vector<28x32xf32>
    %196 = arith.mulf %195, %154 : vector<28x32xf32>
    %197 = arith.addf %196, %157 : vector<28x32xf32>
    %cst_235 = arith.constant 0.000000e+00 : f32
    %198 = vector.broadcast %cst_235 : f32 to vector<28x32xf32>
    %199 = arith.maximumf %197, %198 : vector<28x32xf32>
    %200 = arith.maximumf %184, %199 : vector<28x32xf32>
    %c0_236 = arith.constant 0 : index
    %c0_237 = arith.constant 0 : index
    %201 = vector.load %arg20[%c0_236, %c0_237] : memref<56x64xf32, #tpu.memory_space<vmem>>, vector<28x32xf32>
    tpu.vector_store %arg20[%c0_236, %c0_237], %200 {strides = array<i32>} : memref<56x64xf32, #tpu.memory_space<vmem>>, vector<28x32xf32>,
    %c0_238 = arith.constant 0 : index
    %c0_239 = arith.constant 0 : index
    %202 = tpu.strided_load %arg20[%c0_238, %c0_239] {strides = array<i32: 2, 1>} : memref<56x64xf32, #tpu.memory_space<vmem>>, vector<14x32xf32>
    %c1_240 = arith.constant 1 : index
    %c0_241 = arith.constant 0 : index
    %203 = tpu.strided_load %arg20[%c1_240, %c0_241] {strides = array<i32: 2, 1>} : memref<56x64xf32, #tpu.memory_space<vmem>>, vector<14x32xf32>
    %204 = arith.maximumf %202, %203 : vector<14x32xf32>
    %c0_242 = arith.constant 0 : index
    %c1_243 = arith.constant 1 : index
    %c2_244 = arith.constant 2 : index
    %c0_245 = arith.constant 0 : index
    %205 = vector.load %arg18[%c0_242, %c1_243, %c2_244, %c0_245] : memref<2x4x16x96xf32, #tpu.memory_space<vmem>>, vector<1x1x14x32xf32>
    %206 = vector.shape_cast %205 : vector<1x1x14x32xf32> to vector<14x32xf32>
    %207 = vector.shape_cast %204 : vector<14x32xf32> to vector<1x1x14x32xf32>
    tpu.vector_store %arg18[%c0_242, %c1_243, %c2_244, %c0_245], %207 {strides = array<i32>} : memref<2x4x16x96xf32, #tpu.memory_space<vmem>>, vector<1x1x14x32xf32>,
    %c0_246 = arith.constant 0 : index
    %c1_247 = arith.constant 1 : index
    %c1_248 = arith.constant 1 : index
    %c32_249 = arith.constant 32 : index
    %208 = vector.load %arg18[%c0_246, %c1_247, %c1_248, %c32_249] : memref<2x4x16x96xf32, #tpu.memory_space<vmem>>, vector<1x1x14x32xf32>
    %209 = vector.shape_cast %208 : vector<1x1x14x32xf32> to vector<14x32xf32>
    %210 = vector.shape_cast %204 : vector<14x32xf32> to vector<1x1x14x32xf32>
    tpu.vector_store %arg18[%c0_246, %c1_247, %c1_248, %c32_249], %210 {strides = array<i32>} : memref<2x4x16x96xf32, #tpu.memory_space<vmem>>, vector<1x1x14x32xf32>,
    %c0_250 = arith.constant 0 : index
    %c1_251 = arith.constant 1 : index
    %c0_252 = arith.constant 0 : index
    %c64 = arith.constant 64 : index
    %211 = vector.load %arg18[%c0_250, %c1_251, %c0_252, %c64] : memref<2x4x16x96xf32, #tpu.memory_space<vmem>>, vector<1x1x14x32xf32>
    %212 = vector.shape_cast %211 : vector<1x1x14x32xf32> to vector<14x32xf32>
    %213 = vector.shape_cast %204 : vector<14x32xf32> to vector<1x1x14x32xf32>
    tpu.vector_store %arg18[%c0_250, %c1_251, %c0_252, %c64], %213 {strides = array<i32>} : memref<2x4x16x96xf32, #tpu.memory_space<vmem>>, vector<1x1x14x32xf32>,
    %c0_253 = arith.constant 0 : index
    %c2_254 = arith.constant 2 : index
    %c1_255 = arith.constant 1 : index
    %c0_256 = arith.constant 0 : index
    %214 = vector.load %arg17[%c0_253, %c2_254, %c1_255, %c0_256] : memref<2x6x30x48xf32, #tpu.memory_space<vmem>>, vector<1x1x28x48xf32>
    %215 = vector.shape_cast %214 : vector<1x1x28x48xf32> to vector<28x48xf32>
    %cst_257 = arith.constant dense<0.000000e+00> : vector<28x32xf32>
    %216 = tpu.matmul %215, %147, %cst_257 {dimension_numbers = #tpu.dot_dimension_numbers<[1], [0], [0], [1], [0, 0, 1, 1], [], []>} : vector<28x48xf32>, vector<48x32xf32>, vector<28x32xf32> -> vector<28x32xf32>
    %c0_258 = arith.constant 0 : index
    %c3_259 = arith.constant 3 : index
    %c1_260 = arith.constant 1 : index
    %c0_261 = arith.constant 0 : index
    %217 = vector.load %arg17[%c0_258, %c3_259, %c1_260, %c0_261] : memref<2x6x30x48xf32, #tpu.memory_space<vmem>>, vector<1x1x28x48xf32>
    %218 = vector.shape_cast %217 : vector<1x1x28x48xf32> to vector<28x48xf32>
    %cst_262 = arith.constant dense<0.000000e+00> : vector<28x32xf32>
    %219 = tpu.matmul %218, %149, %cst_262 {dimension_numbers = #tpu.dot_dimension_numbers<[1], [0], [0], [1], [0, 0, 1, 1], [], []>} : vector<28x48xf32>, vector<48x32xf32>, vector<28x32xf32> -> vector<28x32xf32>
    %220 = arith.addf %216, %219 : vector<28x32xf32>
    %c0_263 = arith.constant 0 : index
    %c4_264 = arith.constant 4 : index
    %c1_265 = arith.constant 1 : index
    %c0_266 = arith.constant 0 : index
    %221 = vector.load %arg17[%c0_263, %c4_264, %c1_265, %c0_266] : memref<2x6x30x48xf32, #tpu.memory_space<vmem>>, vector<1x1x28x48xf32>
    %222 = vector.shape_cast %221 : vector<1x1x28x48xf32> to vector<28x48xf32>
    %cst_267 = arith.constant dense<0.000000e+00> : vector<28x32xf32>
    %223 = tpu.matmul %222, %151, %cst_267 {dimension_numbers = #tpu.dot_dimension_numbers<[1], [0], [0], [1], [0, 0, 1, 1], [], []>} : vector<28x48xf32>, vector<48x32xf32>, vector<28x32xf32> -> vector<28x32xf32>
    %224 = arith.addf %220, %223 : vector<28x32xf32>
    %225 = arith.mulf %224, %154 : vector<28x32xf32>
    %226 = arith.addf %225, %157 : vector<28x32xf32>
    %cst_268 = arith.constant 0.000000e+00 : f32
    %227 = vector.broadcast %cst_268 : f32 to vector<28x32xf32>
    %228 = arith.maximumf %226, %227 : vector<28x32xf32>
    %c0_269 = arith.constant 0 : index
    %c3_270 = arith.constant 3 : index
    %c1_271 = arith.constant 1 : index
    %c0_272 = arith.constant 0 : index
    %229 = vector.load %arg17[%c0_269, %c3_270, %c1_271, %c0_272] : memref<2x6x30x48xf32, #tpu.memory_space<vmem>>, vector<1x1x28x48xf32>
    %230 = vector.shape_cast %229 : vector<1x1x28x48xf32> to vector<28x48xf32>
    %cst_273 = arith.constant dense<0.000000e+00> : vector<28x32xf32>
    %231 = tpu.matmul %230, %147, %cst_273 {dimension_numbers = #tpu.dot_dimension_numbers<[1], [0], [0], [1], [0, 0, 1, 1], [], []>} : vector<28x48xf32>, vector<48x32xf32>, vector<28x32xf32> -> vector<28x32xf32>
    %c0_274 = arith.constant 0 : index
    %c4_275 = arith.constant 4 : index
    %c1_276 = arith.constant 1 : index
    %c0_277 = arith.constant 0 : index
    %232 = vector.load %arg17[%c0_274, %c4_275, %c1_276, %c0_277] : memref<2x6x30x48xf32, #tpu.memory_space<vmem>>, vector<1x1x28x48xf32>
    %233 = vector.shape_cast %232 : vector<1x1x28x48xf32> to vector<28x48xf32>
    %cst_278 = arith.constant dense<0.000000e+00> : vector<28x32xf32>
    %234 = tpu.matmul %233, %149, %cst_278 {dimension_numbers = #tpu.dot_dimension_numbers<[1], [0], [0], [1], [0, 0, 1, 1], [], []>} : vector<28x48xf32>, vector<48x32xf32>, vector<28x32xf32> -> vector<28x32xf32>
    %235 = arith.addf %231, %234 : vector<28x32xf32>
    %c0_279 = arith.constant 0 : index
    %c5 = arith.constant 5 : index
    %c1_280 = arith.constant 1 : index
    %c0_281 = arith.constant 0 : index
    %236 = vector.load %arg17[%c0_279, %c5, %c1_280, %c0_281] : memref<2x6x30x48xf32, #tpu.memory_space<vmem>>, vector<1x1x28x48xf32>
    %237 = vector.shape_cast %236 : vector<1x1x28x48xf32> to vector<28x48xf32>
    %cst_282 = arith.constant dense<0.000000e+00> : vector<28x32xf32>
    %238 = tpu.matmul %237, %151, %cst_282 {dimension_numbers = #tpu.dot_dimension_numbers<[1], [0], [0], [1], [0, 0, 1, 1], [], []>} : vector<28x48xf32>, vector<48x32xf32>, vector<28x32xf32> -> vector<28x32xf32>
    %239 = arith.addf %235, %238 : vector<28x32xf32>
    %240 = arith.mulf %239, %154 : vector<28x32xf32>
    %241 = arith.addf %240, %157 : vector<28x32xf32>
    %cst_283 = arith.constant 0.000000e+00 : f32
    %242 = vector.broadcast %cst_283 : f32 to vector<28x32xf32>
    %243 = arith.maximumf %241, %242 : vector<28x32xf32>
    %244 = arith.maximumf %228, %243 : vector<28x32xf32>
    %c0_284 = arith.constant 0 : index
    %c0_285 = arith.constant 0 : index
    %245 = vector.load %arg20[%c0_284, %c0_285] : memref<56x64xf32, #tpu.memory_space<vmem>>, vector<28x32xf32>
    tpu.vector_store %arg20[%c0_284, %c0_285], %244 {strides = array<i32>} : memref<56x64xf32, #tpu.memory_space<vmem>>, vector<28x32xf32>,
    %c0_286 = arith.constant 0 : index
    %c0_287 = arith.constant 0 : index
    %246 = tpu.strided_load %arg20[%c0_286, %c0_287] {strides = array<i32: 2, 1>} : memref<56x64xf32, #tpu.memory_space<vmem>>, vector<14x32xf32>
    %c1_288 = arith.constant 1 : index
    %c0_289 = arith.constant 0 : index
    %247 = tpu.strided_load %arg20[%c1_288, %c0_289] {strides = array<i32: 2, 1>} : memref<56x64xf32, #tpu.memory_space<vmem>>, vector<14x32xf32>
    %248 = arith.maximumf %246, %247 : vector<14x32xf32>
    %c0_290 = arith.constant 0 : index
    %c2_291 = arith.constant 2 : index
    %c2_292 = arith.constant 2 : index
    %c0_293 = arith.constant 0 : index
    %249 = vector.load %arg18[%c0_290, %c2_291, %c2_292, %c0_293] : memref<2x4x16x96xf32, #tpu.memory_space<vmem>>, vector<1x1x14x32xf32>
    %250 = vector.shape_cast %249 : vector<1x1x14x32xf32> to vector<14x32xf32>
    %251 = vector.shape_cast %248 : vector<14x32xf32> to vector<1x1x14x32xf32>
    tpu.vector_store %arg18[%c0_290, %c2_291, %c2_292, %c0_293], %251 {strides = array<i32>} : memref<2x4x16x96xf32, #tpu.memory_space<vmem>>, vector<1x1x14x32xf32>,
    %c0_294 = arith.constant 0 : index
    %c2_295 = arith.constant 2 : index
    %c1_296 = arith.constant 1 : index
    %c32_297 = arith.constant 32 : index
    %252 = vector.load %arg18[%c0_294, %c2_295, %c1_296, %c32_297] : memref<2x4x16x96xf32, #tpu.memory_space<vmem>>, vector<1x1x14x32xf32>
    %253 = vector.shape_cast %252 : vector<1x1x14x32xf32> to vector<14x32xf32>
    %254 = vector.shape_cast %248 : vector<14x32xf32> to vector<1x1x14x32xf32>
    tpu.vector_store %arg18[%c0_294, %c2_295, %c1_296, %c32_297], %254 {strides = array<i32>} : memref<2x4x16x96xf32, #tpu.memory_space<vmem>>, vector<1x1x14x32xf32>,
    %c0_298 = arith.constant 0 : index
    %c2_299 = arith.constant 2 : index
    %c0_300 = arith.constant 0 : index
    %c64_301 = arith.constant 64 : index
    %255 = vector.load %arg18[%c0_298, %c2_299, %c0_300, %c64_301] : memref<2x4x16x96xf32, #tpu.memory_space<vmem>>, vector<1x1x14x32xf32>
    %256 = vector.shape_cast %255 : vector<1x1x14x32xf32> to vector<14x32xf32>
    %257 = vector.shape_cast %248 : vector<14x32xf32> to vector<1x1x14x32xf32>
    tpu.vector_store %arg18[%c0_298, %c2_299, %c0_300, %c64_301], %257 {strides = array<i32>} : memref<2x4x16x96xf32, #tpu.memory_space<vmem>>, vector<1x1x14x32xf32>,
    %c1_302 = arith.constant 1 : index
    %c0_303 = arith.constant 0 : index
    %c1_304 = arith.constant 1 : index
    %c0_305 = arith.constant 0 : index
    %258 = vector.load %arg17[%c1_302, %c0_303, %c1_304, %c0_305] : memref<2x6x30x48xf32, #tpu.memory_space<vmem>>, vector<1x1x28x48xf32>
    %259 = vector.shape_cast %258 : vector<1x1x28x48xf32> to vector<28x48xf32>
    %cst_306 = arith.constant dense<0.000000e+00> : vector<28x32xf32>
    %260 = tpu.matmul %259, %147, %cst_306 {dimension_numbers = #tpu.dot_dimension_numbers<[1], [0], [0], [1], [0, 0, 1, 1], [], []>} : vector<28x48xf32>, vector<48x32xf32>, vector<28x32xf32> -> vector<28x32xf32>
    %c1_307 = arith.constant 1 : index
    %c1_308 = arith.constant 1 : index
    %c1_309 = arith.constant 1 : index
    %c0_310 = arith.constant 0 : index
    %261 = vector.load %arg17[%c1_307, %c1_308, %c1_309, %c0_310] : memref<2x6x30x48xf32, #tpu.memory_space<vmem>>, vector<1x1x28x48xf32>
    %262 = vector.shape_cast %261 : vector<1x1x28x48xf32> to vector<28x48xf32>
    %cst_311 = arith.constant dense<0.000000e+00> : vector<28x32xf32>
    %263 = tpu.matmul %262, %149, %cst_311 {dimension_numbers = #tpu.dot_dimension_numbers<[1], [0], [0], [1], [0, 0, 1, 1], [], []>} : vector<28x48xf32>, vector<48x32xf32>, vector<28x32xf32> -> vector<28x32xf32>
    %264 = arith.addf %260, %263 : vector<28x32xf32>
    %c1_312 = arith.constant 1 : index
    %c2_313 = arith.constant 2 : index
    %c1_314 = arith.constant 1 : index
    %c0_315 = arith.constant 0 : index
    %265 = vector.load %arg17[%c1_312, %c2_313, %c1_314, %c0_315] : memref<2x6x30x48xf32, #tpu.memory_space<vmem>>, vector<1x1x28x48xf32>
    %266 = vector.shape_cast %265 : vector<1x1x28x48xf32> to vector<28x48xf32>
    %cst_316 = arith.constant dense<0.000000e+00> : vector<28x32xf32>
    %267 = tpu.matmul %266, %151, %cst_316 {dimension_numbers = #tpu.dot_dimension_numbers<[1], [0], [0], [1], [0, 0, 1, 1], [], []>} : vector<28x48xf32>, vector<48x32xf32>, vector<28x32xf32> -> vector<28x32xf32>
    %268 = arith.addf %264, %267 : vector<28x32xf32>
    %269 = arith.mulf %268, %154 : vector<28x32xf32>
    %270 = arith.addf %269, %157 : vector<28x32xf32>
    %cst_317 = arith.constant 0.000000e+00 : f32
    %271 = vector.broadcast %cst_317 : f32 to vector<28x32xf32>
    %272 = arith.maximumf %270, %271 : vector<28x32xf32>
    %c1_318 = arith.constant 1 : index
    %c1_319 = arith.constant 1 : index
    %c1_320 = arith.constant 1 : index
    %c0_321 = arith.constant 0 : index
    %273 = vector.load %arg17[%c1_318, %c1_319, %c1_320, %c0_321] : memref<2x6x30x48xf32, #tpu.memory_space<vmem>>, vector<1x1x28x48xf32>
    %274 = vector.shape_cast %273 : vector<1x1x28x48xf32> to vector<28x48xf32>
    %cst_322 = arith.constant dense<0.000000e+00> : vector<28x32xf32>
    %275 = tpu.matmul %274, %147, %cst_322 {dimension_numbers = #tpu.dot_dimension_numbers<[1], [0], [0], [1], [0, 0, 1, 1], [], []>} : vector<28x48xf32>, vector<48x32xf32>, vector<28x32xf32> -> vector<28x32xf32>
    %c1_323 = arith.constant 1 : index
    %c2_324 = arith.constant 2 : index
    %c1_325 = arith.constant 1 : index
    %c0_326 = arith.constant 0 : index
    %276 = vector.load %arg17[%c1_323, %c2_324, %c1_325, %c0_326] : memref<2x6x30x48xf32, #tpu.memory_space<vmem>>, vector<1x1x28x48xf32>
    %277 = vector.shape_cast %276 : vector<1x1x28x48xf32> to vector<28x48xf32>
    %cst_327 = arith.constant dense<0.000000e+00> : vector<28x32xf32>
    %278 = tpu.matmul %277, %149, %cst_327 {dimension_numbers = #tpu.dot_dimension_numbers<[1], [0], [0], [1], [0, 0, 1, 1], [], []>} : vector<28x48xf32>, vector<48x32xf32>, vector<28x32xf32> -> vector<28x32xf32>
    %279 = arith.addf %275, %278 : vector<28x32xf32>
    %c1_328 = arith.constant 1 : index
    %c3_329 = arith.constant 3 : index
    %c1_330 = arith.constant 1 : index
    %c0_331 = arith.constant 0 : index
    %280 = vector.load %arg17[%c1_328, %c3_329, %c1_330, %c0_331] : memref<2x6x30x48xf32, #tpu.memory_space<vmem>>, vector<1x1x28x48xf32>
    %281 = vector.shape_cast %280 : vector<1x1x28x48xf32> to vector<28x48xf32>
    %cst_332 = arith.constant dense<0.000000e+00> : vector<28x32xf32>
    %282 = tpu.matmul %281, %151, %cst_332 {dimension_numbers = #tpu.dot_dimension_numbers<[1], [0], [0], [1], [0, 0, 1, 1], [], []>} : vector<28x48xf32>, vector<48x32xf32>, vector<28x32xf32> -> vector<28x32xf32>
    %283 = arith.addf %279, %282 : vector<28x32xf32>
    %284 = arith.mulf %283, %154 : vector<28x32xf32>
    %285 = arith.addf %284, %157 : vector<28x32xf32>
    %cst_333 = arith.constant 0.000000e+00 : f32
    %286 = vector.broadcast %cst_333 : f32 to vector<28x32xf32>
    %287 = arith.maximumf %285, %286 : vector<28x32xf32>
    %288 = arith.maximumf %272, %287 : vector<28x32xf32>
    %c0_334 = arith.constant 0 : index
    %c0_335 = arith.constant 0 : index
    %289 = vector.load %arg20[%c0_334, %c0_335] : memref<56x64xf32, #tpu.memory_space<vmem>>, vector<28x32xf32>
    tpu.vector_store %arg20[%c0_334, %c0_335], %288 {strides = array<i32>} : memref<56x64xf32, #tpu.memory_space<vmem>>, vector<28x32xf32>,
    %c0_336 = arith.constant 0 : index
    %c0_337 = arith.constant 0 : index
    %290 = tpu.strided_load %arg20[%c0_336, %c0_337] {strides = array<i32: 2, 1>} : memref<56x64xf32, #tpu.memory_space<vmem>>, vector<14x32xf32>
    %c1_338 = arith.constant 1 : index
    %c0_339 = arith.constant 0 : index
    %291 = tpu.strided_load %arg20[%c1_338, %c0_339] {strides = array<i32: 2, 1>} : memref<56x64xf32, #tpu.memory_space<vmem>>, vector<14x32xf32>
    %292 = arith.maximumf %290, %291 : vector<14x32xf32>
    %c1_340 = arith.constant 1 : index
    %c1_341 = arith.constant 1 : index
    %c2_342 = arith.constant 2 : index
    %c0_343 = arith.constant 0 : index
    %293 = vector.load %arg18[%c1_340, %c1_341, %c2_342, %c0_343] : memref<2x4x16x96xf32, #tpu.memory_space<vmem>>, vector<1x1x14x32xf32>
    %294 = vector.shape_cast %293 : vector<1x1x14x32xf32> to vector<14x32xf32>
    %295 = vector.shape_cast %292 : vector<14x32xf32> to vector<1x1x14x32xf32>
    tpu.vector_store %arg18[%c1_340, %c1_341, %c2_342, %c0_343], %295 {strides = array<i32>} : memref<2x4x16x96xf32, #tpu.memory_space<vmem>>, vector<1x1x14x32xf32>,
    %c1_344 = arith.constant 1 : index
    %c1_345 = arith.constant 1 : index
    %c1_346 = arith.constant 1 : index
    %c32_347 = arith.constant 32 : index
    %296 = vector.load %arg18[%c1_344, %c1_345, %c1_346, %c32_347] : memref<2x4x16x96xf32, #tpu.memory_space<vmem>>, vector<1x1x14x32xf32>
    %297 = vector.shape_cast %296 : vector<1x1x14x32xf32> to vector<14x32xf32>
    %298 = vector.shape_cast %292 : vector<14x32xf32> to vector<1x1x14x32xf32>
    tpu.vector_store %arg18[%c1_344, %c1_345, %c1_346, %c32_347], %298 {strides = array<i32>} : memref<2x4x16x96xf32, #tpu.memory_space<vmem>>, vector<1x1x14x32xf32>,
    %c1_348 = arith.constant 1 : index
    %c1_349 = arith.constant 1 : index
    %c0_350 = arith.constant 0 : index
    %c64_351 = arith.constant 64 : index
    %299 = vector.load %arg18[%c1_348, %c1_349, %c0_350, %c64_351] : memref<2x4x16x96xf32, #tpu.memory_space<vmem>>, vector<1x1x14x32xf32>
    %300 = vector.shape_cast %299 : vector<1x1x14x32xf32> to vector<14x32xf32>
    %301 = vector.shape_cast %292 : vector<14x32xf32> to vector<1x1x14x32xf32>
    tpu.vector_store %arg18[%c1_348, %c1_349, %c0_350, %c64_351], %301 {strides = array<i32>} : memref<2x4x16x96xf32, #tpu.memory_space<vmem>>, vector<1x1x14x32xf32>,
    %c1_352 = arith.constant 1 : index
    %c2_353 = arith.constant 2 : index
    %c1_354 = arith.constant 1 : index
    %c0_355 = arith.constant 0 : index
    %302 = vector.load %arg17[%c1_352, %c2_353, %c1_354, %c0_355] : memref<2x6x30x48xf32, #tpu.memory_space<vmem>>, vector<1x1x28x48xf32>
    %303 = vector.shape_cast %302 : vector<1x1x28x48xf32> to vector<28x48xf32>
    %cst_356 = arith.constant dense<0.000000e+00> : vector<28x32xf32>
    %304 = tpu.matmul %303, %147, %cst_356 {dimension_numbers = #tpu.dot_dimension_numbers<[1], [0], [0], [1], [0, 0, 1, 1], [], []>} : vector<28x48xf32>, vector<48x32xf32>, vector<28x32xf32> -> vector<28x32xf32>
    %c1_357 = arith.constant 1 : index
    %c3_358 = arith.constant 3 : index
    %c1_359 = arith.constant 1 : index
    %c0_360 = arith.constant 0 : index
    %305 = vector.load %arg17[%c1_357, %c3_358, %c1_359, %c0_360] : memref<2x6x30x48xf32, #tpu.memory_space<vmem>>, vector<1x1x28x48xf32>
    %306 = vector.shape_cast %305 : vector<1x1x28x48xf32> to vector<28x48xf32>
    %cst_361 = arith.constant dense<0.000000e+00> : vector<28x32xf32>
    %307 = tpu.matmul %306, %149, %cst_361 {dimension_numbers = #tpu.dot_dimension_numbers<[1], [0], [0], [1], [0, 0, 1, 1], [], []>} : vector<28x48xf32>, vector<48x32xf32>, vector<28x32xf32> -> vector<28x32xf32>
    %308 = arith.addf %304, %307 : vector<28x32xf32>
    %c1_362 = arith.constant 1 : index
    %c4_363 = arith.constant 4 : index
    %c1_364 = arith.constant 1 : index
    %c0_365 = arith.constant 0 : index
    %309 = vector.load %arg17[%c1_362, %c4_363, %c1_364, %c0_365] : memref<2x6x30x48xf32, #tpu.memory_space<vmem>>, vector<1x1x28x48xf32>
    %310 = vector.shape_cast %309 : vector<1x1x28x48xf32> to vector<28x48xf32>
    %cst_366 = arith.constant dense<0.000000e+00> : vector<28x32xf32>
    %311 = tpu.matmul %310, %151, %cst_366 {dimension_numbers = #tpu.dot_dimension_numbers<[1], [0], [0], [1], [0, 0, 1, 1], [], []>} : vector<28x48xf32>, vector<48x32xf32>, vector<28x32xf32> -> vector<28x32xf32>
    %312 = arith.addf %308, %311 : vector<28x32xf32>
    %313 = arith.mulf %312, %154 : vector<28x32xf32>
    %314 = arith.addf %313, %157 : vector<28x32xf32>
    %cst_367 = arith.constant 0.000000e+00 : f32
    %315 = vector.broadcast %cst_367 : f32 to vector<28x32xf32>
    %316 = arith.maximumf %314, %315 : vector<28x32xf32>
    %c1_368 = arith.constant 1 : index
    %c3_369 = arith.constant 3 : index
    %c1_370 = arith.constant 1 : index
    %c0_371 = arith.constant 0 : index
    %317 = vector.load %arg17[%c1_368, %c3_369, %c1_370, %c0_371] : memref<2x6x30x48xf32, #tpu.memory_space<vmem>>, vector<1x1x28x48xf32>
    %318 = vector.shape_cast %317 : vector<1x1x28x48xf32> to vector<28x48xf32>
    %cst_372 = arith.constant dense<0.000000e+00> : vector<28x32xf32>
    %319 = tpu.matmul %318, %147, %cst_372 {dimension_numbers = #tpu.dot_dimension_numbers<[1], [0], [0], [1], [0, 0, 1, 1], [], []>} : vector<28x48xf32>, vector<48x32xf32>, vector<28x32xf32> -> vector<28x32xf32>
    %c1_373 = arith.constant 1 : index
    %c4_374 = arith.constant 4 : index
    %c1_375 = arith.constant 1 : index
    %c0_376 = arith.constant 0 : index
    %320 = vector.load %arg17[%c1_373, %c4_374, %c1_375, %c0_376] : memref<2x6x30x48xf32, #tpu.memory_space<vmem>>, vector<1x1x28x48xf32>
    %321 = vector.shape_cast %320 : vector<1x1x28x48xf32> to vector<28x48xf32>
    %cst_377 = arith.constant dense<0.000000e+00> : vector<28x32xf32>
    %322 = tpu.matmul %321, %149, %cst_377 {dimension_numbers = #tpu.dot_dimension_numbers<[1], [0], [0], [1], [0, 0, 1, 1], [], []>} : vector<28x48xf32>, vector<48x32xf32>, vector<28x32xf32> -> vector<28x32xf32>
    %323 = arith.addf %319, %322 : vector<28x32xf32>
    %c1_378 = arith.constant 1 : index
    %c5_379 = arith.constant 5 : index
    %c1_380 = arith.constant 1 : index
    %c0_381 = arith.constant 0 : index
    %324 = vector.load %arg17[%c1_378, %c5_379, %c1_380, %c0_381] : memref<2x6x30x48xf32, #tpu.memory_space<vmem>>, vector<1x1x28x48xf32>
    %325 = vector.shape_cast %324 : vector<1x1x28x48xf32> to vector<28x48xf32>
    %cst_382 = arith.constant dense<0.000000e+00> : vector<28x32xf32>
    %326 = tpu.matmul %325, %151, %cst_382 {dimension_numbers = #tpu.dot_dimension_numbers<[1], [0], [0], [1], [0, 0, 1, 1], [], []>} : vector<28x48xf32>, vector<48x32xf32>, vector<28x32xf32> -> vector<28x32xf32>
    %327 = arith.addf %323, %326 : vector<28x32xf32>
    %328 = arith.mulf %327, %154 : vector<28x32xf32>
    %329 = arith.addf %328, %157 : vector<28x32xf32>
    %cst_383 = arith.constant 0.000000e+00 : f32
    %330 = vector.broadcast %cst_383 : f32 to vector<28x32xf32>
    %331 = arith.maximumf %329, %330 : vector<28x32xf32>
    %332 = arith.maximumf %316, %331 : vector<28x32xf32>
    %c0_384 = arith.constant 0 : index
    %c0_385 = arith.constant 0 : index
    %333 = vector.load %arg20[%c0_384, %c0_385] : memref<56x64xf32, #tpu.memory_space<vmem>>, vector<28x32xf32>
    tpu.vector_store %arg20[%c0_384, %c0_385], %332 {strides = array<i32>} : memref<56x64xf32, #tpu.memory_space<vmem>>, vector<28x32xf32>,
    %c0_386 = arith.constant 0 : index
    %c0_387 = arith.constant 0 : index
    %334 = tpu.strided_load %arg20[%c0_386, %c0_387] {strides = array<i32: 2, 1>} : memref<56x64xf32, #tpu.memory_space<vmem>>, vector<14x32xf32>
    %c1_388 = arith.constant 1 : index
    %c0_389 = arith.constant 0 : index
    %335 = tpu.strided_load %arg20[%c1_388, %c0_389] {strides = array<i32: 2, 1>} : memref<56x64xf32, #tpu.memory_space<vmem>>, vector<14x32xf32>
    %336 = arith.maximumf %334, %335 : vector<14x32xf32>
    %c1_390 = arith.constant 1 : index
    %c2_391 = arith.constant 2 : index
    %c2_392 = arith.constant 2 : index
    %c0_393 = arith.constant 0 : index
    %337 = vector.load %arg18[%c1_390, %c2_391, %c2_392, %c0_393] : memref<2x4x16x96xf32, #tpu.memory_space<vmem>>, vector<1x1x14x32xf32>
    %338 = vector.shape_cast %337 : vector<1x1x14x32xf32> to vector<14x32xf32>
    %339 = vector.shape_cast %336 : vector<14x32xf32> to vector<1x1x14x32xf32>
    tpu.vector_store %arg18[%c1_390, %c2_391, %c2_392, %c0_393], %339 {strides = array<i32>} : memref<2x4x16x96xf32, #tpu.memory_space<vmem>>, vector<1x1x14x32xf32>,
    %c1_394 = arith.constant 1 : index
    %c2_395 = arith.constant 2 : index
    %c1_396 = arith.constant 1 : index
    %c32_397 = arith.constant 32 : index
    %340 = vector.load %arg18[%c1_394, %c2_395, %c1_396, %c32_397] : memref<2x4x16x96xf32, #tpu.memory_space<vmem>>, vector<1x1x14x32xf32>
    %341 = vector.shape_cast %340 : vector<1x1x14x32xf32> to vector<14x32xf32>
    %342 = vector.shape_cast %336 : vector<14x32xf32> to vector<1x1x14x32xf32>
    tpu.vector_store %arg18[%c1_394, %c2_395, %c1_396, %c32_397], %342 {strides = array<i32>} : memref<2x4x16x96xf32, #tpu.memory_space<vmem>>, vector<1x1x14x32xf32>,
    %c1_398 = arith.constant 1 : index
    %c2_399 = arith.constant 2 : index
    %c0_400 = arith.constant 0 : index
    %c64_401 = arith.constant 64 : index
    %343 = vector.load %arg18[%c1_398, %c2_399, %c0_400, %c64_401] : memref<2x4x16x96xf32, #tpu.memory_space<vmem>>, vector<1x1x14x32xf32>
    %344 = vector.shape_cast %343 : vector<1x1x14x32xf32> to vector<14x32xf32>
    %345 = vector.shape_cast %336 : vector<14x32xf32> to vector<1x1x14x32xf32>
    tpu.vector_store %arg18[%c1_398, %c2_399, %c0_400, %c64_401], %345 {strides = array<i32>} : memref<2x4x16x96xf32, #tpu.memory_space<vmem>>, vector<1x1x14x32xf32>,
    %c0_402 = arith.constant 0 : index
    %c0_403 = arith.constant 0 : index
    %c1_404 = arith.constant 1 : index
    %c0_405 = arith.constant 0 : index
    %346 = vector.load %arg18[%c0_402, %c0_403, %c1_404, %c0_405] : memref<2x4x16x96xf32, #tpu.memory_space<vmem>>, vector<1x1x14x96xf32>
    %347 = vector.shape_cast %346 : vector<1x1x14x96xf32> to vector<14x96xf32>
    %cst_406 = arith.constant dense<0.000000e+00> : vector<14x64xf32>
    %348 = tpu.matmul %347, %159, %cst_406 {dimension_numbers = #tpu.dot_dimension_numbers<[1], [0], [0], [1], [0, 0, 1, 1], [], []>} : vector<14x96xf32>, vector<96x64xf32>, vector<14x64xf32> -> vector<14x64xf32>
    %c0_407 = arith.constant 0 : index
    %c1_408 = arith.constant 1 : index
    %c1_409 = arith.constant 1 : index
    %c0_410 = arith.constant 0 : index
    %349 = vector.load %arg18[%c0_407, %c1_408, %c1_409, %c0_410] : memref<2x4x16x96xf32, #tpu.memory_space<vmem>>, vector<1x1x14x96xf32>
    %350 = vector.shape_cast %349 : vector<1x1x14x96xf32> to vector<14x96xf32>
    %cst_411 = arith.constant dense<0.000000e+00> : vector<14x64xf32>
    %351 = tpu.matmul %350, %161, %cst_411 {dimension_numbers = #tpu.dot_dimension_numbers<[1], [0], [0], [1], [0, 0, 1, 1], [], []>} : vector<14x96xf32>, vector<96x64xf32>, vector<14x64xf32> -> vector<14x64xf32>
    %352 = arith.addf %348, %351 : vector<14x64xf32>
    %c0_412 = arith.constant 0 : index
    %c2_413 = arith.constant 2 : index
    %c1_414 = arith.constant 1 : index
    %c0_415 = arith.constant 0 : index
    %353 = vector.load %arg18[%c0_412, %c2_413, %c1_414, %c0_415] : memref<2x4x16x96xf32, #tpu.memory_space<vmem>>, vector<1x1x14x96xf32>
    %354 = vector.shape_cast %353 : vector<1x1x14x96xf32> to vector<14x96xf32>
    %cst_416 = arith.constant dense<0.000000e+00> : vector<14x64xf32>
    %355 = tpu.matmul %354, %163, %cst_416 {dimension_numbers = #tpu.dot_dimension_numbers<[1], [0], [0], [1], [0, 0, 1, 1], [], []>} : vector<14x96xf32>, vector<96x64xf32>, vector<14x64xf32> -> vector<14x64xf32>
    %356 = arith.addf %352, %355 : vector<14x64xf32>
    %357 = arith.mulf %356, %166 : vector<14x64xf32>
    %358 = arith.addf %357, %169 : vector<14x64xf32>
    %cst_417 = arith.constant 0.000000e+00 : f32
    %359 = vector.broadcast %cst_417 : f32 to vector<14x64xf32>
    %360 = arith.maximumf %358, %359 : vector<14x64xf32>
    %c0_418 = arith.constant 0 : index
    %c1_419 = arith.constant 1 : index
    %c1_420 = arith.constant 1 : index
    %c0_421 = arith.constant 0 : index
    %361 = vector.load %arg18[%c0_418, %c1_419, %c1_420, %c0_421] : memref<2x4x16x96xf32, #tpu.memory_space<vmem>>, vector<1x1x14x96xf32>
    %362 = vector.shape_cast %361 : vector<1x1x14x96xf32> to vector<14x96xf32>
    %cst_422 = arith.constant dense<0.000000e+00> : vector<14x64xf32>
    %363 = tpu.matmul %362, %159, %cst_422 {dimension_numbers = #tpu.dot_dimension_numbers<[1], [0], [0], [1], [0, 0, 1, 1], [], []>} : vector<14x96xf32>, vector<96x64xf32>, vector<14x64xf32> -> vector<14x64xf32>
    %c0_423 = arith.constant 0 : index
    %c2_424 = arith.constant 2 : index
    %c1_425 = arith.constant 1 : index
    %c0_426 = arith.constant 0 : index
    %364 = vector.load %arg18[%c0_423, %c2_424, %c1_425, %c0_426] : memref<2x4x16x96xf32, #tpu.memory_space<vmem>>, vector<1x1x14x96xf32>
    %365 = vector.shape_cast %364 : vector<1x1x14x96xf32> to vector<14x96xf32>
    %cst_427 = arith.constant dense<0.000000e+00> : vector<14x64xf32>
    %366 = tpu.matmul %365, %161, %cst_427 {dimension_numbers = #tpu.dot_dimension_numbers<[1], [0], [0], [1], [0, 0, 1, 1], [], []>} : vector<14x96xf32>, vector<96x64xf32>, vector<14x64xf32> -> vector<14x64xf32>
    %367 = arith.addf %363, %366 : vector<14x64xf32>
    %c0_428 = arith.constant 0 : index
    %c3_429 = arith.constant 3 : index
    %c1_430 = arith.constant 1 : index
    %c0_431 = arith.constant 0 : index
    %368 = vector.load %arg18[%c0_428, %c3_429, %c1_430, %c0_431] : memref<2x4x16x96xf32, #tpu.memory_space<vmem>>, vector<1x1x14x96xf32>
    %369 = vector.shape_cast %368 : vector<1x1x14x96xf32> to vector<14x96xf32>
    %cst_432 = arith.constant dense<0.000000e+00> : vector<14x64xf32>
    %370 = tpu.matmul %369, %163, %cst_432 {dimension_numbers = #tpu.dot_dimension_numbers<[1], [0], [0], [1], [0, 0, 1, 1], [], []>} : vector<14x96xf32>, vector<96x64xf32>, vector<14x64xf32> -> vector<14x64xf32>
    %371 = arith.addf %367, %370 : vector<14x64xf32>
    %372 = arith.mulf %371, %166 : vector<14x64xf32>
    %373 = arith.addf %372, %169 : vector<14x64xf32>
    %cst_433 = arith.constant 0.000000e+00 : f32
    %374 = vector.broadcast %cst_433 : f32 to vector<14x64xf32>
    %375 = arith.maximumf %373, %374 : vector<14x64xf32>
    %376 = arith.maximumf %360, %375 : vector<14x64xf32>
    %c0_434 = arith.constant 0 : index
    %c0_435 = arith.constant 0 : index
    %377 = vector.load %arg20[%c0_434, %c0_435] : memref<56x64xf32, #tpu.memory_space<vmem>>, vector<14x64xf32>
    tpu.vector_store %arg20[%c0_434, %c0_435], %376 {strides = array<i32>} : memref<56x64xf32, #tpu.memory_space<vmem>>, vector<14x64xf32>,
    %c0_436 = arith.constant 0 : index
    %c0_437 = arith.constant 0 : index
    %378 = tpu.strided_load %arg20[%c0_436, %c0_437] {strides = array<i32: 2, 1>} : memref<56x64xf32, #tpu.memory_space<vmem>>, vector<7x64xf32>
    %c1_438 = arith.constant 1 : index
    %c0_439 = arith.constant 0 : index
    %379 = tpu.strided_load %arg20[%c1_438, %c0_439] {strides = array<i32: 2, 1>} : memref<56x64xf32, #tpu.memory_space<vmem>>, vector<7x64xf32>
    %380 = arith.maximumf %378, %379 : vector<7x64xf32>
    %c0_440 = arith.constant 0 : index
    %c0_441 = arith.constant 0 : index
    %c0_442 = arith.constant 0 : index
    %381 = vector.load %arg19[%c0_440, %c0_441, %c0_442] : memref<2x7x64xf32, #tpu.memory_space<vmem>>, vector<1x7x64xf32>
    %382 = vector.shape_cast %381 : vector<1x7x64xf32> to vector<7x64xf32>
    %383 = vector.shape_cast %380 : vector<7x64xf32> to vector<1x7x64xf32>
    tpu.vector_store %arg19[%c0_440, %c0_441, %c0_442], %383 {strides = array<i32>} : memref<2x7x64xf32, #tpu.memory_space<vmem>>, vector<1x7x64xf32>,
    %c1_443 = arith.constant 1 : index
    %c0_444 = arith.constant 0 : index
    %c1_445 = arith.constant 1 : index
    %c0_446 = arith.constant 0 : index
    %384 = vector.load %arg18[%c1_443, %c0_444, %c1_445, %c0_446] : memref<2x4x16x96xf32, #tpu.memory_space<vmem>>, vector<1x1x14x96xf32>
    %385 = vector.shape_cast %384 : vector<1x1x14x96xf32> to vector<14x96xf32>
    %cst_447 = arith.constant dense<0.000000e+00> : vector<14x64xf32>
    %386 = tpu.matmul %385, %159, %cst_447 {dimension_numbers = #tpu.dot_dimension_numbers<[1], [0], [0], [1], [0, 0, 1, 1], [], []>} : vector<14x96xf32>, vector<96x64xf32>, vector<14x64xf32> -> vector<14x64xf32>
    %c1_448 = arith.constant 1 : index
    %c1_449 = arith.constant 1 : index
    %c1_450 = arith.constant 1 : index
    %c0_451 = arith.constant 0 : index
    %387 = vector.load %arg18[%c1_448, %c1_449, %c1_450, %c0_451] : memref<2x4x16x96xf32, #tpu.memory_space<vmem>>, vector<1x1x14x96xf32>
    %388 = vector.shape_cast %387 : vector<1x1x14x96xf32> to vector<14x96xf32>
    %cst_452 = arith.constant dense<0.000000e+00> : vector<14x64xf32>
    %389 = tpu.matmul %388, %161, %cst_452 {dimension_numbers = #tpu.dot_dimension_numbers<[1], [0], [0], [1], [0, 0, 1, 1], [], []>} : vector<14x96xf32>, vector<96x64xf32>, vector<14x64xf32> -> vector<14x64xf32>
    %390 = arith.addf %386, %389 : vector<14x64xf32>
    %c1_453 = arith.constant 1 : index
    %c2_454 = arith.constant 2 : index
    %c1_455 = arith.constant 1 : index
    %c0_456 = arith.constant 0 : index
    %391 = vector.load %arg18[%c1_453, %c2_454, %c1_455, %c0_456] : memref<2x4x16x96xf32, #tpu.memory_space<vmem>>, vector<1x1x14x96xf32>
    %392 = vector.shape_cast %391 : vector<1x1x14x96xf32> to vector<14x96xf32>
    %cst_457 = arith.constant dense<0.000000e+00> : vector<14x64xf32>
    %393 = tpu.matmul %392, %163, %cst_457 {dimension_numbers = #tpu.dot_dimension_numbers<[1], [0], [0], [1], [0, 0, 1, 1], [], []>} : vector<14x96xf32>, vector<96x64xf32>, vector<14x64xf32> -> vector<14x64xf32>
    %394 = arith.addf %390, %393 : vector<14x64xf32>
    %395 = arith.mulf %394, %166 : vector<14x64xf32>
    %396 = arith.addf %395, %169 : vector<14x64xf32>
    %cst_458 = arith.constant 0.000000e+00 : f32
    %397 = vector.broadcast %cst_458 : f32 to vector<14x64xf32>
    %398 = arith.maximumf %396, %397 : vector<14x64xf32>
    %c1_459 = arith.constant 1 : index
    %c1_460 = arith.constant 1 : index
    %c1_461 = arith.constant 1 : index
    %c0_462 = arith.constant 0 : index
    %399 = vector.load %arg18[%c1_459, %c1_460, %c1_461, %c0_462] : memref<2x4x16x96xf32, #tpu.memory_space<vmem>>, vector<1x1x14x96xf32>
    %400 = vector.shape_cast %399 : vector<1x1x14x96xf32> to vector<14x96xf32>
    %cst_463 = arith.constant dense<0.000000e+00> : vector<14x64xf32>
    %401 = tpu.matmul %400, %159, %cst_463 {dimension_numbers = #tpu.dot_dimension_numbers<[1], [0], [0], [1], [0, 0, 1, 1], [], []>} : vector<14x96xf32>, vector<96x64xf32>, vector<14x64xf32> -> vector<14x64xf32>
    %c1_464 = arith.constant 1 : index
    %c2_465 = arith.constant 2 : index
    %c1_466 = arith.constant 1 : index
    %c0_467 = arith.constant 0 : index
    %402 = vector.load %arg18[%c1_464, %c2_465, %c1_466, %c0_467] : memref<2x4x16x96xf32, #tpu.memory_space<vmem>>, vector<1x1x14x96xf32>
    %403 = vector.shape_cast %402 : vector<1x1x14x96xf32> to vector<14x96xf32>
    %cst_468 = arith.constant dense<0.000000e+00> : vector<14x64xf32>
    %404 = tpu.matmul %403, %161, %cst_468 {dimension_numbers = #tpu.dot_dimension_numbers<[1], [0], [0], [1], [0, 0, 1, 1], [], []>} : vector<14x96xf32>, vector<96x64xf32>, vector<14x64xf32> -> vector<14x64xf32>
    %405 = arith.addf %401, %404 : vector<14x64xf32>
    %c1_469 = arith.constant 1 : index
    %c3_470 = arith.constant 3 : index
    %c1_471 = arith.constant 1 : index
    %c0_472 = arith.constant 0 : index
    %406 = vector.load %arg18[%c1_469, %c3_470, %c1_471, %c0_472] : memref<2x4x16x96xf32, #tpu.memory_space<vmem>>, vector<1x1x14x96xf32>
    %407 = vector.shape_cast %406 : vector<1x1x14x96xf32> to vector<14x96xf32>
    %cst_473 = arith.constant dense<0.000000e+00> : vector<14x64xf32>
    %408 = tpu.matmul %407, %163, %cst_473 {dimension_numbers = #tpu.dot_dimension_numbers<[1], [0], [0], [1], [0, 0, 1, 1], [], []>} : vector<14x96xf32>, vector<96x64xf32>, vector<14x64xf32> -> vector<14x64xf32>
    %409 = arith.addf %405, %408 : vector<14x64xf32>
    %410 = arith.mulf %409, %166 : vector<14x64xf32>
    %411 = arith.addf %410, %169 : vector<14x64xf32>
    %cst_474 = arith.constant 0.000000e+00 : f32
    %412 = vector.broadcast %cst_474 : f32 to vector<14x64xf32>
    %413 = arith.maximumf %411, %412 : vector<14x64xf32>
    %414 = arith.maximumf %398, %413 : vector<14x64xf32>
    %c0_475 = arith.constant 0 : index
    %c0_476 = arith.constant 0 : index
    %415 = vector.load %arg20[%c0_475, %c0_476] : memref<56x64xf32, #tpu.memory_space<vmem>>, vector<14x64xf32>
    tpu.vector_store %arg20[%c0_475, %c0_476], %414 {strides = array<i32>} : memref<56x64xf32, #tpu.memory_space<vmem>>, vector<14x64xf32>,
    %c0_477 = arith.constant 0 : index
    %c0_478 = arith.constant 0 : index
    %416 = tpu.strided_load %arg20[%c0_477, %c0_478] {strides = array<i32: 2, 1>} : memref<56x64xf32, #tpu.memory_space<vmem>>, vector<7x64xf32>
    %c1_479 = arith.constant 1 : index
    %c0_480 = arith.constant 0 : index
    %417 = tpu.strided_load %arg20[%c1_479, %c0_480] {strides = array<i32: 2, 1>} : memref<56x64xf32, #tpu.memory_space<vmem>>, vector<7x64xf32>
    %418 = arith.maximumf %416, %417 : vector<7x64xf32>
    %c1_481 = arith.constant 1 : index
    %c0_482 = arith.constant 0 : index
    %c0_483 = arith.constant 0 : index
    %419 = vector.load %arg19[%c1_481, %c0_482, %c0_483] : memref<2x7x64xf32, #tpu.memory_space<vmem>>, vector<1x7x64xf32>
    %420 = vector.shape_cast %419 : vector<1x7x64xf32> to vector<7x64xf32>
    %421 = vector.shape_cast %418 : vector<7x64xf32> to vector<1x7x64xf32>
    tpu.vector_store %arg19[%c1_481, %c0_482, %c0_483], %421 {strides = array<i32>} : memref<2x7x64xf32, #tpu.memory_space<vmem>>, vector<1x7x64xf32>,
    %c0_484 = arith.constant 0 : index
    %c0_485 = arith.constant 0 : index
    %c0_486 = arith.constant 0 : index
    %422 = vector.load %arg19[%c0_484, %c0_485, %c0_486] : memref<2x7x64xf32, #tpu.memory_space<vmem>>, vector<2x1x64xf32>
    %423 = vector.shape_cast %422 : vector<2x1x64xf32> to vector<2x64xf32>
    %c0_487 = arith.constant 0 : index
    %c0_488 = arith.constant 0 : index
    %c0_489 = arith.constant 0 : index
    %424 = vector.load %arg10[%c0_487, %c0_488, %c0_489] : memref<7x64x128xf32, #tpu.memory_space<vmem>>, vector<1x64x128xf32>
    %425 = vector.shape_cast %424 : vector<1x64x128xf32> to vector<64x128xf32>
    %cst_490 = arith.constant dense<0.000000e+00> : vector<2x128xf32>
    %426 = tpu.matmul %423, %425, %cst_490 {dimension_numbers = #tpu.dot_dimension_numbers<[1], [0], [0], [1], [0, 0, 1, 1], [], []>} : vector<2x64xf32>, vector<64x128xf32>, vector<2x128xf32> -> vector<2x128xf32>
    %c0_491 = arith.constant 0 : index
    %c1_492 = arith.constant 1 : index
    %c0_493 = arith.constant 0 : index
    %427 = vector.load %arg19[%c0_491, %c1_492, %c0_493] : memref<2x7x64xf32, #tpu.memory_space<vmem>>, vector<2x1x64xf32>
    %428 = vector.shape_cast %427 : vector<2x1x64xf32> to vector<2x64xf32>
    %c1_494 = arith.constant 1 : index
    %c0_495 = arith.constant 0 : index
    %c0_496 = arith.constant 0 : index
    %429 = vector.load %arg10[%c1_494, %c0_495, %c0_496] : memref<7x64x128xf32, #tpu.memory_space<vmem>>, vector<1x64x128xf32>
    %430 = vector.shape_cast %429 : vector<1x64x128xf32> to vector<64x128xf32>
    %cst_497 = arith.constant dense<0.000000e+00> : vector<2x128xf32>
    %431 = tpu.matmul %428, %430, %cst_497 {dimension_numbers = #tpu.dot_dimension_numbers<[1], [0], [0], [1], [0, 0, 1, 1], [], []>} : vector<2x64xf32>, vector<64x128xf32>, vector<2x128xf32> -> vector<2x128xf32>
    %432 = arith.addf %426, %431 : vector<2x128xf32>
    %c0_498 = arith.constant 0 : index
    %c2_499 = arith.constant 2 : index
    %c0_500 = arith.constant 0 : index
    %433 = vector.load %arg19[%c0_498, %c2_499, %c0_500] : memref<2x7x64xf32, #tpu.memory_space<vmem>>, vector<2x1x64xf32>
    %434 = vector.shape_cast %433 : vector<2x1x64xf32> to vector<2x64xf32>
    %c2_501 = arith.constant 2 : index
    %c0_502 = arith.constant 0 : index
    %c0_503 = arith.constant 0 : index
    %435 = vector.load %arg10[%c2_501, %c0_502, %c0_503] : memref<7x64x128xf32, #tpu.memory_space<vmem>>, vector<1x64x128xf32>
    %436 = vector.shape_cast %435 : vector<1x64x128xf32> to vector<64x128xf32>
    %cst_504 = arith.constant dense<0.000000e+00> : vector<2x128xf32>
    %437 = tpu.matmul %434, %436, %cst_504 {dimension_numbers = #tpu.dot_dimension_numbers<[1], [0], [0], [1], [0, 0, 1, 1], [], []>} : vector<2x64xf32>, vector<64x128xf32>, vector<2x128xf32> -> vector<2x128xf32>
    %438 = arith.addf %432, %437 : vector<2x128xf32>
    %c0_505 = arith.constant 0 : index
    %c3_506 = arith.constant 3 : index
    %c0_507 = arith.constant 0 : index
    %439 = vector.load %arg19[%c0_505, %c3_506, %c0_507] : memref<2x7x64xf32, #tpu.memory_space<vmem>>, vector<2x1x64xf32>
    %440 = vector.shape_cast %439 : vector<2x1x64xf32> to vector<2x64xf32>
    %c3_508 = arith.constant 3 : index
    %c0_509 = arith.constant 0 : index
    %c0_510 = arith.constant 0 : index
    %441 = vector.load %arg10[%c3_508, %c0_509, %c0_510] : memref<7x64x128xf32, #tpu.memory_space<vmem>>, vector<1x64x128xf32>
    %442 = vector.shape_cast %441 : vector<1x64x128xf32> to vector<64x128xf32>
    %cst_511 = arith.constant dense<0.000000e+00> : vector<2x128xf32>
    %443 = tpu.matmul %440, %442, %cst_511 {dimension_numbers = #tpu.dot_dimension_numbers<[1], [0], [0], [1], [0, 0, 1, 1], [], []>} : vector<2x64xf32>, vector<64x128xf32>, vector<2x128xf32> -> vector<2x128xf32>
    %444 = arith.addf %438, %443 : vector<2x128xf32>
    %c0_512 = arith.constant 0 : index
    %c4_513 = arith.constant 4 : index
    %c0_514 = arith.constant 0 : index
    %445 = vector.load %arg19[%c0_512, %c4_513, %c0_514] : memref<2x7x64xf32, #tpu.memory_space<vmem>>, vector<2x1x64xf32>
    %446 = vector.shape_cast %445 : vector<2x1x64xf32> to vector<2x64xf32>
    %c4_515 = arith.constant 4 : index
    %c0_516 = arith.constant 0 : index
    %c0_517 = arith.constant 0 : index
    %447 = vector.load %arg10[%c4_515, %c0_516, %c0_517] : memref<7x64x128xf32, #tpu.memory_space<vmem>>, vector<1x64x128xf32>
    %448 = vector.shape_cast %447 : vector<1x64x128xf32> to vector<64x128xf32>
    %cst_518 = arith.constant dense<0.000000e+00> : vector<2x128xf32>
    %449 = tpu.matmul %446, %448, %cst_518 {dimension_numbers = #tpu.dot_dimension_numbers<[1], [0], [0], [1], [0, 0, 1, 1], [], []>} : vector<2x64xf32>, vector<64x128xf32>, vector<2x128xf32> -> vector<2x128xf32>
    %450 = arith.addf %444, %449 : vector<2x128xf32>
    %c0_519 = arith.constant 0 : index
    %c5_520 = arith.constant 5 : index
    %c0_521 = arith.constant 0 : index
    %451 = vector.load %arg19[%c0_519, %c5_520, %c0_521] : memref<2x7x64xf32, #tpu.memory_space<vmem>>, vector<2x1x64xf32>
    %452 = vector.shape_cast %451 : vector<2x1x64xf32> to vector<2x64xf32>
    %c5_522 = arith.constant 5 : index
    %c0_523 = arith.constant 0 : index
    %c0_524 = arith.constant 0 : index
    %453 = vector.load %arg10[%c5_522, %c0_523, %c0_524] : memref<7x64x128xf32, #tpu.memory_space<vmem>>, vector<1x64x128xf32>
    %454 = vector.shape_cast %453 : vector<1x64x128xf32> to vector<64x128xf32>
    %cst_525 = arith.constant dense<0.000000e+00> : vector<2x128xf32>
    %455 = tpu.matmul %452, %454, %cst_525 {dimension_numbers = #tpu.dot_dimension_numbers<[1], [0], [0], [1], [0, 0, 1, 1], [], []>} : vector<2x64xf32>, vector<64x128xf32>, vector<2x128xf32> -> vector<2x128xf32>
    %456 = arith.addf %450, %455 : vector<2x128xf32>
    %c0_526 = arith.constant 0 : index
    %c6 = arith.constant 6 : index
    %c0_527 = arith.constant 0 : index
    %457 = vector.load %arg19[%c0_526, %c6, %c0_527] : memref<2x7x64xf32, #tpu.memory_space<vmem>>, vector<2x1x64xf32>
    %458 = vector.shape_cast %457 : vector<2x1x64xf32> to vector<2x64xf32>
    %c6_528 = arith.constant 6 : index
    %c0_529 = arith.constant 0 : index
    %c0_530 = arith.constant 0 : index
    %459 = vector.load %arg10[%c6_528, %c0_529, %c0_530] : memref<7x64x128xf32, #tpu.memory_space<vmem>>, vector<1x64x128xf32>
    %460 = vector.shape_cast %459 : vector<1x64x128xf32> to vector<64x128xf32>
    %cst_531 = arith.constant dense<0.000000e+00> : vector<2x128xf32>
    %461 = tpu.matmul %458, %460, %cst_531 {dimension_numbers = #tpu.dot_dimension_numbers<[1], [0], [0], [1], [0, 0, 1, 1], [], []>} : vector<2x64xf32>, vector<64x128xf32>, vector<2x128xf32> -> vector<2x128xf32>
    %462 = arith.addf %456, %461 : vector<2x128xf32>
    %c0_532 = arith.constant 0 : index
    %c0_533 = arith.constant 0 : index
    %463 = vector.load %arg11[%c0_532, %c0_533] : memref<1x128xf32, #tpu.memory_space<vmem>>, vector<1x128xf32>
    %464 = vector.broadcast %463 : vector<1x128xf32> to vector<2x128xf32>
    %465 = arith.mulf %462, %464 : vector<2x128xf32>
    %c0_534 = arith.constant 0 : index
    %c0_535 = arith.constant 0 : index
    %466 = vector.load %arg12[%c0_534, %c0_535] : memref<1x128xf32, #tpu.memory_space<vmem>>, vector<1x128xf32>
    %467 = vector.broadcast %466 : vector<1x128xf32> to vector<2x128xf32>
    %468 = arith.addf %465, %467 : vector<2x128xf32>
    %cst_536 = arith.constant 0.000000e+00 : f32
    %469 = vector.broadcast %cst_536 : f32 to vector<2x128xf32>
    %470 = arith.maximumf %468, %469 : vector<2x128xf32>
    %c0_537 = arith.constant 0 : index
    %c0_538 = arith.constant 0 : index
    %471 = vector.load %arg13[%c0_537, %c0_538] : memref<128x2xf32, #tpu.memory_space<vmem>>, vector<128x2xf32>
    %cst_539 = arith.constant dense<0.000000e+00> : vector<2x2xf32>
    %472 = tpu.matmul %470, %471, %cst_539 {dimension_numbers = #tpu.dot_dimension_numbers<[1], [0], [0], [1], [0, 0, 1, 1], [], []>} : vector<2x128xf32>, vector<128x2xf32>, vector<2x2xf32> -> vector<2x2xf32>
    %c0_540 = arith.constant 0 : index
    %c0_541 = arith.constant 0 : index
    %473 = vector.load %arg14[%c0_540, %c0_541] : memref<1x2xf32, #tpu.memory_space<vmem>>, vector<1x2xf32>
    %474 = vector.broadcast %473 : vector<1x2xf32> to vector<2x2xf32>
    %475 = arith.addf %472, %474 : vector<2x2xf32>
    %c0_542 = arith.constant 0 : index
    %c0_543 = arith.constant 0 : index
    %476 = vector.load %arg15[%c0_542, %c0_543] : memref<2x2xf32, #tpu.memory_space<vmem>>, vector<2x2xf32>
    tpu.vector_store %arg15[%c0_542, %c0_543], %475 {strides = array<i32>} : memref<2x2xf32, #tpu.memory_space<vmem>>, vector<2x2xf32>,
    return
  }
}

</mosaic_0001>

<llo_original>
// kernel: net_forward.1
$region0: #{net_forward.1}
  #allocation0 [shape = 'u32[]', space=smem, size = 0x4, offset = 0x4, fixed_abs, tag = 'smem constant byte address 0x4 - core index']
  #allocation1 [shape = 'u32[144,128]{1,0:T(1,128)}', space=vmem, size = 0x12000, scoped, tag = 'internal scratch']
  #allocation2 [shape = 'f32[864,16]{1,0:T(8,128)}', space=vmem, size = 0x6c000, scoped, tag = 'scratch operand']
  #allocation3 [shape = 'f32[2,6,30,48]{3,2,1,0:T(8,128)}', space=vmem, size = 0x30000, scoped, tag = 'scratch operand']
  #allocation4 [shape = 'f32[2,4,16,96]{3,2,1,0:T(8,128)}', space=vmem, size = 0x10000, scoped, tag = 'scratch operand']
  #allocation5 [shape = 'f32[2,7,64]{2,1,0:T(8,128)}', space=vmem, size = 0x2000, scoped, tag = 'scratch operand']
  #allocation6 [shape = 'f32[56,64]{1,0:T(8,128)}', space=vmem, size = 0x7000, scoped, tag = 'scratch operand']
  %s0 = inlined_call_operand.vmem [shape: f32[864,9], index: 0, kind: input, shape index: {}]
  %s1 = inlined_call_operand.vmem [shape: f32[9,16], index: 1, kind: input, shape index: {}]
  %s2 = inlined_call_operand.vmem [shape: f32[1,16], index: 2, kind: input, shape index: {}]
  %s3 = inlined_call_operand.vmem [shape: f32[1,16], index: 3, kind: input, shape index: {}]
  %s4 = inlined_call_operand.vmem [shape: f32[3,48,32], index: 4, kind: input, shape index: {}]
  %s5 = inlined_call_operand.vmem [shape: f32[1,32], index: 5, kind: input, shape index: {}]
  %s6 = inlined_call_operand.vmem [shape: f32[1,32], index: 6, kind: input, shape index: {}]
  %s7 = inlined_call_operand.vmem [shape: f32[3,96,64], index: 7, kind: input, shape index: {}]
  %s8 = inlined_call_operand.vmem [shape: f32[1,64], index: 8, kind: input, shape index: {}]
  %s9 = inlined_call_operand.vmem [shape: f32[1,64], index: 9, kind: input, shape index: {}]
  %s10 = inlined_call_operand.vmem [shape: f32[7,64,128], index: 10, kind: input, shape index: {}]
  %s11 = inlined_call_operand.vmem [shape: f32[1,128], index: 11, kind: input, shape index: {}]
  %s12 = inlined_call_operand.vmem [shape: f32[1,128], index: 12, kind: input, shape index: {}]
  %s13 = inlined_call_operand.vmem [shape: f32[128,2], index: 13, kind: input, shape index: {}]
  %s14 = inlined_call_operand.vmem [shape: f32[1,2], index: 14, kind: input, shape index: {}]
  %s15 = inlined_call_operand.hbm [shape: f32[2,2], index: 15, kind: output, shape index: {}]
  %s16 = sld [smem:[#allocation0]]
  $region70: #{net_forward.1} parent=0
    _
  %s18 = ssub.s32 1, %s16
  %s19 = scalar_select 0, %s18, %s16
  $region1: #{net_forward.1} parent=0
    #allocation7 [shape = 'u8[1024]{0}', space=vmem, size = 0x400, scoped, tag = 'output window, operand 0, single buffered']
    #allocation8 [shape = 's32[1]{0}', space=sflag, size = 0x4, scoped, tag = 'scoped memory for net_forward.1']
    %20 = vsyncpa [#allocation8], 0
    // Predicated region
    $region2: #{net_forward.1} parent=1 // pred_check
      _
    $region3: #{net_forward.1} parent=1 // pred_check_branch
      %22 = sbr.rel (0) target = $region5
    $region4: #{net_forward.1} parent=1 // pred_region
      _
    $region5: #{net_forward.1} parent=1 // pred_fallthru
      _
    // Predicated region
    $region6: #{net_forward.1} parent=1 // pred_check
      _
    $region7: #{net_forward.1} parent=1 // pred_check_branch
      %24 = sbr.rel (0) target = $region9
    $region8: #{net_forward.1} parent=1 // pred_region
      _
    $region9: #{net_forward.1} parent=1 // pred_fallthru
      _
    // Predicated region
    $region10: #{net_forward.1} parent=1 // pred_check
      _
    $region11: #{net_forward.1} parent=1 // pred_check_branch
      %26 = sbr.rel (0) target = $region13
    $region12: #{net_forward.1} parent=1 // pred_region
      _
    $region13: #{net_forward.1} parent=1 // pred_fallthru
      _
    // Predicated region
    $region14: #{net_forward.1} parent=1 // pred_check
      _
    $region15: #{net_forward.1} parent=1 // pred_check_branch
      %28 = sbr.rel (0) target = $region17
    $region16: #{net_forward.1} parent=1 // pred_region
      _
    $region17: #{net_forward.1} parent=1 // pred_fallthru
      _
    // Predicated region
    $region18: #{net_forward.1} parent=1 // pred_check
      _
    $region19: #{net_forward.1} parent=1 // pred_check_branch
      %30 = sbr.rel (0) target = $region21
    $region20: #{net_forward.1} parent=1 // pred_region
      _
    $region21: #{net_forward.1} parent=1 // pred_fallthru
      _
    // Predicated region
    $region22: #{net_forward.1} parent=1 // pred_check
      _
    $region23: #{net_forward.1} parent=1 // pred_check_branch
      %32 = sbr.rel (0) target = $region25
    $region24: #{net_forward.1} parent=1 // pred_region
      _
    $region25: #{net_forward.1} parent=1 // pred_fallthru
      _
    // Predicated region
    $region26: #{net_forward.1} parent=1 // pred_check
      _
    $region27: #{net_forward.1} parent=1 // pred_check_branch
      %34 = sbr.rel (0) target = $region29
    $region28: #{net_forward.1} parent=1 // pred_region
      _
    $region29: #{net_forward.1} parent=1 // pred_fallthru
      _
    // Predicated region
    $region30: #{net_forward.1} parent=1 // pred_check
      _
    $region31: #{net_forward.1} parent=1 // pred_check_branch
      %36 = sbr.rel (0) target = $region33
    $region32: #{net_forward.1} parent=1 // pred_region
      _
    $region33: #{net_forward.1} parent=1 // pred_fallthru
      _
    // Predicated region
    $region34: #{net_forward.1} parent=1 // pred_check
      _
    $region35: #{net_forward.1} parent=1 // pred_check_branch
      %38 = sbr.rel (0) target = $region37
    $region36: #{net_forward.1} parent=1 // pred_region
      _
    $region37: #{net_forward.1} parent=1 // pred_fallthru
      _
    // Predicated region
    $region38: #{net_forward.1} parent=1 // pred_check
      _
    $region39: #{net_forward.1} parent=1 // pred_check_branch
      %40 = sbr.rel (0) target = $region41
    $region40: #{net_forward.1} parent=1 // pred_region
      _
    $region41: #{net_forward.1} parent=1 // pred_fallthru
      _
    // Predicated region
    $region42: #{net_forward.1} parent=1 // pred_check
      _
    $region43: #{net_forward.1} parent=1 // pred_check_branch
      %42 = sbr.rel (0) target = $region45
    $region44: #{net_forward.1} parent=1 // pred_region
      _
    $region45: #{net_forward.1} parent=1 // pred_fallthru
      _
    // Predicated region
    $region46: #{net_forward.1} parent=1 // pred_check
      _
    $region47: #{net_forward.1} parent=1 // pred_check_branch
      %44 = sbr.rel (0) target = $region49
    $region48: #{net_forward.1} parent=1 // pred_region
      _
    $region49: #{net_forward.1} parent=1 // pred_fallthru
      _
    // Predicated region
    $region50: #{net_forward.1} parent=1 // pred_check
      _
    $region51: #{net_forward.1} parent=1 // pred_check_branch
      %46 = sbr.rel (0) target = $region53
    $region52: #{net_forward.1} parent=1 // pred_region
      _
    $region53: #{net_forward.1} parent=1 // pred_fallthru
      _
    // Predicated region
    $region54: #{net_forward.1} parent=1 // pred_check
      _
    $region55: #{net_forward.1} parent=1 // pred_check_branch
      %48 = sbr.rel (0) target = $region57
    $region56: #{net_forward.1} parent=1 // pred_region
      _
    $region57: #{net_forward.1} parent=1 // pred_fallthru
      _
    // Predicated region
    $region58: #{net_forward.1} parent=1 // pred_check
      _
    $region59: #{net_forward.1} parent=1 // pred_check_branch
      %50 = sbr.rel (0) target = $region61
    $region60: #{net_forward.1} parent=1 // pred_region
      _
    $region61: #{net_forward.1} parent=1 // pred_fallthru
      _
    %vm51 = vcmask 392192
    %52 = vst.msk [vmem:[#allocation3] sm:$0xff] %vm51, 0.0
    %53 = vst.msk [vmem:[#allocation3 + $0x8] sm:$0xff] %vm51, 0.0
    %54 = vst.msk [vmem:[#allocation3 + $0x10] sm:$0xff] %vm51, 0.0
    %vm55 = vcmask 390144
    %56 = vst.msk [vmem:[#allocation3 + $0x18] sm:$0x3f] %vm55, 0.0
    %57 = vst.msk [vmem:[#allocation3 + $0x20] sm:$0xff] %vm51, 0.0
    %58 = vst.msk [vmem:[#allocation3 + $0x28] sm:$0xff] %vm51, 0.0
    %59 = vst.msk [vmem:[#allocation3 + $0x30] sm:$0xff] %vm51, 0.0
    %60 = vst.msk [vmem:[#allocation3 + $0x38] sm:$0x3f] %vm55, 0.0
    %61 = vst.msk [vmem:[#allocation3 + $0x40] sm:$0xff] %vm51, 0.0
    %62 = vst.msk [vmem:[#allocation3 + $0x48] sm:$0xff] %vm51, 0.0
    %63 = vst.msk [vmem:[#allocation3 + $0x50] sm:$0xff] %vm51, 0.0
    %64 = vst.msk [vmem:[#allocation3 + $0x58] sm:$0x3f] %vm55, 0.0
    %65 = vst.msk [vmem:[#allocation3 + $0x60] sm:$0xff] %vm51, 0.0
    %66 = vst.msk [vmem:[#allocation3 + $0x68] sm:$0xff] %vm51, 0.0
    %67 = vst.msk [vmem:[#allocation3 + $0x70] sm:$0xff] %vm51, 0.0
    %68 = vst.msk [vmem:[#allocation3 + $0x78] sm:$0x3f] %vm55, 0.0
    %69 = vst.msk [vmem:[#allocation3 + $0x80] sm:$0xff] %vm51, 0.0
    %70 = vst.msk [vmem:[#allocation3 + $0x88] sm:$0xff] %vm51, 0.0
    %71 = vst.msk [vmem:[#allocation3 + $0x90] sm:$0xff] %vm51, 0.0
    %72 = vst.msk [vmem:[#allocation3 + $0x98] sm:$0x3f] %vm55, 0.0
    %73 = vst.msk [vmem:[#allocation3 + $0xa0] sm:$0xff] %vm51, 0.0
    %74 = vst.msk [vmem:[#allocation3 + $0xa8] sm:$0xff] %vm51, 0.0
    %75 = vst.msk [vmem:[#allocation3 + $0xb0] sm:$0xff] %vm51, 0.0
    %76 = vst.msk [vmem:[#allocation3 + $0xb8] sm:$0x3f] %vm55, 0.0
    %77 = vst.msk [vmem:[#allocation3 + $0xc0] sm:$0xff] %vm51, 0.0
    %78 = vst.msk [vmem:[#allocation3 + $0xc8] sm:$0xff] %vm51, 0.0
    %79 = vst.msk [vmem:[#allocation3 + $0xd0] sm:$0xff] %vm51, 0.0
    %80 = vst.msk [vmem:[#allocation3 + $0xd8] sm:$0x3f] %vm55, 0.0
    %81 = vst.msk [vmem:[#allocation3 + $0xe0] sm:$0xff] %vm51, 0.0
    %82 = vst.msk [vmem:[#allocation3 + $0xe8] sm:$0xff] %vm51, 0.0
    %83 = vst.msk [vmem:[#allocation3 + $0xf0] sm:$0xff] %vm51, 0.0
    %84 = vst.msk [vmem:[#allocation3 + $0xf8] sm:$0x3f] %vm55, 0.0
    %85 = vst.msk [vmem:[#allocation3 + $0x100] sm:$0xff] %vm51, 0.0
    %86 = vst.msk [vmem:[#allocation3 + $0x108] sm:$0xff] %vm51, 0.0
    %87 = vst.msk [vmem:[#allocation3 + $0x110] sm:$0xff] %vm51, 0.0
    %88 = vst.msk [vmem:[#allocation3 + $0x118] sm:$0x3f] %vm55, 0.0
    %89 = vst.msk [vmem:[#allocation3 + $0x120] sm:$0xff] %vm51, 0.0
    %90 = vst.msk [vmem:[#allocation3 + $0x128] sm:$0xff] %vm51, 0.0
    %91 = vst.msk [vmem:[#allocation3 + $0x130] sm:$0xff] %vm51, 0.0
    %92 = vst.msk [vmem:[#allocation3 + $0x138] sm:$0x3f] %vm55, 0.0
    %93 = vst.msk [vmem:[#allocation3 + $0x140] sm:$0xff] %vm51, 0.0
    %94 = vst.msk [vmem:[#allocation3 + $0x148] sm:$0xff] %vm51, 0.0
    %95 = vst.msk [vmem:[#allocation3 + $0x150] sm:$0xff] %vm51, 0.0
    %96 = vst.msk [vmem:[#allocation3 + $0x158] sm:$0x3f] %vm55, 0.0
    %97 = vst.msk [vmem:[#allocation3 + $0x160] sm:$0xff] %vm51, 0.0
    %98 = vst.msk [vmem:[#allocation3 + $0x168] sm:$0xff] %vm51, 0.0
    %99 = vst.msk [vmem:[#allocation3 + $0x170] sm:$0xff] %vm51, 0.0
    %100 = vst.msk [vmem:[#allocation3 + $0x178] sm:$0x3f] %vm55, 0.0
    %vm101 = vcmask 785408
    %102 = vst.msk [vmem:[#allocation4] sm:$0xff] %vm101, 0.0
    %103 = vst.msk [vmem:[#allocation4 + $0x8] sm:$0xff] %vm101, 0.0
    %104 = vst.msk [vmem:[#allocation4 + $0x10] sm:$0xff] %vm101, 0.0
    %105 = vst.msk [vmem:[#allocation4 + $0x18] sm:$0xff] %vm101, 0.0
    %106 = vst.msk [vmem:[#allocation4 + $0x20] sm:$0xff] %vm101, 0.0
    %107 = vst.msk [vmem:[#allocation4 + $0x28] sm:$0xff] %vm101, 0.0
    %108 = vst.msk [vmem:[#allocation4 + $0x30] sm:$0xff] %vm101, 0.0
    %109 = vst.msk [vmem:[#allocation4 + $0x38] sm:$0xff] %vm101, 0.0
    %110 = vst.msk [vmem:[#allocation4 + $0x40] sm:$0xff] %vm101, 0.0
    %111 = vst.msk [vmem:[#allocation4 + $0x48] sm:$0xff] %vm101, 0.0
    %112 = vst.msk [vmem:[#allocation4 + $0x50] sm:$0xff] %vm101, 0.0
    %113 = vst.msk [vmem:[#allocation4 + $0x58] sm:$0xff] %vm101, 0.0
    %114 = vst.msk [vmem:[#allocation4 + $0x60] sm:$0xff] %vm101, 0.0
    %115 = vst.msk [vmem:[#allocation4 + $0x68] sm:$0xff] %vm101, 0.0
    %116 = vst.msk [vmem:[#allocation4 + $0x70] sm:$0xff] %vm101, 0.0
    %117 = vst.msk [vmem:[#allocation4 + $0x78] sm:$0xff] %vm101, 0.0
    %vm118 = vcmask 523264
    %119 = vst.msk [vmem:[#allocation6] sm:$0xff] %vm118, 0.0
    %120 = vst.msk [vmem:[#allocation6 + $0x8] sm:$0xff] %vm118, 0.0
    %121 = vst.msk [vmem:[#allocation6 + $0x10] sm:$0xff] %vm118, 0.0
    %122 = vst.msk [vmem:[#allocation6 + $0x18] sm:$0xff] %vm118, 0.0
    %123 = vst.msk [vmem:[#allocation6 + $0x20] sm:$0xff] %vm118, 0.0
    %124 = vst.msk [vmem:[#allocation6 + $0x28] sm:$0xff] %vm118, 0.0
    %125 = vst.msk [vmem:[#allocation6 + $0x30] sm:$0xff] %vm118, 0.0
    %v126 = vld [vmem:[%s0] sm:$0xff]
    %v127 = vld [vmem:[%s0 + $0x8] sm:$0xff]
    %v128 = vld [vmem:[%s0 + $0x10] sm:$0xff]
    %v129 = vld [vmem:[%s0 + $0x18] sm:$0xff]
    %v130 = vld [vmem:[%s0 + $0x20] sm:$0xff]
    %v131 = vld [vmem:[%s0 + $0x28] sm:$0xff]
    %v132 = vld [vmem:[%s0 + $0x30] sm:$0xff]
    %v133 = vld [vmem:[%s0 + $0x38] sm:$0xff]
    %v134 = vld [vmem:[%s0 + $0x40] sm:$0xff]
    %v135 = vld [vmem:[%s0 + $0x48] sm:$0xff]
    %v136 = vld [vmem:[%s0 + $0x50] sm:$0xff]
    %v137 = vld [vmem:[%s0 + $0x58] sm:$0xff]
    %v138 = vld [vmem:[%s0 + $0x60] sm:$0xff]
    %v139 = vld [vmem:[%s0 + $0x68] sm:$0xff]
    %v140 = vld [vmem:[%s0 + $0x70] sm:$0xff]
    %v141 = vld [vmem:[%s0 + $0x78] sm:$0xff]
    %v142 = vld [vmem:[%s0 + $0x80] sm:$0xff]
    %v143 = vld [vmem:[%s0 + $0x88] sm:$0xff]
    %v144 = vld [vmem:[%s0 + $0x90] sm:$0xff]
    %v145 = vld [vmem:[%s0 + $0x98] sm:$0xff]
    %v146 = vld [vmem:[%s0 + $0xa0] sm:$0xff]
    %v147 = vld [vmem:[%s0 + $0xa8] sm:$0xff]
    %v148 = vld [vmem:[%s0 + $0xb0] sm:$0xff]
    %v149 = vld [vmem:[%s0 + $0xb8] sm:$0xff]
    %v150 = vld [vmem:[%s0 + $0xc0] sm:$0xff]
    %v151 = vld [vmem:[%s0 + $0xc8] sm:$0xff]
    %v152 = vld [vmem:[%s0 + $0xd0] sm:$0xff]
    %v153 = vld [vmem:[%s0 + $0xd8] sm:$0xff]
    %v154 = vld [vmem:[%s0 + $0xe0] sm:$0xff]
    %v155 = vld [vmem:[%s0 + $0xe8] sm:$0xff]
    %v156 = vld [vmem:[%s0 + $0xf0] sm:$0xff]
    %v157 = vld [vmem:[%s0 + $0xf8] sm:$0xff]
    %v158 = vld [vmem:[%s0 + $0x100] sm:$0xff]
    %v159 = vld [vmem:[%s0 + $0x108] sm:$0xff]
    %v160 = vld [vmem:[%s0 + $0x110] sm:$0xff]
    %v161 = vld [vmem:[%s0 + $0x118] sm:$0xff]
    %v162 = vld [vmem:[%s0 + $0x120] sm:$0xff]
    %v163 = vld [vmem:[%s0 + $0x128] sm:$0xff]
    %v164 = vld [vmem:[%s0 + $0x130] sm:$0xff]
    %v165 = vld [vmem:[%s0 + $0x138] sm:$0xff]
    %v166 = vld [vmem:[%s0 + $0x140] sm:$0xff]
    %v167 = vld [vmem:[%s0 + $0x148] sm:$0xff]
    %v168 = vld [vmem:[%s0 + $0x150] sm:$0xff]
    %v169 = vld [vmem:[%s0 + $0x158] sm:$0xff]
    %v170 = vld [vmem:[%s0 + $0x160] sm:$0xff]
    %v171 = vld [vmem:[%s0 + $0x168] sm:$0xff]
    %v172 = vld [vmem:[%s0 + $0x170] sm:$0xff]
    %v173 = vld [vmem:[%s0 + $0x178] sm:$0xff]
    %v174 = vld [vmem:[%s0 + $0x180] sm:$0xff]
    %v175 = vld [vmem:[%s0 + $0x188] sm:$0xff]
    %v176 = vld [vmem:[%s0 + $0x190] sm:$0xff]
    %v177 = vld [vmem:[%s0 + $0x198] sm:$0xff]
    %v178 = vld [vmem:[%s0 + $0x1a0] sm:$0xff]
    %v179 = vld [vmem:[%s0 + $0x1a8] sm:$0xff]
    %v180 = vld [vmem:[%s0 + $0x1b0] sm:$0xff]
    %v181 = vld [vmem:[%s0 + $0x1b8] sm:$0xff]
    %v182 = vld [vmem:[%s0 + $0x1c0] sm:$0xff]
    %v183 = vld [vmem:[%s0 + $0x1c8] sm:$0xff]
    %v184 = vld [vmem:[%s0 + $0x1d0] sm:$0xff]
    %v185 = vld [vmem:[%s0 + $0x1d8] sm:$0xff]
    %v186 = vld [vmem:[%s0 + $0x1e0] sm:$0xff]
    %v187 = vld [vmem:[%s0 + $0x1e8] sm:$0xff]
    %v188 = vld [vmem:[%s0 + $0x1f0] sm:$0xff]
    %v189 = vld [vmem:[%s0 + $0x1f8] sm:$0xff]
    %v190 = vld [vmem:[%s0 + $0x200] sm:$0xff]
    %v191 = vld [vmem:[%s0 + $0x208] sm:$0xff]
    %v192 = vld [vmem:[%s0 + $0x210] sm:$0xff]
    %v193 = vld [vmem:[%s0 + $0x218] sm:$0xff]
    %v194 = vld [vmem:[%s0 + $0x220] sm:$0xff]
    %v195 = vld [vmem:[%s0 + $0x228] sm:$0xff]
    %v196 = vld [vmem:[%s0 + $0x230] sm:$0xff]
    %v197 = vld [vmem:[%s0 + $0x238] sm:$0xff]
    %v198 = vld [vmem:[%s0 + $0x240] sm:$0xff]
    %v199 = vld [vmem:[%s0 + $0x248] sm:$0xff]
    %v200 = vld [vmem:[%s0 + $0x250] sm:$0xff]
    %v201 = vld [vmem:[%s0 + $0x258] sm:$0xff]
    %v202 = vld [vmem:[%s0 + $0x260] sm:$0xff]
    %v203 = vld [vmem:[%s0 + $0x268] sm:$0xff]
    %v204 = vld [vmem:[%s0 + $0x270] sm:$0xff]
    %v205 = vld [vmem:[%s0 + $0x278] sm:$0xff]
    %v206 = vld [vmem:[%s0 + $0x280] sm:$0xff]
    %v207 = vld [vmem:[%s0 + $0x288] sm:$0xff]
    %v208 = vld [vmem:[%s0 + $0x290] sm:$0xff]
    %v209 = vld [vmem:[%s0 + $0x298] sm:$0xff]
    %v210 = vld [vmem:[%s0 + $0x2a0] sm:$0xff]
    %v211 = vld [vmem:[%s0 + $0x2a8] sm:$0xff]
    %v212 = vld [vmem:[%s0 + $0x2b0] sm:$0xff]
    %v213 = vld [vmem:[%s0 + $0x2b8] sm:$0xff]
    %v214 = vld [vmem:[%s0 + $0x2c0] sm:$0xff]
    %v215 = vld [vmem:[%s0 + $0x2c8] sm:$0xff]
    %v216 = vld [vmem:[%s0 + $0x2d0] sm:$0xff]
    %v217 = vld [vmem:[%s0 + $0x2d8] sm:$0xff]
    %v218 = vld [vmem:[%s0 + $0x2e0] sm:$0xff]
    %v219 = vld [vmem:[%s0 + $0x2e8] sm:$0xff]
    %v220 = vld [vmem:[%s0 + $0x2f0] sm:$0xff]
    %v221 = vld [vmem:[%s0 + $0x2f8] sm:$0xff]
    %v222 = vld [vmem:[%s0 + $0x300] sm:$0xff]
    %v223 = vld [vmem:[%s0 + $0x308] sm:$0xff]
    %v224 = vld [vmem:[%s0 + $0x310] sm:$0xff]
    %v225 = vld [vmem:[%s0 + $0x318] sm:$0xff]
    %v226 = vld [vmem:[%s0 + $0x320] sm:$0xff]
    %v227 = vld [vmem:[%s0 + $0x328] sm:$0xff]
    %v228 = vld [vmem:[%s0 + $0x330] sm:$0xff]
    %v229 = vld [vmem:[%s0 + $0x338] sm:$0xff]
    %v230 = vld [vmem:[%s0 + $0x340] sm:$0xff]
    %v231 = vld [vmem:[%s0 + $0x348] sm:$0xff]
    %v232 = vld [vmem:[%s0 + $0x350] sm:$0xff]
    %v233 = vld [vmem:[%s0 + $0x358] sm:$0xff]
    %v234 = vld [vmem:[%s1] sm:$0xff]
    %v235 = vld [vmem:[%s1 + $0x8] sm:$0x1]
    %vm236 = vcmask 72704
    %v238 = vsel %vm236, %v126, 0
    %v241 = vsel %vm236, %v127, 0
    %v244 = vsel %vm236, %v128, 0
    %v247 = vsel %vm236, %v129, 0
    %v250 = vsel %vm236, %v130, 0
    %v253 = vsel %vm236, %v131, 0
    %v256 = vsel %vm236, %v132, 0
    %v259 = vsel %vm236, %v133, 0
    %v262 = vsel %vm236, %v134, 0
    %v265 = vsel %vm236, %v135, 0
    %v268 = vsel %vm236, %v136, 0
    %v271 = vsel %vm236, %v137, 0
    %v274 = vsel %vm236, %v138, 0
    %v277 = vsel %vm236, %v139, 0
    %v280 = vsel %vm236, %v140, 0
    %v283 = vsel %vm236, %v141, 0
    %v286 = vsel %vm236, %v142, 0
    %v289 = vsel %vm236, %v143, 0
    %v292 = vsel %vm236, %v144, 0
    %v295 = vsel %vm236, %v145, 0
    %v298 = vsel %vm236, %v146, 0
    %v301 = vsel %vm236, %v147, 0
    %v304 = vsel %vm236, %v148, 0
    %v307 = vsel %vm236, %v149, 0
    %v310 = vsel %vm236, %v150, 0
    %v313 = vsel %vm236, %v151, 0
    %v316 = vsel %vm236, %v152, 0
    %v319 = vsel %vm236, %v153, 0
    %v322 = vsel %vm236, %v154, 0
    %v325 = vsel %vm236, %v155, 0
    %v328 = vsel %vm236, %v156, 0
    %v331 = vsel %vm236, %v157, 0
    %v334 = vsel %vm236, %v158, 0
    %v337 = vsel %vm236, %v159, 0
    %v340 = vsel %vm236, %v160, 0
    %v343 = vsel %vm236, %v161, 0
    %v346 = vsel %vm236, %v162, 0
    %v349 = vsel %vm236, %v163, 0
    %v352 = vsel %vm236, %v164, 0
    %v355 = vsel %vm236, %v165, 0
    %v358 = vsel %vm236, %v166, 0
    %v361 = vsel %vm236, %v167, 0
    %v364 = vsel %vm236, %v168, 0
    %v367 = vsel %vm236, %v169, 0
    %v370 = vsel %vm236, %v170, 0
    %v373 = vsel %vm236, %v171, 0
    %v376 = vsel %vm236, %v172, 0
    %v379 = vsel %vm236, %v173, 0
    %v382 = vsel %vm236, %v174, 0
    %v385 = vsel %vm236, %v175, 0
    %v388 = vsel %vm236, %v176, 0
    %v391 = vsel %vm236, %v177, 0
    %v394 = vsel %vm236, %v178, 0
    %v397 = vsel %vm236, %v179, 0
    %v400 = vsel %vm236, %v180, 0
    %v403 = vsel %vm236, %v181, 0
    %v406 = vsel %vm236, %v182, 0
    %v409 = vsel %vm236, %v183, 0
    %v412 = vsel %vm236, %v184, 0
    %v415 = vsel %vm236, %v185, 0
    %v418 = vsel %vm236, %v186, 0
    %v421 = vsel %vm236, %v187, 0
    %v424 = vsel %vm236, %v188, 0
    %v427 = vsel %vm236, %v189, 0
    %v430 = vsel %vm236, %v190, 0
    %v433 = vsel %vm236, %v191, 0
    %v436 = vsel %vm236, %v192, 0
    %v439 = vsel %vm236, %v193, 0
    %v442 = vsel %vm236, %v194, 0
    %v445 = vsel %vm236, %v195, 0
    %v448 = vsel %vm236, %v196, 0
    %v451 = vsel %vm236, %v197, 0
    %v454 = vsel %vm236, %v198, 0
    %v457 = vsel %vm236, %v199, 0
    %v460 = vsel %vm236, %v200, 0
    %v463 = vsel %vm236, %v201, 0
    %v466 = vsel %vm236, %v202, 0
    %v469 = vsel %vm236, %v203, 0
    %v472 = vsel %vm236, %v204, 0
    %v475 = vsel %vm236, %v205, 0
    %v478 = vsel %vm236, %v206, 0
    %v481 = vsel %vm236, %v207, 0
    %v484 = vsel %vm236, %v208, 0
    %v487 = vsel %vm236, %v209, 0
    %v490 = vsel %vm236, %v210, 0
    %v493 = vsel %vm236, %v211, 0
    %v496 = vsel %vm236, %v212, 0
    %v499 = vsel %vm236, %v213, 0
    %v502 = vsel %vm236, %v214, 0
    %v505 = vsel %vm236, %v215, 0
    %v508 = vsel %vm236, %v216, 0
    %v511 = vsel %vm236, %v217, 0
    %v514 = vsel %vm236, %v218, 0
    %v517 = vsel %vm236, %v219, 0
    %v520 = vsel %vm236, %v220, 0
    %v523 = vsel %vm236, %v221, 0
    %v526 = vsel %vm236, %v222, 0
    %v529 = vsel %vm236, %v223, 0
    %v532 = vsel %vm236, %v224, 0
    %v535 = vsel %vm236, %v225, 0
    %v538 = vsel %vm236, %v226, 0
    %v541 = vsel %vm236, %v227, 0
    %v544 = vsel %vm236, %v228, 0
    %v547 = vsel %vm236, %v229, 0
    %v550 = vsel %vm236, %v230, 0
    %v553 = vsel %vm236, %v231, 0
    %v556 = vsel %vm236, %v232, 0
    %v559 = vsel %vm236, %v233, 0
    %vm561 = vcmask 1040384
    %v563 = vsel %vm561, %v235, 0
    %565 = vmatprep.subr.mxu0 0.0
    %566 = vmatpush1.msra.mxu0 0.0
    %567 = vmatprep.subr.mxu0 0.0
    %568 = vmatpush1.msra.mxu0 0.0
    %569 = vmatprep.subr.mxu0 0.0
    %570 = vmatpush1.msra.mxu0 0.0
    %571 = vmatprep.subr.mxu0 0.0
    %572 = vmatpush1.msra.mxu0 0.0
    %573 = vmatprep.subr.mxu0 0.0
    %574 = vmatpush1.msra.mxu0 0.0
    %575 = vmatprep.subr.mxu0 0.0
    %576 = vmatpush1.msra.mxu0 0.0
    %577 = vmatprep.subr.mxu0 0.0
    %578 = vmatpush1.msra.mxu0 0.0
    %579 = vmatprep.subr.mxu0 0.0
    %580 = vmatpush1.msra.mxu0 0.0
    %581 = vmatprep.subr.mxu0 0.0
    %582 = vmatpush1.msra.mxu0 0.0
    %583 = vmatprep.subr.mxu0 0.0
    %584 = vmatpush1.msra.mxu0 0.0
    %585 = vmatprep.subr.mxu0 0.0
    %586 = vmatpush1.msra.mxu0 0.0
    %587 = vmatprep.subr.mxu0 0.0
    %588 = vmatpush1.msra.mxu0 0.0
    %589 = vmatprep.subr.mxu0 0.0
    %590 = vmatpush1.msra.mxu0 0.0
    %591 = vmatprep.subr.mxu0 0.0
    %592 = vmatpush1.msra.mxu0 0.0
    %593 = vmatprep.subr.mxu0 0.0
    %594 = vmatpush1.msra.mxu0 %v563
    %595 = vmatprep.subr.mxu0 0.0
    %596 = vmatpush1.msra.mxu0 %v234
    %597 = vmatprep.subr.mxu0 0.0
    %598 = vmatpush2.msra.mxu0 0.0
    %599 = vmatprep.subr.mxu0 0.0
    %600 = vmatpush2.msra.mxu0 0.0
    %601 = vmatprep.subr.mxu0 0.0
    %602 = vmatpush2.msra.mxu0 0.0
    %603 = vmatprep.subr.mxu0 0.0
    %604 = vmatpush2.msra.mxu0 0.0
    %605 = vmatprep.subr.mxu0 0.0
    %606 = vmatpush2.msra.mxu0 0.0
    %607 = vmatprep.subr.mxu0 0.0
    %608 = vmatpush2.msra.mxu0 0.0
    %609 = vmatprep.subr.mxu0 0.0
    %610 = vmatpush2.msra.mxu0 0.0
    %611 = vmatprep.subr.mxu0 0.0
    %612 = vmatpush2.msra.mxu0 0.0
    %613 = vmatprep.subr.mxu0 0.0
    %614 = vmatpush2.msra.mxu0 0.0
    %615 = vmatprep.subr.mxu0 0.0
    %616 = vmatpush2.msra.mxu0 0.0
    %617 = vmatprep.subr.mxu0 0.0
    %618 = vmatpush2.msra.mxu0 0.0
    %619 = vmatprep.subr.mxu0 0.0
    %620 = vmatpush2.msra.mxu0 0.0
    %621 = vmatprep.subr.mxu0 0.0
    %622 = vmatpush2.msra.mxu0 0.0
    %623 = vmatprep.subr.mxu0 0.0
    %624 = vmatpush2.msra.mxu0 0.0
    %625 = vmatprep.subr.mxu0 0.0
    %626 = vmatpush2.msra.mxu0 0.0
    %627 = vmatprep.subr.mxu0 0.0
    %628 = vmatpush2.msra.mxu0 0.0
    %629 = vmatprep.mubr.f32.mxu0 0.0
    %630 = vmatmul.mubr.f32.gmra.mxu0 %v238
    %v631 = vpop.f32.mrf.mxu0
    %v632 = vadd.f32 0.0, %v631
    %v633 = vpop.f32.mrf.mxu0
    %634 = vmatprep.mubr.f32.mxu0 0.0
    %635 = vmatmul.mubr.f32.gmra.mxu0 %v241
    %v636 = vpop.f32.mrf.mxu0
    %v637 = vadd.f32 0.0, %v636
    %v638 = vpop.f32.mrf.mxu0
    %639 = vmatprep.mubr.f32.mxu0 0.0
    %640 = vmatmul.mubr.f32.gmra.mxu0 %v244
    %v641 = vpop.f32.mrf.mxu0
    %v642 = vadd.f32 0.0, %v641
    %v643 = vpop.f32.mrf.mxu0
    %644 = vmatprep.mubr.f32.mxu0 0.0
    %645 = vmatmul.mubr.f32.gmra.mxu0 %v247
    %v646 = vpop.f32.mrf.mxu0
    %v647 = vadd.f32 0.0, %v646
    %v648 = vpop.f32.mrf.mxu0
    %649 = vmatprep.mubr.f32.mxu0 0.0
    %650 = vmatmul.mubr.f32.gmra.mxu0 %v250
    %v651 = vpop.f32.mrf.mxu0
    %v652 = vadd.f32 0.0, %v651
    %v653 = vpop.f32.mrf.mxu0
    %654 = vmatprep.mubr.f32.mxu0 0.0
    %655 = vmatmul.mubr.f32.gmra.mxu0 %v253
    %v656 = vpop.f32.mrf.mxu0
    %v657 = vadd.f32 0.0, %v656
    %v658 = vpop.f32.mrf.mxu0
    %659 = vmatprep.mubr.f32.mxu0 0.0
    %660 = vmatmul.mubr.f32.gmra.mxu0 %v256
    %v661 = vpop.f32.mrf.mxu0
    %v662 = vadd.f32 0.0, %v661
    %v663 = vpop.f32.mrf.mxu0
    %664 = vmatprep.mubr.f32.mxu0 0.0
    %665 = vmatmul.mubr.f32.gmra.mxu0 %v259
    %v666 = vpop.f32.mrf.mxu0
    %v667 = vadd.f32 0.0, %v666
    %v668 = vpop.f32.mrf.mxu0
    %669 = vmatprep.mubr.f32.mxu0 0.0
    %670 = vmatmul.mubr.f32.gmra.mxu0 %v262
    %v671 = vpop.f32.mrf.mxu0
    %v672 = vadd.f32 0.0, %v671
    %v673 = vpop.f32.mrf.mxu0
    %674 = vmatprep.mubr.f32.mxu0 0.0
    %675 = vmatmul.mubr.f32.gmra.mxu0 %v265
    %v676 = vpop.f32.mrf.mxu0
    %v677 = vadd.f32 0.0, %v676
    %v678 = vpop.f32.mrf.mxu0
    %679 = vmatprep.mubr.f32.mxu0 0.0
    %680 = vmatmul.mubr.f32.gmra.mxu0 %v268
    %v681 = vpop.f32.mrf.mxu0
    %v682 = vadd.f32 0.0, %v681
    %v683 = vpop.f32.mrf.mxu0
    %684 = vmatprep.mubr.f32.mxu0 0.0
    %685 = vmatmul.mubr.f32.gmra.mxu0 %v271
    %v686 = vpop.f32.mrf.mxu0
    %v687 = vadd.f32 0.0, %v686
    %v688 = vpop.f32.mrf.mxu0
    %689 = vmatprep.mubr.f32.mxu0 0.0
    %690 = vmatmul.mubr.f32.gmra.mxu0 %v274
    %v691 = vpop.f32.mrf.mxu0
    %v692 = vadd.f32 0.0, %v691
    %v693 = vpop.f32.mrf.mxu0
    %694 = vmatprep.mubr.f32.mxu0 0.0
    %695 = vmatmul.mubr.f32.gmra.mxu0 %v277
    %v696 = vpop.f32.mrf.mxu0
    %v697 = vadd.f32 0.0, %v696
    %v698 = vpop.f32.mrf.mxu0
    %699 = vmatprep.mubr.f32.mxu0 0.0
    %700 = vmatmul.mubr.f32.gmra.mxu0 %v280
    %v701 = vpop.f32.mrf.mxu0
    %v702 = vadd.f32 0.0, %v701
    %v703 = vpop.f32.mrf.mxu0
    %704 = vmatprep.mubr.f32.mxu0 0.0
    %705 = vmatmul.mubr.f32.gmra.mxu0 %v283
    %v706 = vpop.f32.mrf.mxu0
    %v707 = vadd.f32 0.0, %v706
    %v708 = vpop.f32.mrf.mxu0
    %709 = vmatprep.mubr.f32.mxu0 0.0
    %710 = vmatmul.mubr.f32.gmra.mxu0 %v286
    %v711 = vpop.f32.mrf.mxu0
    %v712 = vadd.f32 0.0, %v711
    %v713 = vpop.f32.mrf.mxu0
    %714 = vmatprep.mubr.f32.mxu0 0.0
    %715 = vmatmul.mubr.f32.gmra.mxu0 %v289
    %v716 = vpop.f32.mrf.mxu0
    %v717 = vadd.f32 0.0, %v716
    %v718 = vpop.f32.mrf.mxu0
    %719 = vmatprep.mubr.f32.mxu0 0.0
    %720 = vmatmul.mubr.f32.gmra.mxu0 %v292
    %v721 = vpop.f32.mrf.mxu0
    %v722 = vadd.f32 0.0, %v721
    %v723 = vpop.f32.mrf.mxu0
    %724 = vmatprep.mubr.f32.mxu0 0.0
    %725 = vmatmul.mubr.f32.gmra.mxu0 %v295
    %v726 = vpop.f32.mrf.mxu0
    %v727 = vadd.f32 0.0, %v726
    %v728 = vpop.f32.mrf.mxu0
    %729 = vmatprep.mubr.f32.mxu0 0.0
    %730 = vmatmul.mubr.f32.gmra.mxu0 %v298
    %v731 = vpop.f32.mrf.mxu0
    %v732 = vadd.f32 0.0, %v731
    %v733 = vpop.f32.mrf.mxu0
    %734 = vmatprep.mubr.f32.mxu0 0.0
    %735 = vmatmul.mubr.f32.gmra.mxu0 %v301
    %v736 = vpop.f32.mrf.mxu0
    %v737 = vadd.f32 0.0, %v736
    %v738 = vpop.f32.mrf.mxu0
    %739 = vmatprep.mubr.f32.mxu0 0.0
    %740 = vmatmul.mubr.f32.gmra.mxu0 %v304
    %v741 = vpop.f32.mrf.mxu0
    %v742 = vadd.f32 0.0, %v741
    %v743 = vpop.f32.mrf.mxu0
    %744 = vmatprep.mubr.f32.mxu0 0.0
    %745 = vmatmul.mubr.f32.gmra.mxu0 %v307
    %v746 = vpop.f32.mrf.mxu0
    %v747 = vadd.f32 0.0, %v746
    %v748 = vpop.f32.mrf.mxu0
    %749 = vmatprep.mubr.f32.mxu0 0.0
    %750 = vmatmul.mubr.f32.gmra.mxu0 %v310
    %v751 = vpop.f32.mrf.mxu0
    %v752 = vadd.f32 0.0, %v751
    %v753 = vpop.f32.mrf.mxu0
    %754 = vmatprep.mubr.f32.mxu0 0.0
    %755 = vmatmul.mubr.f32.gmra.mxu0 %v313
    %v756 = vpop.f32.mrf.mxu0
    %v757 = vadd.f32 0.0, %v756
    %v758 = vpop.f32.mrf.mxu0
    %759 = vmatprep.mubr.f32.mxu0 0.0
    %760 = vmatmul.mubr.f32.gmra.mxu0 %v316
    %v761 = vpop.f32.mrf.mxu0
    %v762 = vadd.f32 0.0, %v761
    %v763 = vpop.f32.mrf.mxu0
    %764 = vmatprep.mubr.f32.mxu0 0.0
    %765 = vmatmul.mubr.f32.gmra.mxu0 %v319
    %v766 = vpop.f32.mrf.mxu0
    %v767 = vadd.f32 0.0, %v766
    %v768 = vpop.f32.mrf.mxu0
    %769 = vmatprep.mubr.f32.mxu0 0.0
    %770 = vmatmul.mubr.f32.gmra.mxu0 %v322
    %v771 = vpop.f32.mrf.mxu0
    %v772 = vadd.f32 0.0, %v771
    %v773 = vpop.f32.mrf.mxu0
    %774 = vmatprep.mubr.f32.mxu0 0.0
    %775 = vmatmul.mubr.f32.gmra.mxu0 %v325
    %v776 = vpop.f32.mrf.mxu0
    %v777 = vadd.f32 0.0, %v776
    %v778 = vpop.f32.mrf.mxu0
    %779 = vmatprep.mubr.f32.mxu0 0.0
    %780 = vmatmul.mubr.f32.gmra.mxu0 %v328
    %v781 = vpop.f32.mrf.mxu0
    %v782 = vadd.f32 0.0, %v781
    %v783 = vpop.f32.mrf.mxu0
    %784 = vmatprep.mubr.f32.mxu0 0.0
    %785 = vmatmul.mubr.f32.gmra.mxu0 %v331
    %v786 = vpop.f32.mrf.mxu0
    %v787 = vadd.f32 0.0, %v786
    %v788 = vpop.f32.mrf.mxu0
    %789 = vmatprep.mubr.f32.mxu0 0.0
    %790 = vmatmul.mubr.f32.gmra.mxu0 %v334
    %v791 = vpop.f32.mrf.mxu0
    %v792 = vadd.f32 0.0, %v791
    %v793 = vpop.f32.mrf.mxu0
    %794 = vmatprep.mubr.f32.mxu0 0.0
    %795 = vmatmul.mubr.f32.gmra.mxu0 %v337
    %v796 = vpop.f32.mrf.mxu0
    %v797 = vadd.f32 0.0, %v796
    %v798 = vpop.f32.mrf.mxu0
    %799 = vmatprep.mubr.f32.mxu0 0.0
    %800 = vmatmul.mubr.f32.gmra.mxu0 %v340
    %v801 = vpop.f32.mrf.mxu0
    %v802 = vadd.f32 0.0, %v801
    %v803 = vpop.f32.mrf.mxu0
    %804 = vmatprep.mubr.f32.mxu0 0.0
    %805 = vmatmul.mubr.f32.gmra.mxu0 %v343
    %v806 = vpop.f32.mrf.mxu0
    %v807 = vadd.f32 0.0, %v806
    %v808 = vpop.f32.mrf.mxu0
    %809 = vmatprep.mubr.f32.mxu0 0.0
    %810 = vmatmul.mubr.f32.gmra.mxu0 %v346
    %v811 = vpop.f32.mrf.mxu0
    %v812 = vadd.f32 0.0, %v811
    %v813 = vpop.f32.mrf.mxu0
    %814 = vmatprep.mubr.f32.mxu0 0.0
    %815 = vmatmul.mubr.f32.gmra.mxu0 %v349
    %v816 = vpop.f32.mrf.mxu0
    %v817 = vadd.f32 0.0, %v816
    %v818 = vpop.f32.mrf.mxu0
    %819 = vmatprep.mubr.f32.mxu0 0.0
    %820 = vmatmul.mubr.f32.gmra.mxu0 %v352
    %v821 = vpop.f32.mrf.mxu0
    %v822 = vadd.f32 0.0, %v821
    %v823 = vpop.f32.mrf.mxu0
    %824 = vmatprep.mubr.f32.mxu0 0.0
    %825 = vmatmul.mubr.f32.gmra.mxu0 %v355
    %v826 = vpop.f32.mrf.mxu0
    %v827 = vadd.f32 0.0, %v826
    %v828 = vpop.f32.mrf.mxu0
    %829 = vmatprep.mubr.f32.mxu0 0.0
    %830 = vmatmul.mubr.f32.gmra.mxu0 %v358
    %v831 = vpop.f32.mrf.mxu0
    %v832 = vadd.f32 0.0, %v831
    %v833 = vpop.f32.mrf.mxu0
    %834 = vmatprep.mubr.f32.mxu0 0.0
    %835 = vmatmul.mubr.f32.gmra.mxu0 %v361
    %v836 = vpop.f32.mrf.mxu0
    %v837 = vadd.f32 0.0, %v836
    %v838 = vpop.f32.mrf.mxu0
    %839 = vmatprep.mubr.f32.mxu0 0.0
    %840 = vmatmul.mubr.f32.gmra.mxu0 %v364
    %v841 = vpop.f32.mrf.mxu0
    %v842 = vadd.f32 0.0, %v841
    %v843 = vpop.f32.mrf.mxu0
    %844 = vmatprep.mubr.f32.mxu0 0.0
    %845 = vmatmul.mubr.f32.gmra.mxu0 %v367
    %v846 = vpop.f32.mrf.mxu0
    %v847 = vadd.f32 0.0, %v846
    %v848 = vpop.f32.mrf.mxu0
    %849 = vmatprep.mubr.f32.mxu0 0.0
    %850 = vmatmul.mubr.f32.gmra.mxu0 %v370
    %v851 = vpop.f32.mrf.mxu0
    %v852 = vadd.f32 0.0, %v851
    %v853 = vpop.f32.mrf.mxu0
    %854 = vmatprep.mubr.f32.mxu0 0.0
    %855 = vmatmul.mubr.f32.gmra.mxu0 %v373
    %v856 = vpop.f32.mrf.mxu0
    %v857 = vadd.f32 0.0, %v856
    %v858 = vpop.f32.mrf.mxu0
    %859 = vmatprep.mubr.f32.mxu0 0.0
    %860 = vmatmul.mubr.f32.gmra.mxu0 %v376
    %v861 = vpop.f32.mrf.mxu0
    %v862 = vadd.f32 0.0, %v861
    %v863 = vpop.f32.mrf.mxu0
    %864 = vmatprep.mubr.f32.mxu0 0.0
    %865 = vmatmul.mubr.f32.gmra.mxu0 %v379
    %v866 = vpop.f32.mrf.mxu0
    %v867 = vadd.f32 0.0, %v866
    %v868 = vpop.f32.mrf.mxu0
    %869 = vmatprep.mubr.f32.mxu0 0.0
    %870 = vmatmul.mubr.f32.gmra.mxu0 %v382
    %v871 = vpop.f32.mrf.mxu0
    %v872 = vadd.f32 0.0, %v871
    %v873 = vpop.f32.mrf.mxu0
    %874 = vmatprep.mubr.f32.mxu0 0.0
    %875 = vmatmul.mubr.f32.gmra.mxu0 %v385
    %v876 = vpop.f32.mrf.mxu0
    %v877 = vadd.f32 0.0, %v876
    %v878 = vpop.f32.mrf.mxu0
    %879 = vmatprep.mubr.f32.mxu0 0.0
    %880 = vmatmul.mubr.f32.gmra.mxu0 %v388
    %v881 = vpop.f32.mrf.mxu0
    %v882 = vadd.f32 0.0, %v881
    %v883 = vpop.f32.mrf.mxu0
    %884 = vmatprep.mubr.f32.mxu0 0.0
    %885 = vmatmul.mubr.f32.gmra.mxu0 %v391
    %v886 = vpop.f32.mrf.mxu0
    %v887 = vadd.f32 0.0, %v886
    %v888 = vpop.f32.mrf.mxu0
    %889 = vmatprep.mubr.f32.mxu0 0.0
    %890 = vmatmul.mubr.f32.gmra.mxu0 %v394
    %v891 = vpop.f32.mrf.mxu0
    %v892 = vadd.f32 0.0, %v891
    %v893 = vpop.f32.mrf.mxu0
    %894 = vmatprep.mubr.f32.mxu0 0.0
    %895 = vmatmul.mubr.f32.gmra.mxu0 %v397
    %v896 = vpop.f32.mrf.mxu0
    %v897 = vadd.f32 0.0, %v896
    %v898 = vpop.f32.mrf.mxu0
    %899 = vmatprep.mubr.f32.mxu0 0.0
    %900 = vmatmul.mubr.f32.gmra.mxu0 %v400
    %v901 = vpop.f32.mrf.mxu0
    %v902 = vadd.f32 0.0, %v901
    %v903 = vpop.f32.mrf.mxu0
    %904 = vmatprep.mubr.f32.mxu0 0.0
    %905 = vmatmul.mubr.f32.gmra.mxu0 %v403
    %v906 = vpop.f32.mrf.mxu0
    %v907 = vadd.f32 0.0, %v906
    %v908 = vpop.f32.mrf.mxu0
    %909 = vmatprep.mubr.f32.mxu0 0.0
    %910 = vmatmul.mubr.f32.gmra.mxu0 %v406
    %v911 = vpop.f32.mrf.mxu0
    %v912 = vadd.f32 0.0, %v911
    %v913 = vpop.f32.mrf.mxu0
    %914 = vmatprep.mubr.f32.mxu0 0.0
    %915 = vmatmul.mubr.f32.gmra.mxu0 %v409
    %v916 = vpop.f32.mrf.mxu0
    %v917 = vadd.f32 0.0, %v916
    %v918 = vpop.f32.mrf.mxu0
    %919 = vmatprep.mubr.f32.mxu0 0.0
    %920 = vmatmul.mubr.f32.gmra.mxu0 %v412
    %v921 = vpop.f32.mrf.mxu0
    %v922 = vadd.f32 0.0, %v921
    %v923 = vpop.f32.mrf.mxu0
    %924 = vmatprep.mubr.f32.mxu0 0.0
    %925 = vmatmul.mubr.f32.gmra.mxu0 %v415
    %v926 = vpop.f32.mrf.mxu0
    %v927 = vadd.f32 0.0, %v926
    %v928 = vpop.f32.mrf.mxu0
    %929 = vmatprep.mubr.f32.mxu0 0.0
    %930 = vmatmul.mubr.f32.gmra.mxu0 %v418
    %v931 = vpop.f32.mrf.mxu0
    %v932 = vadd.f32 0.0, %v931
    %v933 = vpop.f32.mrf.mxu0
    %934 = vmatprep.mubr.f32.mxu0 0.0
    %935 = vmatmul.mubr.f32.gmra.mxu0 %v421
    %v936 = vpop.f32.mrf.mxu0
    %v937 = vadd.f32 0.0, %v936
    %v938 = vpop.f32.mrf.mxu0
    %939 = vmatprep.mubr.f32.mxu0 0.0
    %940 = vmatmul.mubr.f32.gmra.mxu0 %v424
    %v941 = vpop.f32.mrf.mxu0
    %v942 = vadd.f32 0.0, %v941
    %v943 = vpop.f32.mrf.mxu0
    %944 = vmatprep.mubr.f32.mxu0 0.0
    %945 = vmatmul.mubr.f32.gmra.mxu0 %v427
    %v946 = vpop.f32.mrf.mxu0
    %v947 = vadd.f32 0.0, %v946
    %v948 = vpop.f32.mrf.mxu0
    %949 = vmatprep.mubr.f32.mxu0 0.0
    %950 = vmatmul.mubr.f32.gmra.mxu0 %v430
    %v951 = vpop.f32.mrf.mxu0
    %v952 = vadd.f32 0.0, %v951
    %v953 = vpop.f32.mrf.mxu0
    %954 = vmatprep.mubr.f32.mxu0 0.0
    %955 = vmatmul.mubr.f32.gmra.mxu0 %v433
    %v956 = vpop.f32.mrf.mxu0
    %v957 = vadd.f32 0.0, %v956
    %v958 = vpop.f32.mrf.mxu0
    %959 = vmatprep.mubr.f32.mxu0 0.0
    %960 = vmatmul.mubr.f32.gmra.mxu0 %v436
    %v961 = vpop.f32.mrf.mxu0
    %v962 = vadd.f32 0.0, %v961
    %v963 = vpop.f32.mrf.mxu0
    %964 = vmatprep.mubr.f32.mxu0 0.0
    %965 = vmatmul.mubr.f32.gmra.mxu0 %v439
    %v966 = vpop.f32.mrf.mxu0
    %v967 = vadd.f32 0.0, %v966
    %v968 = vpop.f32.mrf.mxu0
    %969 = vmatprep.mubr.f32.mxu0 0.0
    %970 = vmatmul.mubr.f32.gmra.mxu0 %v442
    %v971 = vpop.f32.mrf.mxu0
    %v972 = vadd.f32 0.0, %v971
    %v973 = vpop.f32.mrf.mxu0
    %974 = vmatprep.mubr.f32.mxu0 0.0
    %975 = vmatmul.mubr.f32.gmra.mxu0 %v445
    %v976 = vpop.f32.mrf.mxu0
    %v977 = vadd.f32 0.0, %v976
    %v978 = vpop.f32.mrf.mxu0
    %979 = vmatprep.mubr.f32.mxu0 0.0
    %980 = vmatmul.mubr.f32.gmra.mxu0 %v448
    %v981 = vpop.f32.mrf.mxu0
    %v982 = vadd.f32 0.0, %v981
    %v983 = vpop.f32.mrf.mxu0
    %984 = vmatprep.mubr.f32.mxu0 0.0
    %985 = vmatmul.mubr.f32.gmra.mxu0 %v451
    %v986 = vpop.f32.mrf.mxu0
    %v987 = vadd.f32 0.0, %v986
    %v988 = vpop.f32.mrf.mxu0
    %989 = vmatprep.mubr.f32.mxu0 0.0
    %990 = vmatmul.mubr.f32.gmra.mxu0 %v454
    %v991 = vpop.f32.mrf.mxu0
    %v992 = vadd.f32 0.0, %v991
    %v993 = vpop.f32.mrf.mxu0
    %994 = vmatprep.mubr.f32.mxu0 0.0
    %995 = vmatmul.mubr.f32.gmra.mxu0 %v457
    %v996 = vpop.f32.mrf.mxu0
    %v997 = vadd.f32 0.0, %v996
    %v998 = vpop.f32.mrf.mxu0
    %999 = vmatprep.mubr.f32.mxu0 0.0
    %1000 = vmatmul.mubr.f32.gmra.mxu0 %v460
    %v1001 = vpop.f32.mrf.mxu0
    %v1002 = vadd.f32 0.0, %v1001
    %v1003 = vpop.f32.mrf.mxu0
    %1004 = vmatprep.mubr.f32.mxu0 0.0
    %1005 = vmatmul.mubr.f32.gmra.mxu0 %v463
    %v1006 = vpop.f32.mrf.mxu0
    %v1007 = vadd.f32 0.0, %v1006
    %v1008 = vpop.f32.mrf.mxu0
    %1009 = vmatprep.mubr.f32.mxu0 0.0
    %1010 = vmatmul.mubr.f32.gmra.mxu0 %v466
    %v1011 = vpop.f32.mrf.mxu0
    %v1012 = vadd.f32 0.0, %v1011
    %v1013 = vpop.f32.mrf.mxu0
    %1014 = vmatprep.mubr.f32.mxu0 0.0
    %1015 = vmatmul.mubr.f32.gmra.mxu0 %v469
    %v1016 = vpop.f32.mrf.mxu0
    %v1017 = vadd.f32 0.0, %v1016
    %v1018 = vpop.f32.mrf.mxu0
    %1019 = vmatprep.mubr.f32.mxu0 0.0
    %1020 = vmatmul.mubr.f32.gmra.mxu0 %v472
    %v1021 = vpop.f32.mrf.mxu0
    %v1022 = vadd.f32 0.0, %v1021
    %v1023 = vpop.f32.mrf.mxu0
    %1024 = vmatprep.mubr.f32.mxu0 0.0
    %1025 = vmatmul.mubr.f32.gmra.mxu0 %v475
    %v1026 = vpop.f32.mrf.mxu0
    %v1027 = vadd.f32 0.0, %v1026
    %v1028 = vpop.f32.mrf.mxu0
    %1029 = vmatprep.mubr.f32.mxu0 0.0
    %1030 = vmatmul.mubr.f32.gmra.mxu0 %v478
    %v1031 = vpop.f32.mrf.mxu0
    %v1032 = vadd.f32 0.0, %v1031
    %v1033 = vpop.f32.mrf.mxu0
    %1034 = vmatprep.mubr.f32.mxu0 0.0
    %1035 = vmatmul.mubr.f32.gmra.mxu0 %v481
    %v1036 = vpop.f32.mrf.mxu0
    %v1037 = vadd.f32 0.0, %v1036
    %v1038 = vpop.f32.mrf.mxu0
    %1039 = vmatprep.mubr.f32.mxu0 0.0
    %1040 = vmatmul.mubr.f32.gmra.mxu0 %v484
    %v1041 = vpop.f32.mrf.mxu0
    %v1042 = vadd.f32 0.0, %v1041
    %v1043 = vpop.f32.mrf.mxu0
    %1044 = vmatprep.mubr.f32.mxu0 0.0
    %1045 = vmatmul.mubr.f32.gmra.mxu0 %v487
    %v1046 = vpop.f32.mrf.mxu0
    %v1047 = vadd.f32 0.0, %v1046
    %v1048 = vpop.f32.mrf.mxu0
    %1049 = vmatprep.mubr.f32.mxu0 0.0
    %1050 = vmatmul.mubr.f32.gmra.mxu0 %v490
    %v1051 = vpop.f32.mrf.mxu0
    %v1052 = vadd.f32 0.0, %v1051
    %v1053 = vpop.f32.mrf.mxu0
    %1054 = vmatprep.mubr.f32.mxu0 0.0
    %1055 = vmatmul.mubr.f32.gmra.mxu0 %v493
    %v1056 = vpop.f32.mrf.mxu0
    %v1057 = vadd.f32 0.0, %v1056
    %v1058 = vpop.f32.mrf.mxu0
    %1059 = vmatprep.mubr.f32.mxu0 0.0
    %1060 = vmatmul.mubr.f32.gmra.mxu0 %v496
    %v1061 = vpop.f32.mrf.mxu0
    %v1062 = vadd.f32 0.0, %v1061
    %v1063 = vpop.f32.mrf.mxu0
    %1064 = vmatprep.mubr.f32.mxu0 0.0
    %1065 = vmatmul.mubr.f32.gmra.mxu0 %v499
    %v1066 = vpop.f32.mrf.mxu0
    %v1067 = vadd.f32 0.0, %v1066
    %v1068 = vpop.f32.mrf.mxu0
    %1069 = vmatprep.mubr.f32.mxu0 0.0
    %1070 = vmatmul.mubr.f32.gmra.mxu0 %v502
    %v1071 = vpop.f32.mrf.mxu0
    %v1072 = vadd.f32 0.0, %v1071
    %v1073 = vpop.f32.mrf.mxu0
    %1074 = vmatprep.mubr.f32.mxu0 0.0
    %1075 = vmatmul.mubr.f32.gmra.mxu0 %v505
    %v1076 = vpop.f32.mrf.mxu0
    %v1077 = vadd.f32 0.0, %v1076
    %v1078 = vpop.f32.mrf.mxu0
    %1079 = vmatprep.mubr.f32.mxu0 0.0
    %1080 = vmatmul.mubr.f32.gmra.mxu0 %v508
    %v1081 = vpop.f32.mrf.mxu0
    %v1082 = vadd.f32 0.0, %v1081
    %v1083 = vpop.f32.mrf.mxu0
    %1084 = vmatprep.mubr.f32.mxu0 0.0
    %1085 = vmatmul.mubr.f32.gmra.mxu0 %v511
    %v1086 = vpop.f32.mrf.mxu0
    %v1087 = vadd.f32 0.0, %v1086
    %v1088 = vpop.f32.mrf.mxu0
    %1089 = vmatprep.mubr.f32.mxu0 0.0
    %1090 = vmatmul.mubr.f32.gmra.mxu0 %v514
    %v1091 = vpop.f32.mrf.mxu0
    %v1092 = vadd.f32 0.0, %v1091
    %v1093 = vpop.f32.mrf.mxu0
    %1094 = vmatprep.mubr.f32.mxu0 0.0
    %1095 = vmatmul.mubr.f32.gmra.mxu0 %v517
    %v1096 = vpop.f32.mrf.mxu0
    %v1097 = vadd.f32 0.0, %v1096
    %v1098 = vpop.f32.mrf.mxu0
    %1099 = vmatprep.mubr.f32.mxu0 0.0
    %1100 = vmatmul.mubr.f32.gmra.mxu0 %v520
    %v1101 = vpop.f32.mrf.mxu0
    %v1102 = vadd.f32 0.0, %v1101
    %v1103 = vpop.f32.mrf.mxu0
    %1104 = vmatprep.mubr.f32.mxu0 0.0
    %1105 = vmatmul.mubr.f32.gmra.mxu0 %v523
    %v1106 = vpop.f32.mrf.mxu0
    %v1107 = vadd.f32 0.0, %v1106
    %v1108 = vpop.f32.mrf.mxu0
    %1109 = vmatprep.mubr.f32.mxu0 0.0
    %1110 = vmatmul.mubr.f32.gmra.mxu0 %v526
    %v1111 = vpop.f32.mrf.mxu0
    %v1112 = vadd.f32 0.0, %v1111
    %v1113 = vpop.f32.mrf.mxu0
    %1114 = vmatprep.mubr.f32.mxu0 0.0
    %1115 = vmatmul.mubr.f32.gmra.mxu0 %v529
    %v1116 = vpop.f32.mrf.mxu0
    %v1117 = vadd.f32 0.0, %v1116
    %v1118 = vpop.f32.mrf.mxu0
    %1119 = vmatprep.mubr.f32.mxu0 0.0
    %1120 = vmatmul.mubr.f32.gmra.mxu0 %v532
    %v1121 = vpop.f32.mrf.mxu0
    %v1122 = vadd.f32 0.0, %v1121
    %v1123 = vpop.f32.mrf.mxu0
    %1124 = vmatprep.mubr.f32.mxu0 0.0
    %1125 = vmatmul.mubr.f32.gmra.mxu0 %v535
    %v1126 = vpop.f32.mrf.mxu0
    %v1127 = vadd.f32 0.0, %v1126
    %v1128 = vpop.f32.mrf.mxu0
    %1129 = vmatprep.mubr.f32.mxu0 0.0
    %1130 = vmatmul.mubr.f32.gmra.mxu0 %v538
    %v1131 = vpop.f32.mrf.mxu0
    %v1132 = vadd.f32 0.0, %v1131
    %v1133 = vpop.f32.mrf.mxu0
    %1134 = vmatprep.mubr.f32.mxu0 0.0
    %1135 = vmatmul.mubr.f32.gmra.mxu0 %v541
    %v1136 = vpop.f32.mrf.mxu0
    %v1137 = vadd.f32 0.0, %v1136
    %v1138 = vpop.f32.mrf.mxu0
    %1139 = vmatprep.mubr.f32.mxu0 0.0
    %1140 = vmatmul.mubr.f32.gmra.mxu0 %v544
    %v1141 = vpop.f32.mrf.mxu0
    %v1142 = vadd.f32 0.0, %v1141
    %v1143 = vpop.f32.mrf.mxu0
    %1144 = vmatprep.mubr.f32.mxu0 0.0
    %1145 = vmatmul.mubr.f32.gmra.mxu0 %v547
    %v1146 = vpop.f32.mrf.mxu0
    %v1147 = vadd.f32 0.0, %v1146
    %v1148 = vpop.f32.mrf.mxu0
    %1149 = vmatprep.mubr.f32.mxu0 0.0
    %1150 = vmatmul.mubr.f32.gmra.mxu0 %v550
    %v1151 = vpop.f32.mrf.mxu0
    %v1152 = vadd.f32 0.0, %v1151
    %v1153 = vpop.f32.mrf.mxu0
    %1154 = vmatprep.mubr.f32.mxu0 0.0
    %1155 = vmatmul.mubr.f32.gmra.mxu0 %v553
    %v1156 = vpop.f32.mrf.mxu0
    %v1157 = vadd.f32 0.0, %v1156
    %v1158 = vpop.f32.mrf.mxu0
    %1159 = vmatprep.mubr.f32.mxu0 0.0
    %1160 = vmatmul.mubr.f32.gmra.mxu0 %v556
    %v1161 = vpop.f32.mrf.mxu0
    %v1162 = vadd.f32 0.0, %v1161
    %v1163 = vpop.f32.mrf.mxu0
    %1164 = vmatprep.mubr.f32.mxu0 0.0
    %1165 = vmatmul.mubr.f32.gmra.mxu0 %v559
    %v1166 = vpop.f32.mrf.mxu0
    %v1167 = vadd.f32 0.0, %v1166
    %v1168 = vpop.f32.mrf.mxu0
    %1169 = vdwg.mxu0
    %v1170 = vld [vmem:[%s2] sm:$0x1]
    %v1172 = vlaneseq
    %v1173 = vshrl.u32 %v1172, 7
    %v1174 = vsub.s32 0, %v1173
    %v1175 = vrot.slane %v1170, %v1174
    %v1177 = vmul.f32 %v632, %v1175
    %v1178 = vmul.f32 %v637, %v1175
    %v1179 = vmul.f32 %v642, %v1175
    %v1180 = vmul.f32 %v647, %v1175
    %v1181 = vmul.f32 %v652, %v1175
    %v1182 = vmul.f32 %v657, %v1175
    %v1183 = vmul.f32 %v662, %v1175
    %v1184 = vmul.f32 %v667, %v1175
    %v1185 = vmul.f32 %v672, %v1175
    %v1186 = vmul.f32 %v677, %v1175
    %v1187 = vmul.f32 %v682, %v1175
    %v1188 = vmul.f32 %v687, %v1175
    %v1189 = vmul.f32 %v692, %v1175
    %v1190 = vmul.f32 %v697, %v1175
    %v1191 = vmul.f32 %v702, %v1175
    %v1192 = vmul.f32 %v707, %v1175
    %v1193 = vmul.f32 %v712, %v1175
    %v1194 = vmul.f32 %v717, %v1175
    %v1195 = vmul.f32 %v722, %v1175
    %v1196 = vmul.f32 %v727, %v1175
    %v1197 = vmul.f32 %v732, %v1175
    %v1198 = vmul.f32 %v737, %v1175
    %v1199 = vmul.f32 %v742, %v1175
    %v1200 = vmul.f32 %v747, %v1175
    %v1201 = vmul.f32 %v752, %v1175
    %v1202 = vmul.f32 %v757, %v1175
    %v1203 = vmul.f32 %v762, %v1175
    %v1204 = vmul.f32 %v767, %v1175
    %v1205 = vmul.f32 %v772, %v1175
    %v1206 = vmul.f32 %v777, %v1175
    %v1207 = vmul.f32 %v782, %v1175
    %v1208 = vmul.f32 %v787, %v1175
    %v1209 = vmul.f32 %v792, %v1175
    %v1210 = vmul.f32 %v797, %v1175
    %v1211 = vmul.f32 %v802, %v1175
    %v1212 = vmul.f32 %v807, %v1175
    %v1213 = vmul.f32 %v812, %v1175
    %v1214 = vmul.f32 %v817, %v1175
    %v1215 = vmul.f32 %v822, %v1175
    %v1216 = vmul.f32 %v827, %v1175
    %v1217 = vmul.f32 %v832, %v1175
    %v1218 = vmul.f32 %v837, %v1175
    %v1219 = vmul.f32 %v842, %v1175
    %v1220 = vmul.f32 %v847, %v1175
    %v1221 = vmul.f32 %v852, %v1175
    %v1222 = vmul.f32 %v857, %v1175
    %v1223 = vmul.f32 %v862, %v1175
    %v1224 = vmul.f32 %v867, %v1175
    %v1225 = vmul.f32 %v872, %v1175
    %v1226 = vmul.f32 %v877, %v1175
    %v1227 = vmul.f32 %v882, %v1175
    %v1228 = vmul.f32 %v887, %v1175
    %v1229 = vmul.f32 %v892, %v1175
    %v1230 = vmul.f32 %v897, %v1175
    %v1231 = vmul.f32 %v902, %v1175
    %v1232 = vmul.f32 %v907, %v1175
    %v1233 = vmul.f32 %v912, %v1175
    %v1234 = vmul.f32 %v917, %v1175
    %v1235 = vmul.f32 %v922, %v1175
    %v1236 = vmul.f32 %v927, %v1175
    %v1237 = vmul.f32 %v932, %v1175
    %v1238 = vmul.f32 %v937, %v1175
    %v1239 = vmul.f32 %v942, %v1175
    %v1240 = vmul.f32 %v947, %v1175
    %v1241 = vmul.f32 %v952, %v1175
    %v1242 = vmul.f32 %v957, %v1175
    %v1243 = vmul.f32 %v962, %v1175
    %v1244 = vmul.f32 %v967, %v1175
    %v1245 = vmul.f32 %v972, %v1175
    %v1246 = vmul.f32 %v977, %v1175
    %v1247 = vmul.f32 %v982, %v1175
    %v1248 = vmul.f32 %v987, %v1175
    %v1249 = vmul.f32 %v992, %v1175
    %v1250 = vmul.f32 %v997, %v1175
    %v1251 = vmul.f32 %v1002, %v1175
    %v1252 = vmul.f32 %v1007, %v1175
    %v1253 = vmul.f32 %v1012, %v1175
    %v1254 = vmul.f32 %v1017, %v1175
    %v1255 = vmul.f32 %v1022, %v1175
    %v1256 = vmul.f32 %v1027, %v1175
    %v1257 = vmul.f32 %v1032, %v1175
    %v1258 = vmul.f32 %v1037, %v1175
    %v1259 = vmul.f32 %v1042, %v1175
    %v1260 = vmul.f32 %v1047, %v1175
    %v1261 = vmul.f32 %v1052, %v1175
    %v1262 = vmul.f32 %v1057, %v1175
    %v1263 = vmul.f32 %v1062, %v1175
    %v1264 = vmul.f32 %v1067, %v1175
    %v1265 = vmul.f32 %v1072, %v1175
    %v1266 = vmul.f32 %v1077, %v1175
    %v1267 = vmul.f32 %v1082, %v1175
    %v1268 = vmul.f32 %v1087, %v1175
    %v1269 = vmul.f32 %v1092, %v1175
    %v1270 = vmul.f32 %v1097, %v1175
    %v1271 = vmul.f32 %v1102, %v1175
    %v1272 = vmul.f32 %v1107, %v1175
    %v1273 = vmul.f32 %v1112, %v1175
    %v1274 = vmul.f32 %v1117, %v1175
    %v1275 = vmul.f32 %v1122, %v1175
    %v1276 = vmul.f32 %v1127, %v1175
    %v1277 = vmul.f32 %v1132, %v1175
    %v1278 = vmul.f32 %v1137, %v1175
    %v1279 = vmul.f32 %v1142, %v1175
    %v1280 = vmul.f32 %v1147, %v1175
    %v1281 = vmul.f32 %v1152, %v1175
    %v1282 = vmul.f32 %v1157, %v1175
    %v1283 = vmul.f32 %v1162, %v1175
    %v1284 = vmul.f32 %v1167, %v1175
    %v1285 = vld [vmem:[%s3] sm:$0x1]
    %v1287 = vlaneseq
    %v1288 = vshrl.u32 %v1287, 7
    %v1289 = vsub.s32 0, %v1288
    %v1290 = vrot.slane %v1285, %v1289
    %v1292 = vadd.f32 %v1177, %v1290
    %v1293 = vadd.f32 %v1178, %v1290
    %v1294 = vadd.f32 %v1179, %v1290
    %v1295 = vadd.f32 %v1180, %v1290
    %v1296 = vadd.f32 %v1181, %v1290
    %v1297 = vadd.f32 %v1182, %v1290
    %v1298 = vadd.f32 %v1183, %v1290
    %v1299 = vadd.f32 %v1184, %v1290
    %v1300 = vadd.f32 %v1185, %v1290
    %v1301 = vadd.f32 %v1186, %v1290
    %v1302 = vadd.f32 %v1187, %v1290
    %v1303 = vadd.f32 %v1188, %v1290
    %v1304 = vadd.f32 %v1189, %v1290
    %v1305 = vadd.f32 %v1190, %v1290
    %v1306 = vadd.f32 %v1191, %v1290
    %v1307 = vadd.f32 %v1192, %v1290
    %v1308 = vadd.f32 %v1193, %v1290
    %v1309 = vadd.f32 %v1194, %v1290
    %v1310 = vadd.f32 %v1195, %v1290
    %v1311 = vadd.f32 %v1196, %v1290
    %v1312 = vadd.f32 %v1197, %v1290
    %v1313 = vadd.f32 %v1198, %v1290
    %v1314 = vadd.f32 %v1199, %v1290
    %v1315 = vadd.f32 %v1200, %v1290
    %v1316 = vadd.f32 %v1201, %v1290
    %v1317 = vadd.f32 %v1202, %v1290
    %v1318 = vadd.f32 %v1203, %v1290
    %v1319 = vadd.f32 %v1204, %v1290
    %v1320 = vadd.f32 %v1205, %v1290
    %v1321 = vadd.f32 %v1206, %v1290
    %v1322 = vadd.f32 %v1207, %v1290
    %v1323 = vadd.f32 %v1208, %v1290
    %v1324 = vadd.f32 %v1209, %v1290
    %v1325 = vadd.f32 %v1210, %v1290
    %v1326 = vadd.f32 %v1211, %v1290
    %v1327 = vadd.f32 %v1212, %v1290
    %v1328 = vadd.f32 %v1213, %v1290
    %v1329 = vadd.f32 %v1214, %v1290
    %v1330 = vadd.f32 %v1215, %v1290
    %v1331 = vadd.f32 %v1216, %v1290
    %v1332 = vadd.f32 %v1217, %v1290
    %v1333 = vadd.f32 %v1218, %v1290
    %v1334 = vadd.f32 %v1219, %v1290
    %v1335 = vadd.f32 %v1220, %v1290
    %v1336 = vadd.f32 %v1221, %v1290
    %v1337 = vadd.f32 %v1222, %v1290
    %v1338 = vadd.f32 %v1223, %v1290
    %v1339 = vadd.f32 %v1224, %v1290
    %v1340 = vadd.f32 %v1225, %v1290
    %v1341 = vadd.f32 %v1226, %v1290
    %v1342 = vadd.f32 %v1227, %v1290
    %v1343 = vadd.f32 %v1228, %v1290
    %v1344 = vadd.f32 %v1229, %v1290
    %v1345 = vadd.f32 %v1230, %v1290
    %v1346 = vadd.f32 %v1231, %v1290
    %v1347 = vadd.f32 %v1232, %v1290
    %v1348 = vadd.f32 %v1233, %v1290
    %v1349 = vadd.f32 %v1234, %v1290
    %v1350 = vadd.f32 %v1235, %v1290
    %v1351 = vadd.f32 %v1236, %v1290
    %v1352 = vadd.f32 %v1237, %v1290
    %v1353 = vadd.f32 %v1238, %v1290
    %v1354 = vadd.f32 %v1239, %v1290
    %v1355 = vadd.f32 %v1240, %v1290
    %v1356 = vadd.f32 %v1241, %v1290
    %v1357 = vadd.f32 %v1242, %v1290
    %v1358 = vadd.f32 %v1243, %v1290
    %v1359 = vadd.f32 %v1244, %v1290
    %v1360 = vadd.f32 %v1245, %v1290
    %v1361 = vadd.f32 %v1246, %v1290
    %v1362 = vadd.f32 %v1247, %v1290
    %v1363 = vadd.f32 %v1248, %v1290
    %v1364 = vadd.f32 %v1249, %v1290
    %v1365 = vadd.f32 %v1250, %v1290
    %v1366 = vadd.f32 %v1251, %v1290
    %v1367 = vadd.f32 %v1252, %v1290
    %v1368 = vadd.f32 %v1253, %v1290
    %v1369 = vadd.f32 %v1254, %v1290
    %v1370 = vadd.f32 %v1255, %v1290
    %v1371 = vadd.f32 %v1256, %v1290
    %v1372 = vadd.f32 %v1257, %v1290
    %v1373 = vadd.f32 %v1258, %v1290
    %v1374 = vadd.f32 %v1259, %v1290
    %v1375 = vadd.f32 %v1260, %v1290
    %v1376 = vadd.f32 %v1261, %v1290
    %v1377 = vadd.f32 %v1262, %v1290
    %v1378 = vadd.f32 %v1263, %v1290
    %v1379 = vadd.f32 %v1264, %v1290
    %v1380 = vadd.f32 %v1265, %v1290
    %v1381 = vadd.f32 %v1266, %v1290
    %v1382 = vadd.f32 %v1267, %v1290
    %v1383 = vadd.f32 %v1268, %v1290
    %v1384 = vadd.f32 %v1269, %v1290
    %v1385 = vadd.f32 %v1270, %v1290
    %v1386 = vadd.f32 %v1271, %v1290
    %v1387 = vadd.f32 %v1272, %v1290
    %v1388 = vadd.f32 %v1273, %v1290
    %v1389 = vadd.f32 %v1274, %v1290
    %v1390 = vadd.f32 %v1275, %v1290
    %v1391 = vadd.f32 %v1276, %v1290
    %v1392 = vadd.f32 %v1277, %v1290
    %v1393 = vadd.f32 %v1278, %v1290
    %v1394 = vadd.f32 %v1279, %v1290
    %v1395 = vadd.f32 %v1280, %v1290
    %v1396 = vadd.f32 %v1281, %v1290
    %v1397 = vadd.f32 %v1282, %v1290
    %v1398 = vadd.f32 %v1283, %v1290
    %v1399 = vadd.f32 %v1284, %v1290
    %v1400 = vmax.f32 %v1292, 0.0
    %v1401 = vmax.f32 %v1293, 0.0
    %v1402 = vmax.f32 %v1294, 0.0
    %v1403 = vmax.f32 %v1295, 0.0
    %v1404 = vmax.f32 %v1296, 0.0
    %v1405 = vmax.f32 %v1297, 0.0
    %v1406 = vmax.f32 %v1298, 0.0
    %v1407 = vmax.f32 %v1299, 0.0
    %v1408 = vmax.f32 %v1300, 0.0
    %v1409 = vmax.f32 %v1301, 0.0
    %v1410 = vmax.f32 %v1302, 0.0
    %v1411 = vmax.f32 %v1303, 0.0
    %v1412 = vmax.f32 %v1304, 0.0
    %v1413 = vmax.f32 %v1305, 0.0
    %v1414 = vmax.f32 %v1306, 0.0
    %v1415 = vmax.f32 %v1307, 0.0
    %v1416 = vmax.f32 %v1308, 0.0
    %v1417 = vmax.f32 %v1309, 0.0
    %v1418 = vmax.f32 %v1310, 0.0
    %v1419 = vmax.f32 %v1311, 0.0
    %v1420 = vmax.f32 %v1312, 0.0
    %v1421 = vmax.f32 %v1313, 0.0
    %v1422 = vmax.f32 %v1314, 0.0
    %v1423 = vmax.f32 %v1315, 0.0
    %v1424 = vmax.f32 %v1316, 0.0
    %v1425 = vmax.f32 %v1317, 0.0
    %v1426 = vmax.f32 %v1318, 0.0
    %v1427 = vmax.f32 %v1319, 0.0
    %v1428 = vmax.f32 %v1320, 0.0
    %v1429 = vmax.f32 %v1321, 0.0
    %v1430 = vmax.f32 %v1322, 0.0
    %v1431 = vmax.f32 %v1323, 0.0
    %v1432 = vmax.f32 %v1324, 0.0
    %v1433 = vmax.f32 %v1325, 0.0
    %v1434 = vmax.f32 %v1326, 0.0
    %v1435 = vmax.f32 %v1327, 0.0
    %v1436 = vmax.f32 %v1328, 0.0
    %v1437 = vmax.f32 %v1329, 0.0
    %v1438 = vmax.f32 %v1330, 0.0
    %v1439 = vmax.f32 %v1331, 0.0
    %v1440 = vmax.f32 %v1332, 0.0
    %v1441 = vmax.f32 %v1333, 0.0
    %v1442 = vmax.f32 %v1334, 0.0
    %v1443 = vmax.f32 %v1335, 0.0
    %v1444 = vmax.f32 %v1336, 0.0
    %v1445 = vmax.f32 %v1337, 0.0
    %v1446 = vmax.f32 %v1338, 0.0
    %v1447 = vmax.f32 %v1339, 0.0
    %v1448 = vmax.f32 %v1340, 0.0
    %v1449 = vmax.f32 %v1341, 0.0
    %v1450 = vmax.f32 %v1342, 0.0
    %v1451 = vmax.f32 %v1343, 0.0
    %v1452 = vmax.f32 %v1344, 0.0
    %v1453 = vmax.f32 %v1345, 0.0
    %v1454 = vmax.f32 %v1346, 0.0
    %v1455 = vmax.f32 %v1347, 0.0
    %v1456 = vmax.f32 %v1348, 0.0
    %v1457 = vmax.f32 %v1349, 0.0
    %v1458 = vmax.f32 %v1350, 0.0
    %v1459 = vmax.f32 %v1351, 0.0
    %v1460 = vmax.f32 %v1352, 0.0
    %v1461 = vmax.f32 %v1353, 0.0
    %v1462 = vmax.f32 %v1354, 0.0
    %v1463 = vmax.f32 %v1355, 0.0
    %v1464 = vmax.f32 %v1356, 0.0
    %v1465 = vmax.f32 %v1357, 0.0
    %v1466 = vmax.f32 %v1358, 0.0
    %v1467 = vmax.f32 %v1359, 0.0
    %v1468 = vmax.f32 %v1360, 0.0
    %v1469 = vmax.f32 %v1361, 0.0
    %v1470 = vmax.f32 %v1362, 0.0
    %v1471 = vmax.f32 %v1363, 0.0
    %v1472 = vmax.f32 %v1364, 0.0
    %v1473 = vmax.f32 %v1365, 0.0
    %v1474 = vmax.f32 %v1366, 0.0
    %v1475 = vmax.f32 %v1367, 0.0
    %v1476 = vmax.f32 %v1368, 0.0
    %v1477 = vmax.f32 %v1369, 0.0
    %v1478 = vmax.f32 %v1370, 0.0
    %v1479 = vmax.f32 %v1371, 0.0
    %v1480 = vmax.f32 %v1372, 0.0
    %v1481 = vmax.f32 %v1373, 0.0
    %v1482 = vmax.f32 %v1374, 0.0
    %v1483 = vmax.f32 %v1375, 0.0
    %v1484 = vmax.f32 %v1376, 0.0
    %v1485 = vmax.f32 %v1377, 0.0
    %v1486 = vmax.f32 %v1378, 0.0
    %v1487 = vmax.f32 %v1379, 0.0
    %v1488 = vmax.f32 %v1380, 0.0
    %v1489 = vmax.f32 %v1381, 0.0
    %v1490 = vmax.f32 %v1382, 0.0
    %v1491 = vmax.f32 %v1383, 0.0
    %v1492 = vmax.f32 %v1384, 0.0
    %v1493 = vmax.f32 %v1385, 0.0
    %v1494 = vmax.f32 %v1386, 0.0
    %v1495 = vmax.f32 %v1387, 0.0
    %v1496 = vmax.f32 %v1388, 0.0
    %v1497 = vmax.f32 %v1389, 0.0
    %v1498 = vmax.f32 %v1390, 0.0
    %v1499 = vmax.f32 %v1391, 0.0
    %v1500 = vmax.f32 %v1392, 0.0
    %v1501 = vmax.f32 %v1393, 0.0
    %v1502 = vmax.f32 %v1394, 0.0
    %v1503 = vmax.f32 %v1395, 0.0
    %v1504 = vmax.f32 %v1396, 0.0
    %v1505 = vmax.f32 %v1397, 0.0
    %v1506 = vmax.f32 %v1398, 0.0
    %v1507 = vmax.f32 %v1399, 0.0
    %vm1508 = vcmask 130048
    %1509 = vst.msk [vmem:[#allocation2] sm:$0xff] %vm1508, %v1400
    %1510 = vst.msk [vmem:[#allocation2 + $0x8] sm:$0xff] %vm1508, %v1401
    %1511 = vst.msk [vmem:[#allocation2 + $0x10] sm:$0xff] %vm1508, %v1402
    %1512 = vst.msk [vmem:[#allocation2 + $0x18] sm:$0xff] %vm1508, %v1403
    %1513 = vst.msk [vmem:[#allocation2 + $0x20] sm:$0xff] %vm1508, %v1404
    %1514 = vst.msk [vmem:[#allocation2 + $0x28] sm:$0xff] %vm1508, %v1405
    %1515 = vst.msk [vmem:[#allocation2 + $0x30] sm:$0xff] %vm1508, %v1406
    %1516 = vst.msk [vmem:[#allocation2 + $0x38] sm:$0xff] %vm1508, %v1407
    %1517 = vst.msk [vmem:[#allocation2 + $0x40] sm:$0xff] %vm1508, %v1408
    %1518 = vst.msk [vmem:[#allocation2 + $0x48] sm:$0xff] %vm1508, %v1409
    %1519 = vst.msk [vmem:[#allocation2 + $0x50] sm:$0xff] %vm1508, %v1410
    %1520 = vst.msk [vmem:[#allocation2 + $0x58] sm:$0xff] %vm1508, %v1411
    %1521 = vst.msk [vmem:[#allocation2 + $0x60] sm:$0xff] %vm1508, %v1412
    %1522 = vst.msk [vmem:[#allocation2 + $0x68] sm:$0xff] %vm1508, %v1413
    %1523 = vst.msk [vmem:[#allocation2 + $0x70] sm:$0xff] %vm1508, %v1414
    %1524 = vst.msk [vmem:[#allocation2 + $0x78] sm:$0xff] %vm1508, %v1415
    %1525 = vst.msk [vmem:[#allocation2 + $0x80] sm:$0xff] %vm1508, %v1416
    %1526 = vst.msk [vmem:[#allocation2 + $0x88] sm:$0xff] %vm1508, %v1417
    %1527 = vst.msk [vmem:[#allocation2 + $0x90] sm:$0xff] %vm1508, %v1418
    %1528 = vst.msk [vmem:[#allocation2 + $0x98] sm:$0xff] %vm1508, %v1419
    %1529 = vst.msk [vmem:[#allocation2 + $0xa0] sm:$0xff] %vm1508, %v1420
    %1530 = vst.msk [vmem:[#allocation2 + $0xa8] sm:$0xff] %vm1508, %v1421
    %1531 = vst.msk [vmem:[#allocation2 + $0xb0] sm:$0xff] %vm1508, %v1422
    %1532 = vst.msk [vmem:[#allocation2 + $0xb8] sm:$0xff] %vm1508, %v1423
    %1533 = vst.msk [vmem:[#allocation2 + $0xc0] sm:$0xff] %vm1508, %v1424
    %1534 = vst.msk [vmem:[#allocation2 + $0xc8] sm:$0xff] %vm1508, %v1425
    %1535 = vst.msk [vmem:[#allocation2 + $0xd0] sm:$0xff] %vm1508, %v1426
    %1536 = vst.msk [vmem:[#allocation2 + $0xd8] sm:$0xff] %vm1508, %v1427
    %1537 = vst.msk [vmem:[#allocation2 + $0xe0] sm:$0xff] %vm1508, %v1428
    %1538 = vst.msk [vmem:[#allocation2 + $0xe8] sm:$0xff] %vm1508, %v1429
    %1539 = vst.msk [vmem:[#allocation2 + $0xf0] sm:$0xff] %vm1508, %v1430
    %1540 = vst.msk [vmem:[#allocation2 + $0xf8] sm:$0xff] %vm1508, %v1431
    %1541 = vst.msk [vmem:[#allocation2 + $0x100] sm:$0xff] %vm1508, %v1432
    %1542 = vst.msk [vmem:[#allocation2 + $0x108] sm:$0xff] %vm1508, %v1433
    %1543 = vst.msk [vmem:[#allocation2 + $0x110] sm:$0xff] %vm1508, %v1434
    %1544 = vst.msk [vmem:[#allocation2 + $0x118] sm:$0xff] %vm1508, %v1435
    %1545 = vst.msk [vmem:[#allocation2 + $0x120] sm:$0xff] %vm1508, %v1436
    %1546 = vst.msk [vmem:[#allocation2 + $0x128] sm:$0xff] %vm1508, %v1437
    %1547 = vst.msk [vmem:[#allocation2 + $0x130] sm:$0xff] %vm1508, %v1438
    %1548 = vst.msk [vmem:[#allocation2 + $0x138] sm:$0xff] %vm1508, %v1439
    %1549 = vst.msk [vmem:[#allocation2 + $0x140] sm:$0xff] %vm1508, %v1440
    %1550 = vst.msk [vmem:[#allocation2 + $0x148] sm:$0xff] %vm1508, %v1441
    %1551 = vst.msk [vmem:[#allocation2 + $0x150] sm:$0xff] %vm1508, %v1442
    %1552 = vst.msk [vmem:[#allocation2 + $0x158] sm:$0xff] %vm1508, %v1443
    %1553 = vst.msk [vmem:[#allocation2 + $0x160] sm:$0xff] %vm1508, %v1444
    %1554 = vst.msk [vmem:[#allocation2 + $0x168] sm:$0xff] %vm1508, %v1445
    %1555 = vst.msk [vmem:[#allocation2 + $0x170] sm:$0xff] %vm1508, %v1446
    %1556 = vst.msk [vmem:[#allocation2 + $0x178] sm:$0xff] %vm1508, %v1447
    %1557 = vst.msk [vmem:[#allocation2 + $0x180] sm:$0xff] %vm1508, %v1448
    %1558 = vst.msk [vmem:[#allocation2 + $0x188] sm:$0xff] %vm1508, %v1449
    %1559 = vst.msk [vmem:[#allocation2 + $0x190] sm:$0xff] %vm1508, %v1450
    %1560 = vst.msk [vmem:[#allocation2 + $0x198] sm:$0xff] %vm1508, %v1451
    %1561 = vst.msk [vmem:[#allocation2 + $0x1a0] sm:$0xff] %vm1508, %v1452
    %1562 = vst.msk [vmem:[#allocation2 + $0x1a8] sm:$0xff] %vm1508, %v1453
    %1563 = vst.msk [vmem:[#allocation2 + $0x1b0] sm:$0xff] %vm1508, %v1454
    %1564 = vst.msk [vmem:[#allocation2 + $0x1b8] sm:$0xff] %vm1508, %v1455
    %1565 = vst.msk [vmem:[#allocation2 + $0x1c0] sm:$0xff] %vm1508, %v1456
    %1566 = vst.msk [vmem:[#allocation2 + $0x1c8] sm:$0xff] %vm1508, %v1457
    %1567 = vst.msk [vmem:[#allocation2 + $0x1d0] sm:$0xff] %vm1508, %v1458
    %1568 = vst.msk [vmem:[#allocation2 + $0x1d8] sm:$0xff] %vm1508, %v1459
    %1569 = vst.msk [vmem:[#allocation2 + $0x1e0] sm:$0xff] %vm1508, %v1460
    %1570 = vst.msk [vmem:[#allocation2 + $0x1e8] sm:$0xff] %vm1508, %v1461
    %1571 = vst.msk [vmem:[#allocation2 + $0x1f0] sm:$0xff] %vm1508, %v1462
    %1572 = vst.msk [vmem:[#allocation2 + $0x1f8] sm:$0xff] %vm1508, %v1463
    %1573 = vst.msk [vmem:[#allocation2 + $0x200] sm:$0xff] %vm1508, %v1464
    %1574 = vst.msk [vmem:[#allocation2 + $0x208] sm:$0xff] %vm1508, %v1465
    %1575 = vst.msk [vmem:[#allocation2 + $0x210] sm:$0xff] %vm1508, %v1466
    %1576 = vst.msk [vmem:[#allocation2 + $0x218] sm:$0xff] %vm1508, %v1467
    %1577 = vst.msk [vmem:[#allocation2 + $0x220] sm:$0xff] %vm1508, %v1468
    %1578 = vst.msk [vmem:[#allocation2 + $0x228] sm:$0xff] %vm1508, %v1469
    %1579 = vst.msk [vmem:[#allocation2 + $0x230] sm:$0xff] %vm1508, %v1470
    %1580 = vst.msk [vmem:[#allocation2 + $0x238] sm:$0xff] %vm1508, %v1471
    %1581 = vst.msk [vmem:[#allocation2 + $0x240] sm:$0xff] %vm1508, %v1472
    %1582 = vst.msk [vmem:[#allocation2 + $0x248] sm:$0xff] %vm1508, %v1473
    %1583 = vst.msk [vmem:[#allocation2 + $0x250] sm:$0xff] %vm1508, %v1474
    %1584 = vst.msk [vmem:[#allocation2 + $0x258] sm:$0xff] %vm1508, %v1475
    %1585 = vst.msk [vmem:[#allocation2 + $0x260] sm:$0xff] %vm1508, %v1476
    %1586 = vst.msk [vmem:[#allocation2 + $0x268] sm:$0xff] %vm1508, %v1477
    %1587 = vst.msk [vmem:[#allocation2 + $0x270] sm:$0xff] %vm1508, %v1478
    %1588 = vst.msk [vmem:[#allocation2 + $0x278] sm:$0xff] %vm1508, %v1479
    %1589 = vst.msk [vmem:[#allocation2 + $0x280] sm:$0xff] %vm1508, %v1480
    %1590 = vst.msk [vmem:[#allocation2 + $0x288] sm:$0xff] %vm1508, %v1481
    %1591 = vst.msk [vmem:[#allocation2 + $0x290] sm:$0xff] %vm1508, %v1482
    %1592 = vst.msk [vmem:[#allocation2 + $0x298] sm:$0xff] %vm1508, %v1483
    %1593 = vst.msk [vmem:[#allocation2 + $0x2a0] sm:$0xff] %vm1508, %v1484
    %1594 = vst.msk [vmem:[#allocation2 + $0x2a8] sm:$0xff] %vm1508, %v1485
    %1595 = vst.msk [vmem:[#allocation2 + $0x2b0] sm:$0xff] %vm1508, %v1486
    %1596 = vst.msk [vmem:[#allocation2 + $0x2b8] sm:$0xff] %vm1508, %v1487
    %1597 = vst.msk [vmem:[#allocation2 + $0x2c0] sm:$0xff] %vm1508, %v1488
    %1598 = vst.msk [vmem:[#allocation2 + $0x2c8] sm:$0xff] %vm1508, %v1489
    %1599 = vst.msk [vmem:[#allocation2 + $0x2d0] sm:$0xff] %vm1508, %v1490
    %1600 = vst.msk [vmem:[#allocation2 + $0x2d8] sm:$0xff] %vm1508, %v1491
    %1601 = vst.msk [vmem:[#allocation2 + $0x2e0] sm:$0xff] %vm1508, %v1492
    %1602 = vst.msk [vmem:[#allocation2 + $0x2e8] sm:$0xff] %vm1508, %v1493
    %1603 = vst.msk [vmem:[#allocation2 + $0x2f0] sm:$0xff] %vm1508, %v1494
    %1604 = vst.msk [vmem:[#allocation2 + $0x2f8] sm:$0xff] %vm1508, %v1495
    %1605 = vst.msk [vmem:[#allocation2 + $0x300] sm:$0xff] %vm1508, %v1496
    %1606 = vst.msk [vmem:[#allocation2 + $0x308] sm:$0xff] %vm1508, %v1497
    %1607 = vst.msk [vmem:[#allocation2 + $0x310] sm:$0xff] %vm1508, %v1498
    %1608 = vst.msk [vmem:[#allocation2 + $0x318] sm:$0xff] %vm1508, %v1499
    %1609 = vst.msk [vmem:[#allocation2 + $0x320] sm:$0xff] %vm1508, %v1500
    %1610 = vst.msk [vmem:[#allocation2 + $0x328] sm:$0xff] %vm1508, %v1501
    %1611 = vst.msk [vmem:[#allocation2 + $0x330] sm:$0xff] %vm1508, %v1502
    %1612 = vst.msk [vmem:[#allocation2 + $0x338] sm:$0xff] %vm1508, %v1503
    %1613 = vst.msk [vmem:[#allocation2 + $0x340] sm:$0xff] %vm1508, %v1504
    %1614 = vst.msk [vmem:[#allocation2 + $0x348] sm:$0xff] %vm1508, %v1505
    %1615 = vst.msk [vmem:[#allocation2 + $0x350] sm:$0xff] %vm1508, %v1506
    %1616 = vst.msk [vmem:[#allocation2 + $0x358] sm:$0xff] %vm1508, %v1507
    %v1617 = vld [vmem:[#allocation2] sm:$0xff]
    %v1618 = vld [vmem:[#allocation2 + $0x8] sm:$0xff]
    %v1619 = vld [vmem:[#allocation2 + $0x10] sm:$0xff]
    %v1620 = vld [vmem:[#allocation2 + $0x18] sm:$0xff]
    %v1621 = vld [vmem:[#allocation2 + $0x20] sm:$0xff]
    %v1622 = vld [vmem:[#allocation2 + $0x28] sm:$0xff]
    %v1623 = vld [vmem:[#allocation2 + $0x30] sm:$0x3f]
    %v1624 = vld [vmem:[#allocation2 + $0x36] sm:$0xff]
    %v1625 = vld [vmem:[#allocation2 + $0x3e] sm:$0xff]
    %v1626 = vld [vmem:[#allocation2 + $0x46] sm:$0xff]
    %v1627 = vld [vmem:[#allocation2 + $0x4e] sm:$0xff]
    %v1628 = vld [vmem:[#allocation2 + $0x56] sm:$0xff]
    %v1629 = vld [vmem:[#allocation2 + $0x5e] sm:$0xff]
    %v1630 = vld [vmem:[#allocation2 + $0x66] sm:$0x3f]
    %v1631 = vmax.f32 %v1617, %v1624
    %v1632 = vmax.f32 %v1618, %v1625
    %v1633 = vmax.f32 %v1619, %v1626
    %v1634 = vmax.f32 %v1620, %v1627
    %v1635 = vmax.f32 %v1621, %v1628
    %v1636 = vmax.f32 %v1622, %v1629
    %v1637 = vmax.f32 %v1623, %v1630
    %1638 = vst.msk [vmem:[#allocation6 + $0x1] sm:$0xff] %vm1508, %v1631
    %1639 = vst.msk [vmem:[#allocation6 + $0x9] sm:$0xff] %vm1508, %v1632
    %1640 = vst.msk [vmem:[#allocation6 + $0x11] sm:$0xff] %vm1508, %v1633
    %1641 = vst.msk [vmem:[#allocation6 + $0x19] sm:$0xff] %vm1508, %v1634
    %1642 = vst.msk [vmem:[#allocation6 + $0x21] sm:$0xff] %vm1508, %v1635
    %1643 = vst.msk [vmem:[#allocation6 + $0x29] sm:$0xff] %vm1508, %v1636
    %vm1644 = vcmask 128000
    %1645 = vst.msk [vmem:[#allocation6 + $0x31] sm:$0x3f] %vm1644, %v1637
    %v1646 = vld [vmem:[#allocation6] ss:$2 sm:$0xff]
    %s1647 = scalar_lea.vmem [#allocation6], 16
    %v1648 = vld [vmem:[%s1647] ss:$2 sm:$0xff]
    %s1649 = scalar_lea.vmem [#allocation6], 32
    %v1650 = vld [vmem:[%s1649] ss:$2 sm:$0xff]
    %s1651 = scalar_lea.vmem [#allocation6], 48
    %v1652 = vld [vmem:[%s1651] ss:$2 sm:$0xf]
    %s1653 = scalar_lea.vmem [#allocation6], 1
    %v1654 = vld [vmem:[%s1653] ss:$2 sm:$0xff]
    %s1655 = scalar_lea.vmem [#allocation6], 17
    %v1656 = vld [vmem:[%s1655] ss:$2 sm:$0xff]
    %s1657 = scalar_lea.vmem [#allocation6], 33
    %v1658 = vld [vmem:[%s1657] ss:$2 sm:$0xff]
    %s1659 = scalar_lea.vmem [#allocation6], 49
    %v1660 = vld [vmem:[%s1659] ss:$2 sm:$0xf]
    %v1661 = vmax.f32 %v1646, %v1654
    %v1662 = vmax.f32 %v1648, %v1656
    %v1663 = vmax.f32 %v1650, %v1658
    %v1664 = vmax.f32 %v1652, %v1660
    %s1665 = scalar_lea.vmem [#allocation3], 32
    %1666 = vst.msk [vmem:[%s1665 + $0x2] sm:$0xff] %vm1508, %v1661
    %1667 = vst.msk [vmem:[%s1665 + $0xa] sm:$0xff] %vm1508, %v1662
    %1668 = vst.msk [vmem:[%s1665 + $0x12] sm:$0xff] %vm1508, %v1663
    %vm1669 = vcmask 125952
    %1670 = vst.msk [vmem:[%s1665 + $0x1a] sm:$0xf] %vm1669, %v1664
    %1675 = vrot.lane.b32.xlu0 %v1661, 16
    %v1676 = vpop.permute.xlu0 %1675
    %1677 = vrot.lane.b32.xlu0 %v1662, 16
    %v1678 = vpop.permute.xlu0 %1677
    %1679 = vrot.lane.b32.xlu0 %v1663, 16
    %v1680 = vpop.permute.xlu0 %1679
    %1681 = vrot.lane.b32.xlu0 %v1664, 16
    %v1682 = vpop.permute.xlu0 %1681
    %vm1687 = vcmask 261248
    %1688 = vst.msk [vmem:[%s1665 + $0x1] sm:$0xff] %vm1687, %v1676
    %1689 = vst.msk [vmem:[%s1665 + $0x9] sm:$0xff] %vm1687, %v1678
    %1690 = vst.msk [vmem:[%s1665 + $0x11] sm:$0xff] %vm1687, %v1680
    %vm1691 = vcmask 257152
    %1692 = vst.msk [vmem:[%s1665 + $0x19] sm:$0xf] %vm1691, %v1682
    %1693 = vrot.lane.b32.xlu0 %v1661, 32
    %v1694 = vpop.permute.xlu0 %1693
    %1695 = vrot.lane.b32.xlu0 %v1662, 32
    %v1696 = vpop.permute.xlu0 %1695
    %1697 = vrot.lane.b32.xlu0 %v1663, 32
    %v1698 = vpop.permute.xlu0 %1697
    %1699 = vrot.lane.b32.xlu0 %v1664, 32
    %v1700 = vpop.permute.xlu0 %1699
    %vm1705 = vcmask 392448
    %1706 = vst.msk [vmem:[%s1665] sm:$0xff] %vm1705, %v1694
    %1707 = vst.msk [vmem:[%s1665 + $0x8] sm:$0xff] %vm1705, %v1696
    %1708 = vst.msk [vmem:[%s1665 + $0x10] sm:$0xff] %vm1705, %v1698
    %vm1709 = vcmask 388352
    %1710 = vst.msk [vmem:[%s1665 + $0x18] sm:$0xf] %vm1709, %v1700
    %v1711 = vld [vmem:[#allocation2 + $0x6c] sm:$0xff]
    %v1712 = vld [vmem:[#allocation2 + $0x74] sm:$0xff]
    %v1713 = vld [vmem:[#allocation2 + $0x7c] sm:$0xff]
    %v1714 = vld [vmem:[#allocation2 + $0x84] sm:$0xff]
    %v1715 = vld [vmem:[#allocation2 + $0x8c] sm:$0xff]
    %v1716 = vld [vmem:[#allocation2 + $0x94] sm:$0xff]
    %v1717 = vld [vmem:[#allocation2 + $0x9c] sm:$0x3f]
    %v1718 = vld [vmem:[#allocation2 + $0xa2] sm:$0xff]
    %v1719 = vld [vmem:[#allocation2 + $0xaa] sm:$0xff]
    %v1720 = vld [vmem:[#allocation2 + $0xb2] sm:$0xff]
    %v1721 = vld [vmem:[#allocation2 + $0xba] sm:$0xff]
    %v1722 = vld [vmem:[#allocation2 + $0xc2] sm:$0xff]
    %v1723 = vld [vmem:[#allocation2 + $0xca] sm:$0xff]
    %v1724 = vld [vmem:[#allocation2 + $0xd2] sm:$0x3f]
    %v1725 = vmax.f32 %v1711, %v1718
    %v1726 = vmax.f32 %v1712, %v1719
    %v1727 = vmax.f32 %v1713, %v1720
    %v1728 = vmax.f32 %v1714, %v1721
    %v1729 = vmax.f32 %v1715, %v1722
    %v1730 = vmax.f32 %v1716, %v1723
    %v1731 = vmax.f32 %v1717, %v1724
    %1732 = vst.msk [vmem:[#allocation6 + $0x1] sm:$0xff] %vm1508, %v1725
    %1733 = vst.msk [vmem:[#allocation6 + $0x9] sm:$0xff] %vm1508, %v1726
    %1734 = vst.msk [vmem:[#allocation6 + $0x11] sm:$0xff] %vm1508, %v1727
    %1735 = vst.msk [vmem:[#allocation6 + $0x19] sm:$0xff] %vm1508, %v1728
    %1736 = vst.msk [vmem:[#allocation6 + $0x21] sm:$0xff] %vm1508, %v1729
    %1737 = vst.msk [vmem:[#allocation6 + $0x29] sm:$0xff] %vm1508, %v1730
    %1738 = vst.msk [vmem:[#allocation6 + $0x31] sm:$0x3f] %vm1644, %v1731
    %v1739 = vld [vmem:[#allocation6] ss:$2 sm:$0xff]
    %v1740 = vld [vmem:[%s1647] ss:$2 sm:$0xff]
    %v1741 = vld [vmem:[%s1649] ss:$2 sm:$0xff]
    %v1742 = vld [vmem:[%s1651] ss:$2 sm:$0xf]
    %v1743 = vld [vmem:[%s1653] ss:$2 sm:$0xff]
    %v1744 = vld [vmem:[%s1655] ss:$2 sm:$0xff]
    %v1745 = vld [vmem:[%s1657] ss:$2 sm:$0xff]
    %v1746 = vld [vmem:[%s1659] ss:$2 sm:$0xf]
    %v1747 = vmax.f32 %v1739, %v1743
    %v1748 = vmax.f32 %v1740, %v1744
    %v1749 = vmax.f32 %v1741, %v1745
    %v1750 = vmax.f32 %v1742, %v1746
    %s1751 = scalar_lea.vmem [#allocation3], 64
    %1752 = vst.msk [vmem:[%s1751 + $0x2] sm:$0xff] %vm1508, %v1747
    %1753 = vst.msk [vmem:[%s1751 + $0xa] sm:$0xff] %vm1508, %v1748
    %1754 = vst.msk [vmem:[%s1751 + $0x12] sm:$0xff] %vm1508, %v1749
    %1755 = vst.msk [vmem:[%s1751 + $0x1a] sm:$0xf] %vm1669, %v1750
    %1760 = vrot.lane.b32.xlu0 %v1747, 16
    %v1761 = vpop.permute.xlu0 %1760
    %1762 = vrot.lane.b32.xlu0 %v1748, 16
    %v1763 = vpop.permute.xlu0 %1762
    %1764 = vrot.lane.b32.xlu0 %v1749, 16
    %v1765 = vpop.permute.xlu0 %1764
    %1766 = vrot.lane.b32.xlu0 %v1750, 16
    %v1767 = vpop.permute.xlu0 %1766
    %1772 = vst.msk [vmem:[%s1751 + $0x1] sm:$0xff] %vm1687, %v1761
    %1773 = vst.msk [vmem:[%s1751 + $0x9] sm:$0xff] %vm1687, %v1763
    %1774 = vst.msk [vmem:[%s1751 + $0x11] sm:$0xff] %vm1687, %v1765
    %1775 = vst.msk [vmem:[%s1751 + $0x19] sm:$0xf] %vm1691, %v1767
    %1776 = vrot.lane.b32.xlu0 %v1747, 32
    %v1777 = vpop.permute.xlu0 %1776
    %1778 = vrot.lane.b32.xlu0 %v1748, 32
    %v1779 = vpop.permute.xlu0 %1778
    %1780 = vrot.lane.b32.xlu0 %v1749, 32
    %v1781 = vpop.permute.xlu0 %1780
    %1782 = vrot.lane.b32.xlu0 %v1750, 32
    %v1783 = vpop.permute.xlu0 %1782
    %1788 = vst.msk [vmem:[%s1751] sm:$0xff] %vm1705, %v1777
    %1789 = vst.msk [vmem:[%s1751 + $0x8] sm:$0xff] %vm1705, %v1779
    %1790 = vst.msk [vmem:[%s1751 + $0x10] sm:$0xff] %vm1705, %v1781
    %1791 = vst.msk [vmem:[%s1751 + $0x18] sm:$0xf] %vm1709, %v1783
    %v1792 = vld [vmem:[#allocation2 + $0xd8] sm:$0xff]
    %v1793 = vld [vmem:[#allocation2 + $0xe0] sm:$0xff]
    %v1794 = vld [vmem:[#allocation2 + $0xe8] sm:$0xff]
    %v1795 = vld [vmem:[#allocation2 + $0xf0] sm:$0xff]
    %v1796 = vld [vmem:[#allocation2 + $0xf8] sm:$0xff]
    %v1797 = vld [vmem:[#allocation2 + $0x100] sm:$0xff]
    %v1798 = vld [vmem:[#allocation2 + $0x108] sm:$0x3f]
    %v1799 = vld [vmem:[#allocation2 + $0x10e] sm:$0xff]
    %v1800 = vld [vmem:[#allocation2 + $0x116] sm:$0xff]
    %v1801 = vld [vmem:[#allocation2 + $0x11e] sm:$0xff]
    %v1802 = vld [vmem:[#allocation2 + $0x126] sm:$0xff]
    %v1803 = vld [vmem:[#allocation2 + $0x12e] sm:$0xff]
    %v1804 = vld [vmem:[#allocation2 + $0x136] sm:$0xff]
    %v1805 = vld [vmem:[#allocation2 + $0x13e] sm:$0x3f]
    %v1806 = vmax.f32 %v1792, %v1799
    %v1807 = vmax.f32 %v1793, %v1800
    %v1808 = vmax.f32 %v1794, %v1801
    %v1809 = vmax.f32 %v1795, %v1802
    %v1810 = vmax.f32 %v1796, %v1803
    %v1811 = vmax.f32 %v1797, %v1804
    %v1812 = vmax.f32 %v1798, %v1805
    %1813 = vst.msk [vmem:[#allocation6 + $0x1] sm:$0xff] %vm1508, %v1806
    %1814 = vst.msk [vmem:[#allocation6 + $0x9] sm:$0xff] %vm1508, %v1807
    %1815 = vst.msk [vmem:[#allocation6 + $0x11] sm:$0xff] %vm1508, %v1808
    %1816 = vst.msk [vmem:[#allocation6 + $0x19] sm:$0xff] %vm1508, %v1809
    %1817 = vst.msk [vmem:[#allocation6 + $0x21] sm:$0xff] %vm1508, %v1810
    %1818 = vst.msk [vmem:[#allocation6 + $0x29] sm:$0xff] %vm1508, %v1811
    %1819 = vst.msk [vmem:[#allocation6 + $0x31] sm:$0x3f] %vm1644, %v1812
    %v1820 = vld [vmem:[#allocation6] ss:$2 sm:$0xff]
    %v1821 = vld [vmem:[%s1647] ss:$2 sm:$0xff]
    %v1822 = vld [vmem:[%s1649] ss:$2 sm:$0xff]
    %v1823 = vld [vmem:[%s1651] ss:$2 sm:$0xf]
    %v1824 = vld [vmem:[%s1653] ss:$2 sm:$0xff]
    %v1825 = vld [vmem:[%s1655] ss:$2 sm:$0xff]
    %v1826 = vld [vmem:[%s1657] ss:$2 sm:$0xff]
    %v1827 = vld [vmem:[%s1659] ss:$2 sm:$0xf]
    %v1828 = vmax.f32 %v1820, %v1824
    %v1829 = vmax.f32 %v1821, %v1825
    %v1830 = vmax.f32 %v1822, %v1826
    %v1831 = vmax.f32 %v1823, %v1827
    %s1832 = scalar_lea.vmem [#allocation3], 96
    %1833 = vst.msk [vmem:[%s1832 + $0x2] sm:$0xff] %vm1508, %v1828
    %1834 = vst.msk [vmem:[%s1832 + $0xa] sm:$0xff] %vm1508, %v1829
    %1835 = vst.msk [vmem:[%s1832 + $0x12] sm:$0xff] %vm1508, %v1830
    %1836 = vst.msk [vmem:[%s1832 + $0x1a] sm:$0xf] %vm1669, %v1831
    %1841 = vrot.lane.b32.xlu0 %v1828, 16
    %v1842 = vpop.permute.xlu0 %1841
    %1843 = vrot.lane.b32.xlu0 %v1829, 16
    %v1844 = vpop.permute.xlu0 %1843
    %1845 = vrot.lane.b32.xlu0 %v1830, 16
    %v1846 = vpop.permute.xlu0 %1845
    %1847 = vrot.lane.b32.xlu0 %v1831, 16
    %v1848 = vpop.permute.xlu0 %1847
    %1853 = vst.msk [vmem:[%s1832 + $0x1] sm:$0xff] %vm1687, %v1842
    %1854 = vst.msk [vmem:[%s1832 + $0x9] sm:$0xff] %vm1687, %v1844
    %1855 = vst.msk [vmem:[%s1832 + $0x11] sm:$0xff] %vm1687, %v1846
    %1856 = vst.msk [vmem:[%s1832 + $0x19] sm:$0xf] %vm1691, %v1848
    %1857 = vrot.lane.b32.xlu0 %v1828, 32
    %v1858 = vpop.permute.xlu0 %1857
    %1859 = vrot.lane.b32.xlu0 %v1829, 32
    %v1860 = vpop.permute.xlu0 %1859
    %1861 = vrot.lane.b32.xlu0 %v1830, 32
    %v1862 = vpop.permute.xlu0 %1861
    %1863 = vrot.lane.b32.xlu0 %v1831, 32
    %v1864 = vpop.permute.xlu0 %1863
    %1869 = vst.msk [vmem:[%s1832] sm:$0xff] %vm1705, %v1858
    %1870 = vst.msk [vmem:[%s1832 + $0x8] sm:$0xff] %vm1705, %v1860
    %1871 = vst.msk [vmem:[%s1832 + $0x10] sm:$0xff] %vm1705, %v1862
    %1872 = vst.msk [vmem:[%s1832 + $0x18] sm:$0xf] %vm1709, %v1864
    %v1873 = vld [vmem:[#allocation2 + $0x144] sm:$0xff]
    %v1874 = vld [vmem:[#allocation2 + $0x14c] sm:$0xff]
    %v1875 = vld [vmem:[#allocation2 + $0x154] sm:$0xff]
    %v1876 = vld [vmem:[#allocation2 + $0x15c] sm:$0xff]
    %v1877 = vld [vmem:[#allocation2 + $0x164] sm:$0xff]
    %v1878 = vld [vmem:[#allocation2 + $0x16c] sm:$0xff]
    %v1879 = vld [vmem:[#allocation2 + $0x174] sm:$0x3f]
    %v1880 = vld [vmem:[#allocation2 + $0x17a] sm:$0xff]
    %v1881 = vld [vmem:[#allocation2 + $0x182] sm:$0xff]
    %v1882 = vld [vmem:[#allocation2 + $0x18a] sm:$0xff]
    %v1883 = vld [vmem:[#allocation2 + $0x192] sm:$0xff]
    %v1884 = vld [vmem:[#allocation2 + $0x19a] sm:$0xff]
    %v1885 = vld [vmem:[#allocation2 + $0x1a2] sm:$0xff]
    %v1886 = vld [vmem:[#allocation2 + $0x1aa] sm:$0x3f]
    %v1887 = vmax.f32 %v1873, %v1880
    %v1888 = vmax.f32 %v1874, %v1881
    %v1889 = vmax.f32 %v1875, %v1882
    %v1890 = vmax.f32 %v1876, %v1883
    %v1891 = vmax.f32 %v1877, %v1884
    %v1892 = vmax.f32 %v1878, %v1885
    %v1893 = vmax.f32 %v1879, %v1886
    %1894 = vst.msk [vmem:[#allocation6 + $0x1] sm:$0xff] %vm1508, %v1887
    %1895 = vst.msk [vmem:[#allocation6 + $0x9] sm:$0xff] %vm1508, %v1888
    %1896 = vst.msk [vmem:[#allocation6 + $0x11] sm:$0xff] %vm1508, %v1889
    %1897 = vst.msk [vmem:[#allocation6 + $0x19] sm:$0xff] %vm1508, %v1890
    %1898 = vst.msk [vmem:[#allocation6 + $0x21] sm:$0xff] %vm1508, %v1891
    %1899 = vst.msk [vmem:[#allocation6 + $0x29] sm:$0xff] %vm1508, %v1892
    %1900 = vst.msk [vmem:[#allocation6 + $0x31] sm:$0x3f] %vm1644, %v1893
    %v1901 = vld [vmem:[#allocation6] ss:$2 sm:$0xff]
    %v1902 = vld [vmem:[%s1647] ss:$2 sm:$0xff]
    %v1903 = vld [vmem:[%s1649] ss:$2 sm:$0xff]
    %v1904 = vld [vmem:[%s1651] ss:$2 sm:$0xf]
    %v1905 = vld [vmem:[%s1653] ss:$2 sm:$0xff]
    %v1906 = vld [vmem:[%s1655] ss:$2 sm:$0xff]
    %v1907 = vld [vmem:[%s1657] ss:$2 sm:$0xff]
    %v1908 = vld [vmem:[%s1659] ss:$2 sm:$0xf]
    %v1909 = vmax.f32 %v1901, %v1905
    %v1910 = vmax.f32 %v1902, %v1906
    %v1911 = vmax.f32 %v1903, %v1907
    %v1912 = vmax.f32 %v1904, %v1908
    %s1913 = scalar_lea.vmem [#allocation3], 128
    %1914 = vst.msk [vmem:[%s1913 + $0x2] sm:$0xff] %vm1508, %v1909
    %1915 = vst.msk [vmem:[%s1913 + $0xa] sm:$0xff] %vm1508, %v1910
    %1916 = vst.msk [vmem:[%s1913 + $0x12] sm:$0xff] %vm1508, %v1911
    %1917 = vst.msk [vmem:[%s1913 + $0x1a] sm:$0xf] %vm1669, %v1912
    %1922 = vrot.lane.b32.xlu0 %v1909, 16
    %v1923 = vpop.permute.xlu0 %1922
    %1924 = vrot.lane.b32.xlu0 %v1910, 16
    %v1925 = vpop.permute.xlu0 %1924
    %1926 = vrot.lane.b32.xlu0 %v1911, 16
    %v1927 = vpop.permute.xlu0 %1926
    %1928 = vrot.lane.b32.xlu0 %v1912, 16
    %v1929 = vpop.permute.xlu0 %1928
    %1934 = vst.msk [vmem:[%s1913 + $0x1] sm:$0xff] %vm1687, %v1923
    %1935 = vst.msk [vmem:[%s1913 + $0x9] sm:$0xff] %vm1687, %v1925
    %1936 = vst.msk [vmem:[%s1913 + $0x11] sm:$0xff] %vm1687, %v1927
    %1937 = vst.msk [vmem:[%s1913 + $0x19] sm:$0xf] %vm1691, %v1929
    %1938 = vrot.lane.b32.xlu0 %v1909, 32
    %v1939 = vpop.permute.xlu0 %1938
    %1940 = vrot.lane.b32.xlu0 %v1910, 32
    %v1941 = vpop.permute.xlu0 %1940
    %1942 = vrot.lane.b32.xlu0 %v1911, 32
    %v1943 = vpop.permute.xlu0 %1942
    %1944 = vrot.lane.b32.xlu0 %v1912, 32
    %v1945 = vpop.permute.xlu0 %1944
    %1950 = vst.msk [vmem:[%s1913] sm:$0xff] %vm1705, %v1939
    %1951 = vst.msk [vmem:[%s1913 + $0x8] sm:$0xff] %vm1705, %v1941
    %1952 = vst.msk [vmem:[%s1913 + $0x10] sm:$0xff] %vm1705, %v1943
    %1953 = vst.msk [vmem:[%s1913 + $0x18] sm:$0xf] %vm1709, %v1945
    %v1954 = vld [vmem:[#allocation2 + $0x1b0] sm:$0xff]
    %v1955 = vld [vmem:[#allocation2 + $0x1b8] sm:$0xff]
    %v1956 = vld [vmem:[#allocation2 + $0x1c0] sm:$0xff]
    %v1957 = vld [vmem:[#allocation2 + $0x1c8] sm:$0xff]
    %v1958 = vld [vmem:[#allocation2 + $0x1d0] sm:$0xff]
    %v1959 = vld [vmem:[#allocation2 + $0x1d8] sm:$0xff]
    %v1960 = vld [vmem:[#allocation2 + $0x1e0] sm:$0x3f]
    %v1961 = vld [vmem:[#allocation2 + $0x1e6] sm:$0xff]
    %v1962 = vld [vmem:[#allocation2 + $0x1ee] sm:$0xff]
    %v1963 = vld [vmem:[#allocation2 + $0x1f6] sm:$0xff]
    %v1964 = vld [vmem:[#allocation2 + $0x1fe] sm:$0xff]
    %v1965 = vld [vmem:[#allocation2 + $0x206] sm:$0xff]
    %v1966 = vld [vmem:[#allocation2 + $0x20e] sm:$0xff]
    %v1967 = vld [vmem:[#allocation2 + $0x216] sm:$0x3f]
    %v1968 = vmax.f32 %v1954, %v1961
    %v1969 = vmax.f32 %v1955, %v1962
    %v1970 = vmax.f32 %v1956, %v1963
    %v1971 = vmax.f32 %v1957, %v1964
    %v1972 = vmax.f32 %v1958, %v1965
    %v1973 = vmax.f32 %v1959, %v1966
    %v1974 = vmax.f32 %v1960, %v1967
    %1975 = vst.msk [vmem:[#allocation6 + $0x1] sm:$0xff] %vm1508, %v1968
    %1976 = vst.msk [vmem:[#allocation6 + $0x9] sm:$0xff] %vm1508, %v1969
    %1977 = vst.msk [vmem:[#allocation6 + $0x11] sm:$0xff] %vm1508, %v1970
    %1978 = vst.msk [vmem:[#allocation6 + $0x19] sm:$0xff] %vm1508, %v1971
    %1979 = vst.msk [vmem:[#allocation6 + $0x21] sm:$0xff] %vm1508, %v1972
    %1980 = vst.msk [vmem:[#allocation6 + $0x29] sm:$0xff] %vm1508, %v1973
    %1981 = vst.msk [vmem:[#allocation6 + $0x31] sm:$0x3f] %vm1644, %v1974
    %v1982 = vld [vmem:[#allocation6] ss:$2 sm:$0xff]
    %v1983 = vld [vmem:[%s1647] ss:$2 sm:$0xff]
    %v1984 = vld [vmem:[%s1649] ss:$2 sm:$0xff]
    %v1985 = vld [vmem:[%s1651] ss:$2 sm:$0xf]
    %v1986 = vld [vmem:[%s1653] ss:$2 sm:$0xff]
    %v1987 = vld [vmem:[%s1655] ss:$2 sm:$0xff]
    %v1988 = vld [vmem:[%s1657] ss:$2 sm:$0xff]
    %v1989 = vld [vmem:[%s1659] ss:$2 sm:$0xf]
    %v1990 = vmax.f32 %v1982, %v1986
    %v1991 = vmax.f32 %v1983, %v1987
    %v1992 = vmax.f32 %v1984, %v1988
    %v1993 = vmax.f32 %v1985, %v1989
    %s1994 = scalar_lea.vmem [#allocation3], 224
    %1995 = vst.msk [vmem:[%s1994 + $0x2] sm:$0xff] %vm1508, %v1990
    %1996 = vst.msk [vmem:[%s1994 + $0xa] sm:$0xff] %vm1508, %v1991
    %1997 = vst.msk [vmem:[%s1994 + $0x12] sm:$0xff] %vm1508, %v1992
    %1998 = vst.msk [vmem:[%s1994 + $0x1a] sm:$0xf] %vm1669, %v1993
    %2003 = vrot.lane.b32.xlu0 %v1990, 16
    %v2004 = vpop.permute.xlu0 %2003
    %2005 = vrot.lane.b32.xlu0 %v1991, 16
    %v2006 = vpop.permute.xlu0 %2005
    %2007 = vrot.lane.b32.xlu0 %v1992, 16
    %v2008 = vpop.permute.xlu0 %2007
    %2009 = vrot.lane.b32.xlu0 %v1993, 16
    %v2010 = vpop.permute.xlu0 %2009
    %2015 = vst.msk [vmem:[%s1994 + $0x1] sm:$0xff] %vm1687, %v2004
    %2016 = vst.msk [vmem:[%s1994 + $0x9] sm:$0xff] %vm1687, %v2006
    %2017 = vst.msk [vmem:[%s1994 + $0x11] sm:$0xff] %vm1687, %v2008
    %2018 = vst.msk [vmem:[%s1994 + $0x19] sm:$0xf] %vm1691, %v2010
    %2019 = vrot.lane.b32.xlu0 %v1990, 32
    %v2020 = vpop.permute.xlu0 %2019
    %2021 = vrot.lane.b32.xlu0 %v1991, 32
    %v2022 = vpop.permute.xlu0 %2021
    %2023 = vrot.lane.b32.xlu0 %v1992, 32
    %v2024 = vpop.permute.xlu0 %2023
    %2025 = vrot.lane.b32.xlu0 %v1993, 32
    %v2026 = vpop.permute.xlu0 %2025
    %2031 = vst.msk [vmem:[%s1994] sm:$0xff] %vm1705, %v2020
    %2032 = vst.msk [vmem:[%s1994 + $0x8] sm:$0xff] %vm1705, %v2022
    %2033 = vst.msk [vmem:[%s1994 + $0x10] sm:$0xff] %vm1705, %v2024
    %2034 = vst.msk [vmem:[%s1994 + $0x18] sm:$0xf] %vm1709, %v2026
    %v2035 = vld [vmem:[#allocation2 + $0x21c] sm:$0xff]
    %v2036 = vld [vmem:[#allocation2 + $0x224] sm:$0xff]
    %v2037 = vld [vmem:[#allocation2 + $0x22c] sm:$0xff]
    %v2038 = vld [vmem:[#allocation2 + $0x234] sm:$0xff]
    %v2039 = vld [vmem:[#allocation2 + $0x23c] sm:$0xff]
    %v2040 = vld [vmem:[#allocation2 + $0x244] sm:$0xff]
    %v2041 = vld [vmem:[#allocation2 + $0x24c] sm:$0x3f]
    %v2042 = vld [vmem:[#allocation2 + $0x252] sm:$0xff]
    %v2043 = vld [vmem:[#allocation2 + $0x25a] sm:$0xff]
    %v2044 = vld [vmem:[#allocation2 + $0x262] sm:$0xff]
    %v2045 = vld [vmem:[#allocation2 + $0x26a] sm:$0xff]
    %v2046 = vld [vmem:[#allocation2 + $0x272] sm:$0xff]
    %v2047 = vld [vmem:[#allocation2 + $0x27a] sm:$0xff]
    %v2048 = vld [vmem:[#allocation2 + $0x282] sm:$0x3f]
    %v2049 = vmax.f32 %v2035, %v2042
    %v2050 = vmax.f32 %v2036, %v2043
    %v2051 = vmax.f32 %v2037, %v2044
    %v2052 = vmax.f32 %v2038, %v2045
    %v2053 = vmax.f32 %v2039, %v2046
    %v2054 = vmax.f32 %v2040, %v2047
    %v2055 = vmax.f32 %v2041, %v2048
    %2056 = vst.msk [vmem:[#allocation6 + $0x1] sm:$0xff] %vm1508, %v2049
    %2057 = vst.msk [vmem:[#allocation6 + $0x9] sm:$0xff] %vm1508, %v2050
    %2058 = vst.msk [vmem:[#allocation6 + $0x11] sm:$0xff] %vm1508, %v2051
    %2059 = vst.msk [vmem:[#allocation6 + $0x19] sm:$0xff] %vm1508, %v2052
    %2060 = vst.msk [vmem:[#allocation6 + $0x21] sm:$0xff] %vm1508, %v2053
    %2061 = vst.msk [vmem:[#allocation6 + $0x29] sm:$0xff] %vm1508, %v2054
    %2062 = vst.msk [vmem:[#allocation6 + $0x31] sm:$0x3f] %vm1644, %v2055
    %v2063 = vld [vmem:[#allocation6] ss:$2 sm:$0xff]
    %v2064 = vld [vmem:[%s1647] ss:$2 sm:$0xff]
    %v2065 = vld [vmem:[%s1649] ss:$2 sm:$0xff]
    %v2066 = vld [vmem:[%s1651] ss:$2 sm:$0xf]
    %v2067 = vld [vmem:[%s1653] ss:$2 sm:$0xff]
    %v2068 = vld [vmem:[%s1655] ss:$2 sm:$0xff]
    %v2069 = vld [vmem:[%s1657] ss:$2 sm:$0xff]
    %v2070 = vld [vmem:[%s1659] ss:$2 sm:$0xf]
    %v2071 = vmax.f32 %v2063, %v2067
    %v2072 = vmax.f32 %v2064, %v2068
    %v2073 = vmax.f32 %v2065, %v2069
    %v2074 = vmax.f32 %v2066, %v2070
    %s2075 = scalar_lea.vmem [#allocation3], 256
    %2076 = vst.msk [vmem:[%s2075 + $0x2] sm:$0xff] %vm1508, %v2071
    %2077 = vst.msk [vmem:[%s2075 + $0xa] sm:$0xff] %vm1508, %v2072
    %2078 = vst.msk [vmem:[%s2075 + $0x12] sm:$0xff] %vm1508, %v2073
    %2079 = vst.msk [vmem:[%s2075 + $0x1a] sm:$0xf] %vm1669, %v2074
    %2084 = vrot.lane.b32.xlu0 %v2071, 16
    %v2085 = vpop.permute.xlu0 %2084
    %2086 = vrot.lane.b32.xlu0 %v2072, 16
    %v2087 = vpop.permute.xlu0 %2086
    %2088 = vrot.lane.b32.xlu0 %v2073, 16
    %v2089 = vpop.permute.xlu0 %2088
    %2090 = vrot.lane.b32.xlu0 %v2074, 16
    %v2091 = vpop.permute.xlu0 %2090
    %2096 = vst.msk [vmem:[%s2075 + $0x1] sm:$0xff] %vm1687, %v2085
    %2097 = vst.msk [vmem:[%s2075 + $0x9] sm:$0xff] %vm1687, %v2087
    %2098 = vst.msk [vmem:[%s2075 + $0x11] sm:$0xff] %vm1687, %v2089
    %2099 = vst.msk [vmem:[%s2075 + $0x19] sm:$0xf] %vm1691, %v2091
    %2100 = vrot.lane.b32.xlu0 %v2071, 32
    %v2101 = vpop.permute.xlu0 %2100
    %2102 = vrot.lane.b32.xlu0 %v2072, 32
    %v2103 = vpop.permute.xlu0 %2102
    %2104 = vrot.lane.b32.xlu0 %v2073, 32
    %v2105 = vpop.permute.xlu0 %2104
    %2106 = vrot.lane.b32.xlu0 %v2074, 32
    %v2107 = vpop.permute.xlu0 %2106
    %2112 = vst.msk [vmem:[%s2075] sm:$0xff] %vm1705, %v2101
    %2113 = vst.msk [vmem:[%s2075 + $0x8] sm:$0xff] %vm1705, %v2103
    %2114 = vst.msk [vmem:[%s2075 + $0x10] sm:$0xff] %vm1705, %v2105
    %2115 = vst.msk [vmem:[%s2075 + $0x18] sm:$0xf] %vm1709, %v2107
    %v2116 = vld [vmem:[#allocation2 + $0x288] sm:$0xff]
    %v2117 = vld [vmem:[#allocation2 + $0x290] sm:$0xff]
    %v2118 = vld [vmem:[#allocation2 + $0x298] sm:$0xff]
    %v2119 = vld [vmem:[#allocation2 + $0x2a0] sm:$0xff]
    %v2120 = vld [vmem:[#allocation2 + $0x2a8] sm:$0xff]
    %v2121 = vld [vmem:[#allocation2 + $0x2b0] sm:$0xff]
    %v2122 = vld [vmem:[#allocation2 + $0x2b8] sm:$0x3f]
    %v2123 = vld [vmem:[#allocation2 + $0x2be] sm:$0xff]
    %v2124 = vld [vmem:[#allocation2 + $0x2c6] sm:$0xff]
    %v2125 = vld [vmem:[#allocation2 + $0x2ce] sm:$0xff]
    %v2126 = vld [vmem:[#allocation2 + $0x2d6] sm:$0xff]
    %v2127 = vld [vmem:[#allocation2 + $0x2de] sm:$0xff]
    %v2128 = vld [vmem:[#allocation2 + $0x2e6] sm:$0xff]
    %v2129 = vld [vmem:[#allocation2 + $0x2ee] sm:$0x3f]
    %v2130 = vmax.f32 %v2116, %v2123
    %v2131 = vmax.f32 %v2117, %v2124
    %v2132 = vmax.f32 %v2118, %v2125
    %v2133 = vmax.f32 %v2119, %v2126
    %v2134 = vmax.f32 %v2120, %v2127
    %v2135 = vmax.f32 %v2121, %v2128
    %v2136 = vmax.f32 %v2122, %v2129
    %2137 = vst.msk [vmem:[#allocation6 + $0x1] sm:$0xff] %vm1508, %v2130
    %2138 = vst.msk [vmem:[#allocation6 + $0x9] sm:$0xff] %vm1508, %v2131
    %2139 = vst.msk [vmem:[#allocation6 + $0x11] sm:$0xff] %vm1508, %v2132
    %2140 = vst.msk [vmem:[#allocation6 + $0x19] sm:$0xff] %vm1508, %v2133
    %2141 = vst.msk [vmem:[#allocation6 + $0x21] sm:$0xff] %vm1508, %v2134
    %2142 = vst.msk [vmem:[#allocation6 + $0x29] sm:$0xff] %vm1508, %v2135
    %2143 = vst.msk [vmem:[#allocation6 + $0x31] sm:$0x3f] %vm1644, %v2136
    %v2144 = vld [vmem:[#allocation6] ss:$2 sm:$0xff]
    %v2145 = vld [vmem:[%s1647] ss:$2 sm:$0xff]
    %v2146 = vld [vmem:[%s1649] ss:$2 sm:$0xff]
    %v2147 = vld [vmem:[%s1651] ss:$2 sm:$0xf]
    %v2148 = vld [vmem:[%s1653] ss:$2 sm:$0xff]
    %v2149 = vld [vmem:[%s1655] ss:$2 sm:$0xff]
    %v2150 = vld [vmem:[%s1657] ss:$2 sm:$0xff]
    %v2151 = vld [vmem:[%s1659] ss:$2 sm:$0xf]
    %v2152 = vmax.f32 %v2144, %v2148
    %v2153 = vmax.f32 %v2145, %v2149
    %v2154 = vmax.f32 %v2146, %v2150
    %v2155 = vmax.f32 %v2147, %v2151
    %s2156 = scalar_lea.vmem [#allocation3], 288
    %2157 = vst.msk [vmem:[%s2156 + $0x2] sm:$0xff] %vm1508, %v2152
    %2158 = vst.msk [vmem:[%s2156 + $0xa] sm:$0xff] %vm1508, %v2153
    %2159 = vst.msk [vmem:[%s2156 + $0x12] sm:$0xff] %vm1508, %v2154
    %2160 = vst.msk [vmem:[%s2156 + $0x1a] sm:$0xf] %vm1669, %v2155
    %2165 = vrot.lane.b32.xlu0 %v2152, 16
    %v2166 = vpop.permute.xlu0 %2165
    %2167 = vrot.lane.b32.xlu0 %v2153, 16
    %v2168 = vpop.permute.xlu0 %2167
    %2169 = vrot.lane.b32.xlu0 %v2154, 16
    %v2170 = vpop.permute.xlu0 %2169
    %2171 = vrot.lane.b32.xlu0 %v2155, 16
    %v2172 = vpop.permute.xlu0 %2171
    %2177 = vst.msk [vmem:[%s2156 + $0x1] sm:$0xff] %vm1687, %v2166
    %2178 = vst.msk [vmem:[%s2156 + $0x9] sm:$0xff] %vm1687, %v2168
    %2179 = vst.msk [vmem:[%s2156 + $0x11] sm:$0xff] %vm1687, %v2170
    %2180 = vst.msk [vmem:[%s2156 + $0x19] sm:$0xf] %vm1691, %v2172
    %2181 = vrot.lane.b32.xlu0 %v2152, 32
    %v2182 = vpop.permute.xlu0 %2181
    %2183 = vrot.lane.b32.xlu0 %v2153, 32
    %v2184 = vpop.permute.xlu0 %2183
    %2185 = vrot.lane.b32.xlu0 %v2154, 32
    %v2186 = vpop.permute.xlu0 %2185
    %2187 = vrot.lane.b32.xlu0 %v2155, 32
    %v2188 = vpop.permute.xlu0 %2187
    %2193 = vst.msk [vmem:[%s2156] sm:$0xff] %vm1705, %v2182
    %2194 = vst.msk [vmem:[%s2156 + $0x8] sm:$0xff] %vm1705, %v2184
    %2195 = vst.msk [vmem:[%s2156 + $0x10] sm:$0xff] %vm1705, %v2186
    %2196 = vst.msk [vmem:[%s2156 + $0x18] sm:$0xf] %vm1709, %v2188
    %v2197 = vld [vmem:[#allocation2 + $0x2f4] sm:$0xff]
    %v2198 = vld [vmem:[#allocation2 + $0x2fc] sm:$0xff]
    %v2199 = vld [vmem:[#allocation2 + $0x304] sm:$0xff]
    %v2200 = vld [vmem:[#allocation2 + $0x30c] sm:$0xff]
    %v2201 = vld [vmem:[#allocation2 + $0x314] sm:$0xff]
    %v2202 = vld [vmem:[#allocation2 + $0x31c] sm:$0xff]
    %v2203 = vld [vmem:[#allocation2 + $0x324] sm:$0x3f]
    %v2204 = vld [vmem:[#allocation2 + $0x32a] sm:$0xff]
    %v2205 = vld [vmem:[#allocation2 + $0x332] sm:$0xff]
    %v2206 = vld [vmem:[#allocation2 + $0x33a] sm:$0xff]
    %v2207 = vld [vmem:[#allocation2 + $0x342] sm:$0xff]
    %v2208 = vld [vmem:[#allocation2 + $0x34a] sm:$0xff]
    %v2209 = vld [vmem:[#allocation2 + $0x352] sm:$0xff]
    %v2210 = vld [vmem:[#allocation2 + $0x35a] sm:$0x3f]
    %v2211 = vmax.f32 %v2197, %v2204
    %v2212 = vmax.f32 %v2198, %v2205
    %v2213 = vmax.f32 %v2199, %v2206
    %v2214 = vmax.f32 %v2200, %v2207
    %v2215 = vmax.f32 %v2201, %v2208
    %v2216 = vmax.f32 %v2202, %v2209
    %v2217 = vmax.f32 %v2203, %v2210
    %2218 = vst.msk [vmem:[#allocation6 + $0x1] sm:$0xff] %vm1508, %v2211
    %2219 = vst.msk [vmem:[#allocation6 + $0x9] sm:$0xff] %vm1508, %v2212
    %2220 = vst.msk [vmem:[#allocation6 + $0x11] sm:$0xff] %vm1508, %v2213
    %2221 = vst.msk [vmem:[#allocation6 + $0x19] sm:$0xff] %vm1508, %v2214
    %2222 = vst.msk [vmem:[#allocation6 + $0x21] sm:$0xff] %vm1508, %v2215
    %2223 = vst.msk [vmem:[#allocation6 + $0x29] sm:$0xff] %vm1508, %v2216
    %2224 = vst.msk [vmem:[#allocation6 + $0x31] sm:$0x3f] %vm1644, %v2217
    %v2225 = vld [vmem:[#allocation6] ss:$2 sm:$0xff]
    %v2226 = vld [vmem:[%s1647] ss:$2 sm:$0xff]
    %v2227 = vld [vmem:[%s1649] ss:$2 sm:$0xff]
    %v2228 = vld [vmem:[%s1651] ss:$2 sm:$0xf]
    %v2229 = vld [vmem:[%s1653] ss:$2 sm:$0xff]
    %v2230 = vld [vmem:[%s1655] ss:$2 sm:$0xff]
    %v2231 = vld [vmem:[%s1657] ss:$2 sm:$0xff]
    %v2232 = vld [vmem:[%s1659] ss:$2 sm:$0xf]
    %v2233 = vmax.f32 %v2225, %v2229
    %v2234 = vmax.f32 %v2226, %v2230
    %v2235 = vmax.f32 %v2227, %v2231
    %v2236 = vmax.f32 %v2228, %v2232
    %s2237 = scalar_lea.vmem [#allocation3], 320
    %2238 = vst.msk [vmem:[%s2237 + $0x2] sm:$0xff] %vm1508, %v2233
    %2239 = vst.msk [vmem:[%s2237 + $0xa] sm:$0xff] %vm1508, %v2234
    %2240 = vst.msk [vmem:[%s2237 + $0x12] sm:$0xff] %vm1508, %v2235
    %2241 = vst.msk [vmem:[%s2237 + $0x1a] sm:$0xf] %vm1669, %v2236
    %2246 = vrot.lane.b32.xlu0 %v2233, 16
    %v2247 = vpop.permute.xlu0 %2246
    %2248 = vrot.lane.b32.xlu0 %v2234, 16
    %v2249 = vpop.permute.xlu0 %2248
    %2250 = vrot.lane.b32.xlu0 %v2235, 16
    %v2251 = vpop.permute.xlu0 %2250
    %2252 = vrot.lane.b32.xlu0 %v2236, 16
    %v2253 = vpop.permute.xlu0 %2252
    %2258 = vst.msk [vmem:[%s2237 + $0x1] sm:$0xff] %vm1687, %v2247
    %2259 = vst.msk [vmem:[%s2237 + $0x9] sm:$0xff] %vm1687, %v2249
    %2260 = vst.msk [vmem:[%s2237 + $0x11] sm:$0xff] %vm1687, %v2251
    %2261 = vst.msk [vmem:[%s2237 + $0x19] sm:$0xf] %vm1691, %v2253
    %2262 = vrot.lane.b32.xlu0 %v2233, 32
    %v2263 = vpop.permute.xlu0 %2262
    %2264 = vrot.lane.b32.xlu0 %v2234, 32
    %v2265 = vpop.permute.xlu0 %2264
    %2266 = vrot.lane.b32.xlu0 %v2235, 32
    %v2267 = vpop.permute.xlu0 %2266
    %2268 = vrot.lane.b32.xlu0 %v2236, 32
    %v2269 = vpop.permute.xlu0 %2268
    %2274 = vst.msk [vmem:[%s2237] sm:$0xff] %vm1705, %v2263
    %2275 = vst.msk [vmem:[%s2237 + $0x8] sm:$0xff] %vm1705, %v2265
    %2276 = vst.msk [vmem:[%s2237 + $0x10] sm:$0xff] %vm1705, %v2267
    %2277 = vst.msk [vmem:[%s2237 + $0x18] sm:$0xf] %vm1709, %v2269
    %v2278 = vld [vmem:[%s4] sm:$0xff]
    %v2279 = vld [vmem:[%s4 + $0x8] sm:$0xff]
    %v2280 = vld [vmem:[%s4 + $0x10] sm:$0xff]
    %v2281 = vld [vmem:[%s4 + $0x18] sm:$0xff]
    %v2282 = vld [vmem:[%s4 + $0x20] sm:$0xff]
    %v2283 = vld [vmem:[%s4 + $0x28] sm:$0xff]
    %s2284 = scalar_lea.vmem %s4, 48
    %v2285 = vld [vmem:[%s2284] sm:$0xff]
    %v2286 = vld [vmem:[%s2284 + $0x8] sm:$0xff]
    %v2287 = vld [vmem:[%s2284 + $0x10] sm:$0xff]
    %v2288 = vld [vmem:[%s2284 + $0x18] sm:$0xff]
    %v2289 = vld [vmem:[%s2284 + $0x20] sm:$0xff]
    %v2290 = vld [vmem:[%s2284 + $0x28] sm:$0xff]
    %s2291 = scalar_lea.vmem %s4, 96
    %v2292 = vld [vmem:[%s2291] sm:$0xff]
    %v2293 = vld [vmem:[%s2291 + $0x8] sm:$0xff]
    %v2294 = vld [vmem:[%s2291 + $0x10] sm:$0xff]
    %v2295 = vld [vmem:[%s2291 + $0x18] sm:$0xff]
    %v2296 = vld [vmem:[%s2291 + $0x20] sm:$0xff]
    %v2297 = vld [vmem:[%s2291 + $0x28] sm:$0xff]
    %v2298 = vld [vmem:[%s5] sm:$0x1]
    %v2300 = vlaneseq
    %v2301 = vshrl.u32 %v2300, 7
    %v2302 = vsub.s32 0, %v2301
    %v2303 = vrot.slane %v2298, %v2302
    %v2305 = vld [vmem:[%s6] sm:$0x1]
    %v2307 = vlaneseq
    %v2308 = vshrl.u32 %v2307, 7
    %v2309 = vsub.s32 0, %v2308
    %v2310 = vrot.slane %v2305, %v2309
    %v2312 = vld [vmem:[%s7] sm:$0xff]
    %v2313 = vld [vmem:[%s7 + $0x8] sm:$0xff]
    %v2314 = vld [vmem:[%s7 + $0x10] sm:$0xff]
    %v2315 = vld [vmem:[%s7 + $0x18] sm:$0xff]
    %v2316 = vld [vmem:[%s7 + $0x20] sm:$0xff]
    %v2317 = vld [vmem:[%s7 + $0x28] sm:$0xff]
    %v2318 = vld [vmem:[%s7 + $0x30] sm:$0xff]
    %v2319 = vld [vmem:[%s7 + $0x38] sm:$0xff]
    %v2320 = vld [vmem:[%s7 + $0x40] sm:$0xff]
    %v2321 = vld [vmem:[%s7 + $0x48] sm:$0xff]
    %v2322 = vld [vmem:[%s7 + $0x50] sm:$0xff]
    %v2323 = vld [vmem:[%s7 + $0x58] sm:$0xff]
    %s2324 = scalar_lea.vmem %s7, 96
    %v2325 = vld [vmem:[%s2324] sm:$0xff]
    %v2326 = vld [vmem:[%s2324 + $0x8] sm:$0xff]
    %v2327 = vld [vmem:[%s2324 + $0x10] sm:$0xff]
    %v2328 = vld [vmem:[%s2324 + $0x18] sm:$0xff]
    %v2329 = vld [vmem:[%s2324 + $0x20] sm:$0xff]
    %v2330 = vld [vmem:[%s2324 + $0x28] sm:$0xff]
    %v2331 = vld [vmem:[%s2324 + $0x30] sm:$0xff]
    %v2332 = vld [vmem:[%s2324 + $0x38] sm:$0xff]
    %v2333 = vld [vmem:[%s2324 + $0x40] sm:$0xff]
    %v2334 = vld [vmem:[%s2324 + $0x48] sm:$0xff]
    %v2335 = vld [vmem:[%s2324 + $0x50] sm:$0xff]
    %v2336 = vld [vmem:[%s2324 + $0x58] sm:$0xff]
    %s2337 = scalar_lea.vmem %s7, 192
    %v2338 = vld [vmem:[%s2337] sm:$0xff]
    %v2339 = vld [vmem:[%s2337 + $0x8] sm:$0xff]
    %v2340 = vld [vmem:[%s2337 + $0x10] sm:$0xff]
    %v2341 = vld [vmem:[%s2337 + $0x18] sm:$0xff]
    %v2342 = vld [vmem:[%s2337 + $0x20] sm:$0xff]
    %v2343 = vld [vmem:[%s2337 + $0x28] sm:$0xff]
    %v2344 = vld [vmem:[%s2337 + $0x30] sm:$0xff]
    %v2345 = vld [vmem:[%s2337 + $0x38] sm:$0xff]
    %v2346 = vld [vmem:[%s2337 + $0x40] sm:$0xff]
    %v2347 = vld [vmem:[%s2337 + $0x48] sm:$0xff]
    %v2348 = vld [vmem:[%s2337 + $0x50] sm:$0xff]
    %v2349 = vld [vmem:[%s2337 + $0x58] sm:$0xff]
    %v2350 = vld [vmem:[%s8] sm:$0x1]
    %v2352 = vlaneseq
    %v2353 = vshrl.u32 %v2352, 7
    %v2354 = vsub.s32 0, %v2353
    %v2355 = vrot.slane %v2350, %v2354
    %v2357 = vld [vmem:[%s9] sm:$0x1]
    %v2359 = vlaneseq
    %v2360 = vshrl.u32 %v2359, 7
    %v2361 = vsub.s32 0, %v2360
    %v2362 = vrot.slane %v2357, %v2361
    %v2364 = vld [vmem:[#allocation3 + $0x1] sm:$0xff]
    %v2365 = vld [vmem:[#allocation3 + $0x9] sm:$0xff]
    %v2366 = vld [vmem:[#allocation3 + $0x11] sm:$0xff]
    %v2367 = vld [vmem:[#allocation3 + $0x19] sm:$0xf]
    %v2368 = vld [vmem:[%s1665 + $0x1] sm:$0xff]
    %v2369 = vld [vmem:[%s1665 + $0x9] sm:$0xff]
    %v2370 = vld [vmem:[%s1665 + $0x11] sm:$0xff]
    %v2371 = vld [vmem:[%s1665 + $0x19] sm:$0xf]
    %v2373 = vsel %vm51, %v2368, 0
    %v2376 = vsel %vm51, %v2369, 0
    %v2379 = vsel %vm51, %v2370, 0
    %v2382 = vsel %vm51, %v2371, 0
    %2384 = vmatprep.subr.mxu0 0.0
    %2385 = vmatpush1.msra.mxu0 0.0
    %2386 = vmatprep.subr.mxu0 0.0
    %2387 = vmatpush1.msra.mxu0 0.0
    %2388 = vmatprep.subr.mxu0 0.0
    %2389 = vmatpush1.msra.mxu0 0.0
    %2390 = vmatprep.subr.mxu0 0.0
    %2391 = vmatpush1.msra.mxu0 0.0
    %2392 = vmatprep.subr.mxu0 0.0
    %2393 = vmatpush1.msra.mxu0 0.0
    %2394 = vmatprep.subr.mxu0 0.0
    %2395 = vmatpush1.msra.mxu0 0.0
    %2396 = vmatprep.subr.mxu0 0.0
    %2397 = vmatpush1.msra.mxu0 0.0
    %2398 = vmatprep.subr.mxu0 0.0
    %2399 = vmatpush1.msra.mxu0 0.0
    %2400 = vmatprep.subr.mxu0 0.0
    %2401 = vmatpush1.msra.mxu0 0.0
    %2402 = vmatprep.subr.mxu0 0.0
    %2403 = vmatpush1.msra.mxu0 0.0
    %2404 = vmatprep.subr.mxu0 0.0
    %2405 = vmatpush1.msra.mxu0 %v2290
    %2406 = vmatprep.subr.mxu0 0.0
    %2407 = vmatpush1.msra.mxu0 %v2289
    %2408 = vmatprep.subr.mxu0 0.0
    %2409 = vmatpush1.msra.mxu0 %v2288
    %2410 = vmatprep.subr.mxu0 0.0
    %2411 = vmatpush1.msra.mxu0 %v2287
    %2412 = vmatprep.subr.mxu0 0.0
    %2413 = vmatpush1.msra.mxu0 %v2286
    %2414 = vmatprep.subr.mxu0 0.0
    %2415 = vmatpush1.msra.mxu0 %v2285
    %2416 = vmatprep.subr.mxu0 0.0
    %2417 = vmatpush2.msra.mxu0 0.0
    %2418 = vmatprep.subr.mxu0 0.0
    %2419 = vmatpush2.msra.mxu0 0.0
    %2420 = vmatprep.subr.mxu0 0.0
    %2421 = vmatpush2.msra.mxu0 0.0
    %2422 = vmatprep.subr.mxu0 0.0
    %2423 = vmatpush2.msra.mxu0 0.0
    %2424 = vmatprep.subr.mxu0 0.0
    %2425 = vmatpush2.msra.mxu0 0.0
    %2426 = vmatprep.subr.mxu0 0.0
    %2427 = vmatpush2.msra.mxu0 0.0
    %2428 = vmatprep.subr.mxu0 0.0
    %2429 = vmatpush2.msra.mxu0 0.0
    %2430 = vmatprep.subr.mxu0 0.0
    %2431 = vmatpush2.msra.mxu0 0.0
    %2432 = vmatprep.subr.mxu0 0.0
    %2433 = vmatpush2.msra.mxu0 0.0
    %2434 = vmatprep.subr.mxu0 0.0
    %2435 = vmatpush2.msra.mxu0 0.0
    %2436 = vmatprep.subr.mxu0 0.0
    %2437 = vmatpush2.msra.mxu0 0.0
    %2438 = vmatprep.subr.mxu0 0.0
    %2439 = vmatpush2.msra.mxu0 0.0
    %2440 = vmatprep.subr.mxu0 0.0
    %2441 = vmatpush2.msra.mxu0 0.0
    %2442 = vmatprep.subr.mxu0 0.0
    %2443 = vmatpush2.msra.mxu0 0.0
    %2444 = vmatprep.subr.mxu0 0.0
    %2445 = vmatpush2.msra.mxu0 0.0
    %2446 = vmatprep.subr.mxu0 0.0
    %2447 = vmatpush2.msra.mxu0 0.0
    %2448 = vmatprep.mubr.f32.mxu0 0.0
    %2449 = vmatmul.mubr.f32.gmra.mxu0 %v2373
    %v2450 = vpop.f32.mrf.mxu0
    %v2451 = vadd.f32 0.0, %v2450
    %v2452 = vpop.f32.mrf.mxu0
    %2453 = vmatprep.mubr.f32.mxu0 0.0
    %2454 = vmatmul.mubr.f32.gmra.mxu0 %v2376
    %v2455 = vpop.f32.mrf.mxu0
    %v2456 = vadd.f32 0.0, %v2455
    %v2457 = vpop.f32.mrf.mxu0
    %2458 = vmatprep.mubr.f32.mxu0 0.0
    %2459 = vmatmul.mubr.f32.gmra.mxu0 %v2379
    %v2460 = vpop.f32.mrf.mxu0
    %v2461 = vadd.f32 0.0, %v2460
    %v2462 = vpop.f32.mrf.mxu0
    %2463 = vmatprep.mubr.f32.mxu0 0.0
    %2464 = vmatmul.mubr.f32.gmra.mxu0 %v2382
    %v2465 = vpop.f32.mrf.mxu0
    %v2466 = vadd.f32 0.0, %v2465
    %v2467 = vpop.f32.mrf.mxu0
    %2468 = vdwg.mxu0
    %v2470 = vsel %vm51, %v2364, 0
    %v2473 = vsel %vm51, %v2365, 0
    %v2476 = vsel %vm51, %v2366, 0
    %v2479 = vsel %vm51, %v2367, 0
    %2481 = vmatprep.subr.mxu0 0.0
    %2482 = vmatpush1.msra.mxu0 0.0
    %2483 = vmatprep.subr.mxu0 0.0
    %2484 = vmatpush1.msra.mxu0 0.0
    %2485 = vmatprep.subr.mxu0 0.0
    %2486 = vmatpush1.msra.mxu0 0.0
    %2487 = vmatprep.subr.mxu0 0.0
    %2488 = vmatpush1.msra.mxu0 0.0
    %2489 = vmatprep.subr.mxu0 0.0
    %2490 = vmatpush1.msra.mxu0 0.0
    %2491 = vmatprep.subr.mxu0 0.0
    %2492 = vmatpush1.msra.mxu0 0.0
    %2493 = vmatprep.subr.mxu0 0.0
    %2494 = vmatpush1.msra.mxu0 0.0
    %2495 = vmatprep.subr.mxu0 0.0
    %2496 = vmatpush1.msra.mxu0 0.0
    %2497 = vmatprep.subr.mxu0 0.0
    %2498 = vmatpush1.msra.mxu0 0.0
    %2499 = vmatprep.subr.mxu0 0.0
    %2500 = vmatpush1.msra.mxu0 0.0
    %2501 = vmatprep.subr.mxu0 0.0
    %2502 = vmatpush1.msra.mxu0 %v2283
    %2503 = vmatprep.subr.mxu0 0.0
    %2504 = vmatpush1.msra.mxu0 %v2282
    %2505 = vmatprep.subr.mxu0 0.0
    %2506 = vmatpush1.msra.mxu0 %v2281
    %2507 = vmatprep.subr.mxu0 0.0
    %2508 = vmatpush1.msra.mxu0 %v2280
    %2509 = vmatprep.subr.mxu0 0.0
    %2510 = vmatpush1.msra.mxu0 %v2279
    %2511 = vmatprep.subr.mxu0 0.0
    %2512 = vmatpush1.msra.mxu0 %v2278
    %2513 = vmatprep.subr.mxu0 0.0
    %2514 = vmatpush2.msra.mxu0 0.0
    %2515 = vmatprep.subr.mxu0 0.0
    %2516 = vmatpush2.msra.mxu0 0.0
    %2517 = vmatprep.subr.mxu0 0.0
    %2518 = vmatpush2.msra.mxu0 0.0
    %2519 = vmatprep.subr.mxu0 0.0
    %2520 = vmatpush2.msra.mxu0 0.0
    %2521 = vmatprep.subr.mxu0 0.0
    %2522 = vmatpush2.msra.mxu0 0.0
    %2523 = vmatprep.subr.mxu0 0.0
    %2524 = vmatpush2.msra.mxu0 0.0
    %2525 = vmatprep.subr.mxu0 0.0
    %2526 = vmatpush2.msra.mxu0 0.0
    %2527 = vmatprep.subr.mxu0 0.0
    %2528 = vmatpush2.msra.mxu0 0.0
    %2529 = vmatprep.subr.mxu0 0.0
    %2530 = vmatpush2.msra.mxu0 0.0
    %2531 = vmatprep.subr.mxu0 0.0
    %2532 = vmatpush2.msra.mxu0 0.0
    %2533 = vmatprep.subr.mxu0 0.0
    %2534 = vmatpush2.msra.mxu0 0.0
    %2535 = vmatprep.subr.mxu0 0.0
    %2536 = vmatpush2.msra.mxu0 0.0
    %2537 = vmatprep.subr.mxu0 0.0
    %2538 = vmatpush2.msra.mxu0 0.0
    %2539 = vmatprep.subr.mxu0 0.0
    %2540 = vmatpush2.msra.mxu0 0.0
    %2541 = vmatprep.subr.mxu0 0.0
    %2542 = vmatpush2.msra.mxu0 0.0
    %2543 = vmatprep.subr.mxu0 0.0
    %2544 = vmatpush2.msra.mxu0 0.0
    %2545 = vmatprep.mubr.f32.mxu0 0.0
    %2546 = vmatmul.mubr.f32.gmra.mxu0 %v2470
    %v2547 = vpop.f32.mrf.mxu0
    %v2548 = vadd.f32 %v2451, %v2547
    %v2549 = vpop.f32.mrf.mxu0
    %2550 = vmatprep.mubr.f32.mxu0 0.0
    %2551 = vmatmul.mubr.f32.gmra.mxu0 %v2473
    %v2552 = vpop.f32.mrf.mxu0
    %v2553 = vadd.f32 %v2456, %v2552
    %v2554 = vpop.f32.mrf.mxu0
    %2555 = vmatprep.mubr.f32.mxu0 0.0
    %2556 = vmatmul.mubr.f32.gmra.mxu0 %v2476
    %v2557 = vpop.f32.mrf.mxu0
    %v2558 = vadd.f32 %v2461, %v2557
    %v2559 = vpop.f32.mrf.mxu0
    %2560 = vmatprep.mubr.f32.mxu0 0.0
    %2561 = vmatmul.mubr.f32.gmra.mxu0 %v2479
    %v2562 = vpop.f32.mrf.mxu0
    %v2563 = vadd.f32 %v2466, %v2562
    %v2564 = vpop.f32.mrf.mxu0
    %2565 = vdwg.mxu0
    %v2566 = vld [vmem:[%s1751 + $0x1] sm:$0xff]
    %v2567 = vld [vmem:[%s1751 + $0x9] sm:$0xff]
    %v2568 = vld [vmem:[%s1751 + $0x11] sm:$0xff]
    %v2569 = vld [vmem:[%s1751 + $0x19] sm:$0xf]
    %v2571 = vsel %vm51, %v2566, 0
    %v2574 = vsel %vm51, %v2567, 0
    %v2577 = vsel %vm51, %v2568, 0
    %v2580 = vsel %vm51, %v2569, 0
    %2582 = vmatprep.subr.mxu0 0.0
    %2583 = vmatpush1.msra.mxu0 0.0
    %2584 = vmatprep.subr.mxu0 0.0
    %2585 = vmatpush1.msra.mxu0 0.0
    %2586 = vmatprep.subr.mxu0 0.0
    %2587 = vmatpush1.msra.mxu0 0.0
    %2588 = vmatprep.subr.mxu0 0.0
    %2589 = vmatpush1.msra.mxu0 0.0
    %2590 = vmatprep.subr.mxu0 0.0
    %2591 = vmatpush1.msra.mxu0 0.0
    %2592 = vmatprep.subr.mxu0 0.0
    %2593 = vmatpush1.msra.mxu0 0.0
    %2594 = vmatprep.subr.mxu0 0.0
    %2595 = vmatpush1.msra.mxu0 0.0
    %2596 = vmatprep.subr.mxu0 0.0
    %2597 = vmatpush1.msra.mxu0 0.0
    %2598 = vmatprep.subr.mxu0 0.0
    %2599 = vmatpush1.msra.mxu0 0.0
    %2600 = vmatprep.subr.mxu0 0.0
    %2601 = vmatpush1.msra.mxu0 0.0
    %2602 = vmatprep.subr.mxu0 0.0
    %2603 = vmatpush1.msra.mxu0 %v2297
    %2604 = vmatprep.subr.mxu0 0.0
    %2605 = vmatpush1.msra.mxu0 %v2296
    %2606 = vmatprep.subr.mxu0 0.0
    %2607 = vmatpush1.msra.mxu0 %v2295
    %2608 = vmatprep.subr.mxu0 0.0
    %2609 = vmatpush1.msra.mxu0 %v2294
    %2610 = vmatprep.subr.mxu0 0.0
    %2611 = vmatpush1.msra.mxu0 %v2293
    %2612 = vmatprep.subr.mxu0 0.0
    %2613 = vmatpush1.msra.mxu0 %v2292
    %2614 = vmatprep.subr.mxu0 0.0
    %2615 = vmatpush2.msra.mxu0 0.0
    %2616 = vmatprep.subr.mxu0 0.0
    %2617 = vmatpush2.msra.mxu0 0.0
    %2618 = vmatprep.subr.mxu0 0.0
    %2619 = vmatpush2.msra.mxu0 0.0
    %2620 = vmatprep.subr.mxu0 0.0
    %2621 = vmatpush2.msra.mxu0 0.0
    %2622 = vmatprep.subr.mxu0 0.0
    %2623 = vmatpush2.msra.mxu0 0.0
    %2624 = vmatprep.subr.mxu0 0.0
    %2625 = vmatpush2.msra.mxu0 0.0
    %2626 = vmatprep.subr.mxu0 0.0
    %2627 = vmatpush2.msra.mxu0 0.0
    %2628 = vmatprep.subr.mxu0 0.0
    %2629 = vmatpush2.msra.mxu0 0.0
    %2630 = vmatprep.subr.mxu0 0.0
    %2631 = vmatpush2.msra.mxu0 0.0
    %2632 = vmatprep.subr.mxu0 0.0
    %2633 = vmatpush2.msra.mxu0 0.0
    %2634 = vmatprep.subr.mxu0 0.0
    %2635 = vmatpush2.msra.mxu0 0.0
    %2636 = vmatprep.subr.mxu0 0.0
    %2637 = vmatpush2.msra.mxu0 0.0
    %2638 = vmatprep.subr.mxu0 0.0
    %2639 = vmatpush2.msra.mxu0 0.0
    %2640 = vmatprep.subr.mxu0 0.0
    %2641 = vmatpush2.msra.mxu0 0.0
    %2642 = vmatprep.subr.mxu0 0.0
    %2643 = vmatpush2.msra.mxu0 0.0
    %2644 = vmatprep.subr.mxu0 0.0
    %2645 = vmatpush2.msra.mxu0 0.0
    %2646 = vmatprep.mubr.f32.mxu0 0.0
    %2647 = vmatmul.mubr.f32.gmra.mxu0 %v2571
    %v2648 = vpop.f32.mrf.mxu0
    %v2649 = vadd.f32 0.0, %v2648
    %v2650 = vpop.f32.mrf.mxu0
    %2651 = vmatprep.mubr.f32.mxu0 0.0
    %2652 = vmatmul.mubr.f32.gmra.mxu0 %v2574
    %v2653 = vpop.f32.mrf.mxu0
    %v2654 = vadd.f32 0.0, %v2653
    %v2655 = vpop.f32.mrf.mxu0
    %2656 = vmatprep.mubr.f32.mxu0 0.0
    %2657 = vmatmul.mubr.f32.gmra.mxu0 %v2577
    %v2658 = vpop.f32.mrf.mxu0
    %v2659 = vadd.f32 0.0, %v2658
    %v2660 = vpop.f32.mrf.mxu0
    %2661 = vmatprep.mubr.f32.mxu0 0.0
    %2662 = vmatmul.mubr.f32.gmra.mxu0 %v2580
    %v2663 = vpop.f32.mrf.mxu0
    %v2664 = vadd.f32 0.0, %v2663
    %v2665 = vpop.f32.mrf.mxu0
    %2666 = vdwg.mxu0
    %v2667 = vadd.f32 %v2548, %v2649
    %v2668 = vadd.f32 %v2553, %v2654
    %v2669 = vadd.f32 %v2558, %v2659
    %v2670 = vadd.f32 %v2563, %v2664
    %v2671 = vmul.f32 %v2667, %v2303
    %v2672 = vmul.f32 %v2668, %v2303
    %v2673 = vmul.f32 %v2669, %v2303
    %v2674 = vmul.f32 %v2670, %v2303
    %v2675 = vadd.f32 %v2671, %v2310
    %v2676 = vadd.f32 %v2672, %v2310
    %v2677 = vadd.f32 %v2673, %v2310
    %v2678 = vadd.f32 %v2674, %v2310
    %v2679 = vmax.f32 %v2675, 0.0
    %v2680 = vmax.f32 %v2676, 0.0
    %v2681 = vmax.f32 %v2677, 0.0
    %v2682 = vmax.f32 %v2678, 0.0
    %2683 = vmatprep.subr.mxu0 0.0
    %2684 = vmatpush1.msra.mxu0 0.0
    %2685 = vmatprep.subr.mxu0 0.0
    %2686 = vmatpush1.msra.mxu0 0.0
    %2687 = vmatprep.subr.mxu0 0.0
    %2688 = vmatpush1.msra.mxu0 0.0
    %2689 = vmatprep.subr.mxu0 0.0
    %2690 = vmatpush1.msra.mxu0 0.0
    %2691 = vmatprep.subr.mxu0 0.0
    %2692 = vmatpush1.msra.mxu0 0.0
    %2693 = vmatprep.subr.mxu0 0.0
    %2694 = vmatpush1.msra.mxu0 0.0
    %2695 = vmatprep.subr.mxu0 0.0
    %2696 = vmatpush1.msra.mxu0 0.0
    %2697 = vmatprep.subr.mxu0 0.0
    %2698 = vmatpush1.msra.mxu0 0.0
    %2699 = vmatprep.subr.mxu0 0.0
    %2700 = vmatpush1.msra.mxu0 0.0
    %2701 = vmatprep.subr.mxu0 0.0
    %2702 = vmatpush1.msra.mxu0 0.0
    %2703 = vmatprep.subr.mxu0 0.0
    %2704 = vmatpush1.msra.mxu0 %v2290
    %2705 = vmatprep.subr.mxu0 0.0
    %2706 = vmatpush1.msra.mxu0 %v2289
    %2707 = vmatprep.subr.mxu0 0.0
    %2708 = vmatpush1.msra.mxu0 %v2288
    %2709 = vmatprep.subr.mxu0 0.0
    %2710 = vmatpush1.msra.mxu0 %v2287
    %2711 = vmatprep.subr.mxu0 0.0
    %2712 = vmatpush1.msra.mxu0 %v2286
    %2713 = vmatprep.subr.mxu0 0.0
    %2714 = vmatpush1.msra.mxu0 %v2285
    %2715 = vmatprep.subr.mxu0 0.0
    %2716 = vmatpush2.msra.mxu0 0.0
    %2717 = vmatprep.subr.mxu0 0.0
    %2718 = vmatpush2.msra.mxu0 0.0
    %2719 = vmatprep.subr.mxu0 0.0
    %2720 = vmatpush2.msra.mxu0 0.0
    %2721 = vmatprep.subr.mxu0 0.0
    %2722 = vmatpush2.msra.mxu0 0.0
    %2723 = vmatprep.subr.mxu0 0.0
    %2724 = vmatpush2.msra.mxu0 0.0
    %2725 = vmatprep.subr.mxu0 0.0
    %2726 = vmatpush2.msra.mxu0 0.0
    %2727 = vmatprep.subr.mxu0 0.0
    %2728 = vmatpush2.msra.mxu0 0.0
    %2729 = vmatprep.subr.mxu0 0.0
    %2730 = vmatpush2.msra.mxu0 0.0
    %2731 = vmatprep.subr.mxu0 0.0
    %2732 = vmatpush2.msra.mxu0 0.0
    %2733 = vmatprep.subr.mxu0 0.0
    %2734 = vmatpush2.msra.mxu0 0.0
    %2735 = vmatprep.subr.mxu0 0.0
    %2736 = vmatpush2.msra.mxu0 0.0
    %2737 = vmatprep.subr.mxu0 0.0
    %2738 = vmatpush2.msra.mxu0 0.0
    %2739 = vmatprep.subr.mxu0 0.0
    %2740 = vmatpush2.msra.mxu0 0.0
    %2741 = vmatprep.subr.mxu0 0.0
    %2742 = vmatpush2.msra.mxu0 0.0
    %2743 = vmatprep.subr.mxu0 0.0
    %2744 = vmatpush2.msra.mxu0 0.0
    %2745 = vmatprep.subr.mxu0 0.0
    %2746 = vmatpush2.msra.mxu0 0.0
    %2747 = vmatprep.mubr.f32.mxu0 0.0
    %2748 = vmatmul.mubr.f32.gmra.mxu0 %v2571
    %v2749 = vpop.f32.mrf.mxu0
    %v2750 = vadd.f32 0.0, %v2749
    %v2751 = vpop.f32.mrf.mxu0
    %2752 = vmatprep.mubr.f32.mxu0 0.0
    %2753 = vmatmul.mubr.f32.gmra.mxu0 %v2574
    %v2754 = vpop.f32.mrf.mxu0
    %v2755 = vadd.f32 0.0, %v2754
    %v2756 = vpop.f32.mrf.mxu0
    %2757 = vmatprep.mubr.f32.mxu0 0.0
    %2758 = vmatmul.mubr.f32.gmra.mxu0 %v2577
    %v2759 = vpop.f32.mrf.mxu0
    %v2760 = vadd.f32 0.0, %v2759
    %v2761 = vpop.f32.mrf.mxu0
    %2762 = vmatprep.mubr.f32.mxu0 0.0
    %2763 = vmatmul.mubr.f32.gmra.mxu0 %v2580
    %v2764 = vpop.f32.mrf.mxu0
    %v2765 = vadd.f32 0.0, %v2764
    %v2766 = vpop.f32.mrf.mxu0
    %2767 = vdwg.mxu0
    %2768 = vmatprep.subr.mxu0 0.0
    %2769 = vmatpush1.msra.mxu0 0.0
    %2770 = vmatprep.subr.mxu0 0.0
    %2771 = vmatpush1.msra.mxu0 0.0
    %2772 = vmatprep.subr.mxu0 0.0
    %2773 = vmatpush1.msra.mxu0 0.0
    %2774 = vmatprep.subr.mxu0 0.0
    %2775 = vmatpush1.msra.mxu0 0.0
    %2776 = vmatprep.subr.mxu0 0.0
    %2777 = vmatpush1.msra.mxu0 0.0
    %2778 = vmatprep.subr.mxu0 0.0
    %2779 = vmatpush1.msra.mxu0 0.0
    %2780 = vmatprep.subr.mxu0 0.0
    %2781 = vmatpush1.msra.mxu0 0.0
    %2782 = vmatprep.subr.mxu0 0.0
    %2783 = vmatpush1.msra.mxu0 0.0
    %2784 = vmatprep.subr.mxu0 0.0
    %2785 = vmatpush1.msra.mxu0 0.0
    %2786 = vmatprep.subr.mxu0 0.0
    %2787 = vmatpush1.msra.mxu0 0.0
    %2788 = vmatprep.subr.mxu0 0.0
    %2789 = vmatpush1.msra.mxu0 %v2283
    %2790 = vmatprep.subr.mxu0 0.0
    %2791 = vmatpush1.msra.mxu0 %v2282
    %2792 = vmatprep.subr.mxu0 0.0
    %2793 = vmatpush1.msra.mxu0 %v2281
    %2794 = vmatprep.subr.mxu0 0.0
    %2795 = vmatpush1.msra.mxu0 %v2280
    %2796 = vmatprep.subr.mxu0 0.0
    %2797 = vmatpush1.msra.mxu0 %v2279
    %2798 = vmatprep.subr.mxu0 0.0
    %2799 = vmatpush1.msra.mxu0 %v2278
    %2800 = vmatprep.subr.mxu0 0.0
    %2801 = vmatpush2.msra.mxu0 0.0
    %2802 = vmatprep.subr.mxu0 0.0
    %2803 = vmatpush2.msra.mxu0 0.0
    %2804 = vmatprep.subr.mxu0 0.0
    %2805 = vmatpush2.msra.mxu0 0.0
    %2806 = vmatprep.subr.mxu0 0.0
    %2807 = vmatpush2.msra.mxu0 0.0
    %2808 = vmatprep.subr.mxu0 0.0
    %2809 = vmatpush2.msra.mxu0 0.0
    %2810 = vmatprep.subr.mxu0 0.0
    %2811 = vmatpush2.msra.mxu0 0.0
    %2812 = vmatprep.subr.mxu0 0.0
    %2813 = vmatpush2.msra.mxu0 0.0
    %2814 = vmatprep.subr.mxu0 0.0
    %2815 = vmatpush2.msra.mxu0 0.0
    %2816 = vmatprep.subr.mxu0 0.0
    %2817 = vmatpush2.msra.mxu0 0.0
    %2818 = vmatprep.subr.mxu0 0.0
    %2819 = vmatpush2.msra.mxu0 0.0
    %2820 = vmatprep.subr.mxu0 0.0
    %2821 = vmatpush2.msra.mxu0 0.0
    %2822 = vmatprep.subr.mxu0 0.0
    %2823 = vmatpush2.msra.mxu0 0.0
    %2824 = vmatprep.subr.mxu0 0.0
    %2825 = vmatpush2.msra.mxu0 0.0
    %2826 = vmatprep.subr.mxu0 0.0
    %2827 = vmatpush2.msra.mxu0 0.0
    %2828 = vmatprep.subr.mxu0 0.0
    %2829 = vmatpush2.msra.mxu0 0.0
    %2830 = vmatprep.subr.mxu0 0.0
    %2831 = vmatpush2.msra.mxu0 0.0
    %2832 = vmatprep.mubr.f32.mxu0 0.0
    %2833 = vmatmul.mubr.f32.gmra.mxu0 %v2373
    %v2834 = vpop.f32.mrf.mxu0
    %v2835 = vadd.f32 %v2750, %v2834
    %v2836 = vpop.f32.mrf.mxu0
    %2837 = vmatprep.mubr.f32.mxu0 0.0
    %2838 = vmatmul.mubr.f32.gmra.mxu0 %v2376
    %v2839 = vpop.f32.mrf.mxu0
    %v2840 = vadd.f32 %v2755, %v2839
    %v2841 = vpop.f32.mrf.mxu0
    %2842 = vmatprep.mubr.f32.mxu0 0.0
    %2843 = vmatmul.mubr.f32.gmra.mxu0 %v2379
    %v2844 = vpop.f32.mrf.mxu0
    %v2845 = vadd.f32 %v2760, %v2844
    %v2846 = vpop.f32.mrf.mxu0
    %2847 = vmatprep.mubr.f32.mxu0 0.0
    %2848 = vmatmul.mubr.f32.gmra.mxu0 %v2382
    %v2849 = vpop.f32.mrf.mxu0
    %v2850 = vadd.f32 %v2765, %v2849
    %v2851 = vpop.f32.mrf.mxu0
    %2852 = vdwg.mxu0
    %v2853 = vld [vmem:[%s1832 + $0x1] sm:$0xff]
    %v2854 = vld [vmem:[%s1832 + $0x9] sm:$0xff]
    %v2855 = vld [vmem:[%s1832 + $0x11] sm:$0xff]
    %v2856 = vld [vmem:[%s1832 + $0x19] sm:$0xf]
    %v2858 = vsel %vm51, %v2853, 0
    %v2861 = vsel %vm51, %v2854, 0
    %v2864 = vsel %vm51, %v2855, 0
    %v2867 = vsel %vm51, %v2856, 0
    %2869 = vmatprep.subr.mxu0 0.0
    %2870 = vmatpush1.msra.mxu0 0.0
    %2871 = vmatprep.subr.mxu0 0.0
    %2872 = vmatpush1.msra.mxu0 0.0
    %2873 = vmatprep.subr.mxu0 0.0
    %2874 = vmatpush1.msra.mxu0 0.0
    %2875 = vmatprep.subr.mxu0 0.0
    %2876 = vmatpush1.msra.mxu0 0.0
    %2877 = vmatprep.subr.mxu0 0.0
    %2878 = vmatpush1.msra.mxu0 0.0
    %2879 = vmatprep.subr.mxu0 0.0
    %2880 = vmatpush1.msra.mxu0 0.0
    %2881 = vmatprep.subr.mxu0 0.0
    %2882 = vmatpush1.msra.mxu0 0.0
    %2883 = vmatprep.subr.mxu0 0.0
    %2884 = vmatpush1.msra.mxu0 0.0
    %2885 = vmatprep.subr.mxu0 0.0
    %2886 = vmatpush1.msra.mxu0 0.0
    %2887 = vmatprep.subr.mxu0 0.0
    %2888 = vmatpush1.msra.mxu0 0.0
    %2889 = vmatprep.subr.mxu0 0.0
    %2890 = vmatpush1.msra.mxu0 %v2297
    %2891 = vmatprep.subr.mxu0 0.0
    %2892 = vmatpush1.msra.mxu0 %v2296
    %2893 = vmatprep.subr.mxu0 0.0
    %2894 = vmatpush1.msra.mxu0 %v2295
    %2895 = vmatprep.subr.mxu0 0.0
    %2896 = vmatpush1.msra.mxu0 %v2294
    %2897 = vmatprep.subr.mxu0 0.0
    %2898 = vmatpush1.msra.mxu0 %v2293
    %2899 = vmatprep.subr.mxu0 0.0
    %2900 = vmatpush1.msra.mxu0 %v2292
    %2901 = vmatprep.subr.mxu0 0.0
    %2902 = vmatpush2.msra.mxu0 0.0
    %2903 = vmatprep.subr.mxu0 0.0
    %2904 = vmatpush2.msra.mxu0 0.0
    %2905 = vmatprep.subr.mxu0 0.0
    %2906 = vmatpush2.msra.mxu0 0.0
    %2907 = vmatprep.subr.mxu0 0.0
    %2908 = vmatpush2.msra.mxu0 0.0
    %2909 = vmatprep.subr.mxu0 0.0
    %2910 = vmatpush2.msra.mxu0 0.0
    %2911 = vmatprep.subr.mxu0 0.0
    %2912 = vmatpush2.msra.mxu0 0.0
    %2913 = vmatprep.subr.mxu0 0.0
    %2914 = vmatpush2.msra.mxu0 0.0
    %2915 = vmatprep.subr.mxu0 0.0
    %2916 = vmatpush2.msra.mxu0 0.0
    %2917 = vmatprep.subr.mxu0 0.0
    %2918 = vmatpush2.msra.mxu0 0.0
    %2919 = vmatprep.subr.mxu0 0.0
    %2920 = vmatpush2.msra.mxu0 0.0
    %2921 = vmatprep.subr.mxu0 0.0
    %2922 = vmatpush2.msra.mxu0 0.0
    %2923 = vmatprep.subr.mxu0 0.0
    %2924 = vmatpush2.msra.mxu0 0.0
    %2925 = vmatprep.subr.mxu0 0.0
    %2926 = vmatpush2.msra.mxu0 0.0
    %2927 = vmatprep.subr.mxu0 0.0
    %2928 = vmatpush2.msra.mxu0 0.0
    %2929 = vmatprep.subr.mxu0 0.0
    %2930 = vmatpush2.msra.mxu0 0.0
    %2931 = vmatprep.subr.mxu0 0.0
    %2932 = vmatpush2.msra.mxu0 0.0
    %2933 = vmatprep.mubr.f32.mxu0 0.0
    %2934 = vmatmul.mubr.f32.gmra.mxu0 %v2858
    %v2935 = vpop.f32.mrf.mxu0
    %v2936 = vadd.f32 0.0, %v2935
    %v2937 = vpop.f32.mrf.mxu0
    %2938 = vmatprep.mubr.f32.mxu0 0.0
    %2939 = vmatmul.mubr.f32.gmra.mxu0 %v2861
    %v2940 = vpop.f32.mrf.mxu0
    %v2941 = vadd.f32 0.0, %v2940
    %v2942 = vpop.f32.mrf.mxu0
    %2943 = vmatprep.mubr.f32.mxu0 0.0
    %2944 = vmatmul.mubr.f32.gmra.mxu0 %v2864
    %v2945 = vpop.f32.mrf.mxu0
    %v2946 = vadd.f32 0.0, %v2945
    %v2947 = vpop.f32.mrf.mxu0
    %2948 = vmatprep.mubr.f32.mxu0 0.0
    %2949 = vmatmul.mubr.f32.gmra.mxu0 %v2867
    %v2950 = vpop.f32.mrf.mxu0
    %v2951 = vadd.f32 0.0, %v2950
    %v2952 = vpop.f32.mrf.mxu0
    %2953 = vdwg.mxu0
    %v2954 = vadd.f32 %v2835, %v2936
    %v2955 = vadd.f32 %v2840, %v2941
    %v2956 = vadd.f32 %v2845, %v2946
    %v2957 = vadd.f32 %v2850, %v2951
    %v2958 = vmul.f32 %v2954, %v2303
    %v2959 = vmul.f32 %v2955, %v2303
    %v2960 = vmul.f32 %v2956, %v2303
    %v2961 = vmul.f32 %v2957, %v2303
    %v2962 = vadd.f32 %v2958, %v2310
    %v2963 = vadd.f32 %v2959, %v2310
    %v2964 = vadd.f32 %v2960, %v2310
    %v2965 = vadd.f32 %v2961, %v2310
    %v2966 = vmax.f32 %v2962, 0.0
    %v2967 = vmax.f32 %v2963, 0.0
    %v2968 = vmax.f32 %v2964, 0.0
    %v2969 = vmax.f32 %v2965, 0.0
    %v2970 = vmax.f32 %v2679, %v2966
    %v2971 = vmax.f32 %v2680, %v2967
    %v2972 = vmax.f32 %v2681, %v2968
    %v2973 = vmax.f32 %v2682, %v2969
    %vm2974 = vcmask 261120
    %2975 = vst.msk [vmem:[#allocation6] sm:$0xff] %vm2974, %v2970
    %2976 = vst.msk [vmem:[#allocation6 + $0x8] sm:$0xff] %vm2974, %v2971
    %2977 = vst.msk [vmem:[#allocation6 + $0x10] sm:$0xff] %vm2974, %v2972
    %vm2978 = vcmask 257024
    %2979 = vst.msk [vmem:[#allocation6 + $0x18] sm:$0xf] %vm2978, %v2973
    %v2980 = vld [vmem:[#allocation6] ss:$2 sm:$0xff]
    %v2981 = vld [vmem:[%s1647] ss:$2 sm:$0x3f]
    %v2982 = vld [vmem:[%s1653] ss:$2 sm:$0xff]
    %v2983 = vld [vmem:[%s1655] ss:$2 sm:$0x3f]
    %v2984 = vmax.f32 %v2980, %v2982
    %v2985 = vmax.f32 %v2981, %v2983
    %s2986 = scalar_lea.vmem [#allocation4], 16
    %2987 = vst.msk [vmem:[%s2986 + $0x2] sm:$0xff] %vm2974, %v2984
    %vm2988 = vcmask 259072
    %2989 = vst.msk [vmem:[%s2986 + $0xa] sm:$0x3f] %vm2988, %v2985
    %2992 = vrot.lane.b32.xlu0 %v2984, 32
    %v2993 = vpop.permute.xlu0 %2992
    %2994 = vrot.lane.b32.xlu0 %v2985, 32
    %v2995 = vpop.permute.xlu0 %2994
    %vm2998 = vcmask 523520
    %2999 = vst.msk [vmem:[%s2986 + $0x1] sm:$0xff] %vm2998, %v2993
    %vm3000 = vcmask 521472
    %3001 = vst.msk [vmem:[%s2986 + $0x9] sm:$0x3f] %vm3000, %v2995
    %3002 = vrot.lane.b32.xlu0 %v2984, 64
    %v3003 = vpop.permute.xlu0 %3002
    %3004 = vrot.lane.b32.xlu0 %v2985, 64
    %v3005 = vpop.permute.xlu0 %3004
    %vm3008 = vcmask 785920
    %3009 = vst.msk [vmem:[%s2986] sm:$0xff] %vm3008, %v3003
    %vm3010 = vcmask 783872
    %3011 = vst.msk [vmem:[%s2986 + $0x8] sm:$0x3f] %vm3010, %v3005
    %v3012 = vld [vmem:[%s1751 + $0x1] sm:$0xff]
    %v3013 = vld [vmem:[%s1751 + $0x9] sm:$0xff]
    %v3014 = vld [vmem:[%s1751 + $0x11] sm:$0xff]
    %v3015 = vld [vmem:[%s1751 + $0x19] sm:$0xf]
    %v3016 = vld [vmem:[%s1832 + $0x1] sm:$0xff]
    %v3017 = vld [vmem:[%s1832 + $0x9] sm:$0xff]
    %v3018 = vld [vmem:[%s1832 + $0x11] sm:$0xff]
    %v3019 = vld [vmem:[%s1832 + $0x19] sm:$0xf]
    %v3021 = vsel %vm51, %v3016, 0
    %v3024 = vsel %vm51, %v3017, 0
    %v3027 = vsel %vm51, %v3018, 0
    %v3030 = vsel %vm51, %v3019, 0
    %3032 = vmatprep.subr.mxu0 0.0
    %3033 = vmatpush1.msra.mxu0 0.0
    %3034 = vmatprep.subr.mxu0 0.0
    %3035 = vmatpush1.msra.mxu0 0.0
    %3036 = vmatprep.subr.mxu0 0.0
    %3037 = vmatpush1.msra.mxu0 0.0
    %3038 = vmatprep.subr.mxu0 0.0
    %3039 = vmatpush1.msra.mxu0 0.0
    %3040 = vmatprep.subr.mxu0 0.0
    %3041 = vmatpush1.msra.mxu0 0.0
    %3042 = vmatprep.subr.mxu0 0.0
    %3043 = vmatpush1.msra.mxu0 0.0
    %3044 = vmatprep.subr.mxu0 0.0
    %3045 = vmatpush1.msra.mxu0 0.0
    %3046 = vmatprep.subr.mxu0 0.0
    %3047 = vmatpush1.msra.mxu0 0.0
    %3048 = vmatprep.subr.mxu0 0.0
    %3049 = vmatpush1.msra.mxu0 0.0
    %3050 = vmatprep.subr.mxu0 0.0
    %3051 = vmatpush1.msra.mxu0 0.0
    %3052 = vmatprep.subr.mxu0 0.0
    %3053 = vmatpush1.msra.mxu0 %v2290
    %3054 = vmatprep.subr.mxu0 0.0
    %3055 = vmatpush1.msra.mxu0 %v2289
    %3056 = vmatprep.subr.mxu0 0.0
    %3057 = vmatpush1.msra.mxu0 %v2288
    %3058 = vmatprep.subr.mxu0 0.0
    %3059 = vmatpush1.msra.mxu0 %v2287
    %3060 = vmatprep.subr.mxu0 0.0
    %3061 = vmatpush1.msra.mxu0 %v2286
    %3062 = vmatprep.subr.mxu0 0.0
    %3063 = vmatpush1.msra.mxu0 %v2285
    %3064 = vmatprep.subr.mxu0 0.0
    %3065 = vmatpush2.msra.mxu0 0.0
    %3066 = vmatprep.subr.mxu0 0.0
    %3067 = vmatpush2.msra.mxu0 0.0
    %3068 = vmatprep.subr.mxu0 0.0
    %3069 = vmatpush2.msra.mxu0 0.0
    %3070 = vmatprep.subr.mxu0 0.0
    %3071 = vmatpush2.msra.mxu0 0.0
    %3072 = vmatprep.subr.mxu0 0.0
    %3073 = vmatpush2.msra.mxu0 0.0
    %3074 = vmatprep.subr.mxu0 0.0
    %3075 = vmatpush2.msra.mxu0 0.0
    %3076 = vmatprep.subr.mxu0 0.0
    %3077 = vmatpush2.msra.mxu0 0.0
    %3078 = vmatprep.subr.mxu0 0.0
    %3079 = vmatpush2.msra.mxu0 0.0
    %3080 = vmatprep.subr.mxu0 0.0
    %3081 = vmatpush2.msra.mxu0 0.0
    %3082 = vmatprep.subr.mxu0 0.0
    %3083 = vmatpush2.msra.mxu0 0.0
    %3084 = vmatprep.subr.mxu0 0.0
    %3085 = vmatpush2.msra.mxu0 0.0
    %3086 = vmatprep.subr.mxu0 0.0
    %3087 = vmatpush2.msra.mxu0 0.0
    %3088 = vmatprep.subr.mxu0 0.0
    %3089 = vmatpush2.msra.mxu0 0.0
    %3090 = vmatprep.subr.mxu0 0.0
    %3091 = vmatpush2.msra.mxu0 0.0
    %3092 = vmatprep.subr.mxu0 0.0
    %3093 = vmatpush2.msra.mxu0 0.0
    %3094 = vmatprep.subr.mxu0 0.0
    %3095 = vmatpush2.msra.mxu0 0.0
    %3096 = vmatprep.mubr.f32.mxu0 0.0
    %3097 = vmatmul.mubr.f32.gmra.mxu0 %v3021
    %v3098 = vpop.f32.mrf.mxu0
    %v3099 = vadd.f32 0.0, %v3098
    %v3100 = vpop.f32.mrf.mxu0
    %3101 = vmatprep.mubr.f32.mxu0 0.0
    %3102 = vmatmul.mubr.f32.gmra.mxu0 %v3024
    %v3103 = vpop.f32.mrf.mxu0
    %v3104 = vadd.f32 0.0, %v3103
    %v3105 = vpop.f32.mrf.mxu0
    %3106 = vmatprep.mubr.f32.mxu0 0.0
    %3107 = vmatmul.mubr.f32.gmra.mxu0 %v3027
    %v3108 = vpop.f32.mrf.mxu0
    %v3109 = vadd.f32 0.0, %v3108
    %v3110 = vpop.f32.mrf.mxu0
    %3111 = vmatprep.mubr.f32.mxu0 0.0
    %3112 = vmatmul.mubr.f32.gmra.mxu0 %v3030
    %v3113 = vpop.f32.mrf.mxu0
    %v3114 = vadd.f32 0.0, %v3113
    %v3115 = vpop.f32.mrf.mxu0
    %3116 = vdwg.mxu0
    %v3118 = vsel %vm51, %v3012, 0
    %v3121 = vsel %vm51, %v3013, 0
    %v3124 = vsel %vm51, %v3014, 0
    %v3127 = vsel %vm51, %v3015, 0
    %3129 = vmatprep.subr.mxu0 0.0
    %3130 = vmatpush1.msra.mxu0 0.0
    %3131 = vmatprep.subr.mxu0 0.0
    %3132 = vmatpush1.msra.mxu0 0.0
    %3133 = vmatprep.subr.mxu0 0.0
    %3134 = vmatpush1.msra.mxu0 0.0
    %3135 = vmatprep.subr.mxu0 0.0
    %3136 = vmatpush1.msra.mxu0 0.0
    %3137 = vmatprep.subr.mxu0 0.0
    %3138 = vmatpush1.msra.mxu0 0.0
    %3139 = vmatprep.subr.mxu0 0.0
    %3140 = vmatpush1.msra.mxu0 0.0
    %3141 = vmatprep.subr.mxu0 0.0
    %3142 = vmatpush1.msra.mxu0 0.0
    %3143 = vmatprep.subr.mxu0 0.0
    %3144 = vmatpush1.msra.mxu0 0.0
    %3145 = vmatprep.subr.mxu0 0.0
    %3146 = vmatpush1.msra.mxu0 0.0
    %3147 = vmatprep.subr.mxu0 0.0
    %3148 = vmatpush1.msra.mxu0 0.0
    %3149 = vmatprep.subr.mxu0 0.0
    %3150 = vmatpush1.msra.mxu0 %v2283
    %3151 = vmatprep.subr.mxu0 0.0
    %3152 = vmatpush1.msra.mxu0 %v2282
    %3153 = vmatprep.subr.mxu0 0.0
    %3154 = vmatpush1.msra.mxu0 %v2281
    %3155 = vmatprep.subr.mxu0 0.0
    %3156 = vmatpush1.msra.mxu0 %v2280
    %3157 = vmatprep.subr.mxu0 0.0
    %3158 = vmatpush1.msra.mxu0 %v2279
    %3159 = vmatprep.subr.mxu0 0.0
    %3160 = vmatpush1.msra.mxu0 %v2278
    %3161 = vmatprep.subr.mxu0 0.0
    %3162 = vmatpush2.msra.mxu0 0.0
    %3163 = vmatprep.subr.mxu0 0.0
    %3164 = vmatpush2.msra.mxu0 0.0
    %3165 = vmatprep.subr.mxu0 0.0
    %3166 = vmatpush2.msra.mxu0 0.0
    %3167 = vmatprep.subr.mxu0 0.0
    %3168 = vmatpush2.msra.mxu0 0.0
    %3169 = vmatprep.subr.mxu0 0.0
    %3170 = vmatpush2.msra.mxu0 0.0
    %3171 = vmatprep.subr.mxu0 0.0
    %3172 = vmatpush2.msra.mxu0 0.0
    %3173 = vmatprep.subr.mxu0 0.0
    %3174 = vmatpush2.msra.mxu0 0.0
    %3175 = vmatprep.subr.mxu0 0.0
    %3176 = vmatpush2.msra.mxu0 0.0
    %3177 = vmatprep.subr.mxu0 0.0
    %3178 = vmatpush2.msra.mxu0 0.0
    %3179 = vmatprep.subr.mxu0 0.0
    %3180 = vmatpush2.msra.mxu0 0.0
    %3181 = vmatprep.subr.mxu0 0.0
    %3182 = vmatpush2.msra.mxu0 0.0
    %3183 = vmatprep.subr.mxu0 0.0
    %3184 = vmatpush2.msra.mxu0 0.0
    %3185 = vmatprep.subr.mxu0 0.0
    %3186 = vmatpush2.msra.mxu0 0.0
    %3187 = vmatprep.subr.mxu0 0.0
    %3188 = vmatpush2.msra.mxu0 0.0
    %3189 = vmatprep.subr.mxu0 0.0
    %3190 = vmatpush2.msra.mxu0 0.0
    %3191 = vmatprep.subr.mxu0 0.0
    %3192 = vmatpush2.msra.mxu0 0.0
    %3193 = vmatprep.mubr.f32.mxu0 0.0
    %3194 = vmatmul.mubr.f32.gmra.mxu0 %v3118
    %v3195 = vpop.f32.mrf.mxu0
    %v3196 = vadd.f32 %v3099, %v3195
    %v3197 = vpop.f32.mrf.mxu0
    %3198 = vmatprep.mubr.f32.mxu0 0.0
    %3199 = vmatmul.mubr.f32.gmra.mxu0 %v3121
    %v3200 = vpop.f32.mrf.mxu0
    %v3201 = vadd.f32 %v3104, %v3200
    %v3202 = vpop.f32.mrf.mxu0
    %3203 = vmatprep.mubr.f32.mxu0 0.0
    %3204 = vmatmul.mubr.f32.gmra.mxu0 %v3124
    %v3205 = vpop.f32.mrf.mxu0
    %v3206 = vadd.f32 %v3109, %v3205
    %v3207 = vpop.f32.mrf.mxu0
    %3208 = vmatprep.mubr.f32.mxu0 0.0
    %3209 = vmatmul.mubr.f32.gmra.mxu0 %v3127
    %v3210 = vpop.f32.mrf.mxu0
    %v3211 = vadd.f32 %v3114, %v3210
    %v3212 = vpop.f32.mrf.mxu0
    %3213 = vdwg.mxu0
    %v3214 = vld [vmem:[%s1913 + $0x1] sm:$0xff]
    %v3215 = vld [vmem:[%s1913 + $0x9] sm:$0xff]
    %v3216 = vld [vmem:[%s1913 + $0x11] sm:$0xff]
    %v3217 = vld [vmem:[%s1913 + $0x19] sm:$0xf]
    %v3219 = vsel %vm51, %v3214, 0
    %v3222 = vsel %vm51, %v3215, 0
    %v3225 = vsel %vm51, %v3216, 0
    %v3228 = vsel %vm51, %v3217, 0
    %3230 = vmatprep.subr.mxu0 0.0
    %3231 = vmatpush1.msra.mxu0 0.0
    %3232 = vmatprep.subr.mxu0 0.0
    %3233 = vmatpush1.msra.mxu0 0.0
    %3234 = vmatprep.subr.mxu0 0.0
    %3235 = vmatpush1.msra.mxu0 0.0
    %3236 = vmatprep.subr.mxu0 0.0
    %3237 = vmatpush1.msra.mxu0 0.0
    %3238 = vmatprep.subr.mxu0 0.0
    %3239 = vmatpush1.msra.mxu0 0.0
    %3240 = vmatprep.subr.mxu0 0.0
    %3241 = vmatpush1.msra.mxu0 0.0
    %3242 = vmatprep.subr.mxu0 0.0
    %3243 = vmatpush1.msra.mxu0 0.0
    %3244 = vmatprep.subr.mxu0 0.0
    %3245 = vmatpush1.msra.mxu0 0.0
    %3246 = vmatprep.subr.mxu0 0.0
    %3247 = vmatpush1.msra.mxu0 0.0
    %3248 = vmatprep.subr.mxu0 0.0
    %3249 = vmatpush1.msra.mxu0 0.0
    %3250 = vmatprep.subr.mxu0 0.0
    %3251 = vmatpush1.msra.mxu0 %v2297
    %3252 = vmatprep.subr.mxu0 0.0
    %3253 = vmatpush1.msra.mxu0 %v2296
    %3254 = vmatprep.subr.mxu0 0.0
    %3255 = vmatpush1.msra.mxu0 %v2295
    %3256 = vmatprep.subr.mxu0 0.0
    %3257 = vmatpush1.msra.mxu0 %v2294
    %3258 = vmatprep.subr.mxu0 0.0
    %3259 = vmatpush1.msra.mxu0 %v2293
    %3260 = vmatprep.subr.mxu0 0.0
    %3261 = vmatpush1.msra.mxu0 %v2292
    %3262 = vmatprep.subr.mxu0 0.0
    %3263 = vmatpush2.msra.mxu0 0.0
    %3264 = vmatprep.subr.mxu0 0.0
    %3265 = vmatpush2.msra.mxu0 0.0
    %3266 = vmatprep.subr.mxu0 0.0
    %3267 = vmatpush2.msra.mxu0 0.0
    %3268 = vmatprep.subr.mxu0 0.0
    %3269 = vmatpush2.msra.mxu0 0.0
    %3270 = vmatprep.subr.mxu0 0.0
    %3271 = vmatpush2.msra.mxu0 0.0
    %3272 = vmatprep.subr.mxu0 0.0
    %3273 = vmatpush2.msra.mxu0 0.0
    %3274 = vmatprep.subr.mxu0 0.0
    %3275 = vmatpush2.msra.mxu0 0.0
    %3276 = vmatprep.subr.mxu0 0.0
    %3277 = vmatpush2.msra.mxu0 0.0
    %3278 = vmatprep.subr.mxu0 0.0
    %3279 = vmatpush2.msra.mxu0 0.0
    %3280 = vmatprep.subr.mxu0 0.0
    %3281 = vmatpush2.msra.mxu0 0.0
    %3282 = vmatprep.subr.mxu0 0.0
    %3283 = vmatpush2.msra.mxu0 0.0
    %3284 = vmatprep.subr.mxu0 0.0
    %3285 = vmatpush2.msra.mxu0 0.0
    %3286 = vmatprep.subr.mxu0 0.0
    %3287 = vmatpush2.msra.mxu0 0.0
    %3288 = vmatprep.subr.mxu0 0.0
    %3289 = vmatpush2.msra.mxu0 0.0
    %3290 = vmatprep.subr.mxu0 0.0
    %3291 = vmatpush2.msra.mxu0 0.0
    %3292 = vmatprep.subr.mxu0 0.0
    %3293 = vmatpush2.msra.mxu0 0.0
    %3294 = vmatprep.mubr.f32.mxu0 0.0
    %3295 = vmatmul.mubr.f32.gmra.mxu0 %v3219
    %v3296 = vpop.f32.mrf.mxu0
    %v3297 = vadd.f32 0.0, %v3296
    %v3298 = vpop.f32.mrf.mxu0
    %3299 = vmatprep.mubr.f32.mxu0 0.0
    %3300 = vmatmul.mubr.f32.gmra.mxu0 %v3222
    %v3301 = vpop.f32.mrf.mxu0
    %v3302 = vadd.f32 0.0, %v3301
    %v3303 = vpop.f32.mrf.mxu0
    %3304 = vmatprep.mubr.f32.mxu0 0.0
    %3305 = vmatmul.mubr.f32.gmra.mxu0 %v3225
    %v3306 = vpop.f32.mrf.mxu0
    %v3307 = vadd.f32 0.0, %v3306
    %v3308 = vpop.f32.mrf.mxu0
    %3309 = vmatprep.mubr.f32.mxu0 0.0
    %3310 = vmatmul.mubr.f32.gmra.mxu0 %v3228
    %v3311 = vpop.f32.mrf.mxu0
    %v3312 = vadd.f32 0.0, %v3311
    %v3313 = vpop.f32.mrf.mxu0
    %3314 = vdwg.mxu0
    %v3315 = vadd.f32 %v3196, %v3297
    %v3316 = vadd.f32 %v3201, %v3302
    %v3317 = vadd.f32 %v3206, %v3307
    %v3318 = vadd.f32 %v3211, %v3312
    %v3319 = vmul.f32 %v3315, %v2303
    %v3320 = vmul.f32 %v3316, %v2303
    %v3321 = vmul.f32 %v3317, %v2303
    %v3322 = vmul.f32 %v3318, %v2303
    %v3323 = vadd.f32 %v3319, %v2310
    %v3324 = vadd.f32 %v3320, %v2310
    %v3325 = vadd.f32 %v3321, %v2310
    %v3326 = vadd.f32 %v3322, %v2310
    %v3327 = vmax.f32 %v3323, 0.0
    %v3328 = vmax.f32 %v3324, 0.0
    %v3329 = vmax.f32 %v3325, 0.0
    %v3330 = vmax.f32 %v3326, 0.0
    %3331 = vmatprep.subr.mxu0 0.0
    %3332 = vmatpush1.msra.mxu0 0.0
    %3333 = vmatprep.subr.mxu0 0.0
    %3334 = vmatpush1.msra.mxu0 0.0
    %3335 = vmatprep.subr.mxu0 0.0
    %3336 = vmatpush1.msra.mxu0 0.0
    %3337 = vmatprep.subr.mxu0 0.0
    %3338 = vmatpush1.msra.mxu0 0.0
    %3339 = vmatprep.subr.mxu0 0.0
    %3340 = vmatpush1.msra.mxu0 0.0
    %3341 = vmatprep.subr.mxu0 0.0
    %3342 = vmatpush1.msra.mxu0 0.0
    %3343 = vmatprep.subr.mxu0 0.0
    %3344 = vmatpush1.msra.mxu0 0.0
    %3345 = vmatprep.subr.mxu0 0.0
    %3346 = vmatpush1.msra.mxu0 0.0
    %3347 = vmatprep.subr.mxu0 0.0
    %3348 = vmatpush1.msra.mxu0 0.0
    %3349 = vmatprep.subr.mxu0 0.0
    %3350 = vmatpush1.msra.mxu0 0.0
    %3351 = vmatprep.subr.mxu0 0.0
    %3352 = vmatpush1.msra.mxu0 %v2290
    %3353 = vmatprep.subr.mxu0 0.0
    %3354 = vmatpush1.msra.mxu0 %v2289
    %3355 = vmatprep.subr.mxu0 0.0
    %3356 = vmatpush1.msra.mxu0 %v2288
    %3357 = vmatprep.subr.mxu0 0.0
    %3358 = vmatpush1.msra.mxu0 %v2287
    %3359 = vmatprep.subr.mxu0 0.0
    %3360 = vmatpush1.msra.mxu0 %v2286
    %3361 = vmatprep.subr.mxu0 0.0
    %3362 = vmatpush1.msra.mxu0 %v2285
    %3363 = vmatprep.subr.mxu0 0.0
    %3364 = vmatpush2.msra.mxu0 0.0
    %3365 = vmatprep.subr.mxu0 0.0
    %3366 = vmatpush2.msra.mxu0 0.0
    %3367 = vmatprep.subr.mxu0 0.0
    %3368 = vmatpush2.msra.mxu0 0.0
    %3369 = vmatprep.subr.mxu0 0.0
    %3370 = vmatpush2.msra.mxu0 0.0
    %3371 = vmatprep.subr.mxu0 0.0
    %3372 = vmatpush2.msra.mxu0 0.0
    %3373 = vmatprep.subr.mxu0 0.0
    %3374 = vmatpush2.msra.mxu0 0.0
    %3375 = vmatprep.subr.mxu0 0.0
    %3376 = vmatpush2.msra.mxu0 0.0
    %3377 = vmatprep.subr.mxu0 0.0
    %3378 = vmatpush2.msra.mxu0 0.0
    %3379 = vmatprep.subr.mxu0 0.0
    %3380 = vmatpush2.msra.mxu0 0.0
    %3381 = vmatprep.subr.mxu0 0.0
    %3382 = vmatpush2.msra.mxu0 0.0
    %3383 = vmatprep.subr.mxu0 0.0
    %3384 = vmatpush2.msra.mxu0 0.0
    %3385 = vmatprep.subr.mxu0 0.0
    %3386 = vmatpush2.msra.mxu0 0.0
    %3387 = vmatprep.subr.mxu0 0.0
    %3388 = vmatpush2.msra.mxu0 0.0
    %3389 = vmatprep.subr.mxu0 0.0
    %3390 = vmatpush2.msra.mxu0 0.0
    %3391 = vmatprep.subr.mxu0 0.0
    %3392 = vmatpush2.msra.mxu0 0.0
    %3393 = vmatprep.subr.mxu0 0.0
    %3394 = vmatpush2.msra.mxu0 0.0
    %3395 = vmatprep.mubr.f32.mxu0 0.0
    %3396 = vmatmul.mubr.f32.gmra.mxu0 %v3219
    %v3397 = vpop.f32.mrf.mxu0
    %v3398 = vadd.f32 0.0, %v3397
    %v3399 = vpop.f32.mrf.mxu0
    %3400 = vmatprep.mubr.f32.mxu0 0.0
    %3401 = vmatmul.mubr.f32.gmra.mxu0 %v3222
    %v3402 = vpop.f32.mrf.mxu0
    %v3403 = vadd.f32 0.0, %v3402
    %v3404 = vpop.f32.mrf.mxu0
    %3405 = vmatprep.mubr.f32.mxu0 0.0
    %3406 = vmatmul.mubr.f32.gmra.mxu0 %v3225
    %v3407 = vpop.f32.mrf.mxu0
    %v3408 = vadd.f32 0.0, %v3407
    %v3409 = vpop.f32.mrf.mxu0
    %3410 = vmatprep.mubr.f32.mxu0 0.0
    %3411 = vmatmul.mubr.f32.gmra.mxu0 %v3228
    %v3412 = vpop.f32.mrf.mxu0
    %v3413 = vadd.f32 0.0, %v3412
    %v3414 = vpop.f32.mrf.mxu0
    %3415 = vdwg.mxu0
    %3416 = vmatprep.subr.mxu0 0.0
    %3417 = vmatpush1.msra.mxu0 0.0
    %3418 = vmatprep.subr.mxu0 0.0
    %3419 = vmatpush1.msra.mxu0 0.0
    %3420 = vmatprep.subr.mxu0 0.0
    %3421 = vmatpush1.msra.mxu0 0.0
    %3422 = vmatprep.subr.mxu0 0.0
    %3423 = vmatpush1.msra.mxu0 0.0
    %3424 = vmatprep.subr.mxu0 0.0
    %3425 = vmatpush1.msra.mxu0 0.0
    %3426 = vmatprep.subr.mxu0 0.0
    %3427 = vmatpush1.msra.mxu0 0.0
    %3428 = vmatprep.subr.mxu0 0.0
    %3429 = vmatpush1.msra.mxu0 0.0
    %3430 = vmatprep.subr.mxu0 0.0
    %3431 = vmatpush1.msra.mxu0 0.0
    %3432 = vmatprep.subr.mxu0 0.0
    %3433 = vmatpush1.msra.mxu0 0.0
    %3434 = vmatprep.subr.mxu0 0.0
    %3435 = vmatpush1.msra.mxu0 0.0
    %3436 = vmatprep.subr.mxu0 0.0
    %3437 = vmatpush1.msra.mxu0 %v2283
    %3438 = vmatprep.subr.mxu0 0.0
    %3439 = vmatpush1.msra.mxu0 %v2282
    %3440 = vmatprep.subr.mxu0 0.0
    %3441 = vmatpush1.msra.mxu0 %v2281
    %3442 = vmatprep.subr.mxu0 0.0
    %3443 = vmatpush1.msra.mxu0 %v2280
    %3444 = vmatprep.subr.mxu0 0.0
    %3445 = vmatpush1.msra.mxu0 %v2279
    %3446 = vmatprep.subr.mxu0 0.0
    %3447 = vmatpush1.msra.mxu0 %v2278
    %3448 = vmatprep.subr.mxu0 0.0
    %3449 = vmatpush2.msra.mxu0 0.0
    %3450 = vmatprep.subr.mxu0 0.0
    %3451 = vmatpush2.msra.mxu0 0.0
    %3452 = vmatprep.subr.mxu0 0.0
    %3453 = vmatpush2.msra.mxu0 0.0
    %3454 = vmatprep.subr.mxu0 0.0
    %3455 = vmatpush2.msra.mxu0 0.0
    %3456 = vmatprep.subr.mxu0 0.0
    %3457 = vmatpush2.msra.mxu0 0.0
    %3458 = vmatprep.subr.mxu0 0.0
    %3459 = vmatpush2.msra.mxu0 0.0
    %3460 = vmatprep.subr.mxu0 0.0
    %3461 = vmatpush2.msra.mxu0 0.0
    %3462 = vmatprep.subr.mxu0 0.0
    %3463 = vmatpush2.msra.mxu0 0.0
    %3464 = vmatprep.subr.mxu0 0.0
    %3465 = vmatpush2.msra.mxu0 0.0
    %3466 = vmatprep.subr.mxu0 0.0
    %3467 = vmatpush2.msra.mxu0 0.0
    %3468 = vmatprep.subr.mxu0 0.0
    %3469 = vmatpush2.msra.mxu0 0.0
    %3470 = vmatprep.subr.mxu0 0.0
    %3471 = vmatpush2.msra.mxu0 0.0
    %3472 = vmatprep.subr.mxu0 0.0
    %3473 = vmatpush2.msra.mxu0 0.0
    %3474 = vmatprep.subr.mxu0 0.0
    %3475 = vmatpush2.msra.mxu0 0.0
    %3476 = vmatprep.subr.mxu0 0.0
    %3477 = vmatpush2.msra.mxu0 0.0
    %3478 = vmatprep.subr.mxu0 0.0
    %3479 = vmatpush2.msra.mxu0 0.0
    %3480 = vmatprep.mubr.f32.mxu0 0.0
    %3481 = vmatmul.mubr.f32.gmra.mxu0 %v3021
    %v3482 = vpop.f32.mrf.mxu0
    %v3483 = vadd.f32 %v3398, %v3482
    %v3484 = vpop.f32.mrf.mxu0
    %3485 = vmatprep.mubr.f32.mxu0 0.0
    %3486 = vmatmul.mubr.f32.gmra.mxu0 %v3024
    %v3487 = vpop.f32.mrf.mxu0
    %v3488 = vadd.f32 %v3403, %v3487
    %v3489 = vpop.f32.mrf.mxu0
    %3490 = vmatprep.mubr.f32.mxu0 0.0
    %3491 = vmatmul.mubr.f32.gmra.mxu0 %v3027
    %v3492 = vpop.f32.mrf.mxu0
    %v3493 = vadd.f32 %v3408, %v3492
    %v3494 = vpop.f32.mrf.mxu0
    %3495 = vmatprep.mubr.f32.mxu0 0.0
    %3496 = vmatmul.mubr.f32.gmra.mxu0 %v3030
    %v3497 = vpop.f32.mrf.mxu0
    %v3498 = vadd.f32 %v3413, %v3497
    %v3499 = vpop.f32.mrf.mxu0
    %3500 = vdwg.mxu0
    %s3501 = scalar_lea.vmem [#allocation3], 160
    %v3502 = vld [vmem:[%s3501 + $0x1] sm:$0xff]
    %v3503 = vld [vmem:[%s3501 + $0x9] sm:$0xff]
    %v3504 = vld [vmem:[%s3501 + $0x11] sm:$0xff]
    %v3505 = vld [vmem:[%s3501 + $0x19] sm:$0xf]
    %v3507 = vsel %vm51, %v3502, 0
    %v3510 = vsel %vm51, %v3503, 0
    %v3513 = vsel %vm51, %v3504, 0
    %v3516 = vsel %vm51, %v3505, 0
    %3518 = vmatprep.subr.mxu0 0.0
    %3519 = vmatpush1.msra.mxu0 0.0
    %3520 = vmatprep.subr.mxu0 0.0
    %3521 = vmatpush1.msra.mxu0 0.0
    %3522 = vmatprep.subr.mxu0 0.0
    %3523 = vmatpush1.msra.mxu0 0.0
    %3524 = vmatprep.subr.mxu0 0.0
    %3525 = vmatpush1.msra.mxu0 0.0
    %3526 = vmatprep.subr.mxu0 0.0
    %3527 = vmatpush1.msra.mxu0 0.0
    %3528 = vmatprep.subr.mxu0 0.0
    %3529 = vmatpush1.msra.mxu0 0.0
    %3530 = vmatprep.subr.mxu0 0.0
    %3531 = vmatpush1.msra.mxu0 0.0
    %3532 = vmatprep.subr.mxu0 0.0
    %3533 = vmatpush1.msra.mxu0 0.0
    %3534 = vmatprep.subr.mxu0 0.0
    %3535 = vmatpush1.msra.mxu0 0.0
    %3536 = vmatprep.subr.mxu0 0.0
    %3537 = vmatpush1.msra.mxu0 0.0
    %3538 = vmatprep.subr.mxu0 0.0
    %3539 = vmatpush1.msra.mxu0 %v2297
    %3540 = vmatprep.subr.mxu0 0.0
    %3541 = vmatpush1.msra.mxu0 %v2296
    %3542 = vmatprep.subr.mxu0 0.0
    %3543 = vmatpush1.msra.mxu0 %v2295
    %3544 = vmatprep.subr.mxu0 0.0
    %3545 = vmatpush1.msra.mxu0 %v2294
    %3546 = vmatprep.subr.mxu0 0.0
    %3547 = vmatpush1.msra.mxu0 %v2293
    %3548 = vmatprep.subr.mxu0 0.0
    %3549 = vmatpush1.msra.mxu0 %v2292
    %3550 = vmatprep.subr.mxu0 0.0
    %3551 = vmatpush2.msra.mxu0 0.0
    %3552 = vmatprep.subr.mxu0 0.0
    %3553 = vmatpush2.msra.mxu0 0.0
    %3554 = vmatprep.subr.mxu0 0.0
    %3555 = vmatpush2.msra.mxu0 0.0
    %3556 = vmatprep.subr.mxu0 0.0
    %3557 = vmatpush2.msra.mxu0 0.0
    %3558 = vmatprep.subr.mxu0 0.0
    %3559 = vmatpush2.msra.mxu0 0.0
    %3560 = vmatprep.subr.mxu0 0.0
    %3561 = vmatpush2.msra.mxu0 0.0
    %3562 = vmatprep.subr.mxu0 0.0
    %3563 = vmatpush2.msra.mxu0 0.0
    %3564 = vmatprep.subr.mxu0 0.0
    %3565 = vmatpush2.msra.mxu0 0.0
    %3566 = vmatprep.subr.mxu0 0.0
    %3567 = vmatpush2.msra.mxu0 0.0
    %3568 = vmatprep.subr.mxu0 0.0
    %3569 = vmatpush2.msra.mxu0 0.0
    %3570 = vmatprep.subr.mxu0 0.0
    %3571 = vmatpush2.msra.mxu0 0.0
    %3572 = vmatprep.subr.mxu0 0.0
    %3573 = vmatpush2.msra.mxu0 0.0
    %3574 = vmatprep.subr.mxu0 0.0
    %3575 = vmatpush2.msra.mxu0 0.0
    %3576 = vmatprep.subr.mxu0 0.0
    %3577 = vmatpush2.msra.mxu0 0.0
    %3578 = vmatprep.subr.mxu0 0.0
    %3579 = vmatpush2.msra.mxu0 0.0
    %3580 = vmatprep.subr.mxu0 0.0
    %3581 = vmatpush2.msra.mxu0 0.0
    %3582 = vmatprep.mubr.f32.mxu0 0.0
    %3583 = vmatmul.mubr.f32.gmra.mxu0 %v3507
    %v3584 = vpop.f32.mrf.mxu0
    %v3585 = vadd.f32 0.0, %v3584
    %v3586 = vpop.f32.mrf.mxu0
    %3587 = vmatprep.mubr.f32.mxu0 0.0
    %3588 = vmatmul.mubr.f32.gmra.mxu0 %v3510
    %v3589 = vpop.f32.mrf.mxu0
    %v3590 = vadd.f32 0.0, %v3589
    %v3591 = vpop.f32.mrf.mxu0
    %3592 = vmatprep.mubr.f32.mxu0 0.0
    %3593 = vmatmul.mubr.f32.gmra.mxu0 %v3513
    %v3594 = vpop.f32.mrf.mxu0
    %v3595 = vadd.f32 0.0, %v3594
    %v3596 = vpop.f32.mrf.mxu0
    %3597 = vmatprep.mubr.f32.mxu0 0.0
    %3598 = vmatmul.mubr.f32.gmra.mxu0 %v3516
    %v3599 = vpop.f32.mrf.mxu0
    %v3600 = vadd.f32 0.0, %v3599
    %v3601 = vpop.f32.mrf.mxu0
    %3602 = vdwg.mxu0
    %v3603 = vadd.f32 %v3483, %v3585
    %v3604 = vadd.f32 %v3488, %v3590
    %v3605 = vadd.f32 %v3493, %v3595
    %v3606 = vadd.f32 %v3498, %v3600
    %v3607 = vmul.f32 %v3603, %v2303
    %v3608 = vmul.f32 %v3604, %v2303
    %v3609 = vmul.f32 %v3605, %v2303
    %v3610 = vmul.f32 %v3606, %v2303
    %v3611 = vadd.f32 %v3607, %v2310
    %v3612 = vadd.f32 %v3608, %v2310
    %v3613 = vadd.f32 %v3609, %v2310
    %v3614 = vadd.f32 %v3610, %v2310
    %v3615 = vmax.f32 %v3611, 0.0
    %v3616 = vmax.f32 %v3612, 0.0
    %v3617 = vmax.f32 %v3613, 0.0
    %v3618 = vmax.f32 %v3614, 0.0
    %v3619 = vmax.f32 %v3327, %v3615
    %v3620 = vmax.f32 %v3328, %v3616
    %v3621 = vmax.f32 %v3329, %v3617
    %v3622 = vmax.f32 %v3330, %v3618
    %3623 = vst.msk [vmem:[#allocation6] sm:$0xff] %vm2974, %v3619
    %3624 = vst.msk [vmem:[#allocation6 + $0x8] sm:$0xff] %vm2974, %v3620
    %3625 = vst.msk [vmem:[#allocation6 + $0x10] sm:$0xff] %vm2974, %v3621
    %3626 = vst.msk [vmem:[#allocation6 + $0x18] sm:$0xf] %vm2978, %v3622
    %v3627 = vld [vmem:[#allocation6] ss:$2 sm:$0xff]
    %v3628 = vld [vmem:[%s1647] ss:$2 sm:$0x3f]
    %v3629 = vld [vmem:[%s1653] ss:$2 sm:$0xff]
    %v3630 = vld [vmem:[%s1655] ss:$2 sm:$0x3f]
    %v3631 = vmax.f32 %v3627, %v3629
    %v3632 = vmax.f32 %v3628, %v3630
    %s3633 = scalar_lea.vmem [#allocation4], 32
    %3634 = vst.msk [vmem:[%s3633 + $0x2] sm:$0xff] %vm2974, %v3631
    %3635 = vst.msk [vmem:[%s3633 + $0xa] sm:$0x3f] %vm2988, %v3632
    %3638 = vrot.lane.b32.xlu0 %v3631, 32
    %v3639 = vpop.permute.xlu0 %3638
    %3640 = vrot.lane.b32.xlu0 %v3632, 32
    %v3641 = vpop.permute.xlu0 %3640
    %3644 = vst.msk [vmem:[%s3633 + $0x1] sm:$0xff] %vm2998, %v3639
    %3645 = vst.msk [vmem:[%s3633 + $0x9] sm:$0x3f] %vm3000, %v3641
    %3646 = vrot.lane.b32.xlu0 %v3631, 64
    %v3647 = vpop.permute.xlu0 %3646
    %3648 = vrot.lane.b32.xlu0 %v3632, 64
    %v3649 = vpop.permute.xlu0 %3648
    %3652 = vst.msk [vmem:[%s3633] sm:$0xff] %vm3008, %v3647
    %3653 = vst.msk [vmem:[%s3633 + $0x8] sm:$0x3f] %vm3010, %v3649
    %s3654 = scalar_lea.vmem [#allocation3], 192
    %v3655 = vld [vmem:[%s3654 + $0x1] sm:$0xff]
    %v3656 = vld [vmem:[%s3654 + $0x9] sm:$0xff]
    %v3657 = vld [vmem:[%s3654 + $0x11] sm:$0xff]
    %v3658 = vld [vmem:[%s3654 + $0x19] sm:$0xf]
    %v3659 = vld [vmem:[%s1994 + $0x1] sm:$0xff]
    %v3660 = vld [vmem:[%s1994 + $0x9] sm:$0xff]
    %v3661 = vld [vmem:[%s1994 + $0x11] sm:$0xff]
    %v3662 = vld [vmem:[%s1994 + $0x19] sm:$0xf]
    %v3664 = vsel %vm51, %v3659, 0
    %v3667 = vsel %vm51, %v3660, 0
    %v3670 = vsel %vm51, %v3661, 0
    %v3673 = vsel %vm51, %v3662, 0
    %3675 = vmatprep.subr.mxu0 0.0
    %3676 = vmatpush1.msra.mxu0 0.0
    %3677 = vmatprep.subr.mxu0 0.0
    %3678 = vmatpush1.msra.mxu0 0.0
    %3679 = vmatprep.subr.mxu0 0.0
    %3680 = vmatpush1.msra.mxu0 0.0
    %3681 = vmatprep.subr.mxu0 0.0
    %3682 = vmatpush1.msra.mxu0 0.0
    %3683 = vmatprep.subr.mxu0 0.0
    %3684 = vmatpush1.msra.mxu0 0.0
    %3685 = vmatprep.subr.mxu0 0.0
    %3686 = vmatpush1.msra.mxu0 0.0
    %3687 = vmatprep.subr.mxu0 0.0
    %3688 = vmatpush1.msra.mxu0 0.0
    %3689 = vmatprep.subr.mxu0 0.0
    %3690 = vmatpush1.msra.mxu0 0.0
    %3691 = vmatprep.subr.mxu0 0.0
    %3692 = vmatpush1.msra.mxu0 0.0
    %3693 = vmatprep.subr.mxu0 0.0
    %3694 = vmatpush1.msra.mxu0 0.0
    %3695 = vmatprep.subr.mxu0 0.0
    %3696 = vmatpush1.msra.mxu0 %v2290
    %3697 = vmatprep.subr.mxu0 0.0
    %3698 = vmatpush1.msra.mxu0 %v2289
    %3699 = vmatprep.subr.mxu0 0.0
    %3700 = vmatpush1.msra.mxu0 %v2288
    %3701 = vmatprep.subr.mxu0 0.0
    %3702 = vmatpush1.msra.mxu0 %v2287
    %3703 = vmatprep.subr.mxu0 0.0
    %3704 = vmatpush1.msra.mxu0 %v2286
    %3705 = vmatprep.subr.mxu0 0.0
    %3706 = vmatpush1.msra.mxu0 %v2285
    %3707 = vmatprep.subr.mxu0 0.0
    %3708 = vmatpush2.msra.mxu0 0.0
    %3709 = vmatprep.subr.mxu0 0.0
    %3710 = vmatpush2.msra.mxu0 0.0
    %3711 = vmatprep.subr.mxu0 0.0
    %3712 = vmatpush2.msra.mxu0 0.0
    %3713 = vmatprep.subr.mxu0 0.0
    %3714 = vmatpush2.msra.mxu0 0.0
    %3715 = vmatprep.subr.mxu0 0.0
    %3716 = vmatpush2.msra.mxu0 0.0
    %3717 = vmatprep.subr.mxu0 0.0
    %3718 = vmatpush2.msra.mxu0 0.0
    %3719 = vmatprep.subr.mxu0 0.0
    %3720 = vmatpush2.msra.mxu0 0.0
    %3721 = vmatprep.subr.mxu0 0.0
    %3722 = vmatpush2.msra.mxu0 0.0
    %3723 = vmatprep.subr.mxu0 0.0
    %3724 = vmatpush2.msra.mxu0 0.0
    %3725 = vmatprep.subr.mxu0 0.0
    %3726 = vmatpush2.msra.mxu0 0.0
    %3727 = vmatprep.subr.mxu0 0.0
    %3728 = vmatpush2.msra.mxu0 0.0
    %3729 = vmatprep.subr.mxu0 0.0
    %3730 = vmatpush2.msra.mxu0 0.0
    %3731 = vmatprep.subr.mxu0 0.0
    %3732 = vmatpush2.msra.mxu0 0.0
    %3733 = vmatprep.subr.mxu0 0.0
    %3734 = vmatpush2.msra.mxu0 0.0
    %3735 = vmatprep.subr.mxu0 0.0
    %3736 = vmatpush2.msra.mxu0 0.0
    %3737 = vmatprep.subr.mxu0 0.0
    %3738 = vmatpush2.msra.mxu0 0.0
    %3739 = vmatprep.mubr.f32.mxu0 0.0
    %3740 = vmatmul.mubr.f32.gmra.mxu0 %v3664
    %v3741 = vpop.f32.mrf.mxu0
    %v3742 = vadd.f32 0.0, %v3741
    %v3743 = vpop.f32.mrf.mxu0
    %3744 = vmatprep.mubr.f32.mxu0 0.0
    %3745 = vmatmul.mubr.f32.gmra.mxu0 %v3667
    %v3746 = vpop.f32.mrf.mxu0
    %v3747 = vadd.f32 0.0, %v3746
    %v3748 = vpop.f32.mrf.mxu0
    %3749 = vmatprep.mubr.f32.mxu0 0.0
    %3750 = vmatmul.mubr.f32.gmra.mxu0 %v3670
    %v3751 = vpop.f32.mrf.mxu0
    %v3752 = vadd.f32 0.0, %v3751
    %v3753 = vpop.f32.mrf.mxu0
    %3754 = vmatprep.mubr.f32.mxu0 0.0
    %3755 = vmatmul.mubr.f32.gmra.mxu0 %v3673
    %v3756 = vpop.f32.mrf.mxu0
    %v3757 = vadd.f32 0.0, %v3756
    %v3758 = vpop.f32.mrf.mxu0
    %3759 = vdwg.mxu0
    %v3761 = vsel %vm51, %v3655, 0
    %v3764 = vsel %vm51, %v3656, 0
    %v3767 = vsel %vm51, %v3657, 0
    %v3770 = vsel %vm51, %v3658, 0
    %3772 = vmatprep.subr.mxu0 0.0
    %3773 = vmatpush1.msra.mxu0 0.0
    %3774 = vmatprep.subr.mxu0 0.0
    %3775 = vmatpush1.msra.mxu0 0.0
    %3776 = vmatprep.subr.mxu0 0.0
    %3777 = vmatpush1.msra.mxu0 0.0
    %3778 = vmatprep.subr.mxu0 0.0
    %3779 = vmatpush1.msra.mxu0 0.0
    %3780 = vmatprep.subr.mxu0 0.0
    %3781 = vmatpush1.msra.mxu0 0.0
    %3782 = vmatprep.subr.mxu0 0.0
    %3783 = vmatpush1.msra.mxu0 0.0
    %3784 = vmatprep.subr.mxu0 0.0
    %3785 = vmatpush1.msra.mxu0 0.0
    %3786 = vmatprep.subr.mxu0 0.0
    %3787 = vmatpush1.msra.mxu0 0.0
    %3788 = vmatprep.subr.mxu0 0.0
    %3789 = vmatpush1.msra.mxu0 0.0
    %3790 = vmatprep.subr.mxu0 0.0
    %3791 = vmatpush1.msra.mxu0 0.0
    %3792 = vmatprep.subr.mxu0 0.0
    %3793 = vmatpush1.msra.mxu0 %v2283
    %3794 = vmatprep.subr.mxu0 0.0
    %3795 = vmatpush1.msra.mxu0 %v2282
    %3796 = vmatprep.subr.mxu0 0.0
    %3797 = vmatpush1.msra.mxu0 %v2281
    %3798 = vmatprep.subr.mxu0 0.0
    %3799 = vmatpush1.msra.mxu0 %v2280
    %3800 = vmatprep.subr.mxu0 0.0
    %3801 = vmatpush1.msra.mxu0 %v2279
    %3802 = vmatprep.subr.mxu0 0.0
    %3803 = vmatpush1.msra.mxu0 %v2278
    %3804 = vmatprep.subr.mxu0 0.0
    %3805 = vmatpush2.msra.mxu0 0.0
    %3806 = vmatprep.subr.mxu0 0.0
    %3807 = vmatpush2.msra.mxu0 0.0
    %3808 = vmatprep.subr.mxu0 0.0
    %3809 = vmatpush2.msra.mxu0 0.0
    %3810 = vmatprep.subr.mxu0 0.0
    %3811 = vmatpush2.msra.mxu0 0.0
    %3812 = vmatprep.subr.mxu0 0.0
    %3813 = vmatpush2.msra.mxu0 0.0
    %3814 = vmatprep.subr.mxu0 0.0
    %3815 = vmatpush2.msra.mxu0 0.0
    %3816 = vmatprep.subr.mxu0 0.0
    %3817 = vmatpush2.msra.mxu0 0.0
    %3818 = vmatprep.subr.mxu0 0.0
    %3819 = vmatpush2.msra.mxu0 0.0
    %3820 = vmatprep.subr.mxu0 0.0
    %3821 = vmatpush2.msra.mxu0 0.0
    %3822 = vmatprep.subr.mxu0 0.0
    %3823 = vmatpush2.msra.mxu0 0.0
    %3824 = vmatprep.subr.mxu0 0.0
    %3825 = vmatpush2.msra.mxu0 0.0
    %3826 = vmatprep.subr.mxu0 0.0
    %3827 = vmatpush2.msra.mxu0 0.0
    %3828 = vmatprep.subr.mxu0 0.0
    %3829 = vmatpush2.msra.mxu0 0.0
    %3830 = vmatprep.subr.mxu0 0.0
    %3831 = vmatpush2.msra.mxu0 0.0
    %3832 = vmatprep.subr.mxu0 0.0
    %3833 = vmatpush2.msra.mxu0 0.0
    %3834 = vmatprep.subr.mxu0 0.0
    %3835 = vmatpush2.msra.mxu0 0.0
    %3836 = vmatprep.mubr.f32.mxu0 0.0
    %3837 = vmatmul.mubr.f32.gmra.mxu0 %v3761
    %v3838 = vpop.f32.mrf.mxu0
    %v3839 = vadd.f32 %v3742, %v3838
    %v3840 = vpop.f32.mrf.mxu0
    %3841 = vmatprep.mubr.f32.mxu0 0.0
    %3842 = vmatmul.mubr.f32.gmra.mxu0 %v3764
    %v3843 = vpop.f32.mrf.mxu0
    %v3844 = vadd.f32 %v3747, %v3843
    %v3845 = vpop.f32.mrf.mxu0
    %3846 = vmatprep.mubr.f32.mxu0 0.0
    %3847 = vmatmul.mubr.f32.gmra.mxu0 %v3767
    %v3848 = vpop.f32.mrf.mxu0
    %v3849 = vadd.f32 %v3752, %v3848
    %v3850 = vpop.f32.mrf.mxu0
    %3851 = vmatprep.mubr.f32.mxu0 0.0
    %3852 = vmatmul.mubr.f32.gmra.mxu0 %v3770
    %v3853 = vpop.f32.mrf.mxu0
    %v3854 = vadd.f32 %v3757, %v3853
    %v3855 = vpop.f32.mrf.mxu0
    %3856 = vdwg.mxu0
    %v3857 = vld [vmem:[%s2075 + $0x1] sm:$0xff]
    %v3858 = vld [vmem:[%s2075 + $0x9] sm:$0xff]
    %v3859 = vld [vmem:[%s2075 + $0x11] sm:$0xff]
    %v3860 = vld [vmem:[%s2075 + $0x19] sm:$0xf]
    %v3862 = vsel %vm51, %v3857, 0
    %v3865 = vsel %vm51, %v3858, 0
    %v3868 = vsel %vm51, %v3859, 0
    %v3871 = vsel %vm51, %v3860, 0
    %3873 = vmatprep.subr.mxu0 0.0
    %3874 = vmatpush1.msra.mxu0 0.0
    %3875 = vmatprep.subr.mxu0 0.0
    %3876 = vmatpush1.msra.mxu0 0.0
    %3877 = vmatprep.subr.mxu0 0.0
    %3878 = vmatpush1.msra.mxu0 0.0
    %3879 = vmatprep.subr.mxu0 0.0
    %3880 = vmatpush1.msra.mxu0 0.0
    %3881 = vmatprep.subr.mxu0 0.0
    %3882 = vmatpush1.msra.mxu0 0.0
    %3883 = vmatprep.subr.mxu0 0.0
    %3884 = vmatpush1.msra.mxu0 0.0
    %3885 = vmatprep.subr.mxu0 0.0
    %3886 = vmatpush1.msra.mxu0 0.0
    %3887 = vmatprep.subr.mxu0 0.0
    %3888 = vmatpush1.msra.mxu0 0.0
    %3889 = vmatprep.subr.mxu0 0.0
    %3890 = vmatpush1.msra.mxu0 0.0
    %3891 = vmatprep.subr.mxu0 0.0
    %3892 = vmatpush1.msra.mxu0 0.0
    %3893 = vmatprep.subr.mxu0 0.0
    %3894 = vmatpush1.msra.mxu0 %v2297
    %3895 = vmatprep.subr.mxu0 0.0
    %3896 = vmatpush1.msra.mxu0 %v2296
    %3897 = vmatprep.subr.mxu0 0.0
    %3898 = vmatpush1.msra.mxu0 %v2295
    %3899 = vmatprep.subr.mxu0 0.0
    %3900 = vmatpush1.msra.mxu0 %v2294
    %3901 = vmatprep.subr.mxu0 0.0
    %3902 = vmatpush1.msra.mxu0 %v2293
    %3903 = vmatprep.subr.mxu0 0.0
    %3904 = vmatpush1.msra.mxu0 %v2292
    %3905 = vmatprep.subr.mxu0 0.0
    %3906 = vmatpush2.msra.mxu0 0.0
    %3907 = vmatprep.subr.mxu0 0.0
    %3908 = vmatpush2.msra.mxu0 0.0
    %3909 = vmatprep.subr.mxu0 0.0
    %3910 = vmatpush2.msra.mxu0 0.0
    %3911 = vmatprep.subr.mxu0 0.0
    %3912 = vmatpush2.msra.mxu0 0.0
    %3913 = vmatprep.subr.mxu0 0.0
    %3914 = vmatpush2.msra.mxu0 0.0
    %3915 = vmatprep.subr.mxu0 0.0
    %3916 = vmatpush2.msra.mxu0 0.0
    %3917 = vmatprep.subr.mxu0 0.0
    %3918 = vmatpush2.msra.mxu0 0.0
    %3919 = vmatprep.subr.mxu0 0.0
    %3920 = vmatpush2.msra.mxu0 0.0
    %3921 = vmatprep.subr.mxu0 0.0
    %3922 = vmatpush2.msra.mxu0 0.0
    %3923 = vmatprep.subr.mxu0 0.0
    %3924 = vmatpush2.msra.mxu0 0.0
    %3925 = vmatprep.subr.mxu0 0.0
    %3926 = vmatpush2.msra.mxu0 0.0
    %3927 = vmatprep.subr.mxu0 0.0
    %3928 = vmatpush2.msra.mxu0 0.0
    %3929 = vmatprep.subr.mxu0 0.0
    %3930 = vmatpush2.msra.mxu0 0.0
    %3931 = vmatprep.subr.mxu0 0.0
    %3932 = vmatpush2.msra.mxu0 0.0
    %3933 = vmatprep.subr.mxu0 0.0
    %3934 = vmatpush2.msra.mxu0 0.0
    %3935 = vmatprep.subr.mxu0 0.0
    %3936 = vmatpush2.msra.mxu0 0.0
    %3937 = vmatprep.mubr.f32.mxu0 0.0
    %3938 = vmatmul.mubr.f32.gmra.mxu0 %v3862
    %v3939 = vpop.f32.mrf.mxu0
    %v3940 = vadd.f32 0.0, %v3939
    %v3941 = vpop.f32.mrf.mxu0
    %3942 = vmatprep.mubr.f32.mxu0 0.0
    %3943 = vmatmul.mubr.f32.gmra.mxu0 %v3865
    %v3944 = vpop.f32.mrf.mxu0
    %v3945 = vadd.f32 0.0, %v3944
    %v3946 = vpop.f32.mrf.mxu0
    %3947 = vmatprep.mubr.f32.mxu0 0.0
    %3948 = vmatmul.mubr.f32.gmra.mxu0 %v3868
    %v3949 = vpop.f32.mrf.mxu0
    %v3950 = vadd.f32 0.0, %v3949
    %v3951 = vpop.f32.mrf.mxu0
    %3952 = vmatprep.mubr.f32.mxu0 0.0
    %3953 = vmatmul.mubr.f32.gmra.mxu0 %v3871
    %v3954 = vpop.f32.mrf.mxu0
    %v3955 = vadd.f32 0.0, %v3954
    %v3956 = vpop.f32.mrf.mxu0
    %3957 = vdwg.mxu0
    %v3958 = vadd.f32 %v3839, %v3940
    %v3959 = vadd.f32 %v3844, %v3945
    %v3960 = vadd.f32 %v3849, %v3950
    %v3961 = vadd.f32 %v3854, %v3955
    %v3962 = vmul.f32 %v3958, %v2303
    %v3963 = vmul.f32 %v3959, %v2303
    %v3964 = vmul.f32 %v3960, %v2303
    %v3965 = vmul.f32 %v3961, %v2303
    %v3966 = vadd.f32 %v3962, %v2310
    %v3967 = vadd.f32 %v3963, %v2310
    %v3968 = vadd.f32 %v3964, %v2310
    %v3969 = vadd.f32 %v3965, %v2310
    %v3970 = vmax.f32 %v3966, 0.0
    %v3971 = vmax.f32 %v3967, 0.0
    %v3972 = vmax.f32 %v3968, 0.0
    %v3973 = vmax.f32 %v3969, 0.0
    %3974 = vmatprep.subr.mxu0 0.0
    %3975 = vmatpush1.msra.mxu0 0.0
    %3976 = vmatprep.subr.mxu0 0.0
    %3977 = vmatpush1.msra.mxu0 0.0
    %3978 = vmatprep.subr.mxu0 0.0
    %3979 = vmatpush1.msra.mxu0 0.0
    %3980 = vmatprep.subr.mxu0 0.0
    %3981 = vmatpush1.msra.mxu0 0.0
    %3982 = vmatprep.subr.mxu0 0.0
    %3983 = vmatpush1.msra.mxu0 0.0
    %3984 = vmatprep.subr.mxu0 0.0
    %3985 = vmatpush1.msra.mxu0 0.0
    %3986 = vmatprep.subr.mxu0 0.0
    %3987 = vmatpush1.msra.mxu0 0.0
    %3988 = vmatprep.subr.mxu0 0.0
    %3989 = vmatpush1.msra.mxu0 0.0
    %3990 = vmatprep.subr.mxu0 0.0
    %3991 = vmatpush1.msra.mxu0 0.0
    %3992 = vmatprep.subr.mxu0 0.0
    %3993 = vmatpush1.msra.mxu0 0.0
    %3994 = vmatprep.subr.mxu0 0.0
    %3995 = vmatpush1.msra.mxu0 %v2290
    %3996 = vmatprep.subr.mxu0 0.0
    %3997 = vmatpush1.msra.mxu0 %v2289
    %3998 = vmatprep.subr.mxu0 0.0
    %3999 = vmatpush1.msra.mxu0 %v2288
    %4000 = vmatprep.subr.mxu0 0.0
    %4001 = vmatpush1.msra.mxu0 %v2287
    %4002 = vmatprep.subr.mxu0 0.0
    %4003 = vmatpush1.msra.mxu0 %v2286
    %4004 = vmatprep.subr.mxu0 0.0
    %4005 = vmatpush1.msra.mxu0 %v2285
    %4006 = vmatprep.subr.mxu0 0.0
    %4007 = vmatpush2.msra.mxu0 0.0
    %4008 = vmatprep.subr.mxu0 0.0
    %4009 = vmatpush2.msra.mxu0 0.0
    %4010 = vmatprep.subr.mxu0 0.0
    %4011 = vmatpush2.msra.mxu0 0.0
    %4012 = vmatprep.subr.mxu0 0.0
    %4013 = vmatpush2.msra.mxu0 0.0
    %4014 = vmatprep.subr.mxu0 0.0
    %4015 = vmatpush2.msra.mxu0 0.0
    %4016 = vmatprep.subr.mxu0 0.0
    %4017 = vmatpush2.msra.mxu0 0.0
    %4018 = vmatprep.subr.mxu0 0.0
    %4019 = vmatpush2.msra.mxu0 0.0
    %4020 = vmatprep.subr.mxu0 0.0
    %4021 = vmatpush2.msra.mxu0 0.0
    %4022 = vmatprep.subr.mxu0 0.0
    %4023 = vmatpush2.msra.mxu0 0.0
    %4024 = vmatprep.subr.mxu0 0.0
    %4025 = vmatpush2.msra.mxu0 0.0
    %4026 = vmatprep.subr.mxu0 0.0
    %4027 = vmatpush2.msra.mxu0 0.0
    %4028 = vmatprep.subr.mxu0 0.0
    %4029 = vmatpush2.msra.mxu0 0.0
    %4030 = vmatprep.subr.mxu0 0.0
    %4031 = vmatpush2.msra.mxu0 0.0
    %4032 = vmatprep.subr.mxu0 0.0
    %4033 = vmatpush2.msra.mxu0 0.0
    %4034 = vmatprep.subr.mxu0 0.0
    %4035 = vmatpush2.msra.mxu0 0.0
    %4036 = vmatprep.subr.mxu0 0.0
    %4037 = vmatpush2.msra.mxu0 0.0
    %4038 = vmatprep.mubr.f32.mxu0 0.0
    %4039 = vmatmul.mubr.f32.gmra.mxu0 %v3862
    %v4040 = vpop.f32.mrf.mxu0
    %v4041 = vadd.f32 0.0, %v4040
    %v4042 = vpop.f32.mrf.mxu0
    %4043 = vmatprep.mubr.f32.mxu0 0.0
    %4044 = vmatmul.mubr.f32.gmra.mxu0 %v3865
    %v4045 = vpop.f32.mrf.mxu0
    %v4046 = vadd.f32 0.0, %v4045
    %v4047 = vpop.f32.mrf.mxu0
    %4048 = vmatprep.mubr.f32.mxu0 0.0
    %4049 = vmatmul.mubr.f32.gmra.mxu0 %v3868
    %v4050 = vpop.f32.mrf.mxu0
    %v4051 = vadd.f32 0.0, %v4050
    %v4052 = vpop.f32.mrf.mxu0
    %4053 = vmatprep.mubr.f32.mxu0 0.0
    %4054 = vmatmul.mubr.f32.gmra.mxu0 %v3871
    %v4055 = vpop.f32.mrf.mxu0
    %v4056 = vadd.f32 0.0, %v4055
    %v4057 = vpop.f32.mrf.mxu0
    %4058 = vdwg.mxu0
    %4059 = vmatprep.subr.mxu0 0.0
    %4060 = vmatpush1.msra.mxu0 0.0
    %4061 = vmatprep.subr.mxu0 0.0
    %4062 = vmatpush1.msra.mxu0 0.0
    %4063 = vmatprep.subr.mxu0 0.0
    %4064 = vmatpush1.msra.mxu0 0.0
    %4065 = vmatprep.subr.mxu0 0.0
    %4066 = vmatpush1.msra.mxu0 0.0
    %4067 = vmatprep.subr.mxu0 0.0
    %4068 = vmatpush1.msra.mxu0 0.0
    %4069 = vmatprep.subr.mxu0 0.0
    %4070 = vmatpush1.msra.mxu0 0.0
    %4071 = vmatprep.subr.mxu0 0.0
    %4072 = vmatpush1.msra.mxu0 0.0
    %4073 = vmatprep.subr.mxu0 0.0
    %4074 = vmatpush1.msra.mxu0 0.0
    %4075 = vmatprep.subr.mxu0 0.0
    %4076 = vmatpush1.msra.mxu0 0.0
    %4077 = vmatprep.subr.mxu0 0.0
    %4078 = vmatpush1.msra.mxu0 0.0
    %4079 = vmatprep.subr.mxu0 0.0
    %4080 = vmatpush1.msra.mxu0 %v2283
    %4081 = vmatprep.subr.mxu0 0.0
    %4082 = vmatpush1.msra.mxu0 %v2282
    %4083 = vmatprep.subr.mxu0 0.0
    %4084 = vmatpush1.msra.mxu0 %v2281
    %4085 = vmatprep.subr.mxu0 0.0
    %4086 = vmatpush1.msra.mxu0 %v2280
    %4087 = vmatprep.subr.mxu0 0.0
    %4088 = vmatpush1.msra.mxu0 %v2279
    %4089 = vmatprep.subr.mxu0 0.0
    %4090 = vmatpush1.msra.mxu0 %v2278
    %4091 = vmatprep.subr.mxu0 0.0
    %4092 = vmatpush2.msra.mxu0 0.0
    %4093 = vmatprep.subr.mxu0 0.0
    %4094 = vmatpush2.msra.mxu0 0.0
    %4095 = vmatprep.subr.mxu0 0.0
    %4096 = vmatpush2.msra.mxu0 0.0
    %4097 = vmatprep.subr.mxu0 0.0
    %4098 = vmatpush2.msra.mxu0 0.0
    %4099 = vmatprep.subr.mxu0 0.0
    %4100 = vmatpush2.msra.mxu0 0.0
    %4101 = vmatprep.subr.mxu0 0.0
    %4102 = vmatpush2.msra.mxu0 0.0
    %4103 = vmatprep.subr.mxu0 0.0
    %4104 = vmatpush2.msra.mxu0 0.0
    %4105 = vmatprep.subr.mxu0 0.0
    %4106 = vmatpush2.msra.mxu0 0.0
    %4107 = vmatprep.subr.mxu0 0.0
    %4108 = vmatpush2.msra.mxu0 0.0
    %4109 = vmatprep.subr.mxu0 0.0
    %4110 = vmatpush2.msra.mxu0 0.0
    %4111 = vmatprep.subr.mxu0 0.0
    %4112 = vmatpush2.msra.mxu0 0.0
    %4113 = vmatprep.subr.mxu0 0.0
    %4114 = vmatpush2.msra.mxu0 0.0
    %4115 = vmatprep.subr.mxu0 0.0
    %4116 = vmatpush2.msra.mxu0 0.0
    %4117 = vmatprep.subr.mxu0 0.0
    %4118 = vmatpush2.msra.mxu0 0.0
    %4119 = vmatprep.subr.mxu0 0.0
    %4120 = vmatpush2.msra.mxu0 0.0
    %4121 = vmatprep.subr.mxu0 0.0
    %4122 = vmatpush2.msra.mxu0 0.0
    %4123 = vmatprep.mubr.f32.mxu0 0.0
    %4124 = vmatmul.mubr.f32.gmra.mxu0 %v3664
    %v4125 = vpop.f32.mrf.mxu0
    %v4126 = vadd.f32 %v4041, %v4125
    %v4127 = vpop.f32.mrf.mxu0
    %4128 = vmatprep.mubr.f32.mxu0 0.0
    %4129 = vmatmul.mubr.f32.gmra.mxu0 %v3667
    %v4130 = vpop.f32.mrf.mxu0
    %v4131 = vadd.f32 %v4046, %v4130
    %v4132 = vpop.f32.mrf.mxu0
    %4133 = vmatprep.mubr.f32.mxu0 0.0
    %4134 = vmatmul.mubr.f32.gmra.mxu0 %v3670
    %v4135 = vpop.f32.mrf.mxu0
    %v4136 = vadd.f32 %v4051, %v4135
    %v4137 = vpop.f32.mrf.mxu0
    %4138 = vmatprep.mubr.f32.mxu0 0.0
    %4139 = vmatmul.mubr.f32.gmra.mxu0 %v3673
    %v4140 = vpop.f32.mrf.mxu0
    %v4141 = vadd.f32 %v4056, %v4140
    %v4142 = vpop.f32.mrf.mxu0
    %4143 = vdwg.mxu0
    %v4144 = vld [vmem:[%s2156 + $0x1] sm:$0xff]
    %v4145 = vld [vmem:[%s2156 + $0x9] sm:$0xff]
    %v4146 = vld [vmem:[%s2156 + $0x11] sm:$0xff]
    %v4147 = vld [vmem:[%s2156 + $0x19] sm:$0xf]
    %v4149 = vsel %vm51, %v4144, 0
    %v4152 = vsel %vm51, %v4145, 0
    %v4155 = vsel %vm51, %v4146, 0
    %v4158 = vsel %vm51, %v4147, 0
    %4160 = vmatprep.subr.mxu0 0.0
    %4161 = vmatpush1.msra.mxu0 0.0
    %4162 = vmatprep.subr.mxu0 0.0
    %4163 = vmatpush1.msra.mxu0 0.0
    %4164 = vmatprep.subr.mxu0 0.0
    %4165 = vmatpush1.msra.mxu0 0.0
    %4166 = vmatprep.subr.mxu0 0.0
    %4167 = vmatpush1.msra.mxu0 0.0
    %4168 = vmatprep.subr.mxu0 0.0
    %4169 = vmatpush1.msra.mxu0 0.0
    %4170 = vmatprep.subr.mxu0 0.0
    %4171 = vmatpush1.msra.mxu0 0.0
    %4172 = vmatprep.subr.mxu0 0.0
    %4173 = vmatpush1.msra.mxu0 0.0
    %4174 = vmatprep.subr.mxu0 0.0
    %4175 = vmatpush1.msra.mxu0 0.0
    %4176 = vmatprep.subr.mxu0 0.0
    %4177 = vmatpush1.msra.mxu0 0.0
    %4178 = vmatprep.subr.mxu0 0.0
    %4179 = vmatpush1.msra.mxu0 0.0
    %4180 = vmatprep.subr.mxu0 0.0
    %4181 = vmatpush1.msra.mxu0 %v2297
    %4182 = vmatprep.subr.mxu0 0.0
    %4183 = vmatpush1.msra.mxu0 %v2296
    %4184 = vmatprep.subr.mxu0 0.0
    %4185 = vmatpush1.msra.mxu0 %v2295
    %4186 = vmatprep.subr.mxu0 0.0
    %4187 = vmatpush1.msra.mxu0 %v2294
    %4188 = vmatprep.subr.mxu0 0.0
    %4189 = vmatpush1.msra.mxu0 %v2293
    %4190 = vmatprep.subr.mxu0 0.0
    %4191 = vmatpush1.msra.mxu0 %v2292
    %4192 = vmatprep.subr.mxu0 0.0
    %4193 = vmatpush2.msra.mxu0 0.0
    %4194 = vmatprep.subr.mxu0 0.0
    %4195 = vmatpush2.msra.mxu0 0.0
    %4196 = vmatprep.subr.mxu0 0.0
    %4197 = vmatpush2.msra.mxu0 0.0
    %4198 = vmatprep.subr.mxu0 0.0
    %4199 = vmatpush2.msra.mxu0 0.0
    %4200 = vmatprep.subr.mxu0 0.0
    %4201 = vmatpush2.msra.mxu0 0.0
    %4202 = vmatprep.subr.mxu0 0.0
    %4203 = vmatpush2.msra.mxu0 0.0
    %4204 = vmatprep.subr.mxu0 0.0
    %4205 = vmatpush2.msra.mxu0 0.0
    %4206 = vmatprep.subr.mxu0 0.0
    %4207 = vmatpush2.msra.mxu0 0.0
    %4208 = vmatprep.subr.mxu0 0.0
    %4209 = vmatpush2.msra.mxu0 0.0
    %4210 = vmatprep.subr.mxu0 0.0
    %4211 = vmatpush2.msra.mxu0 0.0
    %4212 = vmatprep.subr.mxu0 0.0
    %4213 = vmatpush2.msra.mxu0 0.0
    %4214 = vmatprep.subr.mxu0 0.0
    %4215 = vmatpush2.msra.mxu0 0.0
    %4216 = vmatprep.subr.mxu0 0.0
    %4217 = vmatpush2.msra.mxu0 0.0
    %4218 = vmatprep.subr.mxu0 0.0
    %4219 = vmatpush2.msra.mxu0 0.0
    %4220 = vmatprep.subr.mxu0 0.0
    %4221 = vmatpush2.msra.mxu0 0.0
    %4222 = vmatprep.subr.mxu0 0.0
    %4223 = vmatpush2.msra.mxu0 0.0
    %4224 = vmatprep.mubr.f32.mxu0 0.0
    %4225 = vmatmul.mubr.f32.gmra.mxu0 %v4149
    %v4226 = vpop.f32.mrf.mxu0
    %v4227 = vadd.f32 0.0, %v4226
    %v4228 = vpop.f32.mrf.mxu0
    %4229 = vmatprep.mubr.f32.mxu0 0.0
    %4230 = vmatmul.mubr.f32.gmra.mxu0 %v4152
    %v4231 = vpop.f32.mrf.mxu0
    %v4232 = vadd.f32 0.0, %v4231
    %v4233 = vpop.f32.mrf.mxu0
    %4234 = vmatprep.mubr.f32.mxu0 0.0
    %4235 = vmatmul.mubr.f32.gmra.mxu0 %v4155
    %v4236 = vpop.f32.mrf.mxu0
    %v4237 = vadd.f32 0.0, %v4236
    %v4238 = vpop.f32.mrf.mxu0
    %4239 = vmatprep.mubr.f32.mxu0 0.0
    %4240 = vmatmul.mubr.f32.gmra.mxu0 %v4158
    %v4241 = vpop.f32.mrf.mxu0
    %v4242 = vadd.f32 0.0, %v4241
    %v4243 = vpop.f32.mrf.mxu0
    %4244 = vdwg.mxu0
    %v4245 = vadd.f32 %v4126, %v4227
    %v4246 = vadd.f32 %v4131, %v4232
    %v4247 = vadd.f32 %v4136, %v4237
    %v4248 = vadd.f32 %v4141, %v4242
    %v4249 = vmul.f32 %v4245, %v2303
    %v4250 = vmul.f32 %v4246, %v2303
    %v4251 = vmul.f32 %v4247, %v2303
    %v4252 = vmul.f32 %v4248, %v2303
    %v4253 = vadd.f32 %v4249, %v2310
    %v4254 = vadd.f32 %v4250, %v2310
    %v4255 = vadd.f32 %v4251, %v2310
    %v4256 = vadd.f32 %v4252, %v2310
    %v4257 = vmax.f32 %v4253, 0.0
    %v4258 = vmax.f32 %v4254, 0.0
    %v4259 = vmax.f32 %v4255, 0.0
    %v4260 = vmax.f32 %v4256, 0.0
    %v4261 = vmax.f32 %v3970, %v4257
    %v4262 = vmax.f32 %v3971, %v4258
    %v4263 = vmax.f32 %v3972, %v4259
    %v4264 = vmax.f32 %v3973, %v4260
    %4265 = vst.msk [vmem:[#allocation6] sm:$0xff] %vm2974, %v4261
    %4266 = vst.msk [vmem:[#allocation6 + $0x8] sm:$0xff] %vm2974, %v4262
    %4267 = vst.msk [vmem:[#allocation6 + $0x10] sm:$0xff] %vm2974, %v4263
    %4268 = vst.msk [vmem:[#allocation6 + $0x18] sm:$0xf] %vm2978, %v4264
    %v4269 = vld [vmem:[#allocation6] ss:$2 sm:$0xff]
    %v4270 = vld [vmem:[%s1647] ss:$2 sm:$0x3f]
    %v4271 = vld [vmem:[%s1653] ss:$2 sm:$0xff]
    %v4272 = vld [vmem:[%s1655] ss:$2 sm:$0x3f]
    %v4273 = vmax.f32 %v4269, %v4271
    %v4274 = vmax.f32 %v4270, %v4272
    %s4275 = scalar_lea.vmem [#allocation4], 80
    %4276 = vst.msk [vmem:[%s4275 + $0x2] sm:$0xff] %vm2974, %v4273
    %4277 = vst.msk [vmem:[%s4275 + $0xa] sm:$0x3f] %vm2988, %v4274
    %4280 = vrot.lane.b32.xlu0 %v4273, 32
    %v4281 = vpop.permute.xlu0 %4280
    %4282 = vrot.lane.b32.xlu0 %v4274, 32
    %v4283 = vpop.permute.xlu0 %4282
    %4286 = vst.msk [vmem:[%s4275 + $0x1] sm:$0xff] %vm2998, %v4281
    %4287 = vst.msk [vmem:[%s4275 + $0x9] sm:$0x3f] %vm3000, %v4283
    %4288 = vrot.lane.b32.xlu0 %v4273, 64
    %v4289 = vpop.permute.xlu0 %4288
    %4290 = vrot.lane.b32.xlu0 %v4274, 64
    %v4291 = vpop.permute.xlu0 %4290
    %4294 = vst.msk [vmem:[%s4275] sm:$0xff] %vm3008, %v4289
    %4295 = vst.msk [vmem:[%s4275 + $0x8] sm:$0x3f] %vm3010, %v4291
    %v4296 = vld [vmem:[%s2075 + $0x1] sm:$0xff]
    %v4297 = vld [vmem:[%s2075 + $0x9] sm:$0xff]
    %v4298 = vld [vmem:[%s2075 + $0x11] sm:$0xff]
    %v4299 = vld [vmem:[%s2075 + $0x19] sm:$0xf]
    %v4300 = vld [vmem:[%s2156 + $0x1] sm:$0xff]
    %v4301 = vld [vmem:[%s2156 + $0x9] sm:$0xff]
    %v4302 = vld [vmem:[%s2156 + $0x11] sm:$0xff]
    %v4303 = vld [vmem:[%s2156 + $0x19] sm:$0xf]
    %v4305 = vsel %vm51, %v4300, 0
    %v4308 = vsel %vm51, %v4301, 0
    %v4311 = vsel %vm51, %v4302, 0
    %v4314 = vsel %vm51, %v4303, 0
    %4316 = vmatprep.subr.mxu0 0.0
    %4317 = vmatpush1.msra.mxu0 0.0
    %4318 = vmatprep.subr.mxu0 0.0
    %4319 = vmatpush1.msra.mxu0 0.0
    %4320 = vmatprep.subr.mxu0 0.0
    %4321 = vmatpush1.msra.mxu0 0.0
    %4322 = vmatprep.subr.mxu0 0.0
    %4323 = vmatpush1.msra.mxu0 0.0
    %4324 = vmatprep.subr.mxu0 0.0
    %4325 = vmatpush1.msra.mxu0 0.0
    %4326 = vmatprep.subr.mxu0 0.0
    %4327 = vmatpush1.msra.mxu0 0.0
    %4328 = vmatprep.subr.mxu0 0.0
    %4329 = vmatpush1.msra.mxu0 0.0
    %4330 = vmatprep.subr.mxu0 0.0
    %4331 = vmatpush1.msra.mxu0 0.0
    %4332 = vmatprep.subr.mxu0 0.0
    %4333 = vmatpush1.msra.mxu0 0.0
    %4334 = vmatprep.subr.mxu0 0.0
    %4335 = vmatpush1.msra.mxu0 0.0
    %4336 = vmatprep.subr.mxu0 0.0
    %4337 = vmatpush1.msra.mxu0 %v2290
    %4338 = vmatprep.subr.mxu0 0.0
    %4339 = vmatpush1.msra.mxu0 %v2289
    %4340 = vmatprep.subr.mxu0 0.0
    %4341 = vmatpush1.msra.mxu0 %v2288
    %4342 = vmatprep.subr.mxu0 0.0
    %4343 = vmatpush1.msra.mxu0 %v2287
    %4344 = vmatprep.subr.mxu0 0.0
    %4345 = vmatpush1.msra.mxu0 %v2286
    %4346 = vmatprep.subr.mxu0 0.0
    %4347 = vmatpush1.msra.mxu0 %v2285
    %4348 = vmatprep.subr.mxu0 0.0
    %4349 = vmatpush2.msra.mxu0 0.0
    %4350 = vmatprep.subr.mxu0 0.0
    %4351 = vmatpush2.msra.mxu0 0.0
    %4352 = vmatprep.subr.mxu0 0.0
    %4353 = vmatpush2.msra.mxu0 0.0
    %4354 = vmatprep.subr.mxu0 0.0
    %4355 = vmatpush2.msra.mxu0 0.0
    %4356 = vmatprep.subr.mxu0 0.0
    %4357 = vmatpush2.msra.mxu0 0.0
    %4358 = vmatprep.subr.mxu0 0.0
    %4359 = vmatpush2.msra.mxu0 0.0
    %4360 = vmatprep.subr.mxu0 0.0
    %4361 = vmatpush2.msra.mxu0 0.0
    %4362 = vmatprep.subr.mxu0 0.0
    %4363 = vmatpush2.msra.mxu0 0.0
    %4364 = vmatprep.subr.mxu0 0.0
    %4365 = vmatpush2.msra.mxu0 0.0
    %4366 = vmatprep.subr.mxu0 0.0
    %4367 = vmatpush2.msra.mxu0 0.0
    %4368 = vmatprep.subr.mxu0 0.0
    %4369 = vmatpush2.msra.mxu0 0.0
    %4370 = vmatprep.subr.mxu0 0.0
    %4371 = vmatpush2.msra.mxu0 0.0
    %4372 = vmatprep.subr.mxu0 0.0
    %4373 = vmatpush2.msra.mxu0 0.0
    %4374 = vmatprep.subr.mxu0 0.0
    %4375 = vmatpush2.msra.mxu0 0.0
    %4376 = vmatprep.subr.mxu0 0.0
    %4377 = vmatpush2.msra.mxu0 0.0
    %4378 = vmatprep.subr.mxu0 0.0
    %4379 = vmatpush2.msra.mxu0 0.0
    %4380 = vmatprep.mubr.f32.mxu0 0.0
    %4381 = vmatmul.mubr.f32.gmra.mxu0 %v4305
    %v4382 = vpop.f32.mrf.mxu0
    %v4383 = vadd.f32 0.0, %v4382
    %v4384 = vpop.f32.mrf.mxu0
    %4385 = vmatprep.mubr.f32.mxu0 0.0
    %4386 = vmatmul.mubr.f32.gmra.mxu0 %v4308
    %v4387 = vpop.f32.mrf.mxu0
    %v4388 = vadd.f32 0.0, %v4387
    %v4389 = vpop.f32.mrf.mxu0
    %4390 = vmatprep.mubr.f32.mxu0 0.0
    %4391 = vmatmul.mubr.f32.gmra.mxu0 %v4311
    %v4392 = vpop.f32.mrf.mxu0
    %v4393 = vadd.f32 0.0, %v4392
    %v4394 = vpop.f32.mrf.mxu0
    %4395 = vmatprep.mubr.f32.mxu0 0.0
    %4396 = vmatmul.mubr.f32.gmra.mxu0 %v4314
    %v4397 = vpop.f32.mrf.mxu0
    %v4398 = vadd.f32 0.0, %v4397
    %v4399 = vpop.f32.mrf.mxu0
    %4400 = vdwg.mxu0
    %v4402 = vsel %vm51, %v4296, 0
    %v4405 = vsel %vm51, %v4297, 0
    %v4408 = vsel %vm51, %v4298, 0
    %v4411 = vsel %vm51, %v4299, 0
    %4413 = vmatprep.subr.mxu0 0.0
    %4414 = vmatpush1.msra.mxu0 0.0
    %4415 = vmatprep.subr.mxu0 0.0
    %4416 = vmatpush1.msra.mxu0 0.0
    %4417 = vmatprep.subr.mxu0 0.0
    %4418 = vmatpush1.msra.mxu0 0.0
    %4419 = vmatprep.subr.mxu0 0.0
    %4420 = vmatpush1.msra.mxu0 0.0
    %4421 = vmatprep.subr.mxu0 0.0
    %4422 = vmatpush1.msra.mxu0 0.0
    %4423 = vmatprep.subr.mxu0 0.0
    %4424 = vmatpush1.msra.mxu0 0.0
    %4425 = vmatprep.subr.mxu0 0.0
    %4426 = vmatpush1.msra.mxu0 0.0
    %4427 = vmatprep.subr.mxu0 0.0
    %4428 = vmatpush1.msra.mxu0 0.0
    %4429 = vmatprep.subr.mxu0 0.0
    %4430 = vmatpush1.msra.mxu0 0.0
    %4431 = vmatprep.subr.mxu0 0.0
    %4432 = vmatpush1.msra.mxu0 0.0
    %4433 = vmatprep.subr.mxu0 0.0
    %4434 = vmatpush1.msra.mxu0 %v2283
    %4435 = vmatprep.subr.mxu0 0.0
    %4436 = vmatpush1.msra.mxu0 %v2282
    %4437 = vmatprep.subr.mxu0 0.0
    %4438 = vmatpush1.msra.mxu0 %v2281
    %4439 = vmatprep.subr.mxu0 0.0
    %4440 = vmatpush1.msra.mxu0 %v2280
    %4441 = vmatprep.subr.mxu0 0.0
    %4442 = vmatpush1.msra.mxu0 %v2279
    %4443 = vmatprep.subr.mxu0 0.0
    %4444 = vmatpush1.msra.mxu0 %v2278
    %4445 = vmatprep.subr.mxu0 0.0
    %4446 = vmatpush2.msra.mxu0 0.0
    %4447 = vmatprep.subr.mxu0 0.0
    %4448 = vmatpush2.msra.mxu0 0.0
    %4449 = vmatprep.subr.mxu0 0.0
    %4450 = vmatpush2.msra.mxu0 0.0
    %4451 = vmatprep.subr.mxu0 0.0
    %4452 = vmatpush2.msra.mxu0 0.0
    %4453 = vmatprep.subr.mxu0 0.0
    %4454 = vmatpush2.msra.mxu0 0.0
    %4455 = vmatprep.subr.mxu0 0.0
    %4456 = vmatpush2.msra.mxu0 0.0
    %4457 = vmatprep.subr.mxu0 0.0
    %4458 = vmatpush2.msra.mxu0 0.0
    %4459 = vmatprep.subr.mxu0 0.0
    %4460 = vmatpush2.msra.mxu0 0.0
    %4461 = vmatprep.subr.mxu0 0.0
    %4462 = vmatpush2.msra.mxu0 0.0
    %4463 = vmatprep.subr.mxu0 0.0
    %4464 = vmatpush2.msra.mxu0 0.0
    %4465 = vmatprep.subr.mxu0 0.0
    %4466 = vmatpush2.msra.mxu0 0.0
    %4467 = vmatprep.subr.mxu0 0.0
    %4468 = vmatpush2.msra.mxu0 0.0
    %4469 = vmatprep.subr.mxu0 0.0
    %4470 = vmatpush2.msra.mxu0 0.0
    %4471 = vmatprep.subr.mxu0 0.0
    %4472 = vmatpush2.msra.mxu0 0.0
    %4473 = vmatprep.subr.mxu0 0.0
    %4474 = vmatpush2.msra.mxu0 0.0
    %4475 = vmatprep.subr.mxu0 0.0
    %4476 = vmatpush2.msra.mxu0 0.0
    %4477 = vmatprep.mubr.f32.mxu0 0.0
    %4478 = vmatmul.mubr.f32.gmra.mxu0 %v4402
    %v4479 = vpop.f32.mrf.mxu0
    %v4480 = vadd.f32 %v4383, %v4479
    %v4481 = vpop.f32.mrf.mxu0
    %4482 = vmatprep.mubr.f32.mxu0 0.0
    %4483 = vmatmul.mubr.f32.gmra.mxu0 %v4405
    %v4484 = vpop.f32.mrf.mxu0
    %v4485 = vadd.f32 %v4388, %v4484
    %v4486 = vpop.f32.mrf.mxu0
    %4487 = vmatprep.mubr.f32.mxu0 0.0
    %4488 = vmatmul.mubr.f32.gmra.mxu0 %v4408
    %v4489 = vpop.f32.mrf.mxu0
    %v4490 = vadd.f32 %v4393, %v4489
    %v4491 = vpop.f32.mrf.mxu0
    %4492 = vmatprep.mubr.f32.mxu0 0.0
    %4493 = vmatmul.mubr.f32.gmra.mxu0 %v4411
    %v4494 = vpop.f32.mrf.mxu0
    %v4495 = vadd.f32 %v4398, %v4494
    %v4496 = vpop.f32.mrf.mxu0
    %4497 = vdwg.mxu0
    %v4498 = vld [vmem:[%s2237 + $0x1] sm:$0xff]
    %v4499 = vld [vmem:[%s2237 + $0x9] sm:$0xff]
    %v4500 = vld [vmem:[%s2237 + $0x11] sm:$0xff]
    %v4501 = vld [vmem:[%s2237 + $0x19] sm:$0xf]
    %v4503 = vsel %vm51, %v4498, 0
    %v4506 = vsel %vm51, %v4499, 0
    %v4509 = vsel %vm51, %v4500, 0
    %v4512 = vsel %vm51, %v4501, 0
    %4514 = vmatprep.subr.mxu0 0.0
    %4515 = vmatpush1.msra.mxu0 0.0
    %4516 = vmatprep.subr.mxu0 0.0
    %4517 = vmatpush1.msra.mxu0 0.0
    %4518 = vmatprep.subr.mxu0 0.0
    %4519 = vmatpush1.msra.mxu0 0.0
    %4520 = vmatprep.subr.mxu0 0.0
    %4521 = vmatpush1.msra.mxu0 0.0
    %4522 = vmatprep.subr.mxu0 0.0
    %4523 = vmatpush1.msra.mxu0 0.0
    %4524 = vmatprep.subr.mxu0 0.0
    %4525 = vmatpush1.msra.mxu0 0.0
    %4526 = vmatprep.subr.mxu0 0.0
    %4527 = vmatpush1.msra.mxu0 0.0
    %4528 = vmatprep.subr.mxu0 0.0
    %4529 = vmatpush1.msra.mxu0 0.0
    %4530 = vmatprep.subr.mxu0 0.0
    %4531 = vmatpush1.msra.mxu0 0.0
    %4532 = vmatprep.subr.mxu0 0.0
    %4533 = vmatpush1.msra.mxu0 0.0
    %4534 = vmatprep.subr.mxu0 0.0
    %4535 = vmatpush1.msra.mxu0 %v2297
    %4536 = vmatprep.subr.mxu0 0.0
    %4537 = vmatpush1.msra.mxu0 %v2296
    %4538 = vmatprep.subr.mxu0 0.0
    %4539 = vmatpush1.msra.mxu0 %v2295
    %4540 = vmatprep.subr.mxu0 0.0
    %4541 = vmatpush1.msra.mxu0 %v2294
    %4542 = vmatprep.subr.mxu0 0.0
    %4543 = vmatpush1.msra.mxu0 %v2293
    %4544 = vmatprep.subr.mxu0 0.0
    %4545 = vmatpush1.msra.mxu0 %v2292
    %4546 = vmatprep.subr.mxu0 0.0
    %4547 = vmatpush2.msra.mxu0 0.0
    %4548 = vmatprep.subr.mxu0 0.0
    %4549 = vmatpush2.msra.mxu0 0.0
    %4550 = vmatprep.subr.mxu0 0.0
    %4551 = vmatpush2.msra.mxu0 0.0
    %4552 = vmatprep.subr.mxu0 0.0
    %4553 = vmatpush2.msra.mxu0 0.0
    %4554 = vmatprep.subr.mxu0 0.0
    %4555 = vmatpush2.msra.mxu0 0.0
    %4556 = vmatprep.subr.mxu0 0.0
    %4557 = vmatpush2.msra.mxu0 0.0
    %4558 = vmatprep.subr.mxu0 0.0
    %4559 = vmatpush2.msra.mxu0 0.0
    %4560 = vmatprep.subr.mxu0 0.0
    %4561 = vmatpush2.msra.mxu0 0.0
    %4562 = vmatprep.subr.mxu0 0.0
    %4563 = vmatpush2.msra.mxu0 0.0
    %4564 = vmatprep.subr.mxu0 0.0
    %4565 = vmatpush2.msra.mxu0 0.0
    %4566 = vmatprep.subr.mxu0 0.0
    %4567 = vmatpush2.msra.mxu0 0.0
    %4568 = vmatprep.subr.mxu0 0.0
    %4569 = vmatpush2.msra.mxu0 0.0
    %4570 = vmatprep.subr.mxu0 0.0
    %4571 = vmatpush2.msra.mxu0 0.0
    %4572 = vmatprep.subr.mxu0 0.0
    %4573 = vmatpush2.msra.mxu0 0.0
    %4574 = vmatprep.subr.mxu0 0.0
    %4575 = vmatpush2.msra.mxu0 0.0
    %4576 = vmatprep.subr.mxu0 0.0
    %4577 = vmatpush2.msra.mxu0 0.0
    %4578 = vmatprep.mubr.f32.mxu0 0.0
    %4579 = vmatmul.mubr.f32.gmra.mxu0 %v4503
    %v4580 = vpop.f32.mrf.mxu0
    %v4581 = vadd.f32 0.0, %v4580
    %v4582 = vpop.f32.mrf.mxu0
    %4583 = vmatprep.mubr.f32.mxu0 0.0
    %4584 = vmatmul.mubr.f32.gmra.mxu0 %v4506
    %v4585 = vpop.f32.mrf.mxu0
    %v4586 = vadd.f32 0.0, %v4585
    %v4587 = vpop.f32.mrf.mxu0
    %4588 = vmatprep.mubr.f32.mxu0 0.0
    %4589 = vmatmul.mubr.f32.gmra.mxu0 %v4509
    %v4590 = vpop.f32.mrf.mxu0
    %v4591 = vadd.f32 0.0, %v4590
    %v4592 = vpop.f32.mrf.mxu0
    %4593 = vmatprep.mubr.f32.mxu0 0.0
    %4594 = vmatmul.mubr.f32.gmra.mxu0 %v4512
    %v4595 = vpop.f32.mrf.mxu0
    %v4596 = vadd.f32 0.0, %v4595
    %v4597 = vpop.f32.mrf.mxu0
    %4598 = vdwg.mxu0
    %v4599 = vadd.f32 %v4480, %v4581
    %v4600 = vadd.f32 %v4485, %v4586
    %v4601 = vadd.f32 %v4490, %v4591
    %v4602 = vadd.f32 %v4495, %v4596
    %v4603 = vmul.f32 %v4599, %v2303
    %v4604 = vmul.f32 %v4600, %v2303
    %v4605 = vmul.f32 %v4601, %v2303
    %v4606 = vmul.f32 %v4602, %v2303
    %v4607 = vadd.f32 %v4603, %v2310
    %v4608 = vadd.f32 %v4604, %v2310
    %v4609 = vadd.f32 %v4605, %v2310
    %v4610 = vadd.f32 %v4606, %v2310
    %v4611 = vmax.f32 %v4607, 0.0
    %v4612 = vmax.f32 %v4608, 0.0
    %v4613 = vmax.f32 %v4609, 0.0
    %v4614 = vmax.f32 %v4610, 0.0
    %4615 = vmatprep.subr.mxu0 0.0
    %4616 = vmatpush1.msra.mxu0 0.0
    %4617 = vmatprep.subr.mxu0 0.0
    %4618 = vmatpush1.msra.mxu0 0.0
    %4619 = vmatprep.subr.mxu0 0.0
    %4620 = vmatpush1.msra.mxu0 0.0
    %4621 = vmatprep.subr.mxu0 0.0
    %4622 = vmatpush1.msra.mxu0 0.0
    %4623 = vmatprep.subr.mxu0 0.0
    %4624 = vmatpush1.msra.mxu0 0.0
    %4625 = vmatprep.subr.mxu0 0.0
    %4626 = vmatpush1.msra.mxu0 0.0
    %4627 = vmatprep.subr.mxu0 0.0
    %4628 = vmatpush1.msra.mxu0 0.0
    %4629 = vmatprep.subr.mxu0 0.0
    %4630 = vmatpush1.msra.mxu0 0.0
    %4631 = vmatprep.subr.mxu0 0.0
    %4632 = vmatpush1.msra.mxu0 0.0
    %4633 = vmatprep.subr.mxu0 0.0
    %4634 = vmatpush1.msra.mxu0 0.0
    %4635 = vmatprep.subr.mxu0 0.0
    %4636 = vmatpush1.msra.mxu0 %v2290
    %4637 = vmatprep.subr.mxu0 0.0
    %4638 = vmatpush1.msra.mxu0 %v2289
    %4639 = vmatprep.subr.mxu0 0.0
    %4640 = vmatpush1.msra.mxu0 %v2288
    %4641 = vmatprep.subr.mxu0 0.0
    %4642 = vmatpush1.msra.mxu0 %v2287
    %4643 = vmatprep.subr.mxu0 0.0
    %4644 = vmatpush1.msra.mxu0 %v2286
    %4645 = vmatprep.subr.mxu0 0.0
    %4646 = vmatpush1.msra.mxu0 %v2285
    %4647 = vmatprep.subr.mxu0 0.0
    %4648 = vmatpush2.msra.mxu0 0.0
    %4649 = vmatprep.subr.mxu0 0.0
    %4650 = vmatpush2.msra.mxu0 0.0
    %4651 = vmatprep.subr.mxu0 0.0
    %4652 = vmatpush2.msra.mxu0 0.0
    %4653 = vmatprep.subr.mxu0 0.0
    %4654 = vmatpush2.msra.mxu0 0.0
    %4655 = vmatprep.subr.mxu0 0.0
    %4656 = vmatpush2.msra.mxu0 0.0
    %4657 = vmatprep.subr.mxu0 0.0
    %4658 = vmatpush2.msra.mxu0 0.0
    %4659 = vmatprep.subr.mxu0 0.0
    %4660 = vmatpush2.msra.mxu0 0.0
    %4661 = vmatprep.subr.mxu0 0.0
    %4662 = vmatpush2.msra.mxu0 0.0
    %4663 = vmatprep.subr.mxu0 0.0
    %4664 = vmatpush2.msra.mxu0 0.0
    %4665 = vmatprep.subr.mxu0 0.0
    %4666 = vmatpush2.msra.mxu0 0.0
    %4667 = vmatprep.subr.mxu0 0.0
    %4668 = vmatpush2.msra.mxu0 0.0
    %4669 = vmatprep.subr.mxu0 0.0
    %4670 = vmatpush2.msra.mxu0 0.0
    %4671 = vmatprep.subr.mxu0 0.0
    %4672 = vmatpush2.msra.mxu0 0.0
    %4673 = vmatprep.subr.mxu0 0.0
    %4674 = vmatpush2.msra.mxu0 0.0
    %4675 = vmatprep.subr.mxu0 0.0
    %4676 = vmatpush2.msra.mxu0 0.0
    %4677 = vmatprep.subr.mxu0 0.0
    %4678 = vmatpush2.msra.mxu0 0.0
    %4679 = vmatprep.mubr.f32.mxu0 0.0
    %4680 = vmatmul.mubr.f32.gmra.mxu0 %v4503
    %v4681 = vpop.f32.mrf.mxu0
    %v4682 = vadd.f32 0.0, %v4681
    %v4683 = vpop.f32.mrf.mxu0
    %4684 = vmatprep.mubr.f32.mxu0 0.0
    %4685 = vmatmul.mubr.f32.gmra.mxu0 %v4506
    %v4686 = vpop.f32.mrf.mxu0
    %v4687 = vadd.f32 0.0, %v4686
    %v4688 = vpop.f32.mrf.mxu0
    %4689 = vmatprep.mubr.f32.mxu0 0.0
    %4690 = vmatmul.mubr.f32.gmra.mxu0 %v4509
    %v4691 = vpop.f32.mrf.mxu0
    %v4692 = vadd.f32 0.0, %v4691
    %v4693 = vpop.f32.mrf.mxu0
    %4694 = vmatprep.mubr.f32.mxu0 0.0
    %4695 = vmatmul.mubr.f32.gmra.mxu0 %v4512
    %v4696 = vpop.f32.mrf.mxu0
    %v4697 = vadd.f32 0.0, %v4696
    %v4698 = vpop.f32.mrf.mxu0
    %4699 = vdwg.mxu0
    %4700 = vmatprep.subr.mxu0 0.0
    %4701 = vmatpush1.msra.mxu0 0.0
    %4702 = vmatprep.subr.mxu0 0.0
    %4703 = vmatpush1.msra.mxu0 0.0
    %4704 = vmatprep.subr.mxu0 0.0
    %4705 = vmatpush1.msra.mxu0 0.0
    %4706 = vmatprep.subr.mxu0 0.0
    %4707 = vmatpush1.msra.mxu0 0.0
    %4708 = vmatprep.subr.mxu0 0.0
    %4709 = vmatpush1.msra.mxu0 0.0
    %4710 = vmatprep.subr.mxu0 0.0
    %4711 = vmatpush1.msra.mxu0 0.0
    %4712 = vmatprep.subr.mxu0 0.0
    %4713 = vmatpush1.msra.mxu0 0.0
    %4714 = vmatprep.subr.mxu0 0.0
    %4715 = vmatpush1.msra.mxu0 0.0
    %4716 = vmatprep.subr.mxu0 0.0
    %4717 = vmatpush1.msra.mxu0 0.0
    %4718 = vmatprep.subr.mxu0 0.0
    %4719 = vmatpush1.msra.mxu0 0.0
    %4720 = vmatprep.subr.mxu0 0.0
    %4721 = vmatpush1.msra.mxu0 %v2283
    %4722 = vmatprep.subr.mxu0 0.0
    %4723 = vmatpush1.msra.mxu0 %v2282
    %4724 = vmatprep.subr.mxu0 0.0
    %4725 = vmatpush1.msra.mxu0 %v2281
    %4726 = vmatprep.subr.mxu0 0.0
    %4727 = vmatpush1.msra.mxu0 %v2280
    %4728 = vmatprep.subr.mxu0 0.0
    %4729 = vmatpush1.msra.mxu0 %v2279
    %4730 = vmatprep.subr.mxu0 0.0
    %4731 = vmatpush1.msra.mxu0 %v2278
    %4732 = vmatprep.subr.mxu0 0.0
    %4733 = vmatpush2.msra.mxu0 0.0
    %4734 = vmatprep.subr.mxu0 0.0
    %4735 = vmatpush2.msra.mxu0 0.0
    %4736 = vmatprep.subr.mxu0 0.0
    %4737 = vmatpush2.msra.mxu0 0.0
    %4738 = vmatprep.subr.mxu0 0.0
    %4739 = vmatpush2.msra.mxu0 0.0
    %4740 = vmatprep.subr.mxu0 0.0
    %4741 = vmatpush2.msra.mxu0 0.0
    %4742 = vmatprep.subr.mxu0 0.0
    %4743 = vmatpush2.msra.mxu0 0.0
    %4744 = vmatprep.subr.mxu0 0.0
    %4745 = vmatpush2.msra.mxu0 0.0
    %4746 = vmatprep.subr.mxu0 0.0
    %4747 = vmatpush2.msra.mxu0 0.0
    %4748 = vmatprep.subr.mxu0 0.0
    %4749 = vmatpush2.msra.mxu0 0.0
    %4750 = vmatprep.subr.mxu0 0.0
    %4751 = vmatpush2.msra.mxu0 0.0
    %4752 = vmatprep.subr.mxu0 0.0
    %4753 = vmatpush2.msra.mxu0 0.0
    %4754 = vmatprep.subr.mxu0 0.0
    %4755 = vmatpush2.msra.mxu0 0.0
    %4756 = vmatprep.subr.mxu0 0.0
    %4757 = vmatpush2.msra.mxu0 0.0
    %4758 = vmatprep.subr.mxu0 0.0
    %4759 = vmatpush2.msra.mxu0 0.0
    %4760 = vmatprep.subr.mxu0 0.0
    %4761 = vmatpush2.msra.mxu0 0.0
    %4762 = vmatprep.subr.mxu0 0.0
    %4763 = vmatpush2.msra.mxu0 0.0
    %4764 = vmatprep.mubr.f32.mxu0 0.0
    %4765 = vmatmul.mubr.f32.gmra.mxu0 %v4305
    %v4766 = vpop.f32.mrf.mxu0
    %v4767 = vadd.f32 %v4682, %v4766
    %v4768 = vpop.f32.mrf.mxu0
    %4769 = vmatprep.mubr.f32.mxu0 0.0
    %4770 = vmatmul.mubr.f32.gmra.mxu0 %v4308
    %v4771 = vpop.f32.mrf.mxu0
    %v4772 = vadd.f32 %v4687, %v4771
    %v4773 = vpop.f32.mrf.mxu0
    %4774 = vmatprep.mubr.f32.mxu0 0.0
    %4775 = vmatmul.mubr.f32.gmra.mxu0 %v4311
    %v4776 = vpop.f32.mrf.mxu0
    %v4777 = vadd.f32 %v4692, %v4776
    %v4778 = vpop.f32.mrf.mxu0
    %4779 = vmatprep.mubr.f32.mxu0 0.0
    %4780 = vmatmul.mubr.f32.gmra.mxu0 %v4314
    %v4781 = vpop.f32.mrf.mxu0
    %v4782 = vadd.f32 %v4697, %v4781
    %v4783 = vpop.f32.mrf.mxu0
    %4784 = vdwg.mxu0
    %s4785 = scalar_lea.vmem [#allocation3], 352
    %v4786 = vld [vmem:[%s4785 + $0x1] sm:$0xff]
    %v4787 = vld [vmem:[%s4785 + $0x9] sm:$0xff]
    %v4788 = vld [vmem:[%s4785 + $0x11] sm:$0xff]
    %v4789 = vld [vmem:[%s4785 + $0x19] sm:$0xf]
    %v4791 = vsel %vm51, %v4786, 0
    %v4794 = vsel %vm51, %v4787, 0
    %v4797 = vsel %vm51, %v4788, 0
    %v4800 = vsel %vm51, %v4789, 0
    %4802 = vmatprep.subr.mxu0 0.0
    %4803 = vmatpush1.msra.mxu0 0.0
    %4804 = vmatprep.subr.mxu0 0.0
    %4805 = vmatpush1.msra.mxu0 0.0
    %4806 = vmatprep.subr.mxu0 0.0
    %4807 = vmatpush1.msra.mxu0 0.0
    %4808 = vmatprep.subr.mxu0 0.0
    %4809 = vmatpush1.msra.mxu0 0.0
    %4810 = vmatprep.subr.mxu0 0.0
    %4811 = vmatpush1.msra.mxu0 0.0
    %4812 = vmatprep.subr.mxu0 0.0
    %4813 = vmatpush1.msra.mxu0 0.0
    %4814 = vmatprep.subr.mxu0 0.0
    %4815 = vmatpush1.msra.mxu0 0.0
    %4816 = vmatprep.subr.mxu0 0.0
    %4817 = vmatpush1.msra.mxu0 0.0
    %4818 = vmatprep.subr.mxu0 0.0
    %4819 = vmatpush1.msra.mxu0 0.0
    %4820 = vmatprep.subr.mxu0 0.0
    %4821 = vmatpush1.msra.mxu0 0.0
    %4822 = vmatprep.subr.mxu0 0.0
    %4823 = vmatpush1.msra.mxu0 %v2297
    %4824 = vmatprep.subr.mxu0 0.0
    %4825 = vmatpush1.msra.mxu0 %v2296
    %4826 = vmatprep.subr.mxu0 0.0
    %4827 = vmatpush1.msra.mxu0 %v2295
    %4828 = vmatprep.subr.mxu0 0.0
    %4829 = vmatpush1.msra.mxu0 %v2294
    %4830 = vmatprep.subr.mxu0 0.0
    %4831 = vmatpush1.msra.mxu0 %v2293
    %4832 = vmatprep.subr.mxu0 0.0
    %4833 = vmatpush1.msra.mxu0 %v2292
    %4834 = vmatprep.subr.mxu0 0.0
    %4835 = vmatpush2.msra.mxu0 0.0
    %4836 = vmatprep.subr.mxu0 0.0
    %4837 = vmatpush2.msra.mxu0 0.0
    %4838 = vmatprep.subr.mxu0 0.0
    %4839 = vmatpush2.msra.mxu0 0.0
    %4840 = vmatprep.subr.mxu0 0.0
    %4841 = vmatpush2.msra.mxu0 0.0
    %4842 = vmatprep.subr.mxu0 0.0
    %4843 = vmatpush2.msra.mxu0 0.0
    %4844 = vmatprep.subr.mxu0 0.0
    %4845 = vmatpush2.msra.mxu0 0.0
    %4846 = vmatprep.subr.mxu0 0.0
    %4847 = vmatpush2.msra.mxu0 0.0
    %4848 = vmatprep.subr.mxu0 0.0
    %4849 = vmatpush2.msra.mxu0 0.0
    %4850 = vmatprep.subr.mxu0 0.0
    %4851 = vmatpush2.msra.mxu0 0.0
    %4852 = vmatprep.subr.mxu0 0.0
    %4853 = vmatpush2.msra.mxu0 0.0
    %4854 = vmatprep.subr.mxu0 0.0
    %4855 = vmatpush2.msra.mxu0 0.0
    %4856 = vmatprep.subr.mxu0 0.0
    %4857 = vmatpush2.msra.mxu0 0.0
    %4858 = vmatprep.subr.mxu0 0.0
    %4859 = vmatpush2.msra.mxu0 0.0
    %4860 = vmatprep.subr.mxu0 0.0
    %4861 = vmatpush2.msra.mxu0 0.0
    %4862 = vmatprep.subr.mxu0 0.0
    %4863 = vmatpush2.msra.mxu0 0.0
    %4864 = vmatprep.subr.mxu0 0.0
    %4865 = vmatpush2.msra.mxu0 0.0
    %4866 = vmatprep.mubr.f32.mxu0 0.0
    %4867 = vmatmul.mubr.f32.gmra.mxu0 %v4791
    %v4868 = vpop.f32.mrf.mxu0
    %v4869 = vadd.f32 0.0, %v4868
    %v4870 = vpop.f32.mrf.mxu0
    %4871 = vmatprep.mubr.f32.mxu0 0.0
    %4872 = vmatmul.mubr.f32.gmra.mxu0 %v4794
    %v4873 = vpop.f32.mrf.mxu0
    %v4874 = vadd.f32 0.0, %v4873
    %v4875 = vpop.f32.mrf.mxu0
    %4876 = vmatprep.mubr.f32.mxu0 0.0
    %4877 = vmatmul.mubr.f32.gmra.mxu0 %v4797
    %v4878 = vpop.f32.mrf.mxu0
    %v4879 = vadd.f32 0.0, %v4878
    %v4880 = vpop.f32.mrf.mxu0
    %4881 = vmatprep.mubr.f32.mxu0 0.0
    %4882 = vmatmul.mubr.f32.gmra.mxu0 %v4800
    %v4883 = vpop.f32.mrf.mxu0
    %v4884 = vadd.f32 0.0, %v4883
    %v4885 = vpop.f32.mrf.mxu0
    %4886 = vdwg.mxu0
    %v4887 = vadd.f32 %v4767, %v4869
    %v4888 = vadd.f32 %v4772, %v4874
    %v4889 = vadd.f32 %v4777, %v4879
    %v4890 = vadd.f32 %v4782, %v4884
    %v4891 = vmul.f32 %v4887, %v2303
    %v4892 = vmul.f32 %v4888, %v2303
    %v4893 = vmul.f32 %v4889, %v2303
    %v4894 = vmul.f32 %v4890, %v2303
    %v4895 = vadd.f32 %v4891, %v2310
    %v4896 = vadd.f32 %v4892, %v2310
    %v4897 = vadd.f32 %v4893, %v2310
    %v4898 = vadd.f32 %v4894, %v2310
    %v4899 = vmax.f32 %v4895, 0.0
    %v4900 = vmax.f32 %v4896, 0.0
    %v4901 = vmax.f32 %v4897, 0.0
    %v4902 = vmax.f32 %v4898, 0.0
    %v4903 = vmax.f32 %v4611, %v4899
    %v4904 = vmax.f32 %v4612, %v4900
    %v4905 = vmax.f32 %v4613, %v4901
    %v4906 = vmax.f32 %v4614, %v4902
    %4907 = vst.msk [vmem:[#allocation6] sm:$0xff] %vm2974, %v4903
    %4908 = vst.msk [vmem:[#allocation6 + $0x8] sm:$0xff] %vm2974, %v4904
    %4909 = vst.msk [vmem:[#allocation6 + $0x10] sm:$0xff] %vm2974, %v4905
    %4910 = vst.msk [vmem:[#allocation6 + $0x18] sm:$0xf] %vm2978, %v4906
    %v4911 = vld [vmem:[#allocation6] ss:$2 sm:$0xff]
    %v4912 = vld [vmem:[%s1647] ss:$2 sm:$0x3f]
    %v4913 = vld [vmem:[%s1653] ss:$2 sm:$0xff]
    %v4914 = vld [vmem:[%s1655] ss:$2 sm:$0x3f]
    %v4915 = vmax.f32 %v4911, %v4913
    %v4916 = vmax.f32 %v4912, %v4914
    %s4917 = scalar_lea.vmem [#allocation4], 96
    %4918 = vst.msk [vmem:[%s4917 + $0x2] sm:$0xff] %vm2974, %v4915
    %4919 = vst.msk [vmem:[%s4917 + $0xa] sm:$0x3f] %vm2988, %v4916
    %4922 = vrot.lane.b32.xlu0 %v4915, 32
    %v4923 = vpop.permute.xlu0 %4922
    %4924 = vrot.lane.b32.xlu0 %v4916, 32
    %v4925 = vpop.permute.xlu0 %4924
    %4928 = vst.msk [vmem:[%s4917 + $0x1] sm:$0xff] %vm2998, %v4923
    %4929 = vst.msk [vmem:[%s4917 + $0x9] sm:$0x3f] %vm3000, %v4925
    %4930 = vrot.lane.b32.xlu0 %v4915, 64
    %v4931 = vpop.permute.xlu0 %4930
    %4932 = vrot.lane.b32.xlu0 %v4916, 64
    %v4933 = vpop.permute.xlu0 %4932
    %4936 = vst.msk [vmem:[%s4917] sm:$0xff] %vm3008, %v4931
    %4937 = vst.msk [vmem:[%s4917 + $0x8] sm:$0x3f] %vm3010, %v4933
    %v4938 = vld [vmem:[#allocation4 + $0x1] sm:$0xff]
    %v4939 = vld [vmem:[#allocation4 + $0x9] sm:$0x3f]
    %v4940 = vld [vmem:[%s2986 + $0x1] sm:$0xff]
    %v4941 = vld [vmem:[%s2986 + $0x9] sm:$0x3f]
    %v4943 = vsel %vm101, %v4940, 0
    %v4946 = vsel %vm101, %v4941, 0
    %4948 = vmatprep.subr.mxu0 0.0
    %4949 = vmatpush1.msra.mxu0 0.0
    %4950 = vmatprep.subr.mxu0 0.0
    %4951 = vmatpush1.msra.mxu0 0.0
    %4952 = vmatprep.subr.mxu0 0.0
    %4953 = vmatpush1.msra.mxu0 0.0
    %4954 = vmatprep.subr.mxu0 0.0
    %4955 = vmatpush1.msra.mxu0 0.0
    %4956 = vmatprep.subr.mxu0 0.0
    %4957 = vmatpush1.msra.mxu0 %v2336
    %4958 = vmatprep.subr.mxu0 0.0
    %4959 = vmatpush1.msra.mxu0 %v2335
    %4960 = vmatprep.subr.mxu0 0.0
    %4961 = vmatpush1.msra.mxu0 %v2334
    %4962 = vmatprep.subr.mxu0 0.0
    %4963 = vmatpush1.msra.mxu0 %v2333
    %4964 = vmatprep.subr.mxu0 0.0
    %4965 = vmatpush1.msra.mxu0 %v2332
    %4966 = vmatprep.subr.mxu0 0.0
    %4967 = vmatpush1.msra.mxu0 %v2331
    %4968 = vmatprep.subr.mxu0 0.0
    %4969 = vmatpush1.msra.mxu0 %v2330
    %4970 = vmatprep.subr.mxu0 0.0
    %4971 = vmatpush1.msra.mxu0 %v2329
    %4972 = vmatprep.subr.mxu0 0.0
    %4973 = vmatpush1.msra.mxu0 %v2328
    %4974 = vmatprep.subr.mxu0 0.0
    %4975 = vmatpush1.msra.mxu0 %v2327
    %4976 = vmatprep.subr.mxu0 0.0
    %4977 = vmatpush1.msra.mxu0 %v2326
    %4978 = vmatprep.subr.mxu0 0.0
    %4979 = vmatpush1.msra.mxu0 %v2325
    %4980 = vmatprep.subr.mxu0 0.0
    %4981 = vmatpush2.msra.mxu0 0.0
    %4982 = vmatprep.subr.mxu0 0.0
    %4983 = vmatpush2.msra.mxu0 0.0
    %4984 = vmatprep.subr.mxu0 0.0
    %4985 = vmatpush2.msra.mxu0 0.0
    %4986 = vmatprep.subr.mxu0 0.0
    %4987 = vmatpush2.msra.mxu0 0.0
    %4988 = vmatprep.subr.mxu0 0.0
    %4989 = vmatpush2.msra.mxu0 0.0
    %4990 = vmatprep.subr.mxu0 0.0
    %4991 = vmatpush2.msra.mxu0 0.0
    %4992 = vmatprep.subr.mxu0 0.0
    %4993 = vmatpush2.msra.mxu0 0.0
    %4994 = vmatprep.subr.mxu0 0.0
    %4995 = vmatpush2.msra.mxu0 0.0
    %4996 = vmatprep.subr.mxu0 0.0
    %4997 = vmatpush2.msra.mxu0 0.0
    %4998 = vmatprep.subr.mxu0 0.0
    %4999 = vmatpush2.msra.mxu0 0.0
    %5000 = vmatprep.subr.mxu0 0.0
    %5001 = vmatpush2.msra.mxu0 0.0
    %5002 = vmatprep.subr.mxu0 0.0
    %5003 = vmatpush2.msra.mxu0 0.0
    %5004 = vmatprep.subr.mxu0 0.0
    %5005 = vmatpush2.msra.mxu0 0.0
    %5006 = vmatprep.subr.mxu0 0.0
    %5007 = vmatpush2.msra.mxu0 0.0
    %5008 = vmatprep.subr.mxu0 0.0
    %5009 = vmatpush2.msra.mxu0 0.0
    %5010 = vmatprep.subr.mxu0 0.0
    %5011 = vmatpush2.msra.mxu0 0.0
    %5012 = vmatprep.mubr.f32.mxu0 0.0
    %5013 = vmatmul.mubr.f32.gmra.mxu0 %v4943
    %v5014 = vpop.f32.mrf.mxu0
    %v5015 = vadd.f32 0.0, %v5014
    %v5016 = vpop.f32.mrf.mxu0
    %5017 = vmatprep.mubr.f32.mxu0 0.0
    %5018 = vmatmul.mubr.f32.gmra.mxu0 %v4946
    %v5019 = vpop.f32.mrf.mxu0
    %v5020 = vadd.f32 0.0, %v5019
    %v5021 = vpop.f32.mrf.mxu0
    %5022 = vdwg.mxu0
    %v5024 = vsel %vm101, %v4938, 0
    %v5027 = vsel %vm101, %v4939, 0
    %5029 = vmatprep.subr.mxu0 0.0
    %5030 = vmatpush1.msra.mxu0 0.0
    %5031 = vmatprep.subr.mxu0 0.0
    %5032 = vmatpush1.msra.mxu0 0.0
    %5033 = vmatprep.subr.mxu0 0.0
    %5034 = vmatpush1.msra.mxu0 0.0
    %5035 = vmatprep.subr.mxu0 0.0
    %5036 = vmatpush1.msra.mxu0 0.0
    %5037 = vmatprep.subr.mxu0 0.0
    %5038 = vmatpush1.msra.mxu0 %v2323
    %5039 = vmatprep.subr.mxu0 0.0
    %5040 = vmatpush1.msra.mxu0 %v2322
    %5041 = vmatprep.subr.mxu0 0.0
    %5042 = vmatpush1.msra.mxu0 %v2321
    %5043 = vmatprep.subr.mxu0 0.0
    %5044 = vmatpush1.msra.mxu0 %v2320
    %5045 = vmatprep.subr.mxu0 0.0
    %5046 = vmatpush1.msra.mxu0 %v2319
    %5047 = vmatprep.subr.mxu0 0.0
    %5048 = vmatpush1.msra.mxu0 %v2318
    %5049 = vmatprep.subr.mxu0 0.0
    %5050 = vmatpush1.msra.mxu0 %v2317
    %5051 = vmatprep.subr.mxu0 0.0
    %5052 = vmatpush1.msra.mxu0 %v2316
    %5053 = vmatprep.subr.mxu0 0.0
    %5054 = vmatpush1.msra.mxu0 %v2315
    %5055 = vmatprep.subr.mxu0 0.0
    %5056 = vmatpush1.msra.mxu0 %v2314
    %5057 = vmatprep.subr.mxu0 0.0
    %5058 = vmatpush1.msra.mxu0 %v2313
    %5059 = vmatprep.subr.mxu0 0.0
    %5060 = vmatpush1.msra.mxu0 %v2312
    %5061 = vmatprep.subr.mxu0 0.0
    %5062 = vmatpush2.msra.mxu0 0.0
    %5063 = vmatprep.subr.mxu0 0.0
    %5064 = vmatpush2.msra.mxu0 0.0
    %5065 = vmatprep.subr.mxu0 0.0
    %5066 = vmatpush2.msra.mxu0 0.0
    %5067 = vmatprep.subr.mxu0 0.0
    %5068 = vmatpush2.msra.mxu0 0.0
    %5069 = vmatprep.subr.mxu0 0.0
    %5070 = vmatpush2.msra.mxu0 0.0
    %5071 = vmatprep.subr.mxu0 0.0
    %5072 = vmatpush2.msra.mxu0 0.0
    %5073 = vmatprep.subr.mxu0 0.0
    %5074 = vmatpush2.msra.mxu0 0.0
    %5075 = vmatprep.subr.mxu0 0.0
    %5076 = vmatpush2.msra.mxu0 0.0
    %5077 = vmatprep.subr.mxu0 0.0
    %5078 = vmatpush2.msra.mxu0 0.0
    %5079 = vmatprep.subr.mxu0 0.0
    %5080 = vmatpush2.msra.mxu0 0.0
    %5081 = vmatprep.subr.mxu0 0.0
    %5082 = vmatpush2.msra.mxu0 0.0
    %5083 = vmatprep.subr.mxu0 0.0
    %5084 = vmatpush2.msra.mxu0 0.0
    %5085 = vmatprep.subr.mxu0 0.0
    %5086 = vmatpush2.msra.mxu0 0.0
    %5087 = vmatprep.subr.mxu0 0.0
    %5088 = vmatpush2.msra.mxu0 0.0
    %5089 = vmatprep.subr.mxu0 0.0
    %5090 = vmatpush2.msra.mxu0 0.0
    %5091 = vmatprep.subr.mxu0 0.0
    %5092 = vmatpush2.msra.mxu0 0.0
    %5093 = vmatprep.mubr.f32.mxu0 0.0
    %5094 = vmatmul.mubr.f32.gmra.mxu0 %v5024
    %v5095 = vpop.f32.mrf.mxu0
    %v5096 = vadd.f32 %v5015, %v5095
    %v5097 = vpop.f32.mrf.mxu0
    %5098 = vmatprep.mubr.f32.mxu0 0.0
    %5099 = vmatmul.mubr.f32.gmra.mxu0 %v5027
    %v5100 = vpop.f32.mrf.mxu0
    %v5101 = vadd.f32 %v5020, %v5100
    %v5102 = vpop.f32.mrf.mxu0
    %5103 = vdwg.mxu0
    %v5104 = vld [vmem:[%s3633 + $0x1] sm:$0xff]
    %v5105 = vld [vmem:[%s3633 + $0x9] sm:$0x3f]
    %v5107 = vsel %vm101, %v5104, 0
    %v5110 = vsel %vm101, %v5105, 0
    %5112 = vmatprep.subr.mxu0 0.0
    %5113 = vmatpush1.msra.mxu0 0.0
    %5114 = vmatprep.subr.mxu0 0.0
    %5115 = vmatpush1.msra.mxu0 0.0
    %5116 = vmatprep.subr.mxu0 0.0
    %5117 = vmatpush1.msra.mxu0 0.0
    %5118 = vmatprep.subr.mxu0 0.0
    %5119 = vmatpush1.msra.mxu0 0.0
    %5120 = vmatprep.subr.mxu0 0.0
    %5121 = vmatpush1.msra.mxu0 %v2349
    %5122 = vmatprep.subr.mxu0 0.0
    %5123 = vmatpush1.msra.mxu0 %v2348
    %5124 = vmatprep.subr.mxu0 0.0
    %5125 = vmatpush1.msra.mxu0 %v2347
    %5126 = vmatprep.subr.mxu0 0.0
    %5127 = vmatpush1.msra.mxu0 %v2346
    %5128 = vmatprep.subr.mxu0 0.0
    %5129 = vmatpush1.msra.mxu0 %v2345
    %5130 = vmatprep.subr.mxu0 0.0
    %5131 = vmatpush1.msra.mxu0 %v2344
    %5132 = vmatprep.subr.mxu0 0.0
    %5133 = vmatpush1.msra.mxu0 %v2343
    %5134 = vmatprep.subr.mxu0 0.0
    %5135 = vmatpush1.msra.mxu0 %v2342
    %5136 = vmatprep.subr.mxu0 0.0
    %5137 = vmatpush1.msra.mxu0 %v2341
    %5138 = vmatprep.subr.mxu0 0.0
    %5139 = vmatpush1.msra.mxu0 %v2340
    %5140 = vmatprep.subr.mxu0 0.0
    %5141 = vmatpush1.msra.mxu0 %v2339
    %5142 = vmatprep.subr.mxu0 0.0
    %5143 = vmatpush1.msra.mxu0 %v2338
    %5144 = vmatprep.subr.mxu0 0.0
    %5145 = vmatpush2.msra.mxu0 0.0
    %5146 = vmatprep.subr.mxu0 0.0
    %5147 = vmatpush2.msra.mxu0 0.0
    %5148 = vmatprep.subr.mxu0 0.0
    %5149 = vmatpush2.msra.mxu0 0.0
    %5150 = vmatprep.subr.mxu0 0.0
    %5151 = vmatpush2.msra.mxu0 0.0
    %5152 = vmatprep.subr.mxu0 0.0
    %5153 = vmatpush2.msra.mxu0 0.0
    %5154 = vmatprep.subr.mxu0 0.0
    %5155 = vmatpush2.msra.mxu0 0.0
    %5156 = vmatprep.subr.mxu0 0.0
    %5157 = vmatpush2.msra.mxu0 0.0
    %5158 = vmatprep.subr.mxu0 0.0
    %5159 = vmatpush2.msra.mxu0 0.0
    %5160 = vmatprep.subr.mxu0 0.0
    %5161 = vmatpush2.msra.mxu0 0.0
    %5162 = vmatprep.subr.mxu0 0.0
    %5163 = vmatpush2.msra.mxu0 0.0
    %5164 = vmatprep.subr.mxu0 0.0
    %5165 = vmatpush2.msra.mxu0 0.0
    %5166 = vmatprep.subr.mxu0 0.0
    %5167 = vmatpush2.msra.mxu0 0.0
    %5168 = vmatprep.subr.mxu0 0.0
    %5169 = vmatpush2.msra.mxu0 0.0
    %5170 = vmatprep.subr.mxu0 0.0
    %5171 = vmatpush2.msra.mxu0 0.0
    %5172 = vmatprep.subr.mxu0 0.0
    %5173 = vmatpush2.msra.mxu0 0.0
    %5174 = vmatprep.subr.mxu0 0.0
    %5175 = vmatpush2.msra.mxu0 0.0
    %5176 = vmatprep.mubr.f32.mxu0 0.0
    %5177 = vmatmul.mubr.f32.gmra.mxu0 %v5107
    %v5178 = vpop.f32.mrf.mxu0
    %v5179 = vadd.f32 0.0, %v5178
    %v5180 = vpop.f32.mrf.mxu0
    %5181 = vmatprep.mubr.f32.mxu0 0.0
    %5182 = vmatmul.mubr.f32.gmra.mxu0 %v5110
    %v5183 = vpop.f32.mrf.mxu0
    %v5184 = vadd.f32 0.0, %v5183
    %v5185 = vpop.f32.mrf.mxu0
    %5186 = vdwg.mxu0
    %v5187 = vadd.f32 %v5096, %v5179
    %v5188 = vadd.f32 %v5101, %v5184
    %v5189 = vmul.f32 %v5187, %v2355
    %v5190 = vmul.f32 %v5188, %v2355
    %v5191 = vadd.f32 %v5189, %v2362
    %v5192 = vadd.f32 %v5190, %v2362
    %v5193 = vmax.f32 %v5191, 0.0
    %v5194 = vmax.f32 %v5192, 0.0
    %5195 = vmatprep.subr.mxu0 0.0
    %5196 = vmatpush1.msra.mxu0 0.0
    %5197 = vmatprep.subr.mxu0 0.0
    %5198 = vmatpush1.msra.mxu0 0.0
    %5199 = vmatprep.subr.mxu0 0.0
    %5200 = vmatpush1.msra.mxu0 0.0
    %5201 = vmatprep.subr.mxu0 0.0
    %5202 = vmatpush1.msra.mxu0 0.0
    %5203 = vmatprep.subr.mxu0 0.0
    %5204 = vmatpush1.msra.mxu0 %v2336
    %5205 = vmatprep.subr.mxu0 0.0
    %5206 = vmatpush1.msra.mxu0 %v2335
    %5207 = vmatprep.subr.mxu0 0.0
    %5208 = vmatpush1.msra.mxu0 %v2334
    %5209 = vmatprep.subr.mxu0 0.0
    %5210 = vmatpush1.msra.mxu0 %v2333
    %5211 = vmatprep.subr.mxu0 0.0
    %5212 = vmatpush1.msra.mxu0 %v2332
    %5213 = vmatprep.subr.mxu0 0.0
    %5214 = vmatpush1.msra.mxu0 %v2331
    %5215 = vmatprep.subr.mxu0 0.0
    %5216 = vmatpush1.msra.mxu0 %v2330
    %5217 = vmatprep.subr.mxu0 0.0
    %5218 = vmatpush1.msra.mxu0 %v2329
    %5219 = vmatprep.subr.mxu0 0.0
    %5220 = vmatpush1.msra.mxu0 %v2328
    %5221 = vmatprep.subr.mxu0 0.0
    %5222 = vmatpush1.msra.mxu0 %v2327
    %5223 = vmatprep.subr.mxu0 0.0
    %5224 = vmatpush1.msra.mxu0 %v2326
    %5225 = vmatprep.subr.mxu0 0.0
    %5226 = vmatpush1.msra.mxu0 %v2325
    %5227 = vmatprep.subr.mxu0 0.0
    %5228 = vmatpush2.msra.mxu0 0.0
    %5229 = vmatprep.subr.mxu0 0.0
    %5230 = vmatpush2.msra.mxu0 0.0
    %5231 = vmatprep.subr.mxu0 0.0
    %5232 = vmatpush2.msra.mxu0 0.0
    %5233 = vmatprep.subr.mxu0 0.0
    %5234 = vmatpush2.msra.mxu0 0.0
    %5235 = vmatprep.subr.mxu0 0.0
    %5236 = vmatpush2.msra.mxu0 0.0
    %5237 = vmatprep.subr.mxu0 0.0
    %5238 = vmatpush2.msra.mxu0 0.0
    %5239 = vmatprep.subr.mxu0 0.0
    %5240 = vmatpush2.msra.mxu0 0.0
    %5241 = vmatprep.subr.mxu0 0.0
    %5242 = vmatpush2.msra.mxu0 0.0
    %5243 = vmatprep.subr.mxu0 0.0
    %5244 = vmatpush2.msra.mxu0 0.0
    %5245 = vmatprep.subr.mxu0 0.0
    %5246 = vmatpush2.msra.mxu0 0.0
    %5247 = vmatprep.subr.mxu0 0.0
    %5248 = vmatpush2.msra.mxu0 0.0
    %5249 = vmatprep.subr.mxu0 0.0
    %5250 = vmatpush2.msra.mxu0 0.0
    %5251 = vmatprep.subr.mxu0 0.0
    %5252 = vmatpush2.msra.mxu0 0.0
    %5253 = vmatprep.subr.mxu0 0.0
    %5254 = vmatpush2.msra.mxu0 0.0
    %5255 = vmatprep.subr.mxu0 0.0
    %5256 = vmatpush2.msra.mxu0 0.0
    %5257 = vmatprep.subr.mxu0 0.0
    %5258 = vmatpush2.msra.mxu0 0.0
    %5259 = vmatprep.mubr.f32.mxu0 0.0
    %5260 = vmatmul.mubr.f32.gmra.mxu0 %v5107
    %v5261 = vpop.f32.mrf.mxu0
    %v5262 = vadd.f32 0.0, %v5261
    %v5263 = vpop.f32.mrf.mxu0
    %5264 = vmatprep.mubr.f32.mxu0 0.0
    %5265 = vmatmul.mubr.f32.gmra.mxu0 %v5110
    %v5266 = vpop.f32.mrf.mxu0
    %v5267 = vadd.f32 0.0, %v5266
    %v5268 = vpop.f32.mrf.mxu0
    %5269 = vdwg.mxu0
    %5270 = vmatprep.subr.mxu0 0.0
    %5271 = vmatpush1.msra.mxu0 0.0
    %5272 = vmatprep.subr.mxu0 0.0
    %5273 = vmatpush1.msra.mxu0 0.0
    %5274 = vmatprep.subr.mxu0 0.0
    %5275 = vmatpush1.msra.mxu0 0.0
    %5276 = vmatprep.subr.mxu0 0.0
    %5277 = vmatpush1.msra.mxu0 0.0
    %5278 = vmatprep.subr.mxu0 0.0
    %5279 = vmatpush1.msra.mxu0 %v2323
    %5280 = vmatprep.subr.mxu0 0.0
    %5281 = vmatpush1.msra.mxu0 %v2322
    %5282 = vmatprep.subr.mxu0 0.0
    %5283 = vmatpush1.msra.mxu0 %v2321
    %5284 = vmatprep.subr.mxu0 0.0
    %5285 = vmatpush1.msra.mxu0 %v2320
    %5286 = vmatprep.subr.mxu0 0.0
    %5287 = vmatpush1.msra.mxu0 %v2319
    %5288 = vmatprep.subr.mxu0 0.0
    %5289 = vmatpush1.msra.mxu0 %v2318
    %5290 = vmatprep.subr.mxu0 0.0
    %5291 = vmatpush1.msra.mxu0 %v2317
    %5292 = vmatprep.subr.mxu0 0.0
    %5293 = vmatpush1.msra.mxu0 %v2316
    %5294 = vmatprep.subr.mxu0 0.0
    %5295 = vmatpush1.msra.mxu0 %v2315
    %5296 = vmatprep.subr.mxu0 0.0
    %5297 = vmatpush1.msra.mxu0 %v2314
    %5298 = vmatprep.subr.mxu0 0.0
    %5299 = vmatpush1.msra.mxu0 %v2313
    %5300 = vmatprep.subr.mxu0 0.0
    %5301 = vmatpush1.msra.mxu0 %v2312
    %5302 = vmatprep.subr.mxu0 0.0
    %5303 = vmatpush2.msra.mxu0 0.0
    %5304 = vmatprep.subr.mxu0 0.0
    %5305 = vmatpush2.msra.mxu0 0.0
    %5306 = vmatprep.subr.mxu0 0.0
    %5307 = vmatpush2.msra.mxu0 0.0
    %5308 = vmatprep.subr.mxu0 0.0
    %5309 = vmatpush2.msra.mxu0 0.0
    %5310 = vmatprep.subr.mxu0 0.0
    %5311 = vmatpush2.msra.mxu0 0.0
    %5312 = vmatprep.subr.mxu0 0.0
    %5313 = vmatpush2.msra.mxu0 0.0
    %5314 = vmatprep.subr.mxu0 0.0
    %5315 = vmatpush2.msra.mxu0 0.0
    %5316 = vmatprep.subr.mxu0 0.0
    %5317 = vmatpush2.msra.mxu0 0.0
    %5318 = vmatprep.subr.mxu0 0.0
    %5319 = vmatpush2.msra.mxu0 0.0
    %5320 = vmatprep.subr.mxu0 0.0
    %5321 = vmatpush2.msra.mxu0 0.0
    %5322 = vmatprep.subr.mxu0 0.0
    %5323 = vmatpush2.msra.mxu0 0.0
    %5324 = vmatprep.subr.mxu0 0.0
    %5325 = vmatpush2.msra.mxu0 0.0
    %5326 = vmatprep.subr.mxu0 0.0
    %5327 = vmatpush2.msra.mxu0 0.0
    %5328 = vmatprep.subr.mxu0 0.0
    %5329 = vmatpush2.msra.mxu0 0.0
    %5330 = vmatprep.subr.mxu0 0.0
    %5331 = vmatpush2.msra.mxu0 0.0
    %5332 = vmatprep.subr.mxu0 0.0
    %5333 = vmatpush2.msra.mxu0 0.0
    %5334 = vmatprep.mubr.f32.mxu0 0.0
    %5335 = vmatmul.mubr.f32.gmra.mxu0 %v4943
    %v5336 = vpop.f32.mrf.mxu0
    %v5337 = vadd.f32 %v5262, %v5336
    %v5338 = vpop.f32.mrf.mxu0
    %5339 = vmatprep.mubr.f32.mxu0 0.0
    %5340 = vmatmul.mubr.f32.gmra.mxu0 %v4946
    %v5341 = vpop.f32.mrf.mxu0
    %v5342 = vadd.f32 %v5267, %v5341
    %v5343 = vpop.f32.mrf.mxu0
    %5344 = vdwg.mxu0
    %s5345 = scalar_lea.vmem [#allocation4], 48
    %v5346 = vld [vmem:[%s5345 + $0x1] sm:$0xff]
    %v5347 = vld [vmem:[%s5345 + $0x9] sm:$0x3f]
    %v5349 = vsel %vm101, %v5346, 0
    %v5352 = vsel %vm101, %v5347, 0
    %5354 = vmatprep.subr.mxu0 0.0
    %5355 = vmatpush1.msra.mxu0 0.0
    %5356 = vmatprep.subr.mxu0 0.0
    %5357 = vmatpush1.msra.mxu0 0.0
    %5358 = vmatprep.subr.mxu0 0.0
    %5359 = vmatpush1.msra.mxu0 0.0
    %5360 = vmatprep.subr.mxu0 0.0
    %5361 = vmatpush1.msra.mxu0 0.0
    %5362 = vmatprep.subr.mxu0 0.0
    %5363 = vmatpush1.msra.mxu0 %v2349
    %5364 = vmatprep.subr.mxu0 0.0
    %5365 = vmatpush1.msra.mxu0 %v2348
    %5366 = vmatprep.subr.mxu0 0.0
    %5367 = vmatpush1.msra.mxu0 %v2347
    %5368 = vmatprep.subr.mxu0 0.0
    %5369 = vmatpush1.msra.mxu0 %v2346
    %5370 = vmatprep.subr.mxu0 0.0
    %5371 = vmatpush1.msra.mxu0 %v2345
    %5372 = vmatprep.subr.mxu0 0.0
    %5373 = vmatpush1.msra.mxu0 %v2344
    %5374 = vmatprep.subr.mxu0 0.0
    %5375 = vmatpush1.msra.mxu0 %v2343
    %5376 = vmatprep.subr.mxu0 0.0
    %5377 = vmatpush1.msra.mxu0 %v2342
    %5378 = vmatprep.subr.mxu0 0.0
    %5379 = vmatpush1.msra.mxu0 %v2341
    %5380 = vmatprep.subr.mxu0 0.0
    %5381 = vmatpush1.msra.mxu0 %v2340
    %5382 = vmatprep.subr.mxu0 0.0
    %5383 = vmatpush1.msra.mxu0 %v2339
    %5384 = vmatprep.subr.mxu0 0.0
    %5385 = vmatpush1.msra.mxu0 %v2338
    %5386 = vmatprep.subr.mxu0 0.0
    %5387 = vmatpush2.msra.mxu0 0.0
    %5388 = vmatprep.subr.mxu0 0.0
    %5389 = vmatpush2.msra.mxu0 0.0
    %5390 = vmatprep.subr.mxu0 0.0
    %5391 = vmatpush2.msra.mxu0 0.0
    %5392 = vmatprep.subr.mxu0 0.0
    %5393 = vmatpush2.msra.mxu0 0.0
    %5394 = vmatprep.subr.mxu0 0.0
    %5395 = vmatpush2.msra.mxu0 0.0
    %5396 = vmatprep.subr.mxu0 0.0
    %5397 = vmatpush2.msra.mxu0 0.0
    %5398 = vmatprep.subr.mxu0 0.0
    %5399 = vmatpush2.msra.mxu0 0.0
    %5400 = vmatprep.subr.mxu0 0.0
    %5401 = vmatpush2.msra.mxu0 0.0
    %5402 = vmatprep.subr.mxu0 0.0
    %5403 = vmatpush2.msra.mxu0 0.0
    %5404 = vmatprep.subr.mxu0 0.0
    %5405 = vmatpush2.msra.mxu0 0.0
    %5406 = vmatprep.subr.mxu0 0.0
    %5407 = vmatpush2.msra.mxu0 0.0
    %5408 = vmatprep.subr.mxu0 0.0
    %5409 = vmatpush2.msra.mxu0 0.0
    %5410 = vmatprep.subr.mxu0 0.0
    %5411 = vmatpush2.msra.mxu0 0.0
    %5412 = vmatprep.subr.mxu0 0.0
    %5413 = vmatpush2.msra.mxu0 0.0
    %5414 = vmatprep.subr.mxu0 0.0
    %5415 = vmatpush2.msra.mxu0 0.0
    %5416 = vmatprep.subr.mxu0 0.0
    %5417 = vmatpush2.msra.mxu0 0.0
    %5418 = vmatprep.mubr.f32.mxu0 0.0
    %5419 = vmatmul.mubr.f32.gmra.mxu0 %v5349
    %v5420 = vpop.f32.mrf.mxu0
    %v5421 = vadd.f32 0.0, %v5420
    %v5422 = vpop.f32.mrf.mxu0
    %5423 = vmatprep.mubr.f32.mxu0 0.0
    %5424 = vmatmul.mubr.f32.gmra.mxu0 %v5352
    %v5425 = vpop.f32.mrf.mxu0
    %v5426 = vadd.f32 0.0, %v5425
    %v5427 = vpop.f32.mrf.mxu0
    %5428 = vdwg.mxu0
    %v5429 = vadd.f32 %v5337, %v5421
    %v5430 = vadd.f32 %v5342, %v5426
    %v5431 = vmul.f32 %v5429, %v2355
    %v5432 = vmul.f32 %v5430, %v2355
    %v5433 = vadd.f32 %v5431, %v2362
    %v5434 = vadd.f32 %v5432, %v2362
    %v5435 = vmax.f32 %v5433, 0.0
    %v5436 = vmax.f32 %v5434, 0.0
    %v5437 = vmax.f32 %v5193, %v5435
    %v5438 = vmax.f32 %v5194, %v5436
    %5439 = vst.msk [vmem:[#allocation6] sm:$0xff] %vm118, %v5437
    %vm5440 = vcmask 521216
    %5441 = vst.msk [vmem:[#allocation6 + $0x8] sm:$0x3f] %vm5440, %v5438
    %v5442 = vld [vmem:[#allocation6] ss:$2 sm:$0x7f]
    %v5443 = vld [vmem:[%s1653] ss:$2 sm:$0x7f]
    %v5444 = vmax.f32 %v5442, %v5443
    %vm5445 = vcmask 522240
    %5446 = vst.msk [vmem:[#allocation5] sm:$0x7f] %vm5445, %v5444
    %s5447 = scalar_lea.vmem [#allocation4], 64
    %v5448 = vld [vmem:[%s5447 + $0x1] sm:$0xff]
    %v5449 = vld [vmem:[%s5447 + $0x9] sm:$0x3f]
    %v5450 = vld [vmem:[%s4275 + $0x1] sm:$0xff]
    %v5451 = vld [vmem:[%s4275 + $0x9] sm:$0x3f]
    %v5453 = vsel %vm101, %v5450, 0
    %v5456 = vsel %vm101, %v5451, 0
    %5458 = vmatprep.subr.mxu0 0.0
    %5459 = vmatpush1.msra.mxu0 0.0
    %5460 = vmatprep.subr.mxu0 0.0
    %5461 = vmatpush1.msra.mxu0 0.0
    %5462 = vmatprep.subr.mxu0 0.0
    %5463 = vmatpush1.msra.mxu0 0.0
    %5464 = vmatprep.subr.mxu0 0.0
    %5465 = vmatpush1.msra.mxu0 0.0
    %5466 = vmatprep.subr.mxu0 0.0
    %5467 = vmatpush1.msra.mxu0 %v2336
    %5468 = vmatprep.subr.mxu0 0.0
    %5469 = vmatpush1.msra.mxu0 %v2335
    %5470 = vmatprep.subr.mxu0 0.0
    %5471 = vmatpush1.msra.mxu0 %v2334
    %5472 = vmatprep.subr.mxu0 0.0
    %5473 = vmatpush1.msra.mxu0 %v2333
    %5474 = vmatprep.subr.mxu0 0.0
    %5475 = vmatpush1.msra.mxu0 %v2332
    %5476 = vmatprep.subr.mxu0 0.0
    %5477 = vmatpush1.msra.mxu0 %v2331
    %5478 = vmatprep.subr.mxu0 0.0
    %5479 = vmatpush1.msra.mxu0 %v2330
    %5480 = vmatprep.subr.mxu0 0.0
    %5481 = vmatpush1.msra.mxu0 %v2329
    %5482 = vmatprep.subr.mxu0 0.0
    %5483 = vmatpush1.msra.mxu0 %v2328
    %5484 = vmatprep.subr.mxu0 0.0
    %5485 = vmatpush1.msra.mxu0 %v2327
    %5486 = vmatprep.subr.mxu0 0.0
    %5487 = vmatpush1.msra.mxu0 %v2326
    %5488 = vmatprep.subr.mxu0 0.0
    %5489 = vmatpush1.msra.mxu0 %v2325
    %5490 = vmatprep.subr.mxu0 0.0
    %5491 = vmatpush2.msra.mxu0 0.0
    %5492 = vmatprep.subr.mxu0 0.0
    %5493 = vmatpush2.msra.mxu0 0.0
    %5494 = vmatprep.subr.mxu0 0.0
    %5495 = vmatpush2.msra.mxu0 0.0
    %5496 = vmatprep.subr.mxu0 0.0
    %5497 = vmatpush2.msra.mxu0 0.0
    %5498 = vmatprep.subr.mxu0 0.0
    %5499 = vmatpush2.msra.mxu0 0.0
    %5500 = vmatprep.subr.mxu0 0.0
    %5501 = vmatpush2.msra.mxu0 0.0
    %5502 = vmatprep.subr.mxu0 0.0
    %5503 = vmatpush2.msra.mxu0 0.0
    %5504 = vmatprep.subr.mxu0 0.0
    %5505 = vmatpush2.msra.mxu0 0.0
    %5506 = vmatprep.subr.mxu0 0.0
    %5507 = vmatpush2.msra.mxu0 0.0
    %5508 = vmatprep.subr.mxu0 0.0
    %5509 = vmatpush2.msra.mxu0 0.0
    %5510 = vmatprep.subr.mxu0 0.0
    %5511 = vmatpush2.msra.mxu0 0.0
    %5512 = vmatprep.subr.mxu0 0.0
    %5513 = vmatpush2.msra.mxu0 0.0
    %5514 = vmatprep.subr.mxu0 0.0
    %5515 = vmatpush2.msra.mxu0 0.0
    %5516 = vmatprep.subr.mxu0 0.0
    %5517 = vmatpush2.msra.mxu0 0.0
    %5518 = vmatprep.subr.mxu0 0.0
    %5519 = vmatpush2.msra.mxu0 0.0
    %5520 = vmatprep.subr.mxu0 0.0
    %5521 = vmatpush2.msra.mxu0 0.0
    %5522 = vmatprep.mubr.f32.mxu0 0.0
    %5523 = vmatmul.mubr.f32.gmra.mxu0 %v5453
    %v5524 = vpop.f32.mrf.mxu0
    %v5525 = vadd.f32 0.0, %v5524
    %v5526 = vpop.f32.mrf.mxu0
    %5527 = vmatprep.mubr.f32.mxu0 0.0
    %5528 = vmatmul.mubr.f32.gmra.mxu0 %v5456
    %v5529 = vpop.f32.mrf.mxu0
    %v5530 = vadd.f32 0.0, %v5529
    %v5531 = vpop.f32.mrf.mxu0
    %5532 = vdwg.mxu0
    %v5534 = vsel %vm101, %v5448, 0
    %v5537 = vsel %vm101, %v5449, 0
    %5539 = vmatprep.subr.mxu0 0.0
    %5540 = vmatpush1.msra.mxu0 0.0
    %5541 = vmatprep.subr.mxu0 0.0
    %5542 = vmatpush1.msra.mxu0 0.0
    %5543 = vmatprep.subr.mxu0 0.0
    %5544 = vmatpush1.msra.mxu0 0.0
    %5545 = vmatprep.subr.mxu0 0.0
    %5546 = vmatpush1.msra.mxu0 0.0
    %5547 = vmatprep.subr.mxu0 0.0
    %5548 = vmatpush1.msra.mxu0 %v2323
    %5549 = vmatprep.subr.mxu0 0.0
    %5550 = vmatpush1.msra.mxu0 %v2322
    %5551 = vmatprep.subr.mxu0 0.0
    %5552 = vmatpush1.msra.mxu0 %v2321
    %5553 = vmatprep.subr.mxu0 0.0
    %5554 = vmatpush1.msra.mxu0 %v2320
    %5555 = vmatprep.subr.mxu0 0.0
    %5556 = vmatpush1.msra.mxu0 %v2319
    %5557 = vmatprep.subr.mxu0 0.0
    %5558 = vmatpush1.msra.mxu0 %v2318
    %5559 = vmatprep.subr.mxu0 0.0
    %5560 = vmatpush1.msra.mxu0 %v2317
    %5561 = vmatprep.subr.mxu0 0.0
    %5562 = vmatpush1.msra.mxu0 %v2316
    %5563 = vmatprep.subr.mxu0 0.0
    %5564 = vmatpush1.msra.mxu0 %v2315
    %5565 = vmatprep.subr.mxu0 0.0
    %5566 = vmatpush1.msra.mxu0 %v2314
    %5567 = vmatprep.subr.mxu0 0.0
    %5568 = vmatpush1.msra.mxu0 %v2313
    %5569 = vmatprep.subr.mxu0 0.0
    %5570 = vmatpush1.msra.mxu0 %v2312
    %5571 = vmatprep.subr.mxu0 0.0
    %5572 = vmatpush2.msra.mxu0 0.0
    %5573 = vmatprep.subr.mxu0 0.0
    %5574 = vmatpush2.msra.mxu0 0.0
    %5575 = vmatprep.subr.mxu0 0.0
    %5576 = vmatpush2.msra.mxu0 0.0
    %5577 = vmatprep.subr.mxu0 0.0
    %5578 = vmatpush2.msra.mxu0 0.0
    %5579 = vmatprep.subr.mxu0 0.0
    %5580 = vmatpush2.msra.mxu0 0.0
    %5581 = vmatprep.subr.mxu0 0.0
    %5582 = vmatpush2.msra.mxu0 0.0
    %5583 = vmatprep.subr.mxu0 0.0
    %5584 = vmatpush2.msra.mxu0 0.0
    %5585 = vmatprep.subr.mxu0 0.0
    %5586 = vmatpush2.msra.mxu0 0.0
    %5587 = vmatprep.subr.mxu0 0.0
    %5588 = vmatpush2.msra.mxu0 0.0
    %5589 = vmatprep.subr.mxu0 0.0
    %5590 = vmatpush2.msra.mxu0 0.0
    %5591 = vmatprep.subr.mxu0 0.0
    %5592 = vmatpush2.msra.mxu0 0.0
    %5593 = vmatprep.subr.mxu0 0.0
    %5594 = vmatpush2.msra.mxu0 0.0
    %5595 = vmatprep.subr.mxu0 0.0
    %5596 = vmatpush2.msra.mxu0 0.0
    %5597 = vmatprep.subr.mxu0 0.0
    %5598 = vmatpush2.msra.mxu0 0.0
    %5599 = vmatprep.subr.mxu0 0.0
    %5600 = vmatpush2.msra.mxu0 0.0
    %5601 = vmatprep.subr.mxu0 0.0
    %5602 = vmatpush2.msra.mxu0 0.0
    %5603 = vmatprep.mubr.f32.mxu0 0.0
    %5604 = vmatmul.mubr.f32.gmra.mxu0 %v5534
    %v5605 = vpop.f32.mrf.mxu0
    %v5606 = vadd.f32 %v5525, %v5605
    %v5607 = vpop.f32.mrf.mxu0
    %5608 = vmatprep.mubr.f32.mxu0 0.0
    %5609 = vmatmul.mubr.f32.gmra.mxu0 %v5537
    %v5610 = vpop.f32.mrf.mxu0
    %v5611 = vadd.f32 %v5530, %v5610
    %v5612 = vpop.f32.mrf.mxu0
    %5613 = vdwg.mxu0
    %v5614 = vld [vmem:[%s4917 + $0x1] sm:$0xff]
    %v5615 = vld [vmem:[%s4917 + $0x9] sm:$0x3f]
    %v5617 = vsel %vm101, %v5614, 0
    %v5620 = vsel %vm101, %v5615, 0
    %5622 = vmatprep.subr.mxu0 0.0
    %5623 = vmatpush1.msra.mxu0 0.0
    %5624 = vmatprep.subr.mxu0 0.0
    %5625 = vmatpush1.msra.mxu0 0.0
    %5626 = vmatprep.subr.mxu0 0.0
    %5627 = vmatpush1.msra.mxu0 0.0
    %5628 = vmatprep.subr.mxu0 0.0
    %5629 = vmatpush1.msra.mxu0 0.0
    %5630 = vmatprep.subr.mxu0 0.0
    %5631 = vmatpush1.msra.mxu0 %v2349
    %5632 = vmatprep.subr.mxu0 0.0
    %5633 = vmatpush1.msra.mxu0 %v2348
    %5634 = vmatprep.subr.mxu0 0.0
    %5635 = vmatpush1.msra.mxu0 %v2347
    %5636 = vmatprep.subr.mxu0 0.0
    %5637 = vmatpush1.msra.mxu0 %v2346
    %5638 = vmatprep.subr.mxu0 0.0
    %5639 = vmatpush1.msra.mxu0 %v2345
    %5640 = vmatprep.subr.mxu0 0.0
    %5641 = vmatpush1.msra.mxu0 %v2344
    %5642 = vmatprep.subr.mxu0 0.0
    %5643 = vmatpush1.msra.mxu0 %v2343
    %5644 = vmatprep.subr.mxu0 0.0
    %5645 = vmatpush1.msra.mxu0 %v2342
    %5646 = vmatprep.subr.mxu0 0.0
    %5647 = vmatpush1.msra.mxu0 %v2341
    %5648 = vmatprep.subr.mxu0 0.0
    %5649 = vmatpush1.msra.mxu0 %v2340
    %5650 = vmatprep.subr.mxu0 0.0
    %5651 = vmatpush1.msra.mxu0 %v2339
    %5652 = vmatprep.subr.mxu0 0.0
    %5653 = vmatpush1.msra.mxu0 %v2338
    %5654 = vmatprep.subr.mxu0 0.0
    %5655 = vmatpush2.msra.mxu0 0.0
    %5656 = vmatprep.subr.mxu0 0.0
    %5657 = vmatpush2.msra.mxu0 0.0
    %5658 = vmatprep.subr.mxu0 0.0
    %5659 = vmatpush2.msra.mxu0 0.0
    %5660 = vmatprep.subr.mxu0 0.0
    %5661 = vmatpush2.msra.mxu0 0.0
    %5662 = vmatprep.subr.mxu0 0.0
    %5663 = vmatpush2.msra.mxu0 0.0
    %5664 = vmatprep.subr.mxu0 0.0
    %5665 = vmatpush2.msra.mxu0 0.0
    %5666 = vmatprep.subr.mxu0 0.0
    %5667 = vmatpush2.msra.mxu0 0.0
    %5668 = vmatprep.subr.mxu0 0.0
    %5669 = vmatpush2.msra.mxu0 0.0
    %5670 = vmatprep.subr.mxu0 0.0
    %5671 = vmatpush2.msra.mxu0 0.0
    %5672 = vmatprep.subr.mxu0 0.0
    %5673 = vmatpush2.msra.mxu0 0.0
    %5674 = vmatprep.subr.mxu0 0.0
    %5675 = vmatpush2.msra.mxu0 0.0
    %5676 = vmatprep.subr.mxu0 0.0
    %5677 = vmatpush2.msra.mxu0 0.0
    %5678 = vmatprep.subr.mxu0 0.0
    %5679 = vmatpush2.msra.mxu0 0.0
    %5680 = vmatprep.subr.mxu0 0.0
    %5681 = vmatpush2.msra.mxu0 0.0
    %5682 = vmatprep.subr.mxu0 0.0
    %5683 = vmatpush2.msra.mxu0 0.0
    %5684 = vmatprep.subr.mxu0 0.0
    %5685 = vmatpush2.msra.mxu0 0.0
    %5686 = vmatprep.mubr.f32.mxu0 0.0
    %5687 = vmatmul.mubr.f32.gmra.mxu0 %v5617
    %v5688 = vpop.f32.mrf.mxu0
    %v5689 = vadd.f32 0.0, %v5688
    %v5690 = vpop.f32.mrf.mxu0
    %5691 = vmatprep.mubr.f32.mxu0 0.0
    %5692 = vmatmul.mubr.f32.gmra.mxu0 %v5620
    %v5693 = vpop.f32.mrf.mxu0
    %v5694 = vadd.f32 0.0, %v5693
    %v5695 = vpop.f32.mrf.mxu0
    %5696 = vdwg.mxu0
    %v5697 = vadd.f32 %v5606, %v5689
    %v5698 = vadd.f32 %v5611, %v5694
    %v5699 = vmul.f32 %v5697, %v2355
    %v5700 = vmul.f32 %v5698, %v2355
    %v5701 = vadd.f32 %v5699, %v2362
    %v5702 = vadd.f32 %v5700, %v2362
    %v5703 = vmax.f32 %v5701, 0.0
    %v5704 = vmax.f32 %v5702, 0.0
    %5705 = vmatprep.subr.mxu0 0.0
    %5706 = vmatpush1.msra.mxu0 0.0
    %5707 = vmatprep.subr.mxu0 0.0
    %5708 = vmatpush1.msra.mxu0 0.0
    %5709 = vmatprep.subr.mxu0 0.0
    %5710 = vmatpush1.msra.mxu0 0.0
    %5711 = vmatprep.subr.mxu0 0.0
    %5712 = vmatpush1.msra.mxu0 0.0
    %5713 = vmatprep.subr.mxu0 0.0
    %5714 = vmatpush1.msra.mxu0 %v2336
    %5715 = vmatprep.subr.mxu0 0.0
    %5716 = vmatpush1.msra.mxu0 %v2335
    %5717 = vmatprep.subr.mxu0 0.0
    %5718 = vmatpush1.msra.mxu0 %v2334
    %5719 = vmatprep.subr.mxu0 0.0
    %5720 = vmatpush1.msra.mxu0 %v2333
    %5721 = vmatprep.subr.mxu0 0.0
    %5722 = vmatpush1.msra.mxu0 %v2332
    %5723 = vmatprep.subr.mxu0 0.0
    %5724 = vmatpush1.msra.mxu0 %v2331
    %5725 = vmatprep.subr.mxu0 0.0
    %5726 = vmatpush1.msra.mxu0 %v2330
    %5727 = vmatprep.subr.mxu0 0.0
    %5728 = vmatpush1.msra.mxu0 %v2329
    %5729 = vmatprep.subr.mxu0 0.0
    %5730 = vmatpush1.msra.mxu0 %v2328
    %5731 = vmatprep.subr.mxu0 0.0
    %5732 = vmatpush1.msra.mxu0 %v2327
    %5733 = vmatprep.subr.mxu0 0.0
    %5734 = vmatpush1.msra.mxu0 %v2326
    %5735 = vmatprep.subr.mxu0 0.0
    %5736 = vmatpush1.msra.mxu0 %v2325
    %5737 = vmatprep.subr.mxu0 0.0
    %5738 = vmatpush2.msra.mxu0 0.0
    %5739 = vmatprep.subr.mxu0 0.0
    %5740 = vmatpush2.msra.mxu0 0.0
    %5741 = vmatprep.subr.mxu0 0.0
    %5742 = vmatpush2.msra.mxu0 0.0
    %5743 = vmatprep.subr.mxu0 0.0
    %5744 = vmatpush2.msra.mxu0 0.0
    %5745 = vmatprep.subr.mxu0 0.0
    %5746 = vmatpush2.msra.mxu0 0.0
    %5747 = vmatprep.subr.mxu0 0.0
    %5748 = vmatpush2.msra.mxu0 0.0
    %5749 = vmatprep.subr.mxu0 0.0
    %5750 = vmatpush2.msra.mxu0 0.0
    %5751 = vmatprep.subr.mxu0 0.0
    %5752 = vmatpush2.msra.mxu0 0.0
    %5753 = vmatprep.subr.mxu0 0.0
    %5754 = vmatpush2.msra.mxu0 0.0
    %5755 = vmatprep.subr.mxu0 0.0
    %5756 = vmatpush2.msra.mxu0 0.0
    %5757 = vmatprep.subr.mxu0 0.0
    %5758 = vmatpush2.msra.mxu0 0.0
    %5759 = vmatprep.subr.mxu0 0.0
    %5760 = vmatpush2.msra.mxu0 0.0
    %5761 = vmatprep.subr.mxu0 0.0
    %5762 = vmatpush2.msra.mxu0 0.0
    %5763 = vmatprep.subr.mxu0 0.0
    %5764 = vmatpush2.msra.mxu0 0.0
    %5765 = vmatprep.subr.mxu0 0.0
    %5766 = vmatpush2.msra.mxu0 0.0
    %5767 = vmatprep.subr.mxu0 0.0
    %5768 = vmatpush2.msra.mxu0 0.0
    %5769 = vmatprep.mubr.f32.mxu0 0.0
    %5770 = vmatmul.mubr.f32.gmra.mxu0 %v5617
    %v5771 = vpop.f32.mrf.mxu0
    %v5772 = vadd.f32 0.0, %v5771
    %v5773 = vpop.f32.mrf.mxu0
    %5774 = vmatprep.mubr.f32.mxu0 0.0
    %5775 = vmatmul.mubr.f32.gmra.mxu0 %v5620
    %v5776 = vpop.f32.mrf.mxu0
    %v5777 = vadd.f32 0.0, %v5776
    %v5778 = vpop.f32.mrf.mxu0
    %5779 = vdwg.mxu0
    %5780 = vmatprep.subr.mxu0 0.0
    %5781 = vmatpush1.msra.mxu0 0.0
    %5782 = vmatprep.subr.mxu0 0.0
    %5783 = vmatpush1.msra.mxu0 0.0
    %5784 = vmatprep.subr.mxu0 0.0
    %5785 = vmatpush1.msra.mxu0 0.0
    %5786 = vmatprep.subr.mxu0 0.0
    %5787 = vmatpush1.msra.mxu0 0.0
    %5788 = vmatprep.subr.mxu0 0.0
    %5789 = vmatpush1.msra.mxu0 %v2323
    %5790 = vmatprep.subr.mxu0 0.0
    %5791 = vmatpush1.msra.mxu0 %v2322
    %5792 = vmatprep.subr.mxu0 0.0
    %5793 = vmatpush1.msra.mxu0 %v2321
    %5794 = vmatprep.subr.mxu0 0.0
    %5795 = vmatpush1.msra.mxu0 %v2320
    %5796 = vmatprep.subr.mxu0 0.0
    %5797 = vmatpush1.msra.mxu0 %v2319
    %5798 = vmatprep.subr.mxu0 0.0
    %5799 = vmatpush1.msra.mxu0 %v2318
    %5800 = vmatprep.subr.mxu0 0.0
    %5801 = vmatpush1.msra.mxu0 %v2317
    %5802 = vmatprep.subr.mxu0 0.0
    %5803 = vmatpush1.msra.mxu0 %v2316
    %5804 = vmatprep.subr.mxu0 0.0
    %5805 = vmatpush1.msra.mxu0 %v2315
    %5806 = vmatprep.subr.mxu0 0.0
    %5807 = vmatpush1.msra.mxu0 %v2314
    %5808 = vmatprep.subr.mxu0 0.0
    %5809 = vmatpush1.msra.mxu0 %v2313
    %5810 = vmatprep.subr.mxu0 0.0
    %5811 = vmatpush1.msra.mxu0 %v2312
    %5812 = vmatprep.subr.mxu0 0.0
    %5813 = vmatpush2.msra.mxu0 0.0
    %5814 = vmatprep.subr.mxu0 0.0
    %5815 = vmatpush2.msra.mxu0 0.0
    %5816 = vmatprep.subr.mxu0 0.0
    %5817 = vmatpush2.msra.mxu0 0.0
    %5818 = vmatprep.subr.mxu0 0.0
    %5819 = vmatpush2.msra.mxu0 0.0
    %5820 = vmatprep.subr.mxu0 0.0
    %5821 = vmatpush2.msra.mxu0 0.0
    %5822 = vmatprep.subr.mxu0 0.0
    %5823 = vmatpush2.msra.mxu0 0.0
    %5824 = vmatprep.subr.mxu0 0.0
    %5825 = vmatpush2.msra.mxu0 0.0
    %5826 = vmatprep.subr.mxu0 0.0
    %5827 = vmatpush2.msra.mxu0 0.0
    %5828 = vmatprep.subr.mxu0 0.0
    %5829 = vmatpush2.msra.mxu0 0.0
    %5830 = vmatprep.subr.mxu0 0.0
    %5831 = vmatpush2.msra.mxu0 0.0
    %5832 = vmatprep.subr.mxu0 0.0
    %5833 = vmatpush2.msra.mxu0 0.0
    %5834 = vmatprep.subr.mxu0 0.0
    %5835 = vmatpush2.msra.mxu0 0.0
    %5836 = vmatprep.subr.mxu0 0.0
    %5837 = vmatpush2.msra.mxu0 0.0
    %5838 = vmatprep.subr.mxu0 0.0
    %5839 = vmatpush2.msra.mxu0 0.0
    %5840 = vmatprep.subr.mxu0 0.0
    %5841 = vmatpush2.msra.mxu0 0.0
    %5842 = vmatprep.subr.mxu0 0.0
    %5843 = vmatpush2.msra.mxu0 0.0
    %5844 = vmatprep.mubr.f32.mxu0 0.0
    %5845 = vmatmul.mubr.f32.gmra.mxu0 %v5453
    %v5846 = vpop.f32.mrf.mxu0
    %v5847 = vadd.f32 %v5772, %v5846
    %v5848 = vpop.f32.mrf.mxu0
    %5849 = vmatprep.mubr.f32.mxu0 0.0
    %5850 = vmatmul.mubr.f32.gmra.mxu0 %v5456
    %v5851 = vpop.f32.mrf.mxu0
    %v5852 = vadd.f32 %v5777, %v5851
    %v5853 = vpop.f32.mrf.mxu0
    %5854 = vdwg.mxu0
    %s5855 = scalar_lea.vmem [#allocation4], 112
    %v5856 = vld [vmem:[%s5855 + $0x1] sm:$0xff]
    %v5857 = vld [vmem:[%s5855 + $0x9] sm:$0x3f]
    %v5859 = vsel %vm101, %v5856, 0
    %v5862 = vsel %vm101, %v5857, 0
    %5864 = vmatprep.subr.mxu0 0.0
    %5865 = vmatpush1.msra.mxu0 0.0
    %5866 = vmatprep.subr.mxu0 0.0
    %5867 = vmatpush1.msra.mxu0 0.0
    %5868 = vmatprep.subr.mxu0 0.0
    %5869 = vmatpush1.msra.mxu0 0.0
    %5870 = vmatprep.subr.mxu0 0.0
    %5871 = vmatpush1.msra.mxu0 0.0
    %5872 = vmatprep.subr.mxu0 0.0
    %5873 = vmatpush1.msra.mxu0 %v2349
    %5874 = vmatprep.subr.mxu0 0.0
    %5875 = vmatpush1.msra.mxu0 %v2348
    %5876 = vmatprep.subr.mxu0 0.0
    %5877 = vmatpush1.msra.mxu0 %v2347
    %5878 = vmatprep.subr.mxu0 0.0
    %5879 = vmatpush1.msra.mxu0 %v2346
    %5880 = vmatprep.subr.mxu0 0.0
    %5881 = vmatpush1.msra.mxu0 %v2345
    %5882 = vmatprep.subr.mxu0 0.0
    %5883 = vmatpush1.msra.mxu0 %v2344
    %5884 = vmatprep.subr.mxu0 0.0
    %5885 = vmatpush1.msra.mxu0 %v2343
    %5886 = vmatprep.subr.mxu0 0.0
    %5887 = vmatpush1.msra.mxu0 %v2342
    %5888 = vmatprep.subr.mxu0 0.0
    %5889 = vmatpush1.msra.mxu0 %v2341
    %5890 = vmatprep.subr.mxu0 0.0
    %5891 = vmatpush1.msra.mxu0 %v2340
    %5892 = vmatprep.subr.mxu0 0.0
    %5893 = vmatpush1.msra.mxu0 %v2339
    %5894 = vmatprep.subr.mxu0 0.0
    %5895 = vmatpush1.msra.mxu0 %v2338
    %5896 = vmatprep.subr.mxu0 0.0
    %5897 = vmatpush2.msra.mxu0 0.0
    %5898 = vmatprep.subr.mxu0 0.0
    %5899 = vmatpush2.msra.mxu0 0.0
    %5900 = vmatprep.subr.mxu0 0.0
    %5901 = vmatpush2.msra.mxu0 0.0
    %5902 = vmatprep.subr.mxu0 0.0
    %5903 = vmatpush2.msra.mxu0 0.0
    %5904 = vmatprep.subr.mxu0 0.0
    %5905 = vmatpush2.msra.mxu0 0.0
    %5906 = vmatprep.subr.mxu0 0.0
    %5907 = vmatpush2.msra.mxu0 0.0
    %5908 = vmatprep.subr.mxu0 0.0
    %5909 = vmatpush2.msra.mxu0 0.0
    %5910 = vmatprep.subr.mxu0 0.0
    %5911 = vmatpush2.msra.mxu0 0.0
    %5912 = vmatprep.subr.mxu0 0.0
    %5913 = vmatpush2.msra.mxu0 0.0
    %5914 = vmatprep.subr.mxu0 0.0
    %5915 = vmatpush2.msra.mxu0 0.0
    %5916 = vmatprep.subr.mxu0 0.0
    %5917 = vmatpush2.msra.mxu0 0.0
    %5918 = vmatprep.subr.mxu0 0.0
    %5919 = vmatpush2.msra.mxu0 0.0
    %5920 = vmatprep.subr.mxu0 0.0
    %5921 = vmatpush2.msra.mxu0 0.0
    %5922 = vmatprep.subr.mxu0 0.0
    %5923 = vmatpush2.msra.mxu0 0.0
    %5924 = vmatprep.subr.mxu0 0.0
    %5925 = vmatpush2.msra.mxu0 0.0
    %5926 = vmatprep.subr.mxu0 0.0
    %5927 = vmatpush2.msra.mxu0 0.0
    %5928 = vmatprep.mubr.f32.mxu0 0.0
    %5929 = vmatmul.mubr.f32.gmra.mxu0 %v5859
    %v5930 = vpop.f32.mrf.mxu0
    %v5931 = vadd.f32 0.0, %v5930
    %v5932 = vpop.f32.mrf.mxu0
    %5933 = vmatprep.mubr.f32.mxu0 0.0
    %5934 = vmatmul.mubr.f32.gmra.mxu0 %v5862
    %v5935 = vpop.f32.mrf.mxu0
    %v5936 = vadd.f32 0.0, %v5935
    %v5937 = vpop.f32.mrf.mxu0
    %5938 = vdwg.mxu0
    %v5939 = vadd.f32 %v5847, %v5931
    %v5940 = vadd.f32 %v5852, %v5936
    %v5941 = vmul.f32 %v5939, %v2355
    %v5942 = vmul.f32 %v5940, %v2355
    %v5943 = vadd.f32 %v5941, %v2362
    %v5944 = vadd.f32 %v5942, %v2362
    %v5945 = vmax.f32 %v5943, 0.0
    %v5946 = vmax.f32 %v5944, 0.0
    %v5947 = vmax.f32 %v5703, %v5945
    %v5948 = vmax.f32 %v5704, %v5946
    %5949 = vst.msk [vmem:[#allocation6] sm:$0xff] %vm118, %v5947
    %5950 = vst.msk [vmem:[#allocation6 + $0x8] sm:$0x3f] %vm5440, %v5948
    %v5951 = vld [vmem:[#allocation6] ss:$2 sm:$0x7f]
    %v5952 = vld [vmem:[%s1653] ss:$2 sm:$0x7f]
    %v5953 = vmax.f32 %v5951, %v5952
    %s5954 = scalar_lea.vmem [#allocation5], 8
    %5955 = vst.msk [vmem:[%s5954] sm:$0x7f] %vm5445, %v5953
    %v5956 = vld [vmem:[#allocation5] sm:$0x1]
    %v5957 = vld [vmem:[#allocation5 + $0x8] sm:$0x1]
    %v5958 = vld [vmem:[%s10] sm:$0xff]
    %v5959 = vld [vmem:[%s10 + $0x8] sm:$0xff]
    %v5960 = vld [vmem:[%s10 + $0x10] sm:$0xff]
    %v5961 = vld [vmem:[%s10 + $0x18] sm:$0xff]
    %v5962 = vld [vmem:[%s10 + $0x20] sm:$0xff]
    %v5963 = vld [vmem:[%s10 + $0x28] sm:$0xff]
    %v5964 = vld [vmem:[%s10 + $0x30] sm:$0xff]
    %v5965 = vld [vmem:[%s10 + $0x38] sm:$0xff]
    %v5966 = vld [vmem:[#allocation5 + $0x1] sm:$0x1]
    %v5967 = vld [vmem:[#allocation5 + $0x9] sm:$0x1]
    %s5968 = scalar_lea.vmem %s10, 64
    %v5969 = vld [vmem:[%s5968] sm:$0xff]
    %v5970 = vld [vmem:[%s5968 + $0x8] sm:$0xff]
    %v5971 = vld [vmem:[%s5968 + $0x10] sm:$0xff]
    %v5972 = vld [vmem:[%s5968 + $0x18] sm:$0xff]
    %v5973 = vld [vmem:[%s5968 + $0x20] sm:$0xff]
    %v5974 = vld [vmem:[%s5968 + $0x28] sm:$0xff]
    %v5975 = vld [vmem:[%s5968 + $0x30] sm:$0xff]
    %v5976 = vld [vmem:[%s5968 + $0x38] sm:$0xff]
    %v5979 = vrot.slane %v5967, 7
    %vm5980 = vcmask 1041409
    %v5981 = vsel %vm5980, %v5979, %v5966
    %v5982 = vsel %vm118, %v5981, 0
    %5984 = vmatprep.subr.mxu0 0.0
    %5985 = vmatpush1.msra.mxu0 0.0
    %5986 = vmatprep.subr.mxu0 0.0
    %5987 = vmatpush1.msra.mxu0 0.0
    %5988 = vmatprep.subr.mxu0 0.0
    %5989 = vmatpush1.msra.mxu0 0.0
    %5990 = vmatprep.subr.mxu0 0.0
    %5991 = vmatpush1.msra.mxu0 0.0
    %5992 = vmatprep.subr.mxu0 0.0
    %5993 = vmatpush1.msra.mxu0 0.0
    %5994 = vmatprep.subr.mxu0 0.0
    %5995 = vmatpush1.msra.mxu0 0.0
    %5996 = vmatprep.subr.mxu0 0.0
    %5997 = vmatpush1.msra.mxu0 0.0
    %5998 = vmatprep.subr.mxu0 0.0
    %5999 = vmatpush1.msra.mxu0 0.0
    %6000 = vmatprep.subr.mxu0 0.0
    %6001 = vmatpush1.msra.mxu0 %v5976
    %6002 = vmatprep.subr.mxu0 0.0
    %6003 = vmatpush1.msra.mxu0 %v5975
    %6004 = vmatprep.subr.mxu0 0.0
    %6005 = vmatpush1.msra.mxu0 %v5974
    %6006 = vmatprep.subr.mxu0 0.0
    %6007 = vmatpush1.msra.mxu0 %v5973
    %6008 = vmatprep.subr.mxu0 0.0
    %6009 = vmatpush1.msra.mxu0 %v5972
    %6010 = vmatprep.subr.mxu0 0.0
    %6011 = vmatpush1.msra.mxu0 %v5971
    %6012 = vmatprep.subr.mxu0 0.0
    %6013 = vmatpush1.msra.mxu0 %v5970
    %6014 = vmatprep.subr.mxu0 0.0
    %6015 = vmatpush1.msra.mxu0 %v5969
    %6016 = vmatprep.subr.mxu0 0.0
    %6017 = vmatpush2.msra.mxu0 0.0
    %6018 = vmatprep.subr.mxu0 0.0
    %6019 = vmatpush2.msra.mxu0 0.0
    %6020 = vmatprep.subr.mxu0 0.0
    %6021 = vmatpush2.msra.mxu0 0.0
    %6022 = vmatprep.subr.mxu0 0.0
    %6023 = vmatpush2.msra.mxu0 0.0
    %6024 = vmatprep.subr.mxu0 0.0
    %6025 = vmatpush2.msra.mxu0 0.0
    %6026 = vmatprep.subr.mxu0 0.0
    %6027 = vmatpush2.msra.mxu0 0.0
    %6028 = vmatprep.subr.mxu0 0.0
    %6029 = vmatpush2.msra.mxu0 0.0
    %6030 = vmatprep.subr.mxu0 0.0
    %6031 = vmatpush2.msra.mxu0 0.0
    %6032 = vmatprep.subr.mxu0 0.0
    %6033 = vmatpush2.msra.mxu0 0.0
    %6034 = vmatprep.subr.mxu0 0.0
    %6035 = vmatpush2.msra.mxu0 0.0
    %6036 = vmatprep.subr.mxu0 0.0
    %6037 = vmatpush2.msra.mxu0 0.0
    %6038 = vmatprep.subr.mxu0 0.0
    %6039 = vmatpush2.msra.mxu0 0.0
    %6040 = vmatprep.subr.mxu0 0.0
    %6041 = vmatpush2.msra.mxu0 0.0
    %6042 = vmatprep.subr.mxu0 0.0
    %6043 = vmatpush2.msra.mxu0 0.0
    %6044 = vmatprep.subr.mxu0 0.0
    %6045 = vmatpush2.msra.mxu0 0.0
    %6046 = vmatprep.subr.mxu0 0.0
    %6047 = vmatpush2.msra.mxu0 0.0
    %6048 = vmatprep.mubr.f32.mxu0 0.0
    %6049 = vmatmul.mubr.f32.gmra.mxu0 %v5982
    %v6050 = vpop.f32.mrf.mxu0
    %v6051 = vadd.f32 0.0, %v6050
    %v6052 = vpop.f32.mrf.mxu0
    %6053 = vdwg.mxu0
    %v6056 = vrot.slane %v5957, 7
    %v6057 = vsel %vm5980, %v6056, %v5956
    %v6058 = vsel %vm118, %v6057, 0
    %6060 = vmatprep.subr.mxu0 0.0
    %6061 = vmatpush1.msra.mxu0 0.0
    %6062 = vmatprep.subr.mxu0 0.0
    %6063 = vmatpush1.msra.mxu0 0.0
    %6064 = vmatprep.subr.mxu0 0.0
    %6065 = vmatpush1.msra.mxu0 0.0
    %6066 = vmatprep.subr.mxu0 0.0
    %6067 = vmatpush1.msra.mxu0 0.0
    %6068 = vmatprep.subr.mxu0 0.0
    %6069 = vmatpush1.msra.mxu0 0.0
    %6070 = vmatprep.subr.mxu0 0.0
    %6071 = vmatpush1.msra.mxu0 0.0
    %6072 = vmatprep.subr.mxu0 0.0
    %6073 = vmatpush1.msra.mxu0 0.0
    %6074 = vmatprep.subr.mxu0 0.0
    %6075 = vmatpush1.msra.mxu0 0.0
    %6076 = vmatprep.subr.mxu0 0.0
    %6077 = vmatpush1.msra.mxu0 %v5965
    %6078 = vmatprep.subr.mxu0 0.0
    %6079 = vmatpush1.msra.mxu0 %v5964
    %6080 = vmatprep.subr.mxu0 0.0
    %6081 = vmatpush1.msra.mxu0 %v5963
    %6082 = vmatprep.subr.mxu0 0.0
    %6083 = vmatpush1.msra.mxu0 %v5962
    %6084 = vmatprep.subr.mxu0 0.0
    %6085 = vmatpush1.msra.mxu0 %v5961
    %6086 = vmatprep.subr.mxu0 0.0
    %6087 = vmatpush1.msra.mxu0 %v5960
    %6088 = vmatprep.subr.mxu0 0.0
    %6089 = vmatpush1.msra.mxu0 %v5959
    %6090 = vmatprep.subr.mxu0 0.0
    %6091 = vmatpush1.msra.mxu0 %v5958
    %6092 = vmatprep.subr.mxu0 0.0
    %6093 = vmatpush2.msra.mxu0 0.0
    %6094 = vmatprep.subr.mxu0 0.0
    %6095 = vmatpush2.msra.mxu0 0.0
    %6096 = vmatprep.subr.mxu0 0.0
    %6097 = vmatpush2.msra.mxu0 0.0
    %6098 = vmatprep.subr.mxu0 0.0
    %6099 = vmatpush2.msra.mxu0 0.0
    %6100 = vmatprep.subr.mxu0 0.0
    %6101 = vmatpush2.msra.mxu0 0.0
    %6102 = vmatprep.subr.mxu0 0.0
    %6103 = vmatpush2.msra.mxu0 0.0
    %6104 = vmatprep.subr.mxu0 0.0
    %6105 = vmatpush2.msra.mxu0 0.0
    %6106 = vmatprep.subr.mxu0 0.0
    %6107 = vmatpush2.msra.mxu0 0.0
    %6108 = vmatprep.subr.mxu0 0.0
    %6109 = vmatpush2.msra.mxu0 0.0
    %6110 = vmatprep.subr.mxu0 0.0
    %6111 = vmatpush2.msra.mxu0 0.0
    %6112 = vmatprep.subr.mxu0 0.0
    %6113 = vmatpush2.msra.mxu0 0.0
    %6114 = vmatprep.subr.mxu0 0.0
    %6115 = vmatpush2.msra.mxu0 0.0
    %6116 = vmatprep.subr.mxu0 0.0
    %6117 = vmatpush2.msra.mxu0 0.0
    %6118 = vmatprep.subr.mxu0 0.0
    %6119 = vmatpush2.msra.mxu0 0.0
    %6120 = vmatprep.subr.mxu0 0.0
    %6121 = vmatpush2.msra.mxu0 0.0
    %6122 = vmatprep.subr.mxu0 0.0
    %6123 = vmatpush2.msra.mxu0 0.0
    %6124 = vmatprep.mubr.f32.mxu0 0.0
    %6125 = vmatmul.mubr.f32.gmra.mxu0 %v6058
    %v6126 = vpop.f32.mrf.mxu0
    %v6127 = vadd.f32 %v6051, %v6126
    %v6128 = vpop.f32.mrf.mxu0
    %6129 = vdwg.mxu0
    %v6130 = vld [vmem:[#allocation5 + $0x2] sm:$0x1]
    %v6131 = vld [vmem:[#allocation5 + $0xa] sm:$0x1]
    %s6132 = scalar_lea.vmem %s10, 128
    %v6133 = vld [vmem:[%s6132] sm:$0xff]
    %v6134 = vld [vmem:[%s6132 + $0x8] sm:$0xff]
    %v6135 = vld [vmem:[%s6132 + $0x10] sm:$0xff]
    %v6136 = vld [vmem:[%s6132 + $0x18] sm:$0xff]
    %v6137 = vld [vmem:[%s6132 + $0x20] sm:$0xff]
    %v6138 = vld [vmem:[%s6132 + $0x28] sm:$0xff]
    %v6139 = vld [vmem:[%s6132 + $0x30] sm:$0xff]
    %v6140 = vld [vmem:[%s6132 + $0x38] sm:$0xff]
    %v6143 = vrot.slane %v6131, 7
    %v6144 = vsel %vm5980, %v6143, %v6130
    %v6145 = vsel %vm118, %v6144, 0
    %6147 = vmatprep.subr.mxu0 0.0
    %6148 = vmatpush1.msra.mxu0 0.0
    %6149 = vmatprep.subr.mxu0 0.0
    %6150 = vmatpush1.msra.mxu0 0.0
    %6151 = vmatprep.subr.mxu0 0.0
    %6152 = vmatpush1.msra.mxu0 0.0
    %6153 = vmatprep.subr.mxu0 0.0
    %6154 = vmatpush1.msra.mxu0 0.0
    %6155 = vmatprep.subr.mxu0 0.0
    %6156 = vmatpush1.msra.mxu0 0.0
    %6157 = vmatprep.subr.mxu0 0.0
    %6158 = vmatpush1.msra.mxu0 0.0
    %6159 = vmatprep.subr.mxu0 0.0
    %6160 = vmatpush1.msra.mxu0 0.0
    %6161 = vmatprep.subr.mxu0 0.0
    %6162 = vmatpush1.msra.mxu0 0.0
    %6163 = vmatprep.subr.mxu0 0.0
    %6164 = vmatpush1.msra.mxu0 %v6140
    %6165 = vmatprep.subr.mxu0 0.0
    %6166 = vmatpush1.msra.mxu0 %v6139
    %6167 = vmatprep.subr.mxu0 0.0
    %6168 = vmatpush1.msra.mxu0 %v6138
    %6169 = vmatprep.subr.mxu0 0.0
    %6170 = vmatpush1.msra.mxu0 %v6137
    %6171 = vmatprep.subr.mxu0 0.0
    %6172 = vmatpush1.msra.mxu0 %v6136
    %6173 = vmatprep.subr.mxu0 0.0
    %6174 = vmatpush1.msra.mxu0 %v6135
    %6175 = vmatprep.subr.mxu0 0.0
    %6176 = vmatpush1.msra.mxu0 %v6134
    %6177 = vmatprep.subr.mxu0 0.0
    %6178 = vmatpush1.msra.mxu0 %v6133
    %6179 = vmatprep.subr.mxu0 0.0
    %6180 = vmatpush2.msra.mxu0 0.0
    %6181 = vmatprep.subr.mxu0 0.0
    %6182 = vmatpush2.msra.mxu0 0.0
    %6183 = vmatprep.subr.mxu0 0.0
    %6184 = vmatpush2.msra.mxu0 0.0
    %6185 = vmatprep.subr.mxu0 0.0
    %6186 = vmatpush2.msra.mxu0 0.0
    %6187 = vmatprep.subr.mxu0 0.0
    %6188 = vmatpush2.msra.mxu0 0.0
    %6189 = vmatprep.subr.mxu0 0.0
    %6190 = vmatpush2.msra.mxu0 0.0
    %6191 = vmatprep.subr.mxu0 0.0
    %6192 = vmatpush2.msra.mxu0 0.0
    %6193 = vmatprep.subr.mxu0 0.0
    %6194 = vmatpush2.msra.mxu0 0.0
    %6195 = vmatprep.subr.mxu0 0.0
    %6196 = vmatpush2.msra.mxu0 0.0
    %6197 = vmatprep.subr.mxu0 0.0
    %6198 = vmatpush2.msra.mxu0 0.0
    %6199 = vmatprep.subr.mxu0 0.0
    %6200 = vmatpush2.msra.mxu0 0.0
    %6201 = vmatprep.subr.mxu0 0.0
    %6202 = vmatpush2.msra.mxu0 0.0
    %6203 = vmatprep.subr.mxu0 0.0
    %6204 = vmatpush2.msra.mxu0 0.0
    %6205 = vmatprep.subr.mxu0 0.0
    %6206 = vmatpush2.msra.mxu0 0.0
    %6207 = vmatprep.subr.mxu0 0.0
    %6208 = vmatpush2.msra.mxu0 0.0
    %6209 = vmatprep.subr.mxu0 0.0
    %6210 = vmatpush2.msra.mxu0 0.0
    %6211 = vmatprep.mubr.f32.mxu0 0.0
    %6212 = vmatmul.mubr.f32.gmra.mxu0 %v6145
    %v6213 = vpop.f32.mrf.mxu0
    %v6214 = vadd.f32 0.0, %v6213
    %v6215 = vpop.f32.mrf.mxu0
    %6216 = vdwg.mxu0
    %v6217 = vadd.f32 %v6127, %v6214
    %v6218 = vld [vmem:[#allocation5 + $0x3] sm:$0x1]
    %v6219 = vld [vmem:[#allocation5 + $0xb] sm:$0x1]
    %s6220 = scalar_lea.vmem %s10, 192
    %v6221 = vld [vmem:[%s6220] sm:$0xff]
    %v6222 = vld [vmem:[%s6220 + $0x8] sm:$0xff]
    %v6223 = vld [vmem:[%s6220 + $0x10] sm:$0xff]
    %v6224 = vld [vmem:[%s6220 + $0x18] sm:$0xff]
    %v6225 = vld [vmem:[%s6220 + $0x20] sm:$0xff]
    %v6226 = vld [vmem:[%s6220 + $0x28] sm:$0xff]
    %v6227 = vld [vmem:[%s6220 + $0x30] sm:$0xff]
    %v6228 = vld [vmem:[%s6220 + $0x38] sm:$0xff]
    %v6231 = vrot.slane %v6219, 7
    %v6232 = vsel %vm5980, %v6231, %v6218
    %v6233 = vsel %vm118, %v6232, 0
    %6235 = vmatprep.subr.mxu0 0.0
    %6236 = vmatpush1.msra.mxu0 0.0
    %6237 = vmatprep.subr.mxu0 0.0
    %6238 = vmatpush1.msra.mxu0 0.0
    %6239 = vmatprep.subr.mxu0 0.0
    %6240 = vmatpush1.msra.mxu0 0.0
    %6241 = vmatprep.subr.mxu0 0.0
    %6242 = vmatpush1.msra.mxu0 0.0
    %6243 = vmatprep.subr.mxu0 0.0
    %6244 = vmatpush1.msra.mxu0 0.0
    %6245 = vmatprep.subr.mxu0 0.0
    %6246 = vmatpush1.msra.mxu0 0.0
    %6247 = vmatprep.subr.mxu0 0.0
    %6248 = vmatpush1.msra.mxu0 0.0
    %6249 = vmatprep.subr.mxu0 0.0
    %6250 = vmatpush1.msra.mxu0 0.0
    %6251 = vmatprep.subr.mxu0 0.0
    %6252 = vmatpush1.msra.mxu0 %v6228
    %6253 = vmatprep.subr.mxu0 0.0
    %6254 = vmatpush1.msra.mxu0 %v6227
    %6255 = vmatprep.subr.mxu0 0.0
    %6256 = vmatpush1.msra.mxu0 %v6226
    %6257 = vmatprep.subr.mxu0 0.0
    %6258 = vmatpush1.msra.mxu0 %v6225
    %6259 = vmatprep.subr.mxu0 0.0
    %6260 = vmatpush1.msra.mxu0 %v6224
    %6261 = vmatprep.subr.mxu0 0.0
    %6262 = vmatpush1.msra.mxu0 %v6223
    %6263 = vmatprep.subr.mxu0 0.0
    %6264 = vmatpush1.msra.mxu0 %v6222
    %6265 = vmatprep.subr.mxu0 0.0
    %6266 = vmatpush1.msra.mxu0 %v6221
    %6267 = vmatprep.subr.mxu0 0.0
    %6268 = vmatpush2.msra.mxu0 0.0
    %6269 = vmatprep.subr.mxu0 0.0
    %6270 = vmatpush2.msra.mxu0 0.0
    %6271 = vmatprep.subr.mxu0 0.0
    %6272 = vmatpush2.msra.mxu0 0.0
    %6273 = vmatprep.subr.mxu0 0.0
    %6274 = vmatpush2.msra.mxu0 0.0
    %6275 = vmatprep.subr.mxu0 0.0
    %6276 = vmatpush2.msra.mxu0 0.0
    %6277 = vmatprep.subr.mxu0 0.0
    %6278 = vmatpush2.msra.mxu0 0.0
    %6279 = vmatprep.subr.mxu0 0.0
    %6280 = vmatpush2.msra.mxu0 0.0
    %6281 = vmatprep.subr.mxu0 0.0
    %6282 = vmatpush2.msra.mxu0 0.0
    %6283 = vmatprep.subr.mxu0 0.0
    %6284 = vmatpush2.msra.mxu0 0.0
    %6285 = vmatprep.subr.mxu0 0.0
    %6286 = vmatpush2.msra.mxu0 0.0
    %6287 = vmatprep.subr.mxu0 0.0
    %6288 = vmatpush2.msra.mxu0 0.0
    %6289 = vmatprep.subr.mxu0 0.0
    %6290 = vmatpush2.msra.mxu0 0.0
    %6291 = vmatprep.subr.mxu0 0.0
    %6292 = vmatpush2.msra.mxu0 0.0
    %6293 = vmatprep.subr.mxu0 0.0
    %6294 = vmatpush2.msra.mxu0 0.0
    %6295 = vmatprep.subr.mxu0 0.0
    %6296 = vmatpush2.msra.mxu0 0.0
    %6297 = vmatprep.subr.mxu0 0.0
    %6298 = vmatpush2.msra.mxu0 0.0
    %6299 = vmatprep.mubr.f32.mxu0 0.0
    %6300 = vmatmul.mubr.f32.gmra.mxu0 %v6233
    %v6301 = vpop.f32.mrf.mxu0
    %v6302 = vadd.f32 0.0, %v6301
    %v6303 = vpop.f32.mrf.mxu0
    %6304 = vdwg.mxu0
    %v6305 = vadd.f32 %v6217, %v6302
    %v6306 = vld [vmem:[#allocation5 + $0x4] sm:$0x1]
    %v6307 = vld [vmem:[#allocation5 + $0xc] sm:$0x1]
    %s6308 = scalar_lea.vmem %s10, 256
    %v6309 = vld [vmem:[%s6308] sm:$0xff]
    %v6310 = vld [vmem:[%s6308 + $0x8] sm:$0xff]
    %v6311 = vld [vmem:[%s6308 + $0x10] sm:$0xff]
    %v6312 = vld [vmem:[%s6308 + $0x18] sm:$0xff]
    %v6313 = vld [vmem:[%s6308 + $0x20] sm:$0xff]
    %v6314 = vld [vmem:[%s6308 + $0x28] sm:$0xff]
    %v6315 = vld [vmem:[%s6308 + $0x30] sm:$0xff]
    %v6316 = vld [vmem:[%s6308 + $0x38] sm:$0xff]
    %v6319 = vrot.slane %v6307, 7
    %v6320 = vsel %vm5980, %v6319, %v6306
    %v6321 = vsel %vm118, %v6320, 0
    %6323 = vmatprep.subr.mxu0 0.0
    %6324 = vmatpush1.msra.mxu0 0.0
    %6325 = vmatprep.subr.mxu0 0.0
    %6326 = vmatpush1.msra.mxu0 0.0
    %6327 = vmatprep.subr.mxu0 0.0
    %6328 = vmatpush1.msra.mxu0 0.0
    %6329 = vmatprep.subr.mxu0 0.0
    %6330 = vmatpush1.msra.mxu0 0.0
    %6331 = vmatprep.subr.mxu0 0.0
    %6332 = vmatpush1.msra.mxu0 0.0
    %6333 = vmatprep.subr.mxu0 0.0
    %6334 = vmatpush1.msra.mxu0 0.0
    %6335 = vmatprep.subr.mxu0 0.0
    %6336 = vmatpush1.msra.mxu0 0.0
    %6337 = vmatprep.subr.mxu0 0.0
    %6338 = vmatpush1.msra.mxu0 0.0
    %6339 = vmatprep.subr.mxu0 0.0
    %6340 = vmatpush1.msra.mxu0 %v6316
    %6341 = vmatprep.subr.mxu0 0.0
    %6342 = vmatpush1.msra.mxu0 %v6315
    %6343 = vmatprep.subr.mxu0 0.0
    %6344 = vmatpush1.msra.mxu0 %v6314
    %6345 = vmatprep.subr.mxu0 0.0
    %6346 = vmatpush1.msra.mxu0 %v6313
    %6347 = vmatprep.subr.mxu0 0.0
    %6348 = vmatpush1.msra.mxu0 %v6312
    %6349 = vmatprep.subr.mxu0 0.0
    %6350 = vmatpush1.msra.mxu0 %v6311
    %6351 = vmatprep.subr.mxu0 0.0
    %6352 = vmatpush1.msra.mxu0 %v6310
    %6353 = vmatprep.subr.mxu0 0.0
    %6354 = vmatpush1.msra.mxu0 %v6309
    %6355 = vmatprep.subr.mxu0 0.0
    %6356 = vmatpush2.msra.mxu0 0.0
    %6357 = vmatprep.subr.mxu0 0.0
    %6358 = vmatpush2.msra.mxu0 0.0
    %6359 = vmatprep.subr.mxu0 0.0
    %6360 = vmatpush2.msra.mxu0 0.0
    %6361 = vmatprep.subr.mxu0 0.0
    %6362 = vmatpush2.msra.mxu0 0.0
    %6363 = vmatprep.subr.mxu0 0.0
    %6364 = vmatpush2.msra.mxu0 0.0
    %6365 = vmatprep.subr.mxu0 0.0
    %6366 = vmatpush2.msra.mxu0 0.0
    %6367 = vmatprep.subr.mxu0 0.0
    %6368 = vmatpush2.msra.mxu0 0.0
    %6369 = vmatprep.subr.mxu0 0.0
    %6370 = vmatpush2.msra.mxu0 0.0
    %6371 = vmatprep.subr.mxu0 0.0
    %6372 = vmatpush2.msra.mxu0 0.0
    %6373 = vmatprep.subr.mxu0 0.0
    %6374 = vmatpush2.msra.mxu0 0.0
    %6375 = vmatprep.subr.mxu0 0.0
    %6376 = vmatpush2.msra.mxu0 0.0
    %6377 = vmatprep.subr.mxu0 0.0
    %6378 = vmatpush2.msra.mxu0 0.0
    %6379 = vmatprep.subr.mxu0 0.0
    %6380 = vmatpush2.msra.mxu0 0.0
    %6381 = vmatprep.subr.mxu0 0.0
    %6382 = vmatpush2.msra.mxu0 0.0
    %6383 = vmatprep.subr.mxu0 0.0
    %6384 = vmatpush2.msra.mxu0 0.0
    %6385 = vmatprep.subr.mxu0 0.0
    %6386 = vmatpush2.msra.mxu0 0.0
    %6387 = vmatprep.mubr.f32.mxu0 0.0
    %6388 = vmatmul.mubr.f32.gmra.mxu0 %v6321
    %v6389 = vpop.f32.mrf.mxu0
    %v6390 = vadd.f32 0.0, %v6389
    %v6391 = vpop.f32.mrf.mxu0
    %6392 = vdwg.mxu0
    %v6393 = vadd.f32 %v6305, %v6390
    %v6394 = vld [vmem:[#allocation5 + $0x5] sm:$0x1]
    %v6395 = vld [vmem:[#allocation5 + $0xd] sm:$0x1]
    %s6396 = scalar_lea.vmem %s10, 320
    %v6397 = vld [vmem:[%s6396] sm:$0xff]
    %v6398 = vld [vmem:[%s6396 + $0x8] sm:$0xff]
    %v6399 = vld [vmem:[%s6396 + $0x10] sm:$0xff]
    %v6400 = vld [vmem:[%s6396 + $0x18] sm:$0xff]
    %v6401 = vld [vmem:[%s6396 + $0x20] sm:$0xff]
    %v6402 = vld [vmem:[%s6396 + $0x28] sm:$0xff]
    %v6403 = vld [vmem:[%s6396 + $0x30] sm:$0xff]
    %v6404 = vld [vmem:[%s6396 + $0x38] sm:$0xff]
    %v6407 = vrot.slane %v6395, 7
    %v6408 = vsel %vm5980, %v6407, %v6394
    %v6409 = vsel %vm118, %v6408, 0
    %6411 = vmatprep.subr.mxu0 0.0
    %6412 = vmatpush1.msra.mxu0 0.0
    %6413 = vmatprep.subr.mxu0 0.0
    %6414 = vmatpush1.msra.mxu0 0.0
    %6415 = vmatprep.subr.mxu0 0.0
    %6416 = vmatpush1.msra.mxu0 0.0
    %6417 = vmatprep.subr.mxu0 0.0
    %6418 = vmatpush1.msra.mxu0 0.0
    %6419 = vmatprep.subr.mxu0 0.0
    %6420 = vmatpush1.msra.mxu0 0.0
    %6421 = vmatprep.subr.mxu0 0.0
    %6422 = vmatpush1.msra.mxu0 0.0
    %6423 = vmatprep.subr.mxu0 0.0
    %6424 = vmatpush1.msra.mxu0 0.0
    %6425 = vmatprep.subr.mxu0 0.0
    %6426 = vmatpush1.msra.mxu0 0.0
    %6427 = vmatprep.subr.mxu0 0.0
    %6428 = vmatpush1.msra.mxu0 %v6404
    %6429 = vmatprep.subr.mxu0 0.0
    %6430 = vmatpush1.msra.mxu0 %v6403
    %6431 = vmatprep.subr.mxu0 0.0
    %6432 = vmatpush1.msra.mxu0 %v6402
    %6433 = vmatprep.subr.mxu0 0.0
    %6434 = vmatpush1.msra.mxu0 %v6401
    %6435 = vmatprep.subr.mxu0 0.0
    %6436 = vmatpush1.msra.mxu0 %v6400
    %6437 = vmatprep.subr.mxu0 0.0
    %6438 = vmatpush1.msra.mxu0 %v6399
    %6439 = vmatprep.subr.mxu0 0.0
    %6440 = vmatpush1.msra.mxu0 %v6398
    %6441 = vmatprep.subr.mxu0 0.0
    %6442 = vmatpush1.msra.mxu0 %v6397
    %6443 = vmatprep.subr.mxu0 0.0
    %6444 = vmatpush2.msra.mxu0 0.0
    %6445 = vmatprep.subr.mxu0 0.0
    %6446 = vmatpush2.msra.mxu0 0.0
    %6447 = vmatprep.subr.mxu0 0.0
    %6448 = vmatpush2.msra.mxu0 0.0
    %6449 = vmatprep.subr.mxu0 0.0
    %6450 = vmatpush2.msra.mxu0 0.0
    %6451 = vmatprep.subr.mxu0 0.0
    %6452 = vmatpush2.msra.mxu0 0.0
    %6453 = vmatprep.subr.mxu0 0.0
    %6454 = vmatpush2.msra.mxu0 0.0
    %6455 = vmatprep.subr.mxu0 0.0
    %6456 = vmatpush2.msra.mxu0 0.0
    %6457 = vmatprep.subr.mxu0 0.0
    %6458 = vmatpush2.msra.mxu0 0.0
    %6459 = vmatprep.subr.mxu0 0.0
    %6460 = vmatpush2.msra.mxu0 0.0
    %6461 = vmatprep.subr.mxu0 0.0
    %6462 = vmatpush2.msra.mxu0 0.0
    %6463 = vmatprep.subr.mxu0 0.0
    %6464 = vmatpush2.msra.mxu0 0.0
    %6465 = vmatprep.subr.mxu0 0.0
    %6466 = vmatpush2.msra.mxu0 0.0
    %6467 = vmatprep.subr.mxu0 0.0
    %6468 = vmatpush2.msra.mxu0 0.0
    %6469 = vmatprep.subr.mxu0 0.0
    %6470 = vmatpush2.msra.mxu0 0.0
    %6471 = vmatprep.subr.mxu0 0.0
    %6472 = vmatpush2.msra.mxu0 0.0
    %6473 = vmatprep.subr.mxu0 0.0
    %6474 = vmatpush2.msra.mxu0 0.0
    %6475 = vmatprep.mubr.f32.mxu0 0.0
    %6476 = vmatmul.mubr.f32.gmra.mxu0 %v6409
    %v6477 = vpop.f32.mrf.mxu0
    %v6478 = vadd.f32 0.0, %v6477
    %v6479 = vpop.f32.mrf.mxu0
    %6480 = vdwg.mxu0
    %v6481 = vadd.f32 %v6393, %v6478
    %v6482 = vld [vmem:[#allocation5 + $0x6] sm:$0x1]
    %v6483 = vld [vmem:[#allocation5 + $0xe] sm:$0x1]
    %s6484 = scalar_lea.vmem %s10, 384
    %v6485 = vld [vmem:[%s6484] sm:$0xff]
    %v6486 = vld [vmem:[%s6484 + $0x8] sm:$0xff]
    %v6487 = vld [vmem:[%s6484 + $0x10] sm:$0xff]
    %v6488 = vld [vmem:[%s6484 + $0x18] sm:$0xff]
    %v6489 = vld [vmem:[%s6484 + $0x20] sm:$0xff]
    %v6490 = vld [vmem:[%s6484 + $0x28] sm:$0xff]
    %v6491 = vld [vmem:[%s6484 + $0x30] sm:$0xff]
    %v6492 = vld [vmem:[%s6484 + $0x38] sm:$0xff]
    %v6495 = vrot.slane %v6483, 7
    %v6496 = vsel %vm5980, %v6495, %v6482
    %v6497 = vsel %vm118, %v6496, 0
    %6499 = vmatprep.subr.mxu0 0.0
    %6500 = vmatpush1.msra.mxu0 0.0
    %6501 = vmatprep.subr.mxu0 0.0
    %6502 = vmatpush1.msra.mxu0 0.0
    %6503 = vmatprep.subr.mxu0 0.0
    %6504 = vmatpush1.msra.mxu0 0.0
    %6505 = vmatprep.subr.mxu0 0.0
    %6506 = vmatpush1.msra.mxu0 0.0
    %6507 = vmatprep.subr.mxu0 0.0
    %6508 = vmatpush1.msra.mxu0 0.0
    %6509 = vmatprep.subr.mxu0 0.0
    %6510 = vmatpush1.msra.mxu0 0.0
    %6511 = vmatprep.subr.mxu0 0.0
    %6512 = vmatpush1.msra.mxu0 0.0
    %6513 = vmatprep.subr.mxu0 0.0
    %6514 = vmatpush1.msra.mxu0 0.0
    %6515 = vmatprep.subr.mxu0 0.0
    %6516 = vmatpush1.msra.mxu0 %v6492
    %6517 = vmatprep.subr.mxu0 0.0
    %6518 = vmatpush1.msra.mxu0 %v6491
    %6519 = vmatprep.subr.mxu0 0.0
    %6520 = vmatpush1.msra.mxu0 %v6490
    %6521 = vmatprep.subr.mxu0 0.0
    %6522 = vmatpush1.msra.mxu0 %v6489
    %6523 = vmatprep.subr.mxu0 0.0
    %6524 = vmatpush1.msra.mxu0 %v6488
    %6525 = vmatprep.subr.mxu0 0.0
    %6526 = vmatpush1.msra.mxu0 %v6487
    %6527 = vmatprep.subr.mxu0 0.0
    %6528 = vmatpush1.msra.mxu0 %v6486
    %6529 = vmatprep.subr.mxu0 0.0
    %6530 = vmatpush1.msra.mxu0 %v6485
    %6531 = vmatprep.subr.mxu0 0.0
    %6532 = vmatpush2.msra.mxu0 0.0
    %6533 = vmatprep.subr.mxu0 0.0
    %6534 = vmatpush2.msra.mxu0 0.0
    %6535 = vmatprep.subr.mxu0 0.0
    %6536 = vmatpush2.msra.mxu0 0.0
    %6537 = vmatprep.subr.mxu0 0.0
    %6538 = vmatpush2.msra.mxu0 0.0
    %6539 = vmatprep.subr.mxu0 0.0
    %6540 = vmatpush2.msra.mxu0 0.0
    %6541 = vmatprep.subr.mxu0 0.0
    %6542 = vmatpush2.msra.mxu0 0.0
    %6543 = vmatprep.subr.mxu0 0.0
    %6544 = vmatpush2.msra.mxu0 0.0
    %6545 = vmatprep.subr.mxu0 0.0
    %6546 = vmatpush2.msra.mxu0 0.0
    %6547 = vmatprep.subr.mxu0 0.0
    %6548 = vmatpush2.msra.mxu0 0.0
    %6549 = vmatprep.subr.mxu0 0.0
    %6550 = vmatpush2.msra.mxu0 0.0
    %6551 = vmatprep.subr.mxu0 0.0
    %6552 = vmatpush2.msra.mxu0 0.0
    %6553 = vmatprep.subr.mxu0 0.0
    %6554 = vmatpush2.msra.mxu0 0.0
    %6555 = vmatprep.subr.mxu0 0.0
    %6556 = vmatpush2.msra.mxu0 0.0
    %6557 = vmatprep.subr.mxu0 0.0
    %6558 = vmatpush2.msra.mxu0 0.0
    %6559 = vmatprep.subr.mxu0 0.0
    %6560 = vmatpush2.msra.mxu0 0.0
    %6561 = vmatprep.subr.mxu0 0.0
    %6562 = vmatpush2.msra.mxu0 0.0
    %6563 = vmatprep.mubr.f32.mxu0 0.0
    %6564 = vmatmul.mubr.f32.gmra.mxu0 %v6497
    %v6565 = vpop.f32.mrf.mxu0
    %v6566 = vadd.f32 0.0, %v6565
    %v6567 = vpop.f32.mrf.mxu0
    %6568 = vdwg.mxu0
    %v6569 = vadd.f32 %v6481, %v6566
    %v6570 = vld [vmem:[%s11] sm:$0x1]
    %v6572 = vlaneseq
    %v6573 = vshrl.u32 %v6572, 7
    %v6574 = vsub.s32 0, %v6573
    %v6575 = vrot.slane %v6570, %v6574
    %v6577 = vmul.f32 %v6569, %v6575
    %v6578 = vld [vmem:[%s12] sm:$0x1]
    %v6580 = vlaneseq
    %v6581 = vshrl.u32 %v6580, 7
    %v6582 = vsub.s32 0, %v6581
    %v6583 = vrot.slane %v6578, %v6582
    %v6585 = vadd.f32 %v6577, %v6583
    %v6586 = vmax.f32 %v6585, 0.0
    %v6587 = vld [vmem:[%s13] sm:$0xff]
    %v6588 = vld [vmem:[%s13 + $0x8] sm:$0xff]
    %v6589 = vld [vmem:[%s13 + $0x10] sm:$0xff]
    %v6590 = vld [vmem:[%s13 + $0x18] sm:$0xff]
    %v6591 = vld [vmem:[%s13 + $0x20] sm:$0xff]
    %v6592 = vld [vmem:[%s13 + $0x28] sm:$0xff]
    %v6593 = vld [vmem:[%s13 + $0x30] sm:$0xff]
    %v6594 = vld [vmem:[%s13 + $0x38] sm:$0xff]
    %v6595 = vld [vmem:[%s13 + $0x40] sm:$0xff]
    %v6596 = vld [vmem:[%s13 + $0x48] sm:$0xff]
    %v6597 = vld [vmem:[%s13 + $0x50] sm:$0xff]
    %v6598 = vld [vmem:[%s13 + $0x58] sm:$0xff]
    %v6599 = vld [vmem:[%s13 + $0x60] sm:$0xff]
    %v6600 = vld [vmem:[%s13 + $0x68] sm:$0xff]
    %v6601 = vld [vmem:[%s13 + $0x70] sm:$0xff]
    %v6602 = vld [vmem:[%s13 + $0x78] sm:$0xff]
    %v6603 = vld [vmem:[%s14] sm:$0x1]
    %v6605 = vlaneseq
    %v6606 = vshrl.u32 %v6605, 7
    %v6607 = vsub.s32 0, %v6606
    %v6608 = vrot.slane %v6603, %v6607
    %6610 = vmatprep.subr.mxu0 0.0
    %6611 = vmatpush1.msra.mxu0 %v6602
    %6612 = vmatprep.subr.mxu0 0.0
    %6613 = vmatpush1.msra.mxu0 %v6601
    %6614 = vmatprep.subr.mxu0 0.0
    %6615 = vmatpush1.msra.mxu0 %v6600
    %6616 = vmatprep.subr.mxu0 0.0
    %6617 = vmatpush1.msra.mxu0 %v6599
    %6618 = vmatprep.subr.mxu0 0.0
    %6619 = vmatpush1.msra.mxu0 %v6598
    %6620 = vmatprep.subr.mxu0 0.0
    %6621 = vmatpush1.msra.mxu0 %v6597
    %6622 = vmatprep.subr.mxu0 0.0
    %6623 = vmatpush1.msra.mxu0 %v6596
    %6624 = vmatprep.subr.mxu0 0.0
    %6625 = vmatpush1.msra.mxu0 %v6595
    %6626 = vmatprep.subr.mxu0 0.0
    %6627 = vmatpush1.msra.mxu0 %v6594
    %6628 = vmatprep.subr.mxu0 0.0
    %6629 = vmatpush1.msra.mxu0 %v6593
    %6630 = vmatprep.subr.mxu0 0.0
    %6631 = vmatpush1.msra.mxu0 %v6592
    %6632 = vmatprep.subr.mxu0 0.0
    %6633 = vmatpush1.msra.mxu0 %v6591
    %6634 = vmatprep.subr.mxu0 0.0
    %6635 = vmatpush1.msra.mxu0 %v6590
    %6636 = vmatprep.subr.mxu0 0.0
    %6637 = vmatpush1.msra.mxu0 %v6589
    %6638 = vmatprep.subr.mxu0 0.0
    %6639 = vmatpush1.msra.mxu0 %v6588
    %6640 = vmatprep.subr.mxu0 0.0
    %6641 = vmatpush1.msra.mxu0 %v6587
    %6642 = vmatprep.subr.mxu0 0.0
    %6643 = vmatpush2.msra.mxu0 0.0
    %6644 = vmatprep.subr.mxu0 0.0
    %6645 = vmatpush2.msra.mxu0 0.0
    %6646 = vmatprep.subr.mxu0 0.0
    %6647 = vmatpush2.msra.mxu0 0.0
    %6648 = vmatprep.subr.mxu0 0.0
    %6649 = vmatpush2.msra.mxu0 0.0
    %6650 = vmatprep.subr.mxu0 0.0
    %6651 = vmatpush2.msra.mxu0 0.0
    %6652 = vmatprep.subr.mxu0 0.0
    %6653 = vmatpush2.msra.mxu0 0.0
    %6654 = vmatprep.subr.mxu0 0.0
    %6655 = vmatpush2.msra.mxu0 0.0
    %6656 = vmatprep.subr.mxu0 0.0
    %6657 = vmatpush2.msra.mxu0 0.0
    %6658 = vmatprep.subr.mxu0 0.0
    %6659 = vmatpush2.msra.mxu0 0.0
    %6660 = vmatprep.subr.mxu0 0.0
    %6661 = vmatpush2.msra.mxu0 0.0
    %6662 = vmatprep.subr.mxu0 0.0
    %6663 = vmatpush2.msra.mxu0 0.0
    %6664 = vmatprep.subr.mxu0 0.0
    %6665 = vmatpush2.msra.mxu0 0.0
    %6666 = vmatprep.subr.mxu0 0.0
    %6667 = vmatpush2.msra.mxu0 0.0
    %6668 = vmatprep.subr.mxu0 0.0
    %6669 = vmatpush2.msra.mxu0 0.0
    %6670 = vmatprep.subr.mxu0 0.0
    %6671 = vmatpush2.msra.mxu0 0.0
    %6672 = vmatprep.subr.mxu0 0.0
    %6673 = vmatpush2.msra.mxu0 0.0
    %6674 = vmatprep.mubr.f32.mxu0 0.0
    %6675 = vmatmul.mubr.f32.gmra.mxu0 %v6586
    %v6676 = vpop.f32.mrf.mxu0
    %v6677 = vadd.f32 %v6608, %v6676
    %v6678 = vpop.f32.mrf.mxu0
    %6679 = vdwg.mxu0
    %vm6680 = vcmask 9216
    %6681 = vst.msk [vmem:[#allocation7] sm:$0x3] %vm6680, %v6677
    // Predicated region
    $region62: #{net_forward.1} parent=1 // pred_check
      _
    $region63: #{net_forward.1} parent=1 // pred_check_branch
      %6683 = sbr.rel (0) target = $region65
    $region64: #{net_forward.1} parent=1 // pred_region
      %s6685 = ssub.s32 32, 32
      %6686 = vsyncadd [#allocation8], %s6685
      %s6688 = sshll.u32 [#allocation7], 4
      %s6689 = int_to_ptr.vmem [resolvable:$true] %s6688
      %6691 = dma.vmem_to_hbm [thread:$0]  %s6689, 32, %s15, [#allocation8]
    $region65: #{net_forward.1} parent=1 // pred_fallthru
      _
    // Predicated region
    $region66: #{net_forward.1} parent=1 // pred_check
      _
    $region67: #{net_forward.1} parent=1 // pred_check_branch
      %6693 = sbr.rel (0) target = $region69
    $region68: #{net_forward.1} parent=1 // pred_region
      %6694 = dma.done [#allocation8], 32
    $region69: #{net_forward.1} parent=1 // pred_fallthru
      _
    %6695 = vsyncpa [#allocation8], 1

</llo_original>
